<compile_context>
chip_gen: v7x
topology: tpu7x:2x2x1
jax: 0.10.0
libtpu: 0.0.40
codegen_flags: <defaults>
</compile_context>

<pallas_src>
import math
import jax
import jax.numpy as jnp
from jax import lax
from jax.experimental import pallas as pl
from jax.experimental.pallas import tpu as pltpu

W0 = 30.0                                  # SIREN frequency (baked into weights)
_HP = jax.lax.Precision.HIGHEST            # full-f32 matmuls everywhere


def siren_kernel(x_ref, w_ref, b_ref, o_ref):
    # x_ref: (1, tile_n, in_size)   natural-layout point tile (no wrapper transpose)
    # w_ref: (out_size, in_size)    w0 * linear.weight (VMEM-resident, DMA'd once)
    # b_ref: (1, out_size, 1)       w0 * (linear.bias + shift[batch])
    # o_ref: (1, tile_n, out_size)  natural-layout output tile
    x = x_ref[0]                                            # (tile_n, in_size)
    # Contract the feature axis of both operands: result is (out_size, tile_n),
    # i.e. points sit on the 128 lanes -> full-lane vregs for the sin chain.
    y = lax.dot_general(
        w_ref[...], x,
        dimension_numbers=(((1,), (1,)), ((), ())),
        preferred_element_type=jnp.float32,
        precision=_HP)                                      # (out_size, tile_n)
    s = jnp.sin(y + b_ref[0])                               # (out,1) bias broadcasts over lanes
    # In-kernel XLU transpose back to (tile_n, out_size) so the (B, N, F) interface
    # is preserved without an extra HBM round trip in the wrapper.
    o_ref[0] = jnp.transpose(s).astype(o_ref.dtype)


def latent_modulated_siren_layer(x, latent, factors, params, w0=W0, tile_n=1024):
    B, N, in_size = x.shape
    out_size = params["w"].shape[0]
    latent_dim = params["wm"].shape[1]
    half = out_size // 2
    assert 2 * half == out_size, "concatenation conditioning needs even out_size"
    assert latent.shape == (B, latent_dim) and factors.shape == (B, latent_dim)

    # --- per-batch shift, hoisted out of the kernel (exactly mirrors the module) ---
    shift_condition = jnp.dot(factors, params["wc"].T, precision=_HP) + params["bc"]
    shift_modulation = jnp.dot(latent, params["wm"].T, precision=_HP) + params["bm"]
    shift = jnp.concatenate([shift_condition, shift_modulation], axis=-1)  # (B, out)

    # --- fold w0 into weight-side preprocessing ---
    w_scaled = (w0 * params["w"]).astype(jnp.float32)                  # (out, in)
    b_fused = (w0 * (params["b"][None, :] + shift))[:, :, None]        # (B, out, 1)
    b_fused = b_fused.astype(jnp.float32)

    x = x.astype(jnp.float32)

    tile_n = min(tile_n, N)
    assert N % tile_n == 0, "N must be divisible by tile_n (no ragged-tail handling)"
    assert tile_n % 128 == 0 or tile_n == N, "tile_n should be a multiple of 128"
    # TODO(synk): ragged-tail handling for N not divisible by tile_n.

    grid = (B, N // tile_n)
    cost = pl.CostEstimate(
        flops=2 * B * N * in_size * out_size,
        transcendentals=B * N * out_size,
        bytes_accessed=4 * (x.size + B * N * out_size + w_scaled.size + b_fused.size),
    )

    out = pl.pallas_call(
        siren_kernel,
        out_shape=jax.ShapeDtypeStruct((B, N, out_size), jnp.float32),
        grid_spec=pltpu.PrefetchScalarGridSpec(
            num_scalar_prefetch=0,
            grid=grid,
            in_specs=[
                pl.BlockSpec((1, tile_n, in_size), lambda bi, ni: (bi, ni, 0)),
                pl.BlockSpec((out_size, in_size), lambda bi, ni: (0, 0)),
                pl.BlockSpec((1, out_size, 1), lambda bi, ni: (bi, 0, 0)),
            ],
            out_specs=pl.BlockSpec((1, tile_n, out_size), lambda bi, ni: (bi, ni, 0)),
        ),
        compiler_params=pltpu.CompilerParams(
            dimension_semantics=("parallel", "parallel"),
            vmem_limit_bytes=32 * 1024 * 1024,   # keep <= 32 MiB (v7x has 64 MiB physical)
        ),
        cost_estimate=cost,
    )(x, w_scaled, b_fused)

    return out                                   # already in the module's (B, N, out)


def reference(x, latent, factors, params, w0=W0):
    """Pure-JAX mirror of the PyTorch forward (is_last=False, shift-only path)."""
    y = jnp.dot(x, params["w"].T, precision=_HP) + params["b"]
    shift_condition = jnp.dot(factors, params["wc"].T, precision=_HP) + params["bc"]
    shift_modulation = jnp.dot(latent, params["wm"].T, precision=_HP) + params["bm"]
    shift = jnp.concatenate([shift_condition, shift_modulation], axis=-1)[:, None, :]
    return jnp.sin(w0 * (1.0 * y + shift))       # scale = 1.0 (modulate_scale=False)


def init_params(key, in_size, out_size, latent_dim, w0=W0, is_first=False):
    half = out_size // 2
    k = jax.random.split(key, 6)
    # SIREN init for the main linear layer.
    w_std = (1.0 / in_size) if is_first else math.sqrt(6.0 / in_size) / w0
    w = jax.random.uniform(k[0], (out_size, in_size), jnp.float32, -w_std, w_std)
    b = jax.random.uniform(k[1], (out_size,), jnp.float32, -w_std, w_std)
    # Default PyTorch Linear init (uniform +- 1/sqrt(fan_in)) for modulation layers.
    m_std = 1.0 / math.sqrt(latent_dim)
    wc = jax.random.uniform(k[2], (half, latent_dim), jnp.float32, -m_std, m_std)
    bc = jax.random.uniform(k[3], (half,), jnp.float32, -m_std, m_std)
    wm = jax.random.uniform(k[4], (half, latent_dim), jnp.float32, -m_std, m_std)
    bm = jax.random.uniform(k[5], (half,), jnp.float32, -m_std, m_std)
    return {"w": w, "b": b, "wc": wc, "bc": bc, "wm": wm, "bm": bm}


if __name__ == "__main__":
    B, N = 2, 2048                    # grid (2, 2) at the default tile_n=1024
    in_size, out_size = 32, 32
    latent_dim = 64

    key = jax.random.PRNGKey(0)
    kx, kl, kf, kp = jax.random.split(key, 4)
    x = jax.random.normal(kx, (B, N, in_size), jnp.float32)
    latent = jax.random.normal(kl, (B, latent_dim), jnp.float32)
    factors = jax.random.normal(kf, (B, latent_dim), jnp.float32)
    params = init_params(kp, in_size, out_size, latent_dim)

    out = latent_modulated_siren_layer(x, latent, factors, params)
    out = jax.block_until_ready(out)

    ref = reference(x, latent, factors, params)
    assert out.shape == (B, N, out_size)
    # sin(w0 * .) with w0=30 amplifies f32 accumulation-order noise; 1e-3 keeps the
    # check meaningful (real bugs are O(1)) while robust to rounding differences.
    assert jnp.allclose(out, ref, atol=1e-3, rtol=1e-3), "mismatch vs reference"
    print("KERNEL_OK")
</pallas_src>

<mosaic_0001>
module attributes {stable_mosaic.version = 11 : i64} {
  func.func @siren_kernel(%arg0: i32, %arg1: i32, %arg2: memref<1x1024x32xf32, #tpu.memory_space<vmem>>, %arg3: memref<32x32xf32, #tpu.memory_space<vmem>>, %arg4: memref<1x32x1xf32, #tpu.memory_space<vmem>>, %arg5: memref<1x1024x32xf32, #tpu.memory_space<vmem>>) attributes {dimension_semantics = [#tpu.dimension_semantics<parallel>, #tpu.dimension_semantics<parallel>], iteration_bounds = array<i64: 2, 2>, scalar_prefetch = 0 : i64, scratch_operands = 0 : i64, tpu.core_type = #tpu.core_type<tc>, window_params = [{transform_indices = @transform_0, window_bounds = array<i64: 1, 1024, 32>}, {pipeline_mode = #tpu.pipeline_mode<synchronous>, transform_indices = @transform_1, window_bounds = array<i64: 32, 32>}, {transform_indices = @transform_2, window_bounds = array<i64: 1, 32, 1>}, {transform_indices = @transform_3, window_bounds = array<i64: 1, 1024, 32>}]} {
    %c0 = arith.constant 0 : index
    %c0_0 = arith.constant 0 : index
    %c0_1 = arith.constant 0 : index
    %0 = vector.load %arg2[%c0, %c0_0, %c0_1] : memref<1x1024x32xf32, #tpu.memory_space<vmem>>, vector<1x1024x32xf32>
    %1 = vector.shape_cast %0 : vector<1x1024x32xf32> to vector<1024x32xf32>
    %c0_2 = arith.constant 0 : index
    %c0_3 = arith.constant 0 : index
    %2 = vector.load %arg3[%c0_2, %c0_3] : memref<32x32xf32, #tpu.memory_space<vmem>>, vector<32x32xf32>
    %cst = arith.constant dense<0.000000e+00> : vector<32x1024xf32>
    %3 = tpu.matmul %2, %1, %cst {dimension_numbers = #tpu.dot_dimension_numbers<[1], [1], [0], [0], [0, 0, 1, 0], [], []>, precision = #tpu.contract_precision<fp32>} : vector<32x32xf32>, vector<1024x32xf32>, vector<32x1024xf32> -> vector<32x1024xf32>
    %c0_4 = arith.constant 0 : index
    %c0_5 = arith.constant 0 : index
    %c0_6 = arith.constant 0 : index
    %4 = vector.load %arg4[%c0_4, %c0_5, %c0_6] : memref<1x32x1xf32, #tpu.memory_space<vmem>>, vector<1x32x1xf32>
    %5 = vector.shape_cast %4 : vector<1x32x1xf32> to vector<32x1xf32>
    %6 = vector.broadcast %5 : vector<32x1xf32> to vector<32x1024xf32>
    %7 = arith.addf %3, %6 : vector<32x1024xf32>
    %8 = math.sin %7 : vector<32x1024xf32>
    %9 = tpu.transpose %8, [1, 0] : vector<32x1024xf32> -> vector<1024x32xf32>
    %c0_7 = arith.constant 0 : index
    %c0_8 = arith.constant 0 : index
    %c0_9 = arith.constant 0 : index
    %10 = vector.load %arg5[%c0_7, %c0_8, %c0_9] : memref<1x1024x32xf32, #tpu.memory_space<vmem>>, vector<1x1024x32xf32>
    %11 = vector.shape_cast %10 : vector<1x1024x32xf32> to vector<1024x32xf32>
    %12 = vector.shape_cast %9 : vector<1024x32xf32> to vector<1x1024x32xf32>
    tpu.vector_store %arg5[%c0_7, %c0_8, %c0_9], %12 {strides = array<i32>} : memref<1x1024x32xf32, #tpu.memory_space<vmem>>, vector<1x1024x32xf32>,
    return
  }
  func.func @transform_0(%arg0: i32, %arg1: i32) -> (i32, i32, i32) {
    %c0_i32 = arith.constant 0 : i32
    %c0_i32_0 = arith.constant 0 : i32
    return %arg0, %arg1, %c0_i32 : i32, i32, i32
  }
  func.func @transform_1(%arg0: i32, %arg1: i32) -> (i32, i32) {
    %c0_i32 = arith.constant 0 : i32
    %c0_i32_0 = arith.constant 0 : i32
    %c0_i32_1 = arith.constant 0 : i32
    return %c0_i32, %c0_i32_0 : i32, i32
  }
  func.func @transform_2(%arg0: i32, %arg1: i32) -> (i32, i32, i32) {
    %c0_i32 = arith.constant 0 : i32
    %c0_i32_0 = arith.constant 0 : i32
    %c0_i32_1 = arith.constant 0 : i32
    return %arg0, %c0_i32, %c0_i32_0 : i32, i32, i32
  }
  func.func @transform_3(%arg0: i32, %arg1: i32) -> (i32, i32, i32) {
    %c0_i32 = arith.constant 0 : i32
    %c0_i32_0 = arith.constant 0 : i32
    return %arg0, %arg1, %c0_i32 : i32, i32, i32
  }
}

</mosaic_0001>

<llo_original>
// kernel: tpu_custom_call.1
$region0: #{tpu_custom_call.1}
  #allocation0 [shape = 'u32[]', space=smem, size = 0x4, offset = 0x4, fixed_abs, tag = 'smem constant byte address 0x4 - core index']
  #allocation1 [shape = 'u32[144,128]{1,0:T(1,128)}', space=vmem, size = 0x12000, scoped, tag = 'internal scratch']
  %s0 = inlined_call_operand.vmem [shape: f32[2,2048,32], index: 0, kind: input, shape index: {}]
  %s1 = inlined_call_operand.vmem [shape: f32[32,32], index: 1, kind: input, shape index: {}]
  %s2 = inlined_call_operand.vmem [shape: f32[2,32,1], index: 2, kind: input, shape index: {}]
  %s3 = inlined_call_operand.vmem [shape: f32[2,2048,32], index: 3, kind: output, shape index: {}]
  %s4 = sld [smem:[#allocation0]]
  $region45: #{tpu_custom_call.1} parent=0
    _
  %s6 = ssub.s32 1, %s4
  %s7 = scalar_select 0, %s6, %s4
  loop: start=0, step=1, limit=6
  $region2: #{tpu_custom_call.1} parent=0 // loop_pre_header
    _
  $region3: #{tpu_custom_call.1} parent=0 // loop_header
    %s9 = sphi 0, %s13
    %p10 = scmp.ge.s32.totalorder %s9, 6
    %s16 = sphi 0, %s28
    %s17 = sphi 0, %s24
    %s18 = sphi 0, %s16
    %s19 = sphi 0, %s17
    %s20 = sphi 0, %s18
    %s21 = sphi 0, %s19
    %s33 = sphi 0, %s35
    %s36 = sphi 0, %s33
    %s37 = sphi 0, %s36
    %s53 = sphi 0, %s37
    %s57 = sphi 0, %s57
    %s59 = sphi 0, %s57
    %s60 = sphi 0, %s59
    %s74 = sphi 0, %s60
    %s80 = sphi 0, %s82
    %s83 = sphi 0, %s80
    %s84 = sphi 0, %s83
    %s100 = sphi 0, %s84
    %s108 = sphi 0, %s110
    %s111 = sphi 0, %s108
    %s112 = sphi 0, %s111
    %s128 = sphi 0, %s112
  $region4: #{tpu_custom_call.1} parent=0 // loop_header_branch
    %12 = sbr.rel (%p10) target = $region8
  $region5: #{tpu_custom_call.1} parent=0 // loop_body
    %s14 = ssub.s32 %s9, 1
    %s15 = ssub.s32 %s9, 2
    %s22 = sadd.s32 1, %s17
    %p23 = scmp.ge.s32.totalorder %s22, 2
    %s24 = scalar_select %p23, 0, %s22
    %s25 = sadd.s32 1, %s16
    %s26 = scalar_select %p23, %s25, %s16
    %p27 = scmp.ge.s32.totalorder %s26, 2
    %s28 = scalar_select %p27, 0, %s26
    %s29 = ssub.s32 %s16, %s28
    %s30 = ssub.s32 %s17, %s24
    %s31 = sor.u32 %s29, %s30
    %p32 = scmp.eq.s32.totalorder %s31, 0
    %s34 = sadd.s32 %s33, 1
    %s35 = scalar_select %p32, %s33, %s34
    %p38 = pneg %p32
    %p39 = scmp.eq.s32.totalorder %s9, 3
    %p40 = por %p38, %p39
    %p41 = scmp.ne.s32.totalorder %s33, %s36
    %p42 = scmp.eq.s32.totalorder %s9, 0
    %p43 = por %p41, %p42
    %p44 = scmp.ne.s32.totalorder %s33, %s36
    %p45 = scmp.eq.s32.totalorder %s14, 3
    %p46 = por %p44, %p45
    %p47 = scmp.ne.s32.totalorder %s36, %s37
    %p48 = scmp.eq.s32.totalorder %s14, 0
    %p49 = por %p47, %p48
    %p50 = scmp.ne.s32.totalorder %s36, %s37
    %p51 = scmp.eq.s32.totalorder %s15, 3
    %p52 = por %p50, %p51
    %p54 = scmp.ne.s32.totalorder %s37, %s53
    %p55 = scmp.eq.s32.totalorder %s15, 0
    %p56 = por %p54, %p55
    %s58 = sadd.s32 %s57, 1
    %p61 = scmp.eq.s32.totalorder %s9, 3
    %p62 = scmp.ne.s32.totalorder %s57, %s59
    %p63 = scmp.eq.s32.totalorder %s9, 0
    %p64 = por %p62, %p63
    %p65 = scmp.ne.s32.totalorder %s57, %s59
    %p66 = scmp.eq.s32.totalorder %s14, 3
    %p67 = por %p65, %p66
    %p68 = scmp.ne.s32.totalorder %s59, %s60
    %p69 = scmp.eq.s32.totalorder %s14, 0
    %p70 = por %p68, %p69
    %p71 = scmp.ne.s32.totalorder %s59, %s60
    %p72 = scmp.eq.s32.totalorder %s15, 3
    %p73 = por %p71, %p72
    %p75 = scmp.ne.s32.totalorder %s60, %s74
    %p76 = scmp.eq.s32.totalorder %s15, 0
    %p77 = por %p75, %p76
    %s78 = ssub.s32 %s16, %s28
    %p79 = scmp.eq.s32.totalorder %s78, 0
    %s81 = sadd.s32 %s80, 1
    %s82 = scalar_select %p79, %s80, %s81
    %p85 = pneg %p79
    %p86 = scmp.eq.s32.totalorder %s9, 3
    %p87 = por %p85, %p86
    %p88 = scmp.ne.s32.totalorder %s80, %s83
    %p89 = scmp.eq.s32.totalorder %s9, 0
    %p90 = por %p88, %p89
    %p91 = scmp.ne.s32.totalorder %s80, %s83
    %p92 = scmp.eq.s32.totalorder %s14, 3
    %p93 = por %p91, %p92
    %p94 = scmp.ne.s32.totalorder %s83, %s84
    %p95 = scmp.eq.s32.totalorder %s14, 0
    %p96 = por %p94, %p95
    %p97 = scmp.ne.s32.totalorder %s83, %s84
    %p98 = scmp.eq.s32.totalorder %s15, 3
    %p99 = por %p97, %p98
    %p101 = scmp.ne.s32.totalorder %s84, %s100
    %p102 = scmp.eq.s32.totalorder %s15, 0
    %p103 = por %p101, %p102
    %s104 = ssub.s32 %s16, %s28
    %s105 = ssub.s32 %s17, %s24
    %s106 = sor.u32 %s104, %s105
    %p107 = scmp.eq.s32.totalorder %s106, 0
    %s109 = sadd.s32 %s108, 1
    %s110 = scalar_select %p107, %s108, %s109
    %p113 = pneg %p107
    %p114 = scmp.eq.s32.totalorder %s9, 3
    %p115 = por %p113, %p114
    %p116 = scmp.ne.s32.totalorder %s108, %s111
    %p117 = scmp.eq.s32.totalorder %s9, 0
    %p118 = por %p116, %p117
    %p119 = scmp.ne.s32.totalorder %s108, %s111
    %p120 = scmp.eq.s32.totalorder %s14, 3
    %p121 = por %p119, %p120
    %p122 = scmp.ne.s32.totalorder %s111, %s112
    %p123 = scmp.eq.s32.totalorder %s14, 0
    %p124 = por %p122, %p123
    %p125 = scmp.ne.s32.totalorder %s111, %s112
    %p126 = scmp.eq.s32.totalorder %s15, 3
    %p127 = por %p125, %p126
    %p129 = scmp.ne.s32.totalorder %s112, %s128
    %p130 = scmp.eq.s32.totalorder %s15, 0
    %p131 = por %p129, %p130
    %p132 = scmp.le.s32.totalorder 1, %s9
    %p133 = scmp.lt.s32.totalorder %s9, 5
    %p134 = pnand %p132, %p133
    %p135 = pneg %p134
    // Predicated region
    $region9: #{tpu_custom_call.1} parent=5 // pred_check
      _
    $region10: #{tpu_custom_call.1} parent=5 // pred_check_branch
      %137 = sbr.rel (%p134) target = $region12
    $region11: #{tpu_custom_call.1} parent=5 // pred_region
      %s138 = ssub.s32 %s9, 1
      // Predicated region
      $region13: #{tpu_custom_call.1} parent=11 // pred_check
        %p139 = pneg %p70
      $region14: #{tpu_custom_call.1} parent=11 // pred_check_branch
        %141 = sbr.rel (%p139) target = $region16
      $region15: #{tpu_custom_call.1} parent=11 // pred_region
        _
      $region16: #{tpu_custom_call.1} parent=11 // pred_fallthru
        _
    $region12: #{tpu_custom_call.1} parent=5 // pred_fallthru
      _
    %p142 = scmp.lt.s32.totalorder %s9, 4
    // Predicated region
    $region17: #{tpu_custom_call.1} parent=5 // pred_check
      %p143 = pneg %p142
    $region18: #{tpu_custom_call.1} parent=5 // pred_check_branch
      %145 = sbr.rel (%p143) target = $region20
    $region19: #{tpu_custom_call.1} parent=5 // pred_region
      // Predicated region
      $region21: #{tpu_custom_call.1} parent=19 // pred_check
        %p146 = pneg %p43
      $region22: #{tpu_custom_call.1} parent=19 // pred_check_branch
        %148 = sbr.rel (%p146) target = $region24
      $region23: #{tpu_custom_call.1} parent=19 // pred_region
        %s149 = smul.u32 128, %s17
        %p150 = scmp.lt.s32.totalorder %s16, 1
        %s151 = scalar_select %p150, %s16, 1
        %p152 = scmp.lt.s32.totalorder %s149, 255
        %s153 = scalar_select %p152, %s149, 255
        %s154 = smul.addr %s151, 256
        %s155 = sadd.s32 %s153, %s154
        %s156 = smul.addr %s155, 8
        %s157 = scalar_lea.vmem %s0, %s156
        %s158 = smul.u32 128, %s17
      $region24: #{tpu_custom_call.1} parent=19 // pred_fallthru
        _
      // Predicated region
      $region25: #{tpu_custom_call.1} parent=19 // pred_check
        %p159 = pneg %p90
      $region26: #{tpu_custom_call.1} parent=19 // pred_check_branch
        %161 = sbr.rel (%p159) target = $region28
      $region27: #{tpu_custom_call.1} parent=19 // pred_region
        %p162 = scmp.lt.s32.totalorder %s16, 1
        %s163 = scalar_select %p162, %s16, 1
        %s164 = smul.addr %s163, 4
        %s165 = smul.addr %s164, 8
        %s166 = scalar_lea.vmem %s2, %s165
      $region28: #{tpu_custom_call.1} parent=19 // pred_fallthru
        _
    $region20: #{tpu_custom_call.1} parent=5 // pred_fallthru
      _
    %p167 = scmp.le.s32.totalorder 1, %s9
    %p168 = scmp.lt.s32.totalorder %s9, 5
    %p169 = pnand %p167, %p168
    %p170 = pneg %p169
    // Predicated region
    $region29: #{tpu_custom_call.1} parent=5 // pred_check
      _
    $region30: #{tpu_custom_call.1} parent=5 // pred_check_branch
      %172 = sbr.rel (%p169) target = $region32
    $region31: #{tpu_custom_call.1} parent=5 // pred_region
      %s173 = ssub.s32 %s9, 1
      %s174 = smul.u32 128, %s19
      %p175 = scmp.lt.s32.totalorder %s18, 1
      %s176 = scalar_select %p175, %s18, 1
      %p177 = scmp.lt.s32.totalorder %s174, 255
      %s178 = scalar_select %p177, %s174, 255
      %s179 = smul.addr %s176, 256
      %s180 = sadd.s32 %s178, %s179
      %s181 = smul.addr %s180, 8
      %s182 = scalar_lea.vmem %s0, %s181
      %p183 = pneg %p49
      %p184 = pneg %p46
      %p185 = pneg %p70
      %p186 = pneg %p67
      %p187 = scmp.lt.s32.totalorder %s18, 1
      %s188 = scalar_select %p187, %s18, 1
      %s189 = smul.addr %s188, 4
      %s190 = smul.addr %s189, 8
      %s191 = scalar_lea.vmem %s2, %s190
      %p192 = pneg %p96
      %p193 = pneg %p93
      %p194 = pneg %p124
      %p195 = pneg %p121
      %s196 = smul.u32 128, %s19
      %p197 = scmp.lt.s32.totalorder %s18, 1
      %s198 = scalar_select %p197, %s18, 1
      %p199 = scmp.lt.s32.totalorder %s196, 255
      %s200 = scalar_select %p199, %s196, 255
      %s201 = smul.addr %s198, 256
      %s202 = sadd.s32 %s200, %s201
      %s203 = smul.addr %s202, 8
      %s204 = scalar_lea.vmem %s3, %s203
      %s205 = smul.u32 128, %s19
      %p206 = scmp.lt.s32.totalorder %s18, 1
      %s207 = scalar_select %p206, %s18, 1
      %p208 = scmp.lt.s32.totalorder %s205, 255
      %s209 = scalar_select %p208, %s205, 255
      %s210 = smul.addr %s207, 256
      %s211 = sadd.s32 %s209, %s210
      %s212 = smul.addr %s211, 8
      %s213 = scalar_lea.vmem %s0, %s212
      %s214 = smul.u32 128, %s19
      %p215 = scmp.lt.s32.totalorder %s18, 1
      %s216 = scalar_select %p215, %s18, 1
      %s217 = smul.addr %s216, 4
      %s218 = smul.addr %s217, 8
      %s219 = scalar_lea.vmem %s2, %s218
      %s220 = smul.u32 128, %s19
      %p221 = scmp.lt.s32.totalorder %s18, 1
      %s222 = scalar_select %p221, %s18, 1
      %p223 = scmp.lt.s32.totalorder %s220, 255
      %s224 = scalar_select %p223, %s220, 255
      %s225 = smul.addr %s222, 256
      %s226 = sadd.s32 %s224, %s225
      %s227 = smul.addr %s226, 8
      %s228 = scalar_lea.vmem %s3, %s227
      %s229 = smul.u32 128, %s19
      %v230 = vld [vmem:[%s213] sm:$0xff]
      %v231 = vld [vmem:[%s213 + $0x8] sm:$0xff]
      %v232 = vld [vmem:[%s213 + $0x10] sm:$0xff]
      %v233 = vld [vmem:[%s213 + $0x18] sm:$0xff]
      %v234 = vld [vmem:[%s213 + $0x20] sm:$0xff]
      %v235 = vld [vmem:[%s213 + $0x28] sm:$0xff]
      %v236 = vld [vmem:[%s213 + $0x30] sm:$0xff]
      %v237 = vld [vmem:[%s213 + $0x38] sm:$0xff]
      %v238 = vld [vmem:[%s213 + $0x40] sm:$0xff]
      %v239 = vld [vmem:[%s213 + $0x48] sm:$0xff]
      %v240 = vld [vmem:[%s213 + $0x50] sm:$0xff]
      %v241 = vld [vmem:[%s213 + $0x58] sm:$0xff]
      %v242 = vld [vmem:[%s213 + $0x60] sm:$0xff]
      %v243 = vld [vmem:[%s213 + $0x68] sm:$0xff]
      %v244 = vld [vmem:[%s213 + $0x70] sm:$0xff]
      %v245 = vld [vmem:[%s213 + $0x78] sm:$0xff]
      %v246 = vld [vmem:[%s213 + $0x80] sm:$0xff]
      %v247 = vld [vmem:[%s213 + $0x88] sm:$0xff]
      %v248 = vld [vmem:[%s213 + $0x90] sm:$0xff]
      %v249 = vld [vmem:[%s213 + $0x98] sm:$0xff]
      %v250 = vld [vmem:[%s213 + $0xa0] sm:$0xff]
      %v251 = vld [vmem:[%s213 + $0xa8] sm:$0xff]
      %v252 = vld [vmem:[%s213 + $0xb0] sm:$0xff]
      %v253 = vld [vmem:[%s213 + $0xb8] sm:$0xff]
      %v254 = vld [vmem:[%s213 + $0xc0] sm:$0xff]
      %v255 = vld [vmem:[%s213 + $0xc8] sm:$0xff]
      %v256 = vld [vmem:[%s213 + $0xd0] sm:$0xff]
      %v257 = vld [vmem:[%s213 + $0xd8] sm:$0xff]
      %v258 = vld [vmem:[%s213 + $0xe0] sm:$0xff]
      %v259 = vld [vmem:[%s213 + $0xe8] sm:$0xff]
      %v260 = vld [vmem:[%s213 + $0xf0] sm:$0xff]
      %v261 = vld [vmem:[%s213 + $0xf8] sm:$0xff]
      %v262 = vld [vmem:[%s213 + $0x100] sm:$0xff]
      %v263 = vld [vmem:[%s213 + $0x108] sm:$0xff]
      %v264 = vld [vmem:[%s213 + $0x110] sm:$0xff]
      %v265 = vld [vmem:[%s213 + $0x118] sm:$0xff]
      %v266 = vld [vmem:[%s213 + $0x120] sm:$0xff]
      %v267 = vld [vmem:[%s213 + $0x128] sm:$0xff]
      %v268 = vld [vmem:[%s213 + $0x130] sm:$0xff]
      %v269 = vld [vmem:[%s213 + $0x138] sm:$0xff]
      %v270 = vld [vmem:[%s213 + $0x140] sm:$0xff]
      %v271 = vld [vmem:[%s213 + $0x148] sm:$0xff]
      %v272 = vld [vmem:[%s213 + $0x150] sm:$0xff]
      %v273 = vld [vmem:[%s213 + $0x158] sm:$0xff]
      %v274 = vld [vmem:[%s213 + $0x160] sm:$0xff]
      %v275 = vld [vmem:[%s213 + $0x168] sm:$0xff]
      %v276 = vld [vmem:[%s213 + $0x170] sm:$0xff]
      %v277 = vld [vmem:[%s213 + $0x178] sm:$0xff]
      %v278 = vld [vmem:[%s213 + $0x180] sm:$0xff]
      %v279 = vld [vmem:[%s213 + $0x188] sm:$0xff]
      %v280 = vld [vmem:[%s213 + $0x190] sm:$0xff]
      %v281 = vld [vmem:[%s213 + $0x198] sm:$0xff]
      %v282 = vld [vmem:[%s213 + $0x1a0] sm:$0xff]
      %v283 = vld [vmem:[%s213 + $0x1a8] sm:$0xff]
      %v284 = vld [vmem:[%s213 + $0x1b0] sm:$0xff]
      %v285 = vld [vmem:[%s213 + $0x1b8] sm:$0xff]
      %v286 = vld [vmem:[%s213 + $0x1c0] sm:$0xff]
      %v287 = vld [vmem:[%s213 + $0x1c8] sm:$0xff]
      %v288 = vld [vmem:[%s213 + $0x1d0] sm:$0xff]
      %v289 = vld [vmem:[%s213 + $0x1d8] sm:$0xff]
      %v290 = vld [vmem:[%s213 + $0x1e0] sm:$0xff]
      %v291 = vld [vmem:[%s213 + $0x1e8] sm:$0xff]
      %v292 = vld [vmem:[%s213 + $0x1f0] sm:$0xff]
      %v293 = vld [vmem:[%s213 + $0x1f8] sm:$0xff]
      %v294 = vld [vmem:[%s213 + $0x200] sm:$0xff]
      %v295 = vld [vmem:[%s213 + $0x208] sm:$0xff]
      %v296 = vld [vmem:[%s213 + $0x210] sm:$0xff]
      %v297 = vld [vmem:[%s213 + $0x218] sm:$0xff]
      %v298 = vld [vmem:[%s213 + $0x220] sm:$0xff]
      %v299 = vld [vmem:[%s213 + $0x228] sm:$0xff]
      %v300 = vld [vmem:[%s213 + $0x230] sm:$0xff]
      %v301 = vld [vmem:[%s213 + $0x238] sm:$0xff]
      %v302 = vld [vmem:[%s213 + $0x240] sm:$0xff]
      %v303 = vld [vmem:[%s213 + $0x248] sm:$0xff]
      %v304 = vld [vmem:[%s213 + $0x250] sm:$0xff]
      %v305 = vld [vmem:[%s213 + $0x258] sm:$0xff]
      %v306 = vld [vmem:[%s213 + $0x260] sm:$0xff]
      %v307 = vld [vmem:[%s213 + $0x268] sm:$0xff]
      %v308 = vld [vmem:[%s213 + $0x270] sm:$0xff]
      %v309 = vld [vmem:[%s213 + $0x278] sm:$0xff]
      %v310 = vld [vmem:[%s213 + $0x280] sm:$0xff]
      %v311 = vld [vmem:[%s213 + $0x288] sm:$0xff]
      %v312 = vld [vmem:[%s213 + $0x290] sm:$0xff]
      %v313 = vld [vmem:[%s213 + $0x298] sm:$0xff]
      %v314 = vld [vmem:[%s213 + $0x2a0] sm:$0xff]
      %v315 = vld [vmem:[%s213 + $0x2a8] sm:$0xff]
      %v316 = vld [vmem:[%s213 + $0x2b0] sm:$0xff]
      %v317 = vld [vmem:[%s213 + $0x2b8] sm:$0xff]
      %v318 = vld [vmem:[%s213 + $0x2c0] sm:$0xff]
      %v319 = vld [vmem:[%s213 + $0x2c8] sm:$0xff]
      %v320 = vld [vmem:[%s213 + $0x2d0] sm:$0xff]
      %v321 = vld [vmem:[%s213 + $0x2d8] sm:$0xff]
      %v322 = vld [vmem:[%s213 + $0x2e0] sm:$0xff]
      %v323 = vld [vmem:[%s213 + $0x2e8] sm:$0xff]
      %v324 = vld [vmem:[%s213 + $0x2f0] sm:$0xff]
      %v325 = vld [vmem:[%s213 + $0x2f8] sm:$0xff]
      %v326 = vld [vmem:[%s213 + $0x300] sm:$0xff]
      %v327 = vld [vmem:[%s213 + $0x308] sm:$0xff]
      %v328 = vld [vmem:[%s213 + $0x310] sm:$0xff]
      %v329 = vld [vmem:[%s213 + $0x318] sm:$0xff]
      %v330 = vld [vmem:[%s213 + $0x320] sm:$0xff]
      %v331 = vld [vmem:[%s213 + $0x328] sm:$0xff]
      %v332 = vld [vmem:[%s213 + $0x330] sm:$0xff]
      %v333 = vld [vmem:[%s213 + $0x338] sm:$0xff]
      %v334 = vld [vmem:[%s213 + $0x340] sm:$0xff]
      %v335 = vld [vmem:[%s213 + $0x348] sm:$0xff]
      %v336 = vld [vmem:[%s213 + $0x350] sm:$0xff]
      %v337 = vld [vmem:[%s213 + $0x358] sm:$0xff]
      %v338 = vld [vmem:[%s213 + $0x360] sm:$0xff]
      %v339 = vld [vmem:[%s213 + $0x368] sm:$0xff]
      %v340 = vld [vmem:[%s213 + $0x370] sm:$0xff]
      %v341 = vld [vmem:[%s213 + $0x378] sm:$0xff]
      %v342 = vld [vmem:[%s213 + $0x380] sm:$0xff]
      %v343 = vld [vmem:[%s213 + $0x388] sm:$0xff]
      %v344 = vld [vmem:[%s213 + $0x390] sm:$0xff]
      %v345 = vld [vmem:[%s213 + $0x398] sm:$0xff]
      %v346 = vld [vmem:[%s213 + $0x3a0] sm:$0xff]
      %v347 = vld [vmem:[%s213 + $0x3a8] sm:$0xff]
      %v348 = vld [vmem:[%s213 + $0x3b0] sm:$0xff]
      %v349 = vld [vmem:[%s213 + $0x3b8] sm:$0xff]
      %v350 = vld [vmem:[%s213 + $0x3c0] sm:$0xff]
      %v351 = vld [vmem:[%s213 + $0x3c8] sm:$0xff]
      %v352 = vld [vmem:[%s213 + $0x3d0] sm:$0xff]
      %v353 = vld [vmem:[%s213 + $0x3d8] sm:$0xff]
      %v354 = vld [vmem:[%s213 + $0x3e0] sm:$0xff]
      %v355 = vld [vmem:[%s213 + $0x3e8] sm:$0xff]
      %v356 = vld [vmem:[%s213 + $0x3f0] sm:$0xff]
      %v357 = vld [vmem:[%s213 + $0x3f8] sm:$0xff]
      %v358 = vld [vmem:[%s1] sm:$0xff]
      %v359 = vld [vmem:[%s1 + $0x8] sm:$0xff]
      %v360 = vld [vmem:[%s1 + $0x10] sm:$0xff]
      %v361 = vld [vmem:[%s1 + $0x18] sm:$0xff]
      %v362 = vld [vmem:[%s219] sm:$0xff]
      %v363 = vld [vmem:[%s219 + $0x8] sm:$0xff]
      %v364 = vld [vmem:[%s219 + $0x10] sm:$0xff]
      %v365 = vld [vmem:[%s219 + $0x18] sm:$0xff]
      %367 = vset.pattern.permute.xlu0 0
      %368 = vperm.xlu0 %367, %v362
      %v369 = vpop.permute.xlu0 %368
      %372 = vset.pattern.permute.xlu0 0
      %373 = vperm.xlu0 %372, %v363
      %v374 = vpop.permute.xlu0 %373
      %377 = vset.pattern.permute.xlu0 0
      %378 = vperm.xlu0 %377, %v364
      %v379 = vpop.permute.xlu0 %378
      %382 = vset.pattern.permute.xlu0 0
      %383 = vperm.xlu0 %382, %v365
      %v384 = vpop.permute.xlu0 %383
      %vm386 = vcmask 261120
      %v388 = vsel %vm386, %v358, 0
      %v391 = vsel %vm386, %v359, 0
      %v394 = vsel %vm386, %v360, 0
      %v397 = vsel %vm386, %v361, 0
      %v400 = vsel %vm386, %v230, 0
      %v403 = vsel %vm386, %v231, 0
      %v406 = vsel %vm386, %v232, 0
      %v409 = vsel %vm386, %v233, 0
      %v412 = vsel %vm386, %v234, 0
      %v415 = vsel %vm386, %v235, 0
      %v418 = vsel %vm386, %v236, 0
      %v421 = vsel %vm386, %v237, 0
      %v424 = vsel %vm386, %v238, 0
      %v427 = vsel %vm386, %v239, 0
      %v430 = vsel %vm386, %v240, 0
      %v433 = vsel %vm386, %v241, 0
      %v436 = vsel %vm386, %v242, 0
      %v439 = vsel %vm386, %v243, 0
      %v442 = vsel %vm386, %v244, 0
      %v445 = vsel %vm386, %v245, 0
      %v448 = vsel %vm386, %v246, 0
      %v451 = vsel %vm386, %v247, 0
      %v454 = vsel %vm386, %v248, 0
      %v457 = vsel %vm386, %v249, 0
      %v460 = vsel %vm386, %v250, 0
      %v463 = vsel %vm386, %v251, 0
      %v466 = vsel %vm386, %v252, 0
      %v469 = vsel %vm386, %v253, 0
      %v472 = vsel %vm386, %v254, 0
      %v475 = vsel %vm386, %v255, 0
      %v478 = vsel %vm386, %v256, 0
      %v481 = vsel %vm386, %v257, 0
      %v484 = vsel %vm386, %v258, 0
      %v487 = vsel %vm386, %v259, 0
      %v490 = vsel %vm386, %v260, 0
      %v493 = vsel %vm386, %v261, 0
      %v496 = vsel %vm386, %v262, 0
      %v499 = vsel %vm386, %v263, 0
      %v502 = vsel %vm386, %v264, 0
      %v505 = vsel %vm386, %v265, 0
      %v508 = vsel %vm386, %v266, 0
      %v511 = vsel %vm386, %v267, 0
      %v514 = vsel %vm386, %v268, 0
      %v517 = vsel %vm386, %v269, 0
      %v520 = vsel %vm386, %v270, 0
      %v523 = vsel %vm386, %v271, 0
      %v526 = vsel %vm386, %v272, 0
      %v529 = vsel %vm386, %v273, 0
      %v532 = vsel %vm386, %v274, 0
      %v535 = vsel %vm386, %v275, 0
      %v538 = vsel %vm386, %v276, 0
      %v541 = vsel %vm386, %v277, 0
      %v544 = vsel %vm386, %v278, 0
      %v547 = vsel %vm386, %v279, 0
      %v550 = vsel %vm386, %v280, 0
      %v553 = vsel %vm386, %v281, 0
      %v556 = vsel %vm386, %v282, 0
      %v559 = vsel %vm386, %v283, 0
      %v562 = vsel %vm386, %v284, 0
      %v565 = vsel %vm386, %v285, 0
      %v568 = vsel %vm386, %v286, 0
      %v571 = vsel %vm386, %v287, 0
      %v574 = vsel %vm386, %v288, 0
      %v577 = vsel %vm386, %v289, 0
      %v580 = vsel %vm386, %v290, 0
      %v583 = vsel %vm386, %v291, 0
      %v586 = vsel %vm386, %v292, 0
      %v589 = vsel %vm386, %v293, 0
      %v592 = vsel %vm386, %v294, 0
      %v595 = vsel %vm386, %v295, 0
      %v598 = vsel %vm386, %v296, 0
      %v601 = vsel %vm386, %v297, 0
      %v604 = vsel %vm386, %v298, 0
      %v607 = vsel %vm386, %v299, 0
      %v610 = vsel %vm386, %v300, 0
      %v613 = vsel %vm386, %v301, 0
      %v616 = vsel %vm386, %v302, 0
      %v619 = vsel %vm386, %v303, 0
      %v622 = vsel %vm386, %v304, 0
      %v625 = vsel %vm386, %v305, 0
      %v628 = vsel %vm386, %v306, 0
      %v631 = vsel %vm386, %v307, 0
      %v634 = vsel %vm386, %v308, 0
      %v637 = vsel %vm386, %v309, 0
      %v640 = vsel %vm386, %v310, 0
      %v643 = vsel %vm386, %v311, 0
      %v646 = vsel %vm386, %v312, 0
      %v649 = vsel %vm386, %v313, 0
      %v652 = vsel %vm386, %v314, 0
      %v655 = vsel %vm386, %v315, 0
      %v658 = vsel %vm386, %v316, 0
      %v661 = vsel %vm386, %v317, 0
      %v664 = vsel %vm386, %v318, 0
      %v667 = vsel %vm386, %v319, 0
      %v670 = vsel %vm386, %v320, 0
      %v673 = vsel %vm386, %v321, 0
      %v676 = vsel %vm386, %v322, 0
      %v679 = vsel %vm386, %v323, 0
      %v682 = vsel %vm386, %v324, 0
      %v685 = vsel %vm386, %v325, 0
      %v688 = vsel %vm386, %v326, 0
      %v691 = vsel %vm386, %v327, 0
      %v694 = vsel %vm386, %v328, 0
      %v697 = vsel %vm386, %v329, 0
      %v700 = vsel %vm386, %v330, 0
      %v703 = vsel %vm386, %v331, 0
      %v706 = vsel %vm386, %v332, 0
      %v709 = vsel %vm386, %v333, 0
      %v712 = vsel %vm386, %v334, 0
      %v715 = vsel %vm386, %v335, 0
      %v718 = vsel %vm386, %v336, 0
      %v721 = vsel %vm386, %v337, 0
      %v724 = vsel %vm386, %v338, 0
      %v727 = vsel %vm386, %v339, 0
      %v730 = vsel %vm386, %v340, 0
      %v733 = vsel %vm386, %v341, 0
      %v736 = vsel %vm386, %v342, 0
      %v739 = vsel %vm386, %v343, 0
      %v742 = vsel %vm386, %v344, 0
      %v745 = vsel %vm386, %v345, 0
      %v748 = vsel %vm386, %v346, 0
      %v751 = vsel %vm386, %v347, 0
      %v754 = vsel %vm386, %v348, 0
      %v757 = vsel %vm386, %v349, 0
      %v760 = vsel %vm386, %v350, 0
      %v763 = vsel %vm386, %v351, 0
      %v766 = vsel %vm386, %v352, 0
      %v769 = vsel %vm386, %v353, 0
      %v772 = vsel %vm386, %v354, 0
      %v775 = vsel %vm386, %v355, 0
      %v778 = vsel %vm386, %v356, 0
      %v781 = vsel %vm386, %v357, 0
      %783 = vmatprep.subr.mxu0 0.0
      %v784 = vand.u32 %v400, 4294901760
      %785 = vmatpush1.xpose.msra.mxu0 %v784
      %786 = vmatprep.subr.mxu0 0.0
      %v787 = vand.u32 %v403, 4294901760
      %788 = vmatpush1.xpose.msra.mxu0 %v787
      %789 = vmatprep.subr.mxu0 0.0
      %v790 = vand.u32 %v406, 4294901760
      %791 = vmatpush1.xpose.msra.mxu0 %v790
      %792 = vmatprep.subr.mxu0 0.0
      %v793 = vand.u32 %v409, 4294901760
      %794 = vmatpush1.xpose.msra.mxu0 %v793
      %795 = vmatprep.subr.mxu0 0.0
      %v796 = vand.u32 %v412, 4294901760
      %797 = vmatpush1.xpose.msra.mxu0 %v796
      %798 = vmatprep.subr.mxu0 0.0
      %v799 = vand.u32 %v415, 4294901760
      %800 = vmatpush1.xpose.msra.mxu0 %v799
      %801 = vmatprep.subr.mxu0 0.0
      %v802 = vand.u32 %v418, 4294901760
      %803 = vmatpush1.xpose.msra.mxu0 %v802
      %804 = vmatprep.subr.mxu0 0.0
      %v805 = vand.u32 %v421, 4294901760
      %806 = vmatpush1.xpose.msra.mxu0 %v805
      %807 = vmatprep.subr.mxu0 0.0
      %v808 = vand.u32 %v424, 4294901760
      %809 = vmatpush1.xpose.msra.mxu0 %v808
      %810 = vmatprep.subr.mxu0 0.0
      %v811 = vand.u32 %v427, 4294901760
      %812 = vmatpush1.xpose.msra.mxu0 %v811
      %813 = vmatprep.subr.mxu0 0.0
      %v814 = vand.u32 %v430, 4294901760
      %815 = vmatpush1.xpose.msra.mxu0 %v814
      %816 = vmatprep.subr.mxu0 0.0
      %v817 = vand.u32 %v433, 4294901760
      %818 = vmatpush1.xpose.msra.mxu0 %v817
      %819 = vmatprep.subr.mxu0 0.0
      %v820 = vand.u32 %v436, 4294901760
      %821 = vmatpush1.xpose.msra.mxu0 %v820
      %822 = vmatprep.subr.mxu0 0.0
      %v823 = vand.u32 %v439, 4294901760
      %824 = vmatpush1.xpose.msra.mxu0 %v823
      %825 = vmatprep.subr.mxu0 0.0
      %v826 = vand.u32 %v442, 4294901760
      %827 = vmatpush1.xpose.msra.mxu0 %v826
      %828 = vmatprep.subr.mxu0 0.0
      %v829 = vand.u32 %v445, 4294901760
      %830 = vmatpush1.xpose.msra.mxu0 %v829
      %831 = vmatprep.subr.mxu0 0.0
      %v832 = vand.u32 %v448, 4294901760
      %833 = vmatpush1.xpose.msra.mxu0 %v832
      %834 = vmatprep.subr.mxu0 0.0
      %v835 = vand.u32 %v451, 4294901760
      %836 = vmatpush1.xpose.msra.mxu0 %v835
      %837 = vmatprep.subr.mxu0 0.0
      %v838 = vand.u32 %v454, 4294901760
      %839 = vmatpush1.xpose.msra.mxu0 %v838
      %840 = vmatprep.subr.mxu0 0.0
      %v841 = vand.u32 %v457, 4294901760
      %842 = vmatpush1.xpose.msra.mxu0 %v841
      %843 = vmatprep.subr.mxu0 0.0
      %v844 = vand.u32 %v460, 4294901760
      %845 = vmatpush1.xpose.msra.mxu0 %v844
      %846 = vmatprep.subr.mxu0 0.0
      %v847 = vand.u32 %v463, 4294901760
      %848 = vmatpush1.xpose.msra.mxu0 %v847
      %849 = vmatprep.subr.mxu0 0.0
      %v850 = vand.u32 %v466, 4294901760
      %851 = vmatpush1.xpose.msra.mxu0 %v850
      %852 = vmatprep.subr.mxu0 0.0
      %v853 = vand.u32 %v469, 4294901760
      %854 = vmatpush1.xpose.msra.mxu0 %v853
      %855 = vmatprep.subr.mxu0 0.0
      %v856 = vand.u32 %v472, 4294901760
      %857 = vmatpush1.xpose.msra.mxu0 %v856
      %858 = vmatprep.subr.mxu0 0.0
      %v859 = vand.u32 %v475, 4294901760
      %860 = vmatpush1.xpose.msra.mxu0 %v859
      %861 = vmatprep.subr.mxu0 0.0
      %v862 = vand.u32 %v478, 4294901760
      %863 = vmatpush1.xpose.msra.mxu0 %v862
      %864 = vmatprep.subr.mxu0 0.0
      %v865 = vand.u32 %v481, 4294901760
      %866 = vmatpush1.xpose.msra.mxu0 %v865
      %867 = vmatprep.subr.mxu0 0.0
      %v868 = vand.u32 %v484, 4294901760
      %869 = vmatpush1.xpose.msra.mxu0 %v868
      %870 = vmatprep.subr.mxu0 0.0
      %v871 = vand.u32 %v487, 4294901760
      %872 = vmatpush1.xpose.msra.mxu0 %v871
      %873 = vmatprep.subr.mxu0 0.0
      %v874 = vand.u32 %v490, 4294901760
      %875 = vmatpush1.xpose.msra.mxu0 %v874
      %876 = vmatprep.subr.mxu0 0.0
      %v877 = vand.u32 %v493, 4294901760
      %878 = vmatpush1.xpose.msra.mxu0 %v877
      %879 = vmatprep.mubr.f32.mxu0 0.0
      %v880 = vand.u32 %v388, 4294901760
      %v881 = vsub.f32 %v388, %v880
      %v882 = vand.u32 %v881, 4294901760
      %v883 = vsub.f32 %v881, %v882
      %v884 = vand.u32 %v883, 4294901760
      %885 = vmatmul.mubr.f32.gmra.mrb[0].mxu0 %v884
      %v886 = vpop.f32.mrb[0].mxu0
      %v887 = vadd.f32 %v369, %v886
      %v888 = vpop.f32.mrb[0].mxu0
      %v889 = vadd.f32 %v369, %v888
      %890 = vmatprep.mubr.f32.mxu0 0.0
      %v891 = vand.u32 %v391, 4294901760
      %v892 = vsub.f32 %v391, %v891
      %v893 = vand.u32 %v892, 4294901760
      %v894 = vsub.f32 %v892, %v893
      %v895 = vand.u32 %v894, 4294901760
      %896 = vmatmul.mubr.f32.gmra.mrb[0].mxu0 %v895
      %v897 = vpop.f32.mrb[0].mxu0
      %v898 = vadd.f32 %v374, %v897
      %v899 = vpop.f32.mrb[0].mxu0
      %v900 = vadd.f32 %v374, %v899
      %901 = vmatprep.mubr.f32.mxu0 0.0
      %v902 = vand.u32 %v394, 4294901760
      %v903 = vsub.f32 %v394, %v902
      %v904 = vand.u32 %v903, 4294901760
      %v905 = vsub.f32 %v903, %v904
      %v906 = vand.u32 %v905, 4294901760
      %907 = vmatmul.mubr.f32.gmra.mrb[0].mxu0 %v906
      %v908 = vpop.f32.mrb[0].mxu0
      %v909 = vadd.f32 %v379, %v908
      %v910 = vpop.f32.mrb[0].mxu0
      %v911 = vadd.f32 %v379, %v910
      %912 = vmatprep.mubr.f32.mxu0 0.0
      %v913 = vand.u32 %v397, 4294901760
      %v914 = vsub.f32 %v397, %v913
      %v915 = vand.u32 %v914, 4294901760
      %v916 = vsub.f32 %v914, %v915
      %v917 = vand.u32 %v916, 4294901760
      %918 = vmatmul.mubr.f32.gmra.mrb[0].mxu0 %v917
      %v919 = vpop.f32.mrb[0].mxu0
      %v920 = vadd.f32 %v384, %v919
      %v921 = vpop.f32.mrb[0].mxu0
      %v922 = vadd.f32 %v384, %v921
      %923 = vdwg.mxu0
      %924 = vmatprep.subr.mxu0 0.0
      %v925 = vand.u32 %v400, 4294901760
      %v926 = vsub.f32 %v400, %v925
      %v927 = vand.u32 %v926, 4294901760
      %v928 = vsub.f32 %v926, %v927
      %v929 = vand.u32 %v928, 4294901760
      %930 = vmatpush1.xpose.msra.mxu0 %v929
      %931 = vmatprep.subr.mxu0 0.0
      %v932 = vand.u32 %v403, 4294901760
      %v933 = vsub.f32 %v403, %v932
      %v934 = vand.u32 %v933, 4294901760
      %v935 = vsub.f32 %v933, %v934
      %v936 = vand.u32 %v935, 4294901760
      %937 = vmatpush1.xpose.msra.mxu0 %v936
      %938 = vmatprep.subr.mxu0 0.0
      %v939 = vand.u32 %v406, 4294901760
      %v940 = vsub.f32 %v406, %v939
      %v941 = vand.u32 %v940, 4294901760
      %v942 = vsub.f32 %v940, %v941
      %v943 = vand.u32 %v942, 4294901760
      %944 = vmatpush1.xpose.msra.mxu0 %v943
      %945 = vmatprep.subr.mxu0 0.0
      %v946 = vand.u32 %v409, 4294901760
      %v947 = vsub.f32 %v409, %v946
      %v948 = vand.u32 %v947, 4294901760
      %v949 = vsub.f32 %v947, %v948
      %v950 = vand.u32 %v949, 4294901760
      %951 = vmatpush1.xpose.msra.mxu0 %v950
      %952 = vmatprep.subr.mxu0 0.0
      %v953 = vand.u32 %v412, 4294901760
      %v954 = vsub.f32 %v412, %v953
      %v955 = vand.u32 %v954, 4294901760
      %v956 = vsub.f32 %v954, %v955
      %v957 = vand.u32 %v956, 4294901760
      %958 = vmatpush1.xpose.msra.mxu0 %v957
      %959 = vmatprep.subr.mxu0 0.0
      %v960 = vand.u32 %v415, 4294901760
      %v961 = vsub.f32 %v415, %v960
      %v962 = vand.u32 %v961, 4294901760
      %v963 = vsub.f32 %v961, %v962
      %v964 = vand.u32 %v963, 4294901760
      %965 = vmatpush1.xpose.msra.mxu0 %v964
      %966 = vmatprep.subr.mxu0 0.0
      %v967 = vand.u32 %v418, 4294901760
      %v968 = vsub.f32 %v418, %v967
      %v969 = vand.u32 %v968, 4294901760
      %v970 = vsub.f32 %v968, %v969
      %v971 = vand.u32 %v970, 4294901760
      %972 = vmatpush1.xpose.msra.mxu0 %v971
      %973 = vmatprep.subr.mxu0 0.0
      %v974 = vand.u32 %v421, 4294901760
      %v975 = vsub.f32 %v421, %v974
      %v976 = vand.u32 %v975, 4294901760
      %v977 = vsub.f32 %v975, %v976
      %v978 = vand.u32 %v977, 4294901760
      %979 = vmatpush1.xpose.msra.mxu0 %v978
      %980 = vmatprep.subr.mxu0 0.0
      %v981 = vand.u32 %v424, 4294901760
      %v982 = vsub.f32 %v424, %v981
      %v983 = vand.u32 %v982, 4294901760
      %v984 = vsub.f32 %v982, %v983
      %v985 = vand.u32 %v984, 4294901760
      %986 = vmatpush1.xpose.msra.mxu0 %v985
      %987 = vmatprep.subr.mxu0 0.0
      %v988 = vand.u32 %v427, 4294901760
      %v989 = vsub.f32 %v427, %v988
      %v990 = vand.u32 %v989, 4294901760
      %v991 = vsub.f32 %v989, %v990
      %v992 = vand.u32 %v991, 4294901760
      %993 = vmatpush1.xpose.msra.mxu0 %v992
      %994 = vmatprep.subr.mxu0 0.0
      %v995 = vand.u32 %v430, 4294901760
      %v996 = vsub.f32 %v430, %v995
      %v997 = vand.u32 %v996, 4294901760
      %v998 = vsub.f32 %v996, %v997
      %v999 = vand.u32 %v998, 4294901760
      %1000 = vmatpush1.xpose.msra.mxu0 %v999
      %1001 = vmatprep.subr.mxu0 0.0
      %v1002 = vand.u32 %v433, 4294901760
      %v1003 = vsub.f32 %v433, %v1002
      %v1004 = vand.u32 %v1003, 4294901760
      %v1005 = vsub.f32 %v1003, %v1004
      %v1006 = vand.u32 %v1005, 4294901760
      %1007 = vmatpush1.xpose.msra.mxu0 %v1006
      %1008 = vmatprep.subr.mxu0 0.0
      %v1009 = vand.u32 %v436, 4294901760
      %v1010 = vsub.f32 %v436, %v1009
      %v1011 = vand.u32 %v1010, 4294901760
      %v1012 = vsub.f32 %v1010, %v1011
      %v1013 = vand.u32 %v1012, 4294901760
      %1014 = vmatpush1.xpose.msra.mxu0 %v1013
      %1015 = vmatprep.subr.mxu0 0.0
      %v1016 = vand.u32 %v439, 4294901760
      %v1017 = vsub.f32 %v439, %v1016
      %v1018 = vand.u32 %v1017, 4294901760
      %v1019 = vsub.f32 %v1017, %v1018
      %v1020 = vand.u32 %v1019, 4294901760
      %1021 = vmatpush1.xpose.msra.mxu0 %v1020
      %1022 = vmatprep.subr.mxu0 0.0
      %v1023 = vand.u32 %v442, 4294901760
      %v1024 = vsub.f32 %v442, %v1023
      %v1025 = vand.u32 %v1024, 4294901760
      %v1026 = vsub.f32 %v1024, %v1025
      %v1027 = vand.u32 %v1026, 4294901760
      %1028 = vmatpush1.xpose.msra.mxu0 %v1027
      %1029 = vmatprep.subr.mxu0 0.0
      %v1030 = vand.u32 %v445, 4294901760
      %v1031 = vsub.f32 %v445, %v1030
      %v1032 = vand.u32 %v1031, 4294901760
      %v1033 = vsub.f32 %v1031, %v1032
      %v1034 = vand.u32 %v1033, 4294901760
      %1035 = vmatpush1.xpose.msra.mxu0 %v1034
      %1036 = vmatprep.subr.mxu0 0.0
      %v1037 = vand.u32 %v448, 4294901760
      %v1038 = vsub.f32 %v448, %v1037
      %v1039 = vand.u32 %v1038, 4294901760
      %v1040 = vsub.f32 %v1038, %v1039
      %v1041 = vand.u32 %v1040, 4294901760
      %1042 = vmatpush1.xpose.msra.mxu0 %v1041
      %1043 = vmatprep.subr.mxu0 0.0
      %v1044 = vand.u32 %v451, 4294901760
      %v1045 = vsub.f32 %v451, %v1044
      %v1046 = vand.u32 %v1045, 4294901760
      %v1047 = vsub.f32 %v1045, %v1046
      %v1048 = vand.u32 %v1047, 4294901760
      %1049 = vmatpush1.xpose.msra.mxu0 %v1048
      %1050 = vmatprep.subr.mxu0 0.0
      %v1051 = vand.u32 %v454, 4294901760
      %v1052 = vsub.f32 %v454, %v1051
      %v1053 = vand.u32 %v1052, 4294901760
      %v1054 = vsub.f32 %v1052, %v1053
      %v1055 = vand.u32 %v1054, 4294901760
      %1056 = vmatpush1.xpose.msra.mxu0 %v1055
      %1057 = vmatprep.subr.mxu0 0.0
      %v1058 = vand.u32 %v457, 4294901760
      %v1059 = vsub.f32 %v457, %v1058
      %v1060 = vand.u32 %v1059, 4294901760
      %v1061 = vsub.f32 %v1059, %v1060
      %v1062 = vand.u32 %v1061, 4294901760
      %1063 = vmatpush1.xpose.msra.mxu0 %v1062
      %1064 = vmatprep.subr.mxu0 0.0
      %v1065 = vand.u32 %v460, 4294901760
      %v1066 = vsub.f32 %v460, %v1065
      %v1067 = vand.u32 %v1066, 4294901760
      %v1068 = vsub.f32 %v1066, %v1067
      %v1069 = vand.u32 %v1068, 4294901760
      %1070 = vmatpush1.xpose.msra.mxu0 %v1069
      %1071 = vmatprep.subr.mxu0 0.0
      %v1072 = vand.u32 %v463, 4294901760
      %v1073 = vsub.f32 %v463, %v1072
      %v1074 = vand.u32 %v1073, 4294901760
      %v1075 = vsub.f32 %v1073, %v1074
      %v1076 = vand.u32 %v1075, 4294901760
      %1077 = vmatpush1.xpose.msra.mxu0 %v1076
      %1078 = vmatprep.subr.mxu0 0.0
      %v1079 = vand.u32 %v466, 4294901760
      %v1080 = vsub.f32 %v466, %v1079
      %v1081 = vand.u32 %v1080, 4294901760
      %v1082 = vsub.f32 %v1080, %v1081
      %v1083 = vand.u32 %v1082, 4294901760
      %1084 = vmatpush1.xpose.msra.mxu0 %v1083
      %1085 = vmatprep.subr.mxu0 0.0
      %v1086 = vand.u32 %v469, 4294901760
      %v1087 = vsub.f32 %v469, %v1086
      %v1088 = vand.u32 %v1087, 4294901760
      %v1089 = vsub.f32 %v1087, %v1088
      %v1090 = vand.u32 %v1089, 4294901760
      %1091 = vmatpush1.xpose.msra.mxu0 %v1090
      %1092 = vmatprep.subr.mxu0 0.0
      %v1093 = vand.u32 %v472, 4294901760
      %v1094 = vsub.f32 %v472, %v1093
      %v1095 = vand.u32 %v1094, 4294901760
      %v1096 = vsub.f32 %v1094, %v1095
      %v1097 = vand.u32 %v1096, 4294901760
      %1098 = vmatpush1.xpose.msra.mxu0 %v1097
      %1099 = vmatprep.subr.mxu0 0.0
      %v1100 = vand.u32 %v475, 4294901760
      %v1101 = vsub.f32 %v475, %v1100
      %v1102 = vand.u32 %v1101, 4294901760
      %v1103 = vsub.f32 %v1101, %v1102
      %v1104 = vand.u32 %v1103, 4294901760
      %1105 = vmatpush1.xpose.msra.mxu0 %v1104
      %1106 = vmatprep.subr.mxu0 0.0
      %v1107 = vand.u32 %v478, 4294901760
      %v1108 = vsub.f32 %v478, %v1107
      %v1109 = vand.u32 %v1108, 4294901760
      %v1110 = vsub.f32 %v1108, %v1109
      %v1111 = vand.u32 %v1110, 4294901760
      %1112 = vmatpush1.xpose.msra.mxu0 %v1111
      %1113 = vmatprep.subr.mxu0 0.0
      %v1114 = vand.u32 %v481, 4294901760
      %v1115 = vsub.f32 %v481, %v1114
      %v1116 = vand.u32 %v1115, 4294901760
      %v1117 = vsub.f32 %v1115, %v1116
      %v1118 = vand.u32 %v1117, 4294901760
      %1119 = vmatpush1.xpose.msra.mxu0 %v1118
      %1120 = vmatprep.subr.mxu0 0.0
      %v1121 = vand.u32 %v484, 4294901760
      %v1122 = vsub.f32 %v484, %v1121
      %v1123 = vand.u32 %v1122, 4294901760
      %v1124 = vsub.f32 %v1122, %v1123
      %v1125 = vand.u32 %v1124, 4294901760
      %1126 = vmatpush1.xpose.msra.mxu0 %v1125
      %1127 = vmatprep.subr.mxu0 0.0
      %v1128 = vand.u32 %v487, 4294901760
      %v1129 = vsub.f32 %v487, %v1128
      %v1130 = vand.u32 %v1129, 4294901760
      %v1131 = vsub.f32 %v1129, %v1130
      %v1132 = vand.u32 %v1131, 4294901760
      %1133 = vmatpush1.xpose.msra.mxu0 %v1132
      %1134 = vmatprep.subr.mxu0 0.0
      %v1135 = vand.u32 %v490, 4294901760
      %v1136 = vsub.f32 %v490, %v1135
      %v1137 = vand.u32 %v1136, 4294901760
      %v1138 = vsub.f32 %v1136, %v1137
      %v1139 = vand.u32 %v1138, 4294901760
      %1140 = vmatpush1.xpose.msra.mxu0 %v1139
      %1141 = vmatprep.subr.mxu0 0.0
      %v1142 = vand.u32 %v493, 4294901760
      %v1143 = vsub.f32 %v493, %v1142
      %v1144 = vand.u32 %v1143, 4294901760
      %v1145 = vsub.f32 %v1143, %v1144
      %v1146 = vand.u32 %v1145, 4294901760
      %1147 = vmatpush1.xpose.msra.mxu0 %v1146
      %1148 = vmatprep.mubr.f32.mxu0 0.0
      %v1149 = vand.u32 %v388, 4294901760
      %1150 = vmatmul.mubr.f32.gmra.mrb[0].mxu0 %v1149
      %v1151 = vpop.f32.mrb[0].mxu0
      %v1152 = vadd.f32 %v887, %v1151
      %v1153 = vpop.f32.mrb[0].mxu0
      %v1154 = vadd.f32 %v889, %v1153
      %1155 = vmatprep.mubr.f32.mxu0 0.0
      %v1156 = vand.u32 %v391, 4294901760
      %1157 = vmatmul.mubr.f32.gmra.mrb[0].mxu0 %v1156
      %v1158 = vpop.f32.mrb[0].mxu0
      %v1159 = vadd.f32 %v898, %v1158
      %v1160 = vpop.f32.mrb[0].mxu0
      %v1161 = vadd.f32 %v900, %v1160
      %1162 = vmatprep.mubr.f32.mxu0 0.0
      %v1163 = vand.u32 %v394, 4294901760
      %1164 = vmatmul.mubr.f32.gmra.mrb[0].mxu0 %v1163
      %v1165 = vpop.f32.mrb[0].mxu0
      %v1166 = vadd.f32 %v909, %v1165
      %v1167 = vpop.f32.mrb[0].mxu0
      %v1168 = vadd.f32 %v911, %v1167
      %1169 = vmatprep.mubr.f32.mxu0 0.0
      %v1170 = vand.u32 %v397, 4294901760
      %1171 = vmatmul.mubr.f32.gmra.mrb[0].mxu0 %v1170
      %v1172 = vpop.f32.mrb[0].mxu0
      %v1173 = vadd.f32 %v920, %v1172
      %v1174 = vpop.f32.mrb[0].mxu0
      %v1175 = vadd.f32 %v922, %v1174
      %1176 = vdwg.mxu0
      %1177 = vmatprep.subr.mxu0 0.0
      %v1178 = vand.u32 %v400, 4294901760
      %v1179 = vsub.f32 %v400, %v1178
      %1180 = vmatpush1.xpose.msra.mxu0 %v1179
      %1181 = vmatprep.subr.mxu0 0.0
      %v1182 = vand.u32 %v403, 4294901760
      %v1183 = vsub.f32 %v403, %v1182
      %1184 = vmatpush1.xpose.msra.mxu0 %v1183
      %1185 = vmatprep.subr.mxu0 0.0
      %v1186 = vand.u32 %v406, 4294901760
      %v1187 = vsub.f32 %v406, %v1186
      %1188 = vmatpush1.xpose.msra.mxu0 %v1187
      %1189 = vmatprep.subr.mxu0 0.0
      %v1190 = vand.u32 %v409, 4294901760
      %v1191 = vsub.f32 %v409, %v1190
      %1192 = vmatpush1.xpose.msra.mxu0 %v1191
      %1193 = vmatprep.subr.mxu0 0.0
      %v1194 = vand.u32 %v412, 4294901760
      %v1195 = vsub.f32 %v412, %v1194
      %1196 = vmatpush1.xpose.msra.mxu0 %v1195
      %1197 = vmatprep.subr.mxu0 0.0
      %v1198 = vand.u32 %v415, 4294901760
      %v1199 = vsub.f32 %v415, %v1198
      %1200 = vmatpush1.xpose.msra.mxu0 %v1199
      %1201 = vmatprep.subr.mxu0 0.0
      %v1202 = vand.u32 %v418, 4294901760
      %v1203 = vsub.f32 %v418, %v1202
      %1204 = vmatpush1.xpose.msra.mxu0 %v1203
      %1205 = vmatprep.subr.mxu0 0.0
      %v1206 = vand.u32 %v421, 4294901760
      %v1207 = vsub.f32 %v421, %v1206
      %1208 = vmatpush1.xpose.msra.mxu0 %v1207
      %1209 = vmatprep.subr.mxu0 0.0
      %v1210 = vand.u32 %v424, 4294901760
      %v1211 = vsub.f32 %v424, %v1210
      %1212 = vmatpush1.xpose.msra.mxu0 %v1211
      %1213 = vmatprep.subr.mxu0 0.0
      %v1214 = vand.u32 %v427, 4294901760
      %v1215 = vsub.f32 %v427, %v1214
      %1216 = vmatpush1.xpose.msra.mxu0 %v1215
      %1217 = vmatprep.subr.mxu0 0.0
      %v1218 = vand.u32 %v430, 4294901760
      %v1219 = vsub.f32 %v430, %v1218
      %1220 = vmatpush1.xpose.msra.mxu0 %v1219
      %1221 = vmatprep.subr.mxu0 0.0
      %v1222 = vand.u32 %v433, 4294901760
      %v1223 = vsub.f32 %v433, %v1222
      %1224 = vmatpush1.xpose.msra.mxu0 %v1223
      %1225 = vmatprep.subr.mxu0 0.0
      %v1226 = vand.u32 %v436, 4294901760
      %v1227 = vsub.f32 %v436, %v1226
      %1228 = vmatpush1.xpose.msra.mxu0 %v1227
      %1229 = vmatprep.subr.mxu0 0.0
      %v1230 = vand.u32 %v439, 4294901760
      %v1231 = vsub.f32 %v439, %v1230
      %1232 = vmatpush1.xpose.msra.mxu0 %v1231
      %1233 = vmatprep.subr.mxu0 0.0
      %v1234 = vand.u32 %v442, 4294901760
      %v1235 = vsub.f32 %v442, %v1234
      %1236 = vmatpush1.xpose.msra.mxu0 %v1235
      %1237 = vmatprep.subr.mxu0 0.0
      %v1238 = vand.u32 %v445, 4294901760
      %v1239 = vsub.f32 %v445, %v1238
      %1240 = vmatpush1.xpose.msra.mxu0 %v1239
      %1241 = vmatprep.subr.mxu0 0.0
      %v1242 = vand.u32 %v448, 4294901760
      %v1243 = vsub.f32 %v448, %v1242
      %1244 = vmatpush1.xpose.msra.mxu0 %v1243
      %1245 = vmatprep.subr.mxu0 0.0
      %v1246 = vand.u32 %v451, 4294901760
      %v1247 = vsub.f32 %v451, %v1246
      %1248 = vmatpush1.xpose.msra.mxu0 %v1247
      %1249 = vmatprep.subr.mxu0 0.0
      %v1250 = vand.u32 %v454, 4294901760
      %v1251 = vsub.f32 %v454, %v1250
      %1252 = vmatpush1.xpose.msra.mxu0 %v1251
      %1253 = vmatprep.subr.mxu0 0.0
      %v1254 = vand.u32 %v457, 4294901760
      %v1255 = vsub.f32 %v457, %v1254
      %1256 = vmatpush1.xpose.msra.mxu0 %v1255
      %1257 = vmatprep.subr.mxu0 0.0
      %v1258 = vand.u32 %v460, 4294901760
      %v1259 = vsub.f32 %v460, %v1258
      %1260 = vmatpush1.xpose.msra.mxu0 %v1259
      %1261 = vmatprep.subr.mxu0 0.0
      %v1262 = vand.u32 %v463, 4294901760
      %v1263 = vsub.f32 %v463, %v1262
      %1264 = vmatpush1.xpose.msra.mxu0 %v1263
      %1265 = vmatprep.subr.mxu0 0.0
      %v1266 = vand.u32 %v466, 4294901760
      %v1267 = vsub.f32 %v466, %v1266
      %1268 = vmatpush1.xpose.msra.mxu0 %v1267
      %1269 = vmatprep.subr.mxu0 0.0
      %v1270 = vand.u32 %v469, 4294901760
      %v1271 = vsub.f32 %v469, %v1270
      %1272 = vmatpush1.xpose.msra.mxu0 %v1271
      %1273 = vmatprep.subr.mxu0 0.0
      %v1274 = vand.u32 %v472, 4294901760
      %v1275 = vsub.f32 %v472, %v1274
      %1276 = vmatpush1.xpose.msra.mxu0 %v1275
      %1277 = vmatprep.subr.mxu0 0.0
      %v1278 = vand.u32 %v475, 4294901760
      %v1279 = vsub.f32 %v475, %v1278
      %1280 = vmatpush1.xpose.msra.mxu0 %v1279
      %1281 = vmatprep.subr.mxu0 0.0
      %v1282 = vand.u32 %v478, 4294901760
      %v1283 = vsub.f32 %v478, %v1282
      %1284 = vmatpush1.xpose.msra.mxu0 %v1283
      %1285 = vmatprep.subr.mxu0 0.0
      %v1286 = vand.u32 %v481, 4294901760
      %v1287 = vsub.f32 %v481, %v1286
      %1288 = vmatpush1.xpose.msra.mxu0 %v1287
      %1289 = vmatprep.subr.mxu0 0.0
      %v1290 = vand.u32 %v484, 4294901760
      %v1291 = vsub.f32 %v484, %v1290
      %1292 = vmatpush1.xpose.msra.mxu0 %v1291
      %1293 = vmatprep.subr.mxu0 0.0
      %v1294 = vand.u32 %v487, 4294901760
      %v1295 = vsub.f32 %v487, %v1294
      %1296 = vmatpush1.xpose.msra.mxu0 %v1295
      %1297 = vmatprep.subr.mxu0 0.0
      %v1298 = vand.u32 %v490, 4294901760
      %v1299 = vsub.f32 %v490, %v1298
      %1300 = vmatpush1.xpose.msra.mxu0 %v1299
      %1301 = vmatprep.subr.mxu0 0.0
      %v1302 = vand.u32 %v493, 4294901760
      %v1303 = vsub.f32 %v493, %v1302
      %1304 = vmatpush1.xpose.msra.mxu0 %v1303
      %1305 = vmatprep.mubr.f32.mxu0 0.0
      %v1306 = vand.u32 %v388, 4294901760
      %v1307 = vsub.f32 %v388, %v1306
      %1308 = vmatmul.mubr.f32.gmra.mrb[0].mxu0 %v1307
      %v1309 = vpop.f32.mrb[0].mxu0
      %v1310 = vadd.f32 %v1152, %v1309
      %v1311 = vpop.f32.mrb[0].mxu0
      %v1312 = vadd.f32 %v1154, %v1311
      %1313 = vmatprep.mubr.f32.mxu0 0.0
      %v1314 = vand.u32 %v391, 4294901760
      %v1315 = vsub.f32 %v391, %v1314
      %1316 = vmatmul.mubr.f32.gmra.mrb[0].mxu0 %v1315
      %v1317 = vpop.f32.mrb[0].mxu0
      %v1318 = vadd.f32 %v1159, %v1317
      %v1319 = vpop.f32.mrb[0].mxu0
      %v1320 = vadd.f32 %v1161, %v1319
      %1321 = vmatprep.mubr.f32.mxu0 0.0
      %v1322 = vand.u32 %v394, 4294901760
      %v1323 = vsub.f32 %v394, %v1322
      %1324 = vmatmul.mubr.f32.gmra.mrb[0].mxu0 %v1323
      %v1325 = vpop.f32.mrb[0].mxu0
      %v1326 = vadd.f32 %v1166, %v1325
      %v1327 = vpop.f32.mrb[0].mxu0
      %v1328 = vadd.f32 %v1168, %v1327
      %1329 = vmatprep.mubr.f32.mxu0 0.0
      %v1330 = vand.u32 %v397, 4294901760
      %v1331 = vsub.f32 %v397, %v1330
      %1332 = vmatmul.mubr.f32.gmra.mrb[0].mxu0 %v1331
      %v1333 = vpop.f32.mrb[0].mxu0
      %v1334 = vadd.f32 %v1173, %v1333
      %v1335 = vpop.f32.mrb[0].mxu0
      %v1336 = vadd.f32 %v1175, %v1335
      %1337 = vdwg.mxu0
      %1338 = vmatprep.subr.mxu0 0.0
      %v1339 = vand.u32 %v400, 4294901760
      %1340 = vmatpush1.xpose.msra.mxu0 %v1339
      %1341 = vmatprep.subr.mxu0 0.0
      %v1342 = vand.u32 %v403, 4294901760
      %1343 = vmatpush1.xpose.msra.mxu0 %v1342
      %1344 = vmatprep.subr.mxu0 0.0
      %v1345 = vand.u32 %v406, 4294901760
      %1346 = vmatpush1.xpose.msra.mxu0 %v1345
      %1347 = vmatprep.subr.mxu0 0.0
      %v1348 = vand.u32 %v409, 4294901760
      %1349 = vmatpush1.xpose.msra.mxu0 %v1348
      %1350 = vmatprep.subr.mxu0 0.0
      %v1351 = vand.u32 %v412, 4294901760
      %1352 = vmatpush1.xpose.msra.mxu0 %v1351
      %1353 = vmatprep.subr.mxu0 0.0
      %v1354 = vand.u32 %v415, 4294901760
      %1355 = vmatpush1.xpose.msra.mxu0 %v1354
      %1356 = vmatprep.subr.mxu0 0.0
      %v1357 = vand.u32 %v418, 4294901760
      %1358 = vmatpush1.xpose.msra.mxu0 %v1357
      %1359 = vmatprep.subr.mxu0 0.0
      %v1360 = vand.u32 %v421, 4294901760
      %1361 = vmatpush1.xpose.msra.mxu0 %v1360
      %1362 = vmatprep.subr.mxu0 0.0
      %v1363 = vand.u32 %v424, 4294901760
      %1364 = vmatpush1.xpose.msra.mxu0 %v1363
      %1365 = vmatprep.subr.mxu0 0.0
      %v1366 = vand.u32 %v427, 4294901760
      %1367 = vmatpush1.xpose.msra.mxu0 %v1366
      %1368 = vmatprep.subr.mxu0 0.0
      %v1369 = vand.u32 %v430, 4294901760
      %1370 = vmatpush1.xpose.msra.mxu0 %v1369
      %1371 = vmatprep.subr.mxu0 0.0
      %v1372 = vand.u32 %v433, 4294901760
      %1373 = vmatpush1.xpose.msra.mxu0 %v1372
      %1374 = vmatprep.subr.mxu0 0.0
      %v1375 = vand.u32 %v436, 4294901760
      %1376 = vmatpush1.xpose.msra.mxu0 %v1375
      %1377 = vmatprep.subr.mxu0 0.0
      %v1378 = vand.u32 %v439, 4294901760
      %1379 = vmatpush1.xpose.msra.mxu0 %v1378
      %1380 = vmatprep.subr.mxu0 0.0
      %v1381 = vand.u32 %v442, 4294901760
      %1382 = vmatpush1.xpose.msra.mxu0 %v1381
      %1383 = vmatprep.subr.mxu0 0.0
      %v1384 = vand.u32 %v445, 4294901760
      %1385 = vmatpush1.xpose.msra.mxu0 %v1384
      %1386 = vmatprep.subr.mxu0 0.0
      %v1387 = vand.u32 %v448, 4294901760
      %1388 = vmatpush1.xpose.msra.mxu0 %v1387
      %1389 = vmatprep.subr.mxu0 0.0
      %v1390 = vand.u32 %v451, 4294901760
      %1391 = vmatpush1.xpose.msra.mxu0 %v1390
      %1392 = vmatprep.subr.mxu0 0.0
      %v1393 = vand.u32 %v454, 4294901760
      %1394 = vmatpush1.xpose.msra.mxu0 %v1393
      %1395 = vmatprep.subr.mxu0 0.0
      %v1396 = vand.u32 %v457, 4294901760
      %1397 = vmatpush1.xpose.msra.mxu0 %v1396
      %1398 = vmatprep.subr.mxu0 0.0
      %v1399 = vand.u32 %v460, 4294901760
      %1400 = vmatpush1.xpose.msra.mxu0 %v1399
      %1401 = vmatprep.subr.mxu0 0.0
      %v1402 = vand.u32 %v463, 4294901760
      %1403 = vmatpush1.xpose.msra.mxu0 %v1402
      %1404 = vmatprep.subr.mxu0 0.0
      %v1405 = vand.u32 %v466, 4294901760
      %1406 = vmatpush1.xpose.msra.mxu0 %v1405
      %1407 = vmatprep.subr.mxu0 0.0
      %v1408 = vand.u32 %v469, 4294901760
      %1409 = vmatpush1.xpose.msra.mxu0 %v1408
      %1410 = vmatprep.subr.mxu0 0.0
      %v1411 = vand.u32 %v472, 4294901760
      %1412 = vmatpush1.xpose.msra.mxu0 %v1411
      %1413 = vmatprep.subr.mxu0 0.0
      %v1414 = vand.u32 %v475, 4294901760
      %1415 = vmatpush1.xpose.msra.mxu0 %v1414
      %1416 = vmatprep.subr.mxu0 0.0
      %v1417 = vand.u32 %v478, 4294901760
      %1418 = vmatpush1.xpose.msra.mxu0 %v1417
      %1419 = vmatprep.subr.mxu0 0.0
      %v1420 = vand.u32 %v481, 4294901760
      %1421 = vmatpush1.xpose.msra.mxu0 %v1420
      %1422 = vmatprep.subr.mxu0 0.0
      %v1423 = vand.u32 %v484, 4294901760
      %1424 = vmatpush1.xpose.msra.mxu0 %v1423
      %1425 = vmatprep.subr.mxu0 0.0
      %v1426 = vand.u32 %v487, 4294901760
      %1427 = vmatpush1.xpose.msra.mxu0 %v1426
      %1428 = vmatprep.subr.mxu0 0.0
      %v1429 = vand.u32 %v490, 4294901760
      %1430 = vmatpush1.xpose.msra.mxu0 %v1429
      %1431 = vmatprep.subr.mxu0 0.0
      %v1432 = vand.u32 %v493, 4294901760
      %1433 = vmatpush1.xpose.msra.mxu0 %v1432
      %1434 = vmatprep.mubr.f32.mxu0 0.0
      %v1435 = vand.u32 %v388, 4294901760
      %v1436 = vsub.f32 %v388, %v1435
      %v1437 = vand.u32 %v1436, 4294901760
      %1438 = vmatmul.mubr.f32.gmra.mrb[0].mxu0 %v1437
      %v1439 = vpop.f32.mrb[0].mxu0
      %v1440 = vadd.f32 %v1310, %v1439
      %v1441 = vpop.f32.mrb[0].mxu0
      %v1442 = vadd.f32 %v1312, %v1441
      %1443 = vmatprep.mubr.f32.mxu0 0.0
      %v1444 = vand.u32 %v391, 4294901760
      %v1445 = vsub.f32 %v391, %v1444
      %v1446 = vand.u32 %v1445, 4294901760
      %1447 = vmatmul.mubr.f32.gmra.mrb[0].mxu0 %v1446
      %v1448 = vpop.f32.mrb[0].mxu0
      %v1449 = vadd.f32 %v1318, %v1448
      %v1450 = vpop.f32.mrb[0].mxu0
      %v1451 = vadd.f32 %v1320, %v1450
      %1452 = vmatprep.mubr.f32.mxu0 0.0
      %v1453 = vand.u32 %v394, 4294901760
      %v1454 = vsub.f32 %v394, %v1453
      %v1455 = vand.u32 %v1454, 4294901760
      %1456 = vmatmul.mubr.f32.gmra.mrb[0].mxu0 %v1455
      %v1457 = vpop.f32.mrb[0].mxu0
      %v1458 = vadd.f32 %v1326, %v1457
      %v1459 = vpop.f32.mrb[0].mxu0
      %v1460 = vadd.f32 %v1328, %v1459
      %1461 = vmatprep.mubr.f32.mxu0 0.0
      %v1462 = vand.u32 %v397, 4294901760
      %v1463 = vsub.f32 %v397, %v1462
      %v1464 = vand.u32 %v1463, 4294901760
      %1465 = vmatmul.mubr.f32.gmra.mrb[0].mxu0 %v1464
      %v1466 = vpop.f32.mrb[0].mxu0
      %v1467 = vadd.f32 %v1334, %v1466
      %v1468 = vpop.f32.mrb[0].mxu0
      %v1469 = vadd.f32 %v1336, %v1468
      %1470 = vdwg.mxu0
      %1471 = vmatprep.subr.mxu0 0.0
      %v1472 = vand.u32 %v400, 4294901760
      %v1473 = vsub.f32 %v400, %v1472
      %v1474 = vand.u32 %v1473, 4294901760
      %1475 = vmatpush1.xpose.msra.mxu0 %v1474
      %1476 = vmatprep.subr.mxu0 0.0
      %v1477 = vand.u32 %v403, 4294901760
      %v1478 = vsub.f32 %v403, %v1477
      %v1479 = vand.u32 %v1478, 4294901760
      %1480 = vmatpush1.xpose.msra.mxu0 %v1479
      %1481 = vmatprep.subr.mxu0 0.0
      %v1482 = vand.u32 %v406, 4294901760
      %v1483 = vsub.f32 %v406, %v1482
      %v1484 = vand.u32 %v1483, 4294901760
      %1485 = vmatpush1.xpose.msra.mxu0 %v1484
      %1486 = vmatprep.subr.mxu0 0.0
      %v1487 = vand.u32 %v409, 4294901760
      %v1488 = vsub.f32 %v409, %v1487
      %v1489 = vand.u32 %v1488, 4294901760
      %1490 = vmatpush1.xpose.msra.mxu0 %v1489
      %1491 = vmatprep.subr.mxu0 0.0
      %v1492 = vand.u32 %v412, 4294901760
      %v1493 = vsub.f32 %v412, %v1492
      %v1494 = vand.u32 %v1493, 4294901760
      %1495 = vmatpush1.xpose.msra.mxu0 %v1494
      %1496 = vmatprep.subr.mxu0 0.0
      %v1497 = vand.u32 %v415, 4294901760
      %v1498 = vsub.f32 %v415, %v1497
      %v1499 = vand.u32 %v1498, 4294901760
      %1500 = vmatpush1.xpose.msra.mxu0 %v1499
      %1501 = vmatprep.subr.mxu0 0.0
      %v1502 = vand.u32 %v418, 4294901760
      %v1503 = vsub.f32 %v418, %v1502
      %v1504 = vand.u32 %v1503, 4294901760
      %1505 = vmatpush1.xpose.msra.mxu0 %v1504
      %1506 = vmatprep.subr.mxu0 0.0
      %v1507 = vand.u32 %v421, 4294901760
      %v1508 = vsub.f32 %v421, %v1507
      %v1509 = vand.u32 %v1508, 4294901760
      %1510 = vmatpush1.xpose.msra.mxu0 %v1509
      %1511 = vmatprep.subr.mxu0 0.0
      %v1512 = vand.u32 %v424, 4294901760
      %v1513 = vsub.f32 %v424, %v1512
      %v1514 = vand.u32 %v1513, 4294901760
      %1515 = vmatpush1.xpose.msra.mxu0 %v1514
      %1516 = vmatprep.subr.mxu0 0.0
      %v1517 = vand.u32 %v427, 4294901760
      %v1518 = vsub.f32 %v427, %v1517
      %v1519 = vand.u32 %v1518, 4294901760
      %1520 = vmatpush1.xpose.msra.mxu0 %v1519
      %1521 = vmatprep.subr.mxu0 0.0
      %v1522 = vand.u32 %v430, 4294901760
      %v1523 = vsub.f32 %v430, %v1522
      %v1524 = vand.u32 %v1523, 4294901760
      %1525 = vmatpush1.xpose.msra.mxu0 %v1524
      %1526 = vmatprep.subr.mxu0 0.0
      %v1527 = vand.u32 %v433, 4294901760
      %v1528 = vsub.f32 %v433, %v1527
      %v1529 = vand.u32 %v1528, 4294901760
      %1530 = vmatpush1.xpose.msra.mxu0 %v1529
      %1531 = vmatprep.subr.mxu0 0.0
      %v1532 = vand.u32 %v436, 4294901760
      %v1533 = vsub.f32 %v436, %v1532
      %v1534 = vand.u32 %v1533, 4294901760
      %1535 = vmatpush1.xpose.msra.mxu0 %v1534
      %1536 = vmatprep.subr.mxu0 0.0
      %v1537 = vand.u32 %v439, 4294901760
      %v1538 = vsub.f32 %v439, %v1537
      %v1539 = vand.u32 %v1538, 4294901760
      %1540 = vmatpush1.xpose.msra.mxu0 %v1539
      %1541 = vmatprep.subr.mxu0 0.0
      %v1542 = vand.u32 %v442, 4294901760
      %v1543 = vsub.f32 %v442, %v1542
      %v1544 = vand.u32 %v1543, 4294901760
      %1545 = vmatpush1.xpose.msra.mxu0 %v1544
      %1546 = vmatprep.subr.mxu0 0.0
      %v1547 = vand.u32 %v445, 4294901760
      %v1548 = vsub.f32 %v445, %v1547
      %v1549 = vand.u32 %v1548, 4294901760
      %1550 = vmatpush1.xpose.msra.mxu0 %v1549
      %1551 = vmatprep.subr.mxu0 0.0
      %v1552 = vand.u32 %v448, 4294901760
      %v1553 = vsub.f32 %v448, %v1552
      %v1554 = vand.u32 %v1553, 4294901760
      %1555 = vmatpush1.xpose.msra.mxu0 %v1554
      %1556 = vmatprep.subr.mxu0 0.0
      %v1557 = vand.u32 %v451, 4294901760
      %v1558 = vsub.f32 %v451, %v1557
      %v1559 = vand.u32 %v1558, 4294901760
      %1560 = vmatpush1.xpose.msra.mxu0 %v1559
      %1561 = vmatprep.subr.mxu0 0.0
      %v1562 = vand.u32 %v454, 4294901760
      %v1563 = vsub.f32 %v454, %v1562
      %v1564 = vand.u32 %v1563, 4294901760
      %1565 = vmatpush1.xpose.msra.mxu0 %v1564
      %1566 = vmatprep.subr.mxu0 0.0
      %v1567 = vand.u32 %v457, 4294901760
      %v1568 = vsub.f32 %v457, %v1567
      %v1569 = vand.u32 %v1568, 4294901760
      %1570 = vmatpush1.xpose.msra.mxu0 %v1569
      %1571 = vmatprep.subr.mxu0 0.0
      %v1572 = vand.u32 %v460, 4294901760
      %v1573 = vsub.f32 %v460, %v1572
      %v1574 = vand.u32 %v1573, 4294901760
      %1575 = vmatpush1.xpose.msra.mxu0 %v1574
      %1576 = vmatprep.subr.mxu0 0.0
      %v1577 = vand.u32 %v463, 4294901760
      %v1578 = vsub.f32 %v463, %v1577
      %v1579 = vand.u32 %v1578, 4294901760
      %1580 = vmatpush1.xpose.msra.mxu0 %v1579
      %1581 = vmatprep.subr.mxu0 0.0
      %v1582 = vand.u32 %v466, 4294901760
      %v1583 = vsub.f32 %v466, %v1582
      %v1584 = vand.u32 %v1583, 4294901760
      %1585 = vmatpush1.xpose.msra.mxu0 %v1584
      %1586 = vmatprep.subr.mxu0 0.0
      %v1587 = vand.u32 %v469, 4294901760
      %v1588 = vsub.f32 %v469, %v1587
      %v1589 = vand.u32 %v1588, 4294901760
      %1590 = vmatpush1.xpose.msra.mxu0 %v1589
      %1591 = vmatprep.subr.mxu0 0.0
      %v1592 = vand.u32 %v472, 4294901760
      %v1593 = vsub.f32 %v472, %v1592
      %v1594 = vand.u32 %v1593, 4294901760
      %1595 = vmatpush1.xpose.msra.mxu0 %v1594
      %1596 = vmatprep.subr.mxu0 0.0
      %v1597 = vand.u32 %v475, 4294901760
      %v1598 = vsub.f32 %v475, %v1597
      %v1599 = vand.u32 %v1598, 4294901760
      %1600 = vmatpush1.xpose.msra.mxu0 %v1599
      %1601 = vmatprep.subr.mxu0 0.0
      %v1602 = vand.u32 %v478, 4294901760
      %v1603 = vsub.f32 %v478, %v1602
      %v1604 = vand.u32 %v1603, 4294901760
      %1605 = vmatpush1.xpose.msra.mxu0 %v1604
      %1606 = vmatprep.subr.mxu0 0.0
      %v1607 = vand.u32 %v481, 4294901760
      %v1608 = vsub.f32 %v481, %v1607
      %v1609 = vand.u32 %v1608, 4294901760
      %1610 = vmatpush1.xpose.msra.mxu0 %v1609
      %1611 = vmatprep.subr.mxu0 0.0
      %v1612 = vand.u32 %v484, 4294901760
      %v1613 = vsub.f32 %v484, %v1612
      %v1614 = vand.u32 %v1613, 4294901760
      %1615 = vmatpush1.xpose.msra.mxu0 %v1614
      %1616 = vmatprep.subr.mxu0 0.0
      %v1617 = vand.u32 %v487, 4294901760
      %v1618 = vsub.f32 %v487, %v1617
      %v1619 = vand.u32 %v1618, 4294901760
      %1620 = vmatpush1.xpose.msra.mxu0 %v1619
      %1621 = vmatprep.subr.mxu0 0.0
      %v1622 = vand.u32 %v490, 4294901760
      %v1623 = vsub.f32 %v490, %v1622
      %v1624 = vand.u32 %v1623, 4294901760
      %1625 = vmatpush1.xpose.msra.mxu0 %v1624
      %1626 = vmatprep.subr.mxu0 0.0
      %v1627 = vand.u32 %v493, 4294901760
      %v1628 = vsub.f32 %v493, %v1627
      %v1629 = vand.u32 %v1628, 4294901760
      %1630 = vmatpush1.xpose.msra.mxu0 %v1629
      %1631 = vmatprep.mubr.f32.mxu0 0.0
      %v1632 = vand.u32 %v388, 4294901760
      %1633 = vmatmul.mubr.f32.gmra.mrb[0].mxu0 %v1632
      %v1634 = vpop.f32.mrb[0].mxu0
      %v1635 = vadd.f32 %v1440, %v1634
      %v1636 = vpop.f32.mrb[0].mxu0
      %v1637 = vadd.f32 %v1442, %v1636
      %1638 = vmatprep.mubr.f32.mxu0 0.0
      %v1639 = vand.u32 %v391, 4294901760
      %1640 = vmatmul.mubr.f32.gmra.mrb[0].mxu0 %v1639
      %v1641 = vpop.f32.mrb[0].mxu0
      %v1642 = vadd.f32 %v1449, %v1641
      %v1643 = vpop.f32.mrb[0].mxu0
      %v1644 = vadd.f32 %v1451, %v1643
      %1645 = vmatprep.mubr.f32.mxu0 0.0
      %v1646 = vand.u32 %v394, 4294901760
      %1647 = vmatmul.mubr.f32.gmra.mrb[0].mxu0 %v1646
      %v1648 = vpop.f32.mrb[0].mxu0
      %v1649 = vadd.f32 %v1458, %v1648
      %v1650 = vpop.f32.mrb[0].mxu0
      %v1651 = vadd.f32 %v1460, %v1650
      %1652 = vmatprep.mubr.f32.mxu0 0.0
      %v1653 = vand.u32 %v397, 4294901760
      %1654 = vmatmul.mubr.f32.gmra.mrb[0].mxu0 %v1653
      %v1655 = vpop.f32.mrb[0].mxu0
      %v1656 = vadd.f32 %v1467, %v1655
      %v1657 = vpop.f32.mrb[0].mxu0
      %v1658 = vadd.f32 %v1469, %v1657
      %1659 = vdwg.mxu0
      %1660 = vmatprep.subr.mxu0 0.0
      %v1661 = vand.u32 %v400, 4294901760
      %1662 = vmatpush1.xpose.msra.mxu0 %v1661
      %1663 = vmatprep.subr.mxu0 0.0
      %v1664 = vand.u32 %v403, 4294901760
      %1665 = vmatpush1.xpose.msra.mxu0 %v1664
      %1666 = vmatprep.subr.mxu0 0.0
      %v1667 = vand.u32 %v406, 4294901760
      %1668 = vmatpush1.xpose.msra.mxu0 %v1667
      %1669 = vmatprep.subr.mxu0 0.0
      %v1670 = vand.u32 %v409, 4294901760
      %1671 = vmatpush1.xpose.msra.mxu0 %v1670
      %1672 = vmatprep.subr.mxu0 0.0
      %v1673 = vand.u32 %v412, 4294901760
      %1674 = vmatpush1.xpose.msra.mxu0 %v1673
      %1675 = vmatprep.subr.mxu0 0.0
      %v1676 = vand.u32 %v415, 4294901760
      %1677 = vmatpush1.xpose.msra.mxu0 %v1676
      %1678 = vmatprep.subr.mxu0 0.0
      %v1679 = vand.u32 %v418, 4294901760
      %1680 = vmatpush1.xpose.msra.mxu0 %v1679
      %1681 = vmatprep.subr.mxu0 0.0
      %v1682 = vand.u32 %v421, 4294901760
      %1683 = vmatpush1.xpose.msra.mxu0 %v1682
      %1684 = vmatprep.subr.mxu0 0.0
      %v1685 = vand.u32 %v424, 4294901760
      %1686 = vmatpush1.xpose.msra.mxu0 %v1685
      %1687 = vmatprep.subr.mxu0 0.0
      %v1688 = vand.u32 %v427, 4294901760
      %1689 = vmatpush1.xpose.msra.mxu0 %v1688
      %1690 = vmatprep.subr.mxu0 0.0
      %v1691 = vand.u32 %v430, 4294901760
      %1692 = vmatpush1.xpose.msra.mxu0 %v1691
      %1693 = vmatprep.subr.mxu0 0.0
      %v1694 = vand.u32 %v433, 4294901760
      %1695 = vmatpush1.xpose.msra.mxu0 %v1694
      %1696 = vmatprep.subr.mxu0 0.0
      %v1697 = vand.u32 %v436, 4294901760
      %1698 = vmatpush1.xpose.msra.mxu0 %v1697
      %1699 = vmatprep.subr.mxu0 0.0
      %v1700 = vand.u32 %v439, 4294901760
      %1701 = vmatpush1.xpose.msra.mxu0 %v1700
      %1702 = vmatprep.subr.mxu0 0.0
      %v1703 = vand.u32 %v442, 4294901760
      %1704 = vmatpush1.xpose.msra.mxu0 %v1703
      %1705 = vmatprep.subr.mxu0 0.0
      %v1706 = vand.u32 %v445, 4294901760
      %1707 = vmatpush1.xpose.msra.mxu0 %v1706
      %1708 = vmatprep.subr.mxu0 0.0
      %v1709 = vand.u32 %v448, 4294901760
      %1710 = vmatpush1.xpose.msra.mxu0 %v1709
      %1711 = vmatprep.subr.mxu0 0.0
      %v1712 = vand.u32 %v451, 4294901760
      %1713 = vmatpush1.xpose.msra.mxu0 %v1712
      %1714 = vmatprep.subr.mxu0 0.0
      %v1715 = vand.u32 %v454, 4294901760
      %1716 = vmatpush1.xpose.msra.mxu0 %v1715
      %1717 = vmatprep.subr.mxu0 0.0
      %v1718 = vand.u32 %v457, 4294901760
      %1719 = vmatpush1.xpose.msra.mxu0 %v1718
      %1720 = vmatprep.subr.mxu0 0.0
      %v1721 = vand.u32 %v460, 4294901760
      %1722 = vmatpush1.xpose.msra.mxu0 %v1721
      %1723 = vmatprep.subr.mxu0 0.0
      %v1724 = vand.u32 %v463, 4294901760
      %1725 = vmatpush1.xpose.msra.mxu0 %v1724
      %1726 = vmatprep.subr.mxu0 0.0
      %v1727 = vand.u32 %v466, 4294901760
      %1728 = vmatpush1.xpose.msra.mxu0 %v1727
      %1729 = vmatprep.subr.mxu0 0.0
      %v1730 = vand.u32 %v469, 4294901760
      %1731 = vmatpush1.xpose.msra.mxu0 %v1730
      %1732 = vmatprep.subr.mxu0 0.0
      %v1733 = vand.u32 %v472, 4294901760
      %1734 = vmatpush1.xpose.msra.mxu0 %v1733
      %1735 = vmatprep.subr.mxu0 0.0
      %v1736 = vand.u32 %v475, 4294901760
      %1737 = vmatpush1.xpose.msra.mxu0 %v1736
      %1738 = vmatprep.subr.mxu0 0.0
      %v1739 = vand.u32 %v478, 4294901760
      %1740 = vmatpush1.xpose.msra.mxu0 %v1739
      %1741 = vmatprep.subr.mxu0 0.0
      %v1742 = vand.u32 %v481, 4294901760
      %1743 = vmatpush1.xpose.msra.mxu0 %v1742
      %1744 = vmatprep.subr.mxu0 0.0
      %v1745 = vand.u32 %v484, 4294901760
      %1746 = vmatpush1.xpose.msra.mxu0 %v1745
      %1747 = vmatprep.subr.mxu0 0.0
      %v1748 = vand.u32 %v487, 4294901760
      %1749 = vmatpush1.xpose.msra.mxu0 %v1748
      %1750 = vmatprep.subr.mxu0 0.0
      %v1751 = vand.u32 %v490, 4294901760
      %1752 = vmatpush1.xpose.msra.mxu0 %v1751
      %1753 = vmatprep.subr.mxu0 0.0
      %v1754 = vand.u32 %v493, 4294901760
      %1755 = vmatpush1.xpose.msra.mxu0 %v1754
      %1756 = vmatprep.mubr.f32.mxu0 0.0
      %v1757 = vand.u32 %v388, 4294901760
      %1758 = vmatmul.mubr.f32.gmra.mrb[0].mxu0 %v1757
      %v1759 = vpop.f32.mrb[0].mxu0
      %v1760 = vadd.f32 %v1635, %v1759
      %v1761 = vpop.f32.mrb[0].mxu0
      %v1762 = vadd.f32 %v1637, %v1761
      %1763 = vmatprep.mubr.f32.mxu0 0.0
      %v1764 = vand.u32 %v391, 4294901760
      %1765 = vmatmul.mubr.f32.gmra.mrb[0].mxu0 %v1764
      %v1766 = vpop.f32.mrb[0].mxu0
      %v1767 = vadd.f32 %v1642, %v1766
      %v1768 = vpop.f32.mrb[0].mxu0
      %v1769 = vadd.f32 %v1644, %v1768
      %1770 = vmatprep.mubr.f32.mxu0 0.0
      %v1771 = vand.u32 %v394, 4294901760
      %1772 = vmatmul.mubr.f32.gmra.mrb[0].mxu0 %v1771
      %v1773 = vpop.f32.mrb[0].mxu0
      %v1774 = vadd.f32 %v1649, %v1773
      %v1775 = vpop.f32.mrb[0].mxu0
      %v1776 = vadd.f32 %v1651, %v1775
      %1777 = vmatprep.mubr.f32.mxu0 0.0
      %v1778 = vand.u32 %v397, 4294901760
      %1779 = vmatmul.mubr.f32.gmra.mrb[0].mxu0 %v1778
      %v1780 = vpop.f32.mrb[0].mxu0
      %v1781 = vadd.f32 %v1656, %v1780
      %v1782 = vpop.f32.mrb[0].mxu0
      %v1783 = vadd.f32 %v1658, %v1782
      %1784 = vdwg.mxu0
      %1785 = vmatprep.subr.mxu0 0.0
      %v1786 = vand.u32 %v496, 4294901760
      %1787 = vmatpush1.xpose.msra.mxu0 %v1786
      %1788 = vmatprep.subr.mxu0 0.0
      %v1789 = vand.u32 %v499, 4294901760
      %1790 = vmatpush1.xpose.msra.mxu0 %v1789
      %1791 = vmatprep.subr.mxu0 0.0
      %v1792 = vand.u32 %v502, 4294901760
      %1793 = vmatpush1.xpose.msra.mxu0 %v1792
      %1794 = vmatprep.subr.mxu0 0.0
      %v1795 = vand.u32 %v505, 4294901760
      %1796 = vmatpush1.xpose.msra.mxu0 %v1795
      %1797 = vmatprep.subr.mxu0 0.0
      %v1798 = vand.u32 %v508, 4294901760
      %1799 = vmatpush1.xpose.msra.mxu0 %v1798
      %1800 = vmatprep.subr.mxu0 0.0
      %v1801 = vand.u32 %v511, 4294901760
      %1802 = vmatpush1.xpose.msra.mxu0 %v1801
      %1803 = vmatprep.subr.mxu0 0.0
      %v1804 = vand.u32 %v514, 4294901760
      %1805 = vmatpush1.xpose.msra.mxu0 %v1804
      %1806 = vmatprep.subr.mxu0 0.0
      %v1807 = vand.u32 %v517, 4294901760
      %1808 = vmatpush1.xpose.msra.mxu0 %v1807
      %1809 = vmatprep.subr.mxu0 0.0
      %v1810 = vand.u32 %v520, 4294901760
      %1811 = vmatpush1.xpose.msra.mxu0 %v1810
      %1812 = vmatprep.subr.mxu0 0.0
      %v1813 = vand.u32 %v523, 4294901760
      %1814 = vmatpush1.xpose.msra.mxu0 %v1813
      %1815 = vmatprep.subr.mxu0 0.0
      %v1816 = vand.u32 %v526, 4294901760
      %1817 = vmatpush1.xpose.msra.mxu0 %v1816
      %1818 = vmatprep.subr.mxu0 0.0
      %v1819 = vand.u32 %v529, 4294901760
      %1820 = vmatpush1.xpose.msra.mxu0 %v1819
      %1821 = vmatprep.subr.mxu0 0.0
      %v1822 = vand.u32 %v532, 4294901760
      %1823 = vmatpush1.xpose.msra.mxu0 %v1822
      %1824 = vmatprep.subr.mxu0 0.0
      %v1825 = vand.u32 %v535, 4294901760
      %1826 = vmatpush1.xpose.msra.mxu0 %v1825
      %1827 = vmatprep.subr.mxu0 0.0
      %v1828 = vand.u32 %v538, 4294901760
      %1829 = vmatpush1.xpose.msra.mxu0 %v1828
      %1830 = vmatprep.subr.mxu0 0.0
      %v1831 = vand.u32 %v541, 4294901760
      %1832 = vmatpush1.xpose.msra.mxu0 %v1831
      %1833 = vmatprep.subr.mxu0 0.0
      %v1834 = vand.u32 %v544, 4294901760
      %1835 = vmatpush1.xpose.msra.mxu0 %v1834
      %1836 = vmatprep.subr.mxu0 0.0
      %v1837 = vand.u32 %v547, 4294901760
      %1838 = vmatpush1.xpose.msra.mxu0 %v1837
      %1839 = vmatprep.subr.mxu0 0.0
      %v1840 = vand.u32 %v550, 4294901760
      %1841 = vmatpush1.xpose.msra.mxu0 %v1840
      %1842 = vmatprep.subr.mxu0 0.0
      %v1843 = vand.u32 %v553, 4294901760
      %1844 = vmatpush1.xpose.msra.mxu0 %v1843
      %1845 = vmatprep.subr.mxu0 0.0
      %v1846 = vand.u32 %v556, 4294901760
      %1847 = vmatpush1.xpose.msra.mxu0 %v1846
      %1848 = vmatprep.subr.mxu0 0.0
      %v1849 = vand.u32 %v559, 4294901760
      %1850 = vmatpush1.xpose.msra.mxu0 %v1849
      %1851 = vmatprep.subr.mxu0 0.0
      %v1852 = vand.u32 %v562, 4294901760
      %1853 = vmatpush1.xpose.msra.mxu0 %v1852
      %1854 = vmatprep.subr.mxu0 0.0
      %v1855 = vand.u32 %v565, 4294901760
      %1856 = vmatpush1.xpose.msra.mxu0 %v1855
      %1857 = vmatprep.subr.mxu0 0.0
      %v1858 = vand.u32 %v568, 4294901760
      %1859 = vmatpush1.xpose.msra.mxu0 %v1858
      %1860 = vmatprep.subr.mxu0 0.0
      %v1861 = vand.u32 %v571, 4294901760
      %1862 = vmatpush1.xpose.msra.mxu0 %v1861
      %1863 = vmatprep.subr.mxu0 0.0
      %v1864 = vand.u32 %v574, 4294901760
      %1865 = vmatpush1.xpose.msra.mxu0 %v1864
      %1866 = vmatprep.subr.mxu0 0.0
      %v1867 = vand.u32 %v577, 4294901760
      %1868 = vmatpush1.xpose.msra.mxu0 %v1867
      %1869 = vmatprep.subr.mxu0 0.0
      %v1870 = vand.u32 %v580, 4294901760
      %1871 = vmatpush1.xpose.msra.mxu0 %v1870
      %1872 = vmatprep.subr.mxu0 0.0
      %v1873 = vand.u32 %v583, 4294901760
      %1874 = vmatpush1.xpose.msra.mxu0 %v1873
      %1875 = vmatprep.subr.mxu0 0.0
      %v1876 = vand.u32 %v586, 4294901760
      %1877 = vmatpush1.xpose.msra.mxu0 %v1876
      %1878 = vmatprep.subr.mxu0 0.0
      %v1879 = vand.u32 %v589, 4294901760
      %1880 = vmatpush1.xpose.msra.mxu0 %v1879
      %1881 = vmatprep.mubr.f32.mxu0 0.0
      %v1882 = vand.u32 %v388, 4294901760
      %v1883 = vsub.f32 %v388, %v1882
      %v1884 = vand.u32 %v1883, 4294901760
      %v1885 = vsub.f32 %v1883, %v1884
      %v1886 = vand.u32 %v1885, 4294901760
      %1887 = vmatmul.mubr.f32.gmra.mrb[0].mxu0 %v1886
      %v1888 = vpop.f32.mrb[0].mxu0
      %v1889 = vadd.f32 %v369, %v1888
      %v1890 = vpop.f32.mrb[0].mxu0
      %v1891 = vadd.f32 %v369, %v1890
      %1892 = vmatprep.mubr.f32.mxu0 0.0
      %v1893 = vand.u32 %v391, 4294901760
      %v1894 = vsub.f32 %v391, %v1893
      %v1895 = vand.u32 %v1894, 4294901760
      %v1896 = vsub.f32 %v1894, %v1895
      %v1897 = vand.u32 %v1896, 4294901760
      %1898 = vmatmul.mubr.f32.gmra.mrb[0].mxu0 %v1897
      %v1899 = vpop.f32.mrb[0].mxu0
      %v1900 = vadd.f32 %v374, %v1899
      %v1901 = vpop.f32.mrb[0].mxu0
      %v1902 = vadd.f32 %v374, %v1901
      %1903 = vmatprep.mubr.f32.mxu0 0.0
      %v1904 = vand.u32 %v394, 4294901760
      %v1905 = vsub.f32 %v394, %v1904
      %v1906 = vand.u32 %v1905, 4294901760
      %v1907 = vsub.f32 %v1905, %v1906
      %v1908 = vand.u32 %v1907, 4294901760
      %1909 = vmatmul.mubr.f32.gmra.mrb[0].mxu0 %v1908
      %v1910 = vpop.f32.mrb[0].mxu0
      %v1911 = vadd.f32 %v379, %v1910
      %v1912 = vpop.f32.mrb[0].mxu0
      %v1913 = vadd.f32 %v379, %v1912
      %1914 = vmatprep.mubr.f32.mxu0 0.0
      %v1915 = vand.u32 %v397, 4294901760
      %v1916 = vsub.f32 %v397, %v1915
      %v1917 = vand.u32 %v1916, 4294901760
      %v1918 = vsub.f32 %v1916, %v1917
      %v1919 = vand.u32 %v1918, 4294901760
      %1920 = vmatmul.mubr.f32.gmra.mrb[0].mxu0 %v1919
      %v1921 = vpop.f32.mrb[0].mxu0
      %v1922 = vadd.f32 %v384, %v1921
      %v1923 = vpop.f32.mrb[0].mxu0
      %v1924 = vadd.f32 %v384, %v1923
      %1925 = vdwg.mxu0
      %1926 = vmatprep.subr.mxu0 0.0
      %v1927 = vand.u32 %v496, 4294901760
      %v1928 = vsub.f32 %v496, %v1927
      %v1929 = vand.u32 %v1928, 4294901760
      %v1930 = vsub.f32 %v1928, %v1929
      %v1931 = vand.u32 %v1930, 4294901760
      %1932 = vmatpush1.xpose.msra.mxu0 %v1931
      %1933 = vmatprep.subr.mxu0 0.0
      %v1934 = vand.u32 %v499, 4294901760
      %v1935 = vsub.f32 %v499, %v1934
      %v1936 = vand.u32 %v1935, 4294901760
      %v1937 = vsub.f32 %v1935, %v1936
      %v1938 = vand.u32 %v1937, 4294901760
      %1939 = vmatpush1.xpose.msra.mxu0 %v1938
      %1940 = vmatprep.subr.mxu0 0.0
      %v1941 = vand.u32 %v502, 4294901760
      %v1942 = vsub.f32 %v502, %v1941
      %v1943 = vand.u32 %v1942, 4294901760
      %v1944 = vsub.f32 %v1942, %v1943
      %v1945 = vand.u32 %v1944, 4294901760
      %1946 = vmatpush1.xpose.msra.mxu0 %v1945
      %1947 = vmatprep.subr.mxu0 0.0
      %v1948 = vand.u32 %v505, 4294901760
      %v1949 = vsub.f32 %v505, %v1948
      %v1950 = vand.u32 %v1949, 4294901760
      %v1951 = vsub.f32 %v1949, %v1950
      %v1952 = vand.u32 %v1951, 4294901760
      %1953 = vmatpush1.xpose.msra.mxu0 %v1952
      %1954 = vmatprep.subr.mxu0 0.0
      %v1955 = vand.u32 %v508, 4294901760
      %v1956 = vsub.f32 %v508, %v1955
      %v1957 = vand.u32 %v1956, 4294901760
      %v1958 = vsub.f32 %v1956, %v1957
      %v1959 = vand.u32 %v1958, 4294901760
      %1960 = vmatpush1.xpose.msra.mxu0 %v1959
      %1961 = vmatprep.subr.mxu0 0.0
      %v1962 = vand.u32 %v511, 4294901760
      %v1963 = vsub.f32 %v511, %v1962
      %v1964 = vand.u32 %v1963, 4294901760
      %v1965 = vsub.f32 %v1963, %v1964
      %v1966 = vand.u32 %v1965, 4294901760
      %1967 = vmatpush1.xpose.msra.mxu0 %v1966
      %1968 = vmatprep.subr.mxu0 0.0
      %v1969 = vand.u32 %v514, 4294901760
      %v1970 = vsub.f32 %v514, %v1969
      %v1971 = vand.u32 %v1970, 4294901760
      %v1972 = vsub.f32 %v1970, %v1971
      %v1973 = vand.u32 %v1972, 4294901760
      %1974 = vmatpush1.xpose.msra.mxu0 %v1973
      %1975 = vmatprep.subr.mxu0 0.0
      %v1976 = vand.u32 %v517, 4294901760
      %v1977 = vsub.f32 %v517, %v1976
      %v1978 = vand.u32 %v1977, 4294901760
      %v1979 = vsub.f32 %v1977, %v1978
      %v1980 = vand.u32 %v1979, 4294901760
      %1981 = vmatpush1.xpose.msra.mxu0 %v1980
      %1982 = vmatprep.subr.mxu0 0.0
      %v1983 = vand.u32 %v520, 4294901760
      %v1984 = vsub.f32 %v520, %v1983
      %v1985 = vand.u32 %v1984, 4294901760
      %v1986 = vsub.f32 %v1984, %v1985
      %v1987 = vand.u32 %v1986, 4294901760
      %1988 = vmatpush1.xpose.msra.mxu0 %v1987
      %1989 = vmatprep.subr.mxu0 0.0
      %v1990 = vand.u32 %v523, 4294901760
      %v1991 = vsub.f32 %v523, %v1990
      %v1992 = vand.u32 %v1991, 4294901760
      %v1993 = vsub.f32 %v1991, %v1992
      %v1994 = vand.u32 %v1993, 4294901760
      %1995 = vmatpush1.xpose.msra.mxu0 %v1994
      %1996 = vmatprep.subr.mxu0 0.0
      %v1997 = vand.u32 %v526, 4294901760
      %v1998 = vsub.f32 %v526, %v1997
      %v1999 = vand.u32 %v1998, 4294901760
      %v2000 = vsub.f32 %v1998, %v1999
      %v2001 = vand.u32 %v2000, 4294901760
      %2002 = vmatpush1.xpose.msra.mxu0 %v2001
      %2003 = vmatprep.subr.mxu0 0.0
      %v2004 = vand.u32 %v529, 4294901760
      %v2005 = vsub.f32 %v529, %v2004
      %v2006 = vand.u32 %v2005, 4294901760
      %v2007 = vsub.f32 %v2005, %v2006
      %v2008 = vand.u32 %v2007, 4294901760
      %2009 = vmatpush1.xpose.msra.mxu0 %v2008
      %2010 = vmatprep.subr.mxu0 0.0
      %v2011 = vand.u32 %v532, 4294901760
      %v2012 = vsub.f32 %v532, %v2011
      %v2013 = vand.u32 %v2012, 4294901760
      %v2014 = vsub.f32 %v2012, %v2013
      %v2015 = vand.u32 %v2014, 4294901760
      %2016 = vmatpush1.xpose.msra.mxu0 %v2015
      %2017 = vmatprep.subr.mxu0 0.0
      %v2018 = vand.u32 %v535, 4294901760
      %v2019 = vsub.f32 %v535, %v2018
      %v2020 = vand.u32 %v2019, 4294901760
      %v2021 = vsub.f32 %v2019, %v2020
      %v2022 = vand.u32 %v2021, 4294901760
      %2023 = vmatpush1.xpose.msra.mxu0 %v2022
      %2024 = vmatprep.subr.mxu0 0.0
      %v2025 = vand.u32 %v538, 4294901760
      %v2026 = vsub.f32 %v538, %v2025
      %v2027 = vand.u32 %v2026, 4294901760
      %v2028 = vsub.f32 %v2026, %v2027
      %v2029 = vand.u32 %v2028, 4294901760
      %2030 = vmatpush1.xpose.msra.mxu0 %v2029
      %2031 = vmatprep.subr.mxu0 0.0
      %v2032 = vand.u32 %v541, 4294901760
      %v2033 = vsub.f32 %v541, %v2032
      %v2034 = vand.u32 %v2033, 4294901760
      %v2035 = vsub.f32 %v2033, %v2034
      %v2036 = vand.u32 %v2035, 4294901760
      %2037 = vmatpush1.xpose.msra.mxu0 %v2036
      %2038 = vmatprep.subr.mxu0 0.0
      %v2039 = vand.u32 %v544, 4294901760
      %v2040 = vsub.f32 %v544, %v2039
      %v2041 = vand.u32 %v2040, 4294901760
      %v2042 = vsub.f32 %v2040, %v2041
      %v2043 = vand.u32 %v2042, 4294901760
      %2044 = vmatpush1.xpose.msra.mxu0 %v2043
      %2045 = vmatprep.subr.mxu0 0.0
      %v2046 = vand.u32 %v547, 4294901760
      %v2047 = vsub.f32 %v547, %v2046
      %v2048 = vand.u32 %v2047, 4294901760
      %v2049 = vsub.f32 %v2047, %v2048
      %v2050 = vand.u32 %v2049, 4294901760
      %2051 = vmatpush1.xpose.msra.mxu0 %v2050
      %2052 = vmatprep.subr.mxu0 0.0
      %v2053 = vand.u32 %v550, 4294901760
      %v2054 = vsub.f32 %v550, %v2053
      %v2055 = vand.u32 %v2054, 4294901760
      %v2056 = vsub.f32 %v2054, %v2055
      %v2057 = vand.u32 %v2056, 4294901760
      %2058 = vmatpush1.xpose.msra.mxu0 %v2057
      %2059 = vmatprep.subr.mxu0 0.0
      %v2060 = vand.u32 %v553, 4294901760
      %v2061 = vsub.f32 %v553, %v2060
      %v2062 = vand.u32 %v2061, 4294901760
      %v2063 = vsub.f32 %v2061, %v2062
      %v2064 = vand.u32 %v2063, 4294901760
      %2065 = vmatpush1.xpose.msra.mxu0 %v2064
      %2066 = vmatprep.subr.mxu0 0.0
      %v2067 = vand.u32 %v556, 4294901760
      %v2068 = vsub.f32 %v556, %v2067
      %v2069 = vand.u32 %v2068, 4294901760
      %v2070 = vsub.f32 %v2068, %v2069
      %v2071 = vand.u32 %v2070, 4294901760
      %2072 = vmatpush1.xpose.msra.mxu0 %v2071
      %2073 = vmatprep.subr.mxu0 0.0
      %v2074 = vand.u32 %v559, 4294901760
      %v2075 = vsub.f32 %v559, %v2074
      %v2076 = vand.u32 %v2075, 4294901760
      %v2077 = vsub.f32 %v2075, %v2076
      %v2078 = vand.u32 %v2077, 4294901760
      %2079 = vmatpush1.xpose.msra.mxu0 %v2078
      %2080 = vmatprep.subr.mxu0 0.0
      %v2081 = vand.u32 %v562, 4294901760
      %v2082 = vsub.f32 %v562, %v2081
      %v2083 = vand.u32 %v2082, 4294901760
      %v2084 = vsub.f32 %v2082, %v2083
      %v2085 = vand.u32 %v2084, 4294901760
      %2086 = vmatpush1.xpose.msra.mxu0 %v2085
      %2087 = vmatprep.subr.mxu0 0.0
      %v2088 = vand.u32 %v565, 4294901760
      %v2089 = vsub.f32 %v565, %v2088
      %v2090 = vand.u32 %v2089, 4294901760
      %v2091 = vsub.f32 %v2089, %v2090
      %v2092 = vand.u32 %v2091, 4294901760
      %2093 = vmatpush1.xpose.msra.mxu0 %v2092
      %2094 = vmatprep.subr.mxu0 0.0
      %v2095 = vand.u32 %v568, 4294901760
      %v2096 = vsub.f32 %v568, %v2095
      %v2097 = vand.u32 %v2096, 4294901760
      %v2098 = vsub.f32 %v2096, %v2097
      %v2099 = vand.u32 %v2098, 4294901760
      %2100 = vmatpush1.xpose.msra.mxu0 %v2099
      %2101 = vmatprep.subr.mxu0 0.0
      %v2102 = vand.u32 %v571, 4294901760
      %v2103 = vsub.f32 %v571, %v2102
      %v2104 = vand.u32 %v2103, 4294901760
      %v2105 = vsub.f32 %v2103, %v2104
      %v2106 = vand.u32 %v2105, 4294901760
      %2107 = vmatpush1.xpose.msra.mxu0 %v2106
      %2108 = vmatprep.subr.mxu0 0.0
      %v2109 = vand.u32 %v574, 4294901760
      %v2110 = vsub.f32 %v574, %v2109
      %v2111 = vand.u32 %v2110, 4294901760
      %v2112 = vsub.f32 %v2110, %v2111
      %v2113 = vand.u32 %v2112, 4294901760
      %2114 = vmatpush1.xpose.msra.mxu0 %v2113
      %2115 = vmatprep.subr.mxu0 0.0
      %v2116 = vand.u32 %v577, 4294901760
      %v2117 = vsub.f32 %v577, %v2116
      %v2118 = vand.u32 %v2117, 4294901760
      %v2119 = vsub.f32 %v2117, %v2118
      %v2120 = vand.u32 %v2119, 4294901760
      %2121 = vmatpush1.xpose.msra.mxu0 %v2120
      %2122 = vmatprep.subr.mxu0 0.0
      %v2123 = vand.u32 %v580, 4294901760
      %v2124 = vsub.f32 %v580, %v2123
      %v2125 = vand.u32 %v2124, 4294901760
      %v2126 = vsub.f32 %v2124, %v2125
      %v2127 = vand.u32 %v2126, 4294901760
      %2128 = vmatpush1.xpose.msra.mxu0 %v2127
      %2129 = vmatprep.subr.mxu0 0.0
      %v2130 = vand.u32 %v583, 4294901760
      %v2131 = vsub.f32 %v583, %v2130
      %v2132 = vand.u32 %v2131, 4294901760
      %v2133 = vsub.f32 %v2131, %v2132
      %v2134 = vand.u32 %v2133, 4294901760
      %2135 = vmatpush1.xpose.msra.mxu0 %v2134
      %2136 = vmatprep.subr.mxu0 0.0
      %v2137 = vand.u32 %v586, 4294901760
      %v2138 = vsub.f32 %v586, %v2137
      %v2139 = vand.u32 %v2138, 4294901760
      %v2140 = vsub.f32 %v2138, %v2139
      %v2141 = vand.u32 %v2140, 4294901760
      %2142 = vmatpush1.xpose.msra.mxu0 %v2141
      %2143 = vmatprep.subr.mxu0 0.0
      %v2144 = vand.u32 %v589, 4294901760
      %v2145 = vsub.f32 %v589, %v2144
      %v2146 = vand.u32 %v2145, 4294901760
      %v2147 = vsub.f32 %v2145, %v2146
      %v2148 = vand.u32 %v2147, 4294901760
      %2149 = vmatpush1.xpose.msra.mxu0 %v2148
      %2150 = vmatprep.mubr.f32.mxu0 0.0
      %v2151 = vand.u32 %v388, 4294901760
      %2152 = vmatmul.mubr.f32.gmra.mrb[0].mxu0 %v2151
      %v2153 = vpop.f32.mrb[0].mxu0
      %v2154 = vadd.f32 %v1889, %v2153
      %v2155 = vpop.f32.mrb[0].mxu0
      %v2156 = vadd.f32 %v1891, %v2155
      %2157 = vmatprep.mubr.f32.mxu0 0.0
      %v2158 = vand.u32 %v391, 4294901760
      %2159 = vmatmul.mubr.f32.gmra.mrb[0].mxu0 %v2158
      %v2160 = vpop.f32.mrb[0].mxu0
      %v2161 = vadd.f32 %v1900, %v2160
      %v2162 = vpop.f32.mrb[0].mxu0
      %v2163 = vadd.f32 %v1902, %v2162
      %2164 = vmatprep.mubr.f32.mxu0 0.0
      %v2165 = vand.u32 %v394, 4294901760
      %2166 = vmatmul.mubr.f32.gmra.mrb[0].mxu0 %v2165
      %v2167 = vpop.f32.mrb[0].mxu0
      %v2168 = vadd.f32 %v1911, %v2167
      %v2169 = vpop.f32.mrb[0].mxu0
      %v2170 = vadd.f32 %v1913, %v2169
      %2171 = vmatprep.mubr.f32.mxu0 0.0
      %v2172 = vand.u32 %v397, 4294901760
      %2173 = vmatmul.mubr.f32.gmra.mrb[0].mxu0 %v2172
      %v2174 = vpop.f32.mrb[0].mxu0
      %v2175 = vadd.f32 %v1922, %v2174
      %v2176 = vpop.f32.mrb[0].mxu0
      %v2177 = vadd.f32 %v1924, %v2176
      %2178 = vdwg.mxu0
      %2179 = vmatprep.subr.mxu0 0.0
      %v2180 = vand.u32 %v496, 4294901760
      %v2181 = vsub.f32 %v496, %v2180
      %2182 = vmatpush1.xpose.msra.mxu0 %v2181
      %2183 = vmatprep.subr.mxu0 0.0
      %v2184 = vand.u32 %v499, 4294901760
      %v2185 = vsub.f32 %v499, %v2184
      %2186 = vmatpush1.xpose.msra.mxu0 %v2185
      %2187 = vmatprep.subr.mxu0 0.0
      %v2188 = vand.u32 %v502, 4294901760
      %v2189 = vsub.f32 %v502, %v2188
      %2190 = vmatpush1.xpose.msra.mxu0 %v2189
      %2191 = vmatprep.subr.mxu0 0.0
      %v2192 = vand.u32 %v505, 4294901760
      %v2193 = vsub.f32 %v505, %v2192
      %2194 = vmatpush1.xpose.msra.mxu0 %v2193
      %2195 = vmatprep.subr.mxu0 0.0
      %v2196 = vand.u32 %v508, 4294901760
      %v2197 = vsub.f32 %v508, %v2196
      %2198 = vmatpush1.xpose.msra.mxu0 %v2197
      %2199 = vmatprep.subr.mxu0 0.0
      %v2200 = vand.u32 %v511, 4294901760
      %v2201 = vsub.f32 %v511, %v2200
      %2202 = vmatpush1.xpose.msra.mxu0 %v2201
      %2203 = vmatprep.subr.mxu0 0.0
      %v2204 = vand.u32 %v514, 4294901760
      %v2205 = vsub.f32 %v514, %v2204
      %2206 = vmatpush1.xpose.msra.mxu0 %v2205
      %2207 = vmatprep.subr.mxu0 0.0
      %v2208 = vand.u32 %v517, 4294901760
      %v2209 = vsub.f32 %v517, %v2208
      %2210 = vmatpush1.xpose.msra.mxu0 %v2209
      %2211 = vmatprep.subr.mxu0 0.0
      %v2212 = vand.u32 %v520, 4294901760
      %v2213 = vsub.f32 %v520, %v2212
      %2214 = vmatpush1.xpose.msra.mxu0 %v2213
      %2215 = vmatprep.subr.mxu0 0.0
      %v2216 = vand.u32 %v523, 4294901760
      %v2217 = vsub.f32 %v523, %v2216
      %2218 = vmatpush1.xpose.msra.mxu0 %v2217
      %2219 = vmatprep.subr.mxu0 0.0
      %v2220 = vand.u32 %v526, 4294901760
      %v2221 = vsub.f32 %v526, %v2220
      %2222 = vmatpush1.xpose.msra.mxu0 %v2221
      %2223 = vmatprep.subr.mxu0 0.0
      %v2224 = vand.u32 %v529, 4294901760
      %v2225 = vsub.f32 %v529, %v2224
      %2226 = vmatpush1.xpose.msra.mxu0 %v2225
      %2227 = vmatprep.subr.mxu0 0.0
      %v2228 = vand.u32 %v532, 4294901760
      %v2229 = vsub.f32 %v532, %v2228
      %2230 = vmatpush1.xpose.msra.mxu0 %v2229
      %2231 = vmatprep.subr.mxu0 0.0
      %v2232 = vand.u32 %v535, 4294901760
      %v2233 = vsub.f32 %v535, %v2232
      %2234 = vmatpush1.xpose.msra.mxu0 %v2233
      %2235 = vmatprep.subr.mxu0 0.0
      %v2236 = vand.u32 %v538, 4294901760
      %v2237 = vsub.f32 %v538, %v2236
      %2238 = vmatpush1.xpose.msra.mxu0 %v2237
      %2239 = vmatprep.subr.mxu0 0.0
      %v2240 = vand.u32 %v541, 4294901760
      %v2241 = vsub.f32 %v541, %v2240
      %2242 = vmatpush1.xpose.msra.mxu0 %v2241
      %2243 = vmatprep.subr.mxu0 0.0
      %v2244 = vand.u32 %v544, 4294901760
      %v2245 = vsub.f32 %v544, %v2244
      %2246 = vmatpush1.xpose.msra.mxu0 %v2245
      %2247 = vmatprep.subr.mxu0 0.0
      %v2248 = vand.u32 %v547, 4294901760
      %v2249 = vsub.f32 %v547, %v2248
      %2250 = vmatpush1.xpose.msra.mxu0 %v2249
      %2251 = vmatprep.subr.mxu0 0.0
      %v2252 = vand.u32 %v550, 4294901760
      %v2253 = vsub.f32 %v550, %v2252
      %2254 = vmatpush1.xpose.msra.mxu0 %v2253
      %2255 = vmatprep.subr.mxu0 0.0
      %v2256 = vand.u32 %v553, 4294901760
      %v2257 = vsub.f32 %v553, %v2256
      %2258 = vmatpush1.xpose.msra.mxu0 %v2257
      %2259 = vmatprep.subr.mxu0 0.0
      %v2260 = vand.u32 %v556, 4294901760
      %v2261 = vsub.f32 %v556, %v2260
      %2262 = vmatpush1.xpose.msra.mxu0 %v2261
      %2263 = vmatprep.subr.mxu0 0.0
      %v2264 = vand.u32 %v559, 4294901760
      %v2265 = vsub.f32 %v559, %v2264
      %2266 = vmatpush1.xpose.msra.mxu0 %v2265
      %2267 = vmatprep.subr.mxu0 0.0
      %v2268 = vand.u32 %v562, 4294901760
      %v2269 = vsub.f32 %v562, %v2268
      %2270 = vmatpush1.xpose.msra.mxu0 %v2269
      %2271 = vmatprep.subr.mxu0 0.0
      %v2272 = vand.u32 %v565, 4294901760
      %v2273 = vsub.f32 %v565, %v2272
      %2274 = vmatpush1.xpose.msra.mxu0 %v2273
      %2275 = vmatprep.subr.mxu0 0.0
      %v2276 = vand.u32 %v568, 4294901760
      %v2277 = vsub.f32 %v568, %v2276
      %2278 = vmatpush1.xpose.msra.mxu0 %v2277
      %2279 = vmatprep.subr.mxu0 0.0
      %v2280 = vand.u32 %v571, 4294901760
      %v2281 = vsub.f32 %v571, %v2280
      %2282 = vmatpush1.xpose.msra.mxu0 %v2281
      %2283 = vmatprep.subr.mxu0 0.0
      %v2284 = vand.u32 %v574, 4294901760
      %v2285 = vsub.f32 %v574, %v2284
      %2286 = vmatpush1.xpose.msra.mxu0 %v2285
      %2287 = vmatprep.subr.mxu0 0.0
      %v2288 = vand.u32 %v577, 4294901760
      %v2289 = vsub.f32 %v577, %v2288
      %2290 = vmatpush1.xpose.msra.mxu0 %v2289
      %2291 = vmatprep.subr.mxu0 0.0
      %v2292 = vand.u32 %v580, 4294901760
      %v2293 = vsub.f32 %v580, %v2292
      %2294 = vmatpush1.xpose.msra.mxu0 %v2293
      %2295 = vmatprep.subr.mxu0 0.0
      %v2296 = vand.u32 %v583, 4294901760
      %v2297 = vsub.f32 %v583, %v2296
      %2298 = vmatpush1.xpose.msra.mxu0 %v2297
      %2299 = vmatprep.subr.mxu0 0.0
      %v2300 = vand.u32 %v586, 4294901760
      %v2301 = vsub.f32 %v586, %v2300
      %2302 = vmatpush1.xpose.msra.mxu0 %v2301
      %2303 = vmatprep.subr.mxu0 0.0
      %v2304 = vand.u32 %v589, 4294901760
      %v2305 = vsub.f32 %v589, %v2304
      %2306 = vmatpush1.xpose.msra.mxu0 %v2305
      %2307 = vmatprep.mubr.f32.mxu0 0.0
      %v2308 = vand.u32 %v388, 4294901760
      %v2309 = vsub.f32 %v388, %v2308
      %2310 = vmatmul.mubr.f32.gmra.mrb[0].mxu0 %v2309
      %v2311 = vpop.f32.mrb[0].mxu0
      %v2312 = vadd.f32 %v2154, %v2311
      %v2313 = vpop.f32.mrb[0].mxu0
      %v2314 = vadd.f32 %v2156, %v2313
      %2315 = vmatprep.mubr.f32.mxu0 0.0
      %v2316 = vand.u32 %v391, 4294901760
      %v2317 = vsub.f32 %v391, %v2316
      %2318 = vmatmul.mubr.f32.gmra.mrb[0].mxu0 %v2317
      %v2319 = vpop.f32.mrb[0].mxu0
      %v2320 = vadd.f32 %v2161, %v2319
      %v2321 = vpop.f32.mrb[0].mxu0
      %v2322 = vadd.f32 %v2163, %v2321
      %2323 = vmatprep.mubr.f32.mxu0 0.0
      %v2324 = vand.u32 %v394, 4294901760
      %v2325 = vsub.f32 %v394, %v2324
      %2326 = vmatmul.mubr.f32.gmra.mrb[0].mxu0 %v2325
      %v2327 = vpop.f32.mrb[0].mxu0
      %v2328 = vadd.f32 %v2168, %v2327
      %v2329 = vpop.f32.mrb[0].mxu0
      %v2330 = vadd.f32 %v2170, %v2329
      %2331 = vmatprep.mubr.f32.mxu0 0.0
      %v2332 = vand.u32 %v397, 4294901760
      %v2333 = vsub.f32 %v397, %v2332
      %2334 = vmatmul.mubr.f32.gmra.mrb[0].mxu0 %v2333
      %v2335 = vpop.f32.mrb[0].mxu0
      %v2336 = vadd.f32 %v2175, %v2335
      %v2337 = vpop.f32.mrb[0].mxu0
      %v2338 = vadd.f32 %v2177, %v2337
      %2339 = vdwg.mxu0
      %2340 = vmatprep.subr.mxu0 0.0
      %v2341 = vand.u32 %v496, 4294901760
      %2342 = vmatpush1.xpose.msra.mxu0 %v2341
      %2343 = vmatprep.subr.mxu0 0.0
      %v2344 = vand.u32 %v499, 4294901760
      %2345 = vmatpush1.xpose.msra.mxu0 %v2344
      %2346 = vmatprep.subr.mxu0 0.0
      %v2347 = vand.u32 %v502, 4294901760
      %2348 = vmatpush1.xpose.msra.mxu0 %v2347
      %2349 = vmatprep.subr.mxu0 0.0
      %v2350 = vand.u32 %v505, 4294901760
      %2351 = vmatpush1.xpose.msra.mxu0 %v2350
      %2352 = vmatprep.subr.mxu0 0.0
      %v2353 = vand.u32 %v508, 4294901760
      %2354 = vmatpush1.xpose.msra.mxu0 %v2353
      %2355 = vmatprep.subr.mxu0 0.0
      %v2356 = vand.u32 %v511, 4294901760
      %2357 = vmatpush1.xpose.msra.mxu0 %v2356
      %2358 = vmatprep.subr.mxu0 0.0
      %v2359 = vand.u32 %v514, 4294901760
      %2360 = vmatpush1.xpose.msra.mxu0 %v2359
      %2361 = vmatprep.subr.mxu0 0.0
      %v2362 = vand.u32 %v517, 4294901760
      %2363 = vmatpush1.xpose.msra.mxu0 %v2362
      %2364 = vmatprep.subr.mxu0 0.0
      %v2365 = vand.u32 %v520, 4294901760
      %2366 = vmatpush1.xpose.msra.mxu0 %v2365
      %2367 = vmatprep.subr.mxu0 0.0
      %v2368 = vand.u32 %v523, 4294901760
      %2369 = vmatpush1.xpose.msra.mxu0 %v2368
      %2370 = vmatprep.subr.mxu0 0.0
      %v2371 = vand.u32 %v526, 4294901760
      %2372 = vmatpush1.xpose.msra.mxu0 %v2371
      %2373 = vmatprep.subr.mxu0 0.0
      %v2374 = vand.u32 %v529, 4294901760
      %2375 = vmatpush1.xpose.msra.mxu0 %v2374
      %2376 = vmatprep.subr.mxu0 0.0
      %v2377 = vand.u32 %v532, 4294901760
      %2378 = vmatpush1.xpose.msra.mxu0 %v2377
      %2379 = vmatprep.subr.mxu0 0.0
      %v2380 = vand.u32 %v535, 4294901760
      %2381 = vmatpush1.xpose.msra.mxu0 %v2380
      %2382 = vmatprep.subr.mxu0 0.0
      %v2383 = vand.u32 %v538, 4294901760
      %2384 = vmatpush1.xpose.msra.mxu0 %v2383
      %2385 = vmatprep.subr.mxu0 0.0
      %v2386 = vand.u32 %v541, 4294901760
      %2387 = vmatpush1.xpose.msra.mxu0 %v2386
      %2388 = vmatprep.subr.mxu0 0.0
      %v2389 = vand.u32 %v544, 4294901760
      %2390 = vmatpush1.xpose.msra.mxu0 %v2389
      %2391 = vmatprep.subr.mxu0 0.0
      %v2392 = vand.u32 %v547, 4294901760
      %2393 = vmatpush1.xpose.msra.mxu0 %v2392
      %2394 = vmatprep.subr.mxu0 0.0
      %v2395 = vand.u32 %v550, 4294901760
      %2396 = vmatpush1.xpose.msra.mxu0 %v2395
      %2397 = vmatprep.subr.mxu0 0.0
      %v2398 = vand.u32 %v553, 4294901760
      %2399 = vmatpush1.xpose.msra.mxu0 %v2398
      %2400 = vmatprep.subr.mxu0 0.0
      %v2401 = vand.u32 %v556, 4294901760
      %2402 = vmatpush1.xpose.msra.mxu0 %v2401
      %2403 = vmatprep.subr.mxu0 0.0
      %v2404 = vand.u32 %v559, 4294901760
      %2405 = vmatpush1.xpose.msra.mxu0 %v2404
      %2406 = vmatprep.subr.mxu0 0.0
      %v2407 = vand.u32 %v562, 4294901760
      %2408 = vmatpush1.xpose.msra.mxu0 %v2407
      %2409 = vmatprep.subr.mxu0 0.0
      %v2410 = vand.u32 %v565, 4294901760
      %2411 = vmatpush1.xpose.msra.mxu0 %v2410
      %2412 = vmatprep.subr.mxu0 0.0
      %v2413 = vand.u32 %v568, 4294901760
      %2414 = vmatpush1.xpose.msra.mxu0 %v2413
      %2415 = vmatprep.subr.mxu0 0.0
      %v2416 = vand.u32 %v571, 4294901760
      %2417 = vmatpush1.xpose.msra.mxu0 %v2416
      %2418 = vmatprep.subr.mxu0 0.0
      %v2419 = vand.u32 %v574, 4294901760
      %2420 = vmatpush1.xpose.msra.mxu0 %v2419
      %2421 = vmatprep.subr.mxu0 0.0
      %v2422 = vand.u32 %v577, 4294901760
      %2423 = vmatpush1.xpose.msra.mxu0 %v2422
      %2424 = vmatprep.subr.mxu0 0.0
      %v2425 = vand.u32 %v580, 4294901760
      %2426 = vmatpush1.xpose.msra.mxu0 %v2425
      %2427 = vmatprep.subr.mxu0 0.0
      %v2428 = vand.u32 %v583, 4294901760
      %2429 = vmatpush1.xpose.msra.mxu0 %v2428
      %2430 = vmatprep.subr.mxu0 0.0
      %v2431 = vand.u32 %v586, 4294901760
      %2432 = vmatpush1.xpose.msra.mxu0 %v2431
      %2433 = vmatprep.subr.mxu0 0.0
      %v2434 = vand.u32 %v589, 4294901760
      %2435 = vmatpush1.xpose.msra.mxu0 %v2434
      %2436 = vmatprep.mubr.f32.mxu0 0.0
      %v2437 = vand.u32 %v388, 4294901760
      %v2438 = vsub.f32 %v388, %v2437
      %v2439 = vand.u32 %v2438, 4294901760
      %2440 = vmatmul.mubr.f32.gmra.mrb[0].mxu0 %v2439
      %v2441 = vpop.f32.mrb[0].mxu0
      %v2442 = vadd.f32 %v2312, %v2441
      %v2443 = vpop.f32.mrb[0].mxu0
      %v2444 = vadd.f32 %v2314, %v2443
      %2445 = vmatprep.mubr.f32.mxu0 0.0
      %v2446 = vand.u32 %v391, 4294901760
      %v2447 = vsub.f32 %v391, %v2446
      %v2448 = vand.u32 %v2447, 4294901760
      %2449 = vmatmul.mubr.f32.gmra.mrb[0].mxu0 %v2448
      %v2450 = vpop.f32.mrb[0].mxu0
      %v2451 = vadd.f32 %v2320, %v2450
      %v2452 = vpop.f32.mrb[0].mxu0
      %v2453 = vadd.f32 %v2322, %v2452
      %2454 = vmatprep.mubr.f32.mxu0 0.0
      %v2455 = vand.u32 %v394, 4294901760
      %v2456 = vsub.f32 %v394, %v2455
      %v2457 = vand.u32 %v2456, 4294901760
      %2458 = vmatmul.mubr.f32.gmra.mrb[0].mxu0 %v2457
      %v2459 = vpop.f32.mrb[0].mxu0
      %v2460 = vadd.f32 %v2328, %v2459
      %v2461 = vpop.f32.mrb[0].mxu0
      %v2462 = vadd.f32 %v2330, %v2461
      %2463 = vmatprep.mubr.f32.mxu0 0.0
      %v2464 = vand.u32 %v397, 4294901760
      %v2465 = vsub.f32 %v397, %v2464
      %v2466 = vand.u32 %v2465, 4294901760
      %2467 = vmatmul.mubr.f32.gmra.mrb[0].mxu0 %v2466
      %v2468 = vpop.f32.mrb[0].mxu0
      %v2469 = vadd.f32 %v2336, %v2468
      %v2470 = vpop.f32.mrb[0].mxu0
      %v2471 = vadd.f32 %v2338, %v2470
      %2472 = vdwg.mxu0
      %2473 = vmatprep.subr.mxu0 0.0
      %v2474 = vand.u32 %v496, 4294901760
      %v2475 = vsub.f32 %v496, %v2474
      %v2476 = vand.u32 %v2475, 4294901760
      %2477 = vmatpush1.xpose.msra.mxu0 %v2476
      %2478 = vmatprep.subr.mxu0 0.0
      %v2479 = vand.u32 %v499, 4294901760
      %v2480 = vsub.f32 %v499, %v2479
      %v2481 = vand.u32 %v2480, 4294901760
      %2482 = vmatpush1.xpose.msra.mxu0 %v2481
      %2483 = vmatprep.subr.mxu0 0.0
      %v2484 = vand.u32 %v502, 4294901760
      %v2485 = vsub.f32 %v502, %v2484
      %v2486 = vand.u32 %v2485, 4294901760
      %2487 = vmatpush1.xpose.msra.mxu0 %v2486
      %2488 = vmatprep.subr.mxu0 0.0
      %v2489 = vand.u32 %v505, 4294901760
      %v2490 = vsub.f32 %v505, %v2489
      %v2491 = vand.u32 %v2490, 4294901760
      %2492 = vmatpush1.xpose.msra.mxu0 %v2491
      %2493 = vmatprep.subr.mxu0 0.0
      %v2494 = vand.u32 %v508, 4294901760
      %v2495 = vsub.f32 %v508, %v2494
      %v2496 = vand.u32 %v2495, 4294901760
      %2497 = vmatpush1.xpose.msra.mxu0 %v2496
      %2498 = vmatprep.subr.mxu0 0.0
      %v2499 = vand.u32 %v511, 4294901760
      %v2500 = vsub.f32 %v511, %v2499
      %v2501 = vand.u32 %v2500, 4294901760
      %2502 = vmatpush1.xpose.msra.mxu0 %v2501
      %2503 = vmatprep.subr.mxu0 0.0
      %v2504 = vand.u32 %v514, 4294901760
      %v2505 = vsub.f32 %v514, %v2504
      %v2506 = vand.u32 %v2505, 4294901760
      %2507 = vmatpush1.xpose.msra.mxu0 %v2506
      %2508 = vmatprep.subr.mxu0 0.0
      %v2509 = vand.u32 %v517, 4294901760
      %v2510 = vsub.f32 %v517, %v2509
      %v2511 = vand.u32 %v2510, 4294901760
      %2512 = vmatpush1.xpose.msra.mxu0 %v2511
      %2513 = vmatprep.subr.mxu0 0.0
      %v2514 = vand.u32 %v520, 4294901760
      %v2515 = vsub.f32 %v520, %v2514
      %v2516 = vand.u32 %v2515, 4294901760
      %2517 = vmatpush1.xpose.msra.mxu0 %v2516
      %2518 = vmatprep.subr.mxu0 0.0
      %v2519 = vand.u32 %v523, 4294901760
      %v2520 = vsub.f32 %v523, %v2519
      %v2521 = vand.u32 %v2520, 4294901760
      %2522 = vmatpush1.xpose.msra.mxu0 %v2521
      %2523 = vmatprep.subr.mxu0 0.0
      %v2524 = vand.u32 %v526, 4294901760
      %v2525 = vsub.f32 %v526, %v2524
      %v2526 = vand.u32 %v2525, 4294901760
      %2527 = vmatpush1.xpose.msra.mxu0 %v2526
      %2528 = vmatprep.subr.mxu0 0.0
      %v2529 = vand.u32 %v529, 4294901760
      %v2530 = vsub.f32 %v529, %v2529
      %v2531 = vand.u32 %v2530, 4294901760
      %2532 = vmatpush1.xpose.msra.mxu0 %v2531
      %2533 = vmatprep.subr.mxu0 0.0
      %v2534 = vand.u32 %v532, 4294901760
      %v2535 = vsub.f32 %v532, %v2534
      %v2536 = vand.u32 %v2535, 4294901760
      %2537 = vmatpush1.xpose.msra.mxu0 %v2536
      %2538 = vmatprep.subr.mxu0 0.0
      %v2539 = vand.u32 %v535, 4294901760
      %v2540 = vsub.f32 %v535, %v2539
      %v2541 = vand.u32 %v2540, 4294901760
      %2542 = vmatpush1.xpose.msra.mxu0 %v2541
      %2543 = vmatprep.subr.mxu0 0.0
      %v2544 = vand.u32 %v538, 4294901760
      %v2545 = vsub.f32 %v538, %v2544
      %v2546 = vand.u32 %v2545, 4294901760
      %2547 = vmatpush1.xpose.msra.mxu0 %v2546
      %2548 = vmatprep.subr.mxu0 0.0
      %v2549 = vand.u32 %v541, 4294901760
      %v2550 = vsub.f32 %v541, %v2549
      %v2551 = vand.u32 %v2550, 4294901760
      %2552 = vmatpush1.xpose.msra.mxu0 %v2551
      %2553 = vmatprep.subr.mxu0 0.0
      %v2554 = vand.u32 %v544, 4294901760
      %v2555 = vsub.f32 %v544, %v2554
      %v2556 = vand.u32 %v2555, 4294901760
      %2557 = vmatpush1.xpose.msra.mxu0 %v2556
      %2558 = vmatprep.subr.mxu0 0.0
      %v2559 = vand.u32 %v547, 4294901760
      %v2560 = vsub.f32 %v547, %v2559
      %v2561 = vand.u32 %v2560, 4294901760
      %2562 = vmatpush1.xpose.msra.mxu0 %v2561
      %2563 = vmatprep.subr.mxu0 0.0
      %v2564 = vand.u32 %v550, 4294901760
      %v2565 = vsub.f32 %v550, %v2564
      %v2566 = vand.u32 %v2565, 4294901760
      %2567 = vmatpush1.xpose.msra.mxu0 %v2566
      %2568 = vmatprep.subr.mxu0 0.0
      %v2569 = vand.u32 %v553, 4294901760
      %v2570 = vsub.f32 %v553, %v2569
      %v2571 = vand.u32 %v2570, 4294901760
      %2572 = vmatpush1.xpose.msra.mxu0 %v2571
      %2573 = vmatprep.subr.mxu0 0.0
      %v2574 = vand.u32 %v556, 4294901760
      %v2575 = vsub.f32 %v556, %v2574
      %v2576 = vand.u32 %v2575, 4294901760
      %2577 = vmatpush1.xpose.msra.mxu0 %v2576
      %2578 = vmatprep.subr.mxu0 0.0
      %v2579 = vand.u32 %v559, 4294901760
      %v2580 = vsub.f32 %v559, %v2579
      %v2581 = vand.u32 %v2580, 4294901760
      %2582 = vmatpush1.xpose.msra.mxu0 %v2581
      %2583 = vmatprep.subr.mxu0 0.0
      %v2584 = vand.u32 %v562, 4294901760
      %v2585 = vsub.f32 %v562, %v2584
      %v2586 = vand.u32 %v2585, 4294901760
      %2587 = vmatpush1.xpose.msra.mxu0 %v2586
      %2588 = vmatprep.subr.mxu0 0.0
      %v2589 = vand.u32 %v565, 4294901760
      %v2590 = vsub.f32 %v565, %v2589
      %v2591 = vand.u32 %v2590, 4294901760
      %2592 = vmatpush1.xpose.msra.mxu0 %v2591
      %2593 = vmatprep.subr.mxu0 0.0
      %v2594 = vand.u32 %v568, 4294901760
      %v2595 = vsub.f32 %v568, %v2594
      %v2596 = vand.u32 %v2595, 4294901760
      %2597 = vmatpush1.xpose.msra.mxu0 %v2596
      %2598 = vmatprep.subr.mxu0 0.0
      %v2599 = vand.u32 %v571, 4294901760
      %v2600 = vsub.f32 %v571, %v2599
      %v2601 = vand.u32 %v2600, 4294901760
      %2602 = vmatpush1.xpose.msra.mxu0 %v2601
      %2603 = vmatprep.subr.mxu0 0.0
      %v2604 = vand.u32 %v574, 4294901760
      %v2605 = vsub.f32 %v574, %v2604
      %v2606 = vand.u32 %v2605, 4294901760
      %2607 = vmatpush1.xpose.msra.mxu0 %v2606
      %2608 = vmatprep.subr.mxu0 0.0
      %v2609 = vand.u32 %v577, 4294901760
      %v2610 = vsub.f32 %v577, %v2609
      %v2611 = vand.u32 %v2610, 4294901760
      %2612 = vmatpush1.xpose.msra.mxu0 %v2611
      %2613 = vmatprep.subr.mxu0 0.0
      %v2614 = vand.u32 %v580, 4294901760
      %v2615 = vsub.f32 %v580, %v2614
      %v2616 = vand.u32 %v2615, 4294901760
      %2617 = vmatpush1.xpose.msra.mxu0 %v2616
      %2618 = vmatprep.subr.mxu0 0.0
      %v2619 = vand.u32 %v583, 4294901760
      %v2620 = vsub.f32 %v583, %v2619
      %v2621 = vand.u32 %v2620, 4294901760
      %2622 = vmatpush1.xpose.msra.mxu0 %v2621
      %2623 = vmatprep.subr.mxu0 0.0
      %v2624 = vand.u32 %v586, 4294901760
      %v2625 = vsub.f32 %v586, %v2624
      %v2626 = vand.u32 %v2625, 4294901760
      %2627 = vmatpush1.xpose.msra.mxu0 %v2626
      %2628 = vmatprep.subr.mxu0 0.0
      %v2629 = vand.u32 %v589, 4294901760
      %v2630 = vsub.f32 %v589, %v2629
      %v2631 = vand.u32 %v2630, 4294901760
      %2632 = vmatpush1.xpose.msra.mxu0 %v2631
      %2633 = vmatprep.mubr.f32.mxu0 0.0
      %v2634 = vand.u32 %v388, 4294901760
      %2635 = vmatmul.mubr.f32.gmra.mrb[0].mxu0 %v2634
      %v2636 = vpop.f32.mrb[0].mxu0
      %v2637 = vadd.f32 %v2442, %v2636
      %v2638 = vpop.f32.mrb[0].mxu0
      %v2639 = vadd.f32 %v2444, %v2638
      %2640 = vmatprep.mubr.f32.mxu0 0.0
      %v2641 = vand.u32 %v391, 4294901760
      %2642 = vmatmul.mubr.f32.gmra.mrb[0].mxu0 %v2641
      %v2643 = vpop.f32.mrb[0].mxu0
      %v2644 = vadd.f32 %v2451, %v2643
      %v2645 = vpop.f32.mrb[0].mxu0
      %v2646 = vadd.f32 %v2453, %v2645
      %2647 = vmatprep.mubr.f32.mxu0 0.0
      %v2648 = vand.u32 %v394, 4294901760
      %2649 = vmatmul.mubr.f32.gmra.mrb[0].mxu0 %v2648
      %v2650 = vpop.f32.mrb[0].mxu0
      %v2651 = vadd.f32 %v2460, %v2650
      %v2652 = vpop.f32.mrb[0].mxu0
      %v2653 = vadd.f32 %v2462, %v2652
      %2654 = vmatprep.mubr.f32.mxu0 0.0
      %v2655 = vand.u32 %v397, 4294901760
      %2656 = vmatmul.mubr.f32.gmra.mrb[0].mxu0 %v2655
      %v2657 = vpop.f32.mrb[0].mxu0
      %v2658 = vadd.f32 %v2469, %v2657
      %v2659 = vpop.f32.mrb[0].mxu0
      %v2660 = vadd.f32 %v2471, %v2659
      %2661 = vdwg.mxu0
      %2662 = vmatprep.subr.mxu0 0.0
      %v2663 = vand.u32 %v496, 4294901760
      %2664 = vmatpush1.xpose.msra.mxu0 %v2663
      %2665 = vmatprep.subr.mxu0 0.0
      %v2666 = vand.u32 %v499, 4294901760
      %2667 = vmatpush1.xpose.msra.mxu0 %v2666
      %2668 = vmatprep.subr.mxu0 0.0
      %v2669 = vand.u32 %v502, 4294901760
      %2670 = vmatpush1.xpose.msra.mxu0 %v2669
      %2671 = vmatprep.subr.mxu0 0.0
      %v2672 = vand.u32 %v505, 4294901760
      %2673 = vmatpush1.xpose.msra.mxu0 %v2672
      %2674 = vmatprep.subr.mxu0 0.0
      %v2675 = vand.u32 %v508, 4294901760
      %2676 = vmatpush1.xpose.msra.mxu0 %v2675
      %2677 = vmatprep.subr.mxu0 0.0
      %v2678 = vand.u32 %v511, 4294901760
      %2679 = vmatpush1.xpose.msra.mxu0 %v2678
      %2680 = vmatprep.subr.mxu0 0.0
      %v2681 = vand.u32 %v514, 4294901760
      %2682 = vmatpush1.xpose.msra.mxu0 %v2681
      %2683 = vmatprep.subr.mxu0 0.0
      %v2684 = vand.u32 %v517, 4294901760
      %2685 = vmatpush1.xpose.msra.mxu0 %v2684
      %2686 = vmatprep.subr.mxu0 0.0
      %v2687 = vand.u32 %v520, 4294901760
      %2688 = vmatpush1.xpose.msra.mxu0 %v2687
      %2689 = vmatprep.subr.mxu0 0.0
      %v2690 = vand.u32 %v523, 4294901760
      %2691 = vmatpush1.xpose.msra.mxu0 %v2690
      %2692 = vmatprep.subr.mxu0 0.0
      %v2693 = vand.u32 %v526, 4294901760
      %2694 = vmatpush1.xpose.msra.mxu0 %v2693
      %2695 = vmatprep.subr.mxu0 0.0
      %v2696 = vand.u32 %v529, 4294901760
      %2697 = vmatpush1.xpose.msra.mxu0 %v2696
      %2698 = vmatprep.subr.mxu0 0.0
      %v2699 = vand.u32 %v532, 4294901760
      %2700 = vmatpush1.xpose.msra.mxu0 %v2699
      %2701 = vmatprep.subr.mxu0 0.0
      %v2702 = vand.u32 %v535, 4294901760
      %2703 = vmatpush1.xpose.msra.mxu0 %v2702
      %2704 = vmatprep.subr.mxu0 0.0
      %v2705 = vand.u32 %v538, 4294901760
      %2706 = vmatpush1.xpose.msra.mxu0 %v2705
      %2707 = vmatprep.subr.mxu0 0.0
      %v2708 = vand.u32 %v541, 4294901760
      %2709 = vmatpush1.xpose.msra.mxu0 %v2708
      %2710 = vmatprep.subr.mxu0 0.0
      %v2711 = vand.u32 %v544, 4294901760
      %2712 = vmatpush1.xpose.msra.mxu0 %v2711
      %2713 = vmatprep.subr.mxu0 0.0
      %v2714 = vand.u32 %v547, 4294901760
      %2715 = vmatpush1.xpose.msra.mxu0 %v2714
      %2716 = vmatprep.subr.mxu0 0.0
      %v2717 = vand.u32 %v550, 4294901760
      %2718 = vmatpush1.xpose.msra.mxu0 %v2717
      %2719 = vmatprep.subr.mxu0 0.0
      %v2720 = vand.u32 %v553, 4294901760
      %2721 = vmatpush1.xpose.msra.mxu0 %v2720
      %2722 = vmatprep.subr.mxu0 0.0
      %v2723 = vand.u32 %v556, 4294901760
      %2724 = vmatpush1.xpose.msra.mxu0 %v2723
      %2725 = vmatprep.subr.mxu0 0.0
      %v2726 = vand.u32 %v559, 4294901760
      %2727 = vmatpush1.xpose.msra.mxu0 %v2726
      %2728 = vmatprep.subr.mxu0 0.0
      %v2729 = vand.u32 %v562, 4294901760
      %2730 = vmatpush1.xpose.msra.mxu0 %v2729
      %2731 = vmatprep.subr.mxu0 0.0
      %v2732 = vand.u32 %v565, 4294901760
      %2733 = vmatpush1.xpose.msra.mxu0 %v2732
      %2734 = vmatprep.subr.mxu0 0.0
      %v2735 = vand.u32 %v568, 4294901760
      %2736 = vmatpush1.xpose.msra.mxu0 %v2735
      %2737 = vmatprep.subr.mxu0 0.0
      %v2738 = vand.u32 %v571, 4294901760
      %2739 = vmatpush1.xpose.msra.mxu0 %v2738
      %2740 = vmatprep.subr.mxu0 0.0
      %v2741 = vand.u32 %v574, 4294901760
      %2742 = vmatpush1.xpose.msra.mxu0 %v2741
      %2743 = vmatprep.subr.mxu0 0.0
      %v2744 = vand.u32 %v577, 4294901760
      %2745 = vmatpush1.xpose.msra.mxu0 %v2744
      %2746 = vmatprep.subr.mxu0 0.0
      %v2747 = vand.u32 %v580, 4294901760
      %2748 = vmatpush1.xpose.msra.mxu0 %v2747
      %2749 = vmatprep.subr.mxu0 0.0
      %v2750 = vand.u32 %v583, 4294901760
      %2751 = vmatpush1.xpose.msra.mxu0 %v2750
      %2752 = vmatprep.subr.mxu0 0.0
      %v2753 = vand.u32 %v586, 4294901760
      %2754 = vmatpush1.xpose.msra.mxu0 %v2753
      %2755 = vmatprep.subr.mxu0 0.0
      %v2756 = vand.u32 %v589, 4294901760
      %2757 = vmatpush1.xpose.msra.mxu0 %v2756
      %2758 = vmatprep.mubr.f32.mxu0 0.0
      %v2759 = vand.u32 %v388, 4294901760
      %2760 = vmatmul.mubr.f32.gmra.mrb[0].mxu0 %v2759
      %v2761 = vpop.f32.mrb[0].mxu0
      %v2762 = vadd.f32 %v2637, %v2761
      %v2763 = vpop.f32.mrb[0].mxu0
      %v2764 = vadd.f32 %v2639, %v2763
      %2765 = vmatprep.mubr.f32.mxu0 0.0
      %v2766 = vand.u32 %v391, 4294901760
      %2767 = vmatmul.mubr.f32.gmra.mrb[0].mxu0 %v2766
      %v2768 = vpop.f32.mrb[0].mxu0
      %v2769 = vadd.f32 %v2644, %v2768
      %v2770 = vpop.f32.mrb[0].mxu0
      %v2771 = vadd.f32 %v2646, %v2770
      %2772 = vmatprep.mubr.f32.mxu0 0.0
      %v2773 = vand.u32 %v394, 4294901760
      %2774 = vmatmul.mubr.f32.gmra.mrb[0].mxu0 %v2773
      %v2775 = vpop.f32.mrb[0].mxu0
      %v2776 = vadd.f32 %v2651, %v2775
      %v2777 = vpop.f32.mrb[0].mxu0
      %v2778 = vadd.f32 %v2653, %v2777
      %2779 = vmatprep.mubr.f32.mxu0 0.0
      %v2780 = vand.u32 %v397, 4294901760
      %2781 = vmatmul.mubr.f32.gmra.mrb[0].mxu0 %v2780
      %v2782 = vpop.f32.mrb[0].mxu0
      %v2783 = vadd.f32 %v2658, %v2782
      %v2784 = vpop.f32.mrb[0].mxu0
      %v2785 = vadd.f32 %v2660, %v2784
      %2786 = vdwg.mxu0
      %2787 = vmatprep.subr.mxu0 0.0
      %v2788 = vand.u32 %v592, 4294901760
      %2789 = vmatpush1.xpose.msra.mxu0 %v2788
      %2790 = vmatprep.subr.mxu0 0.0
      %v2791 = vand.u32 %v595, 4294901760
      %2792 = vmatpush1.xpose.msra.mxu0 %v2791
      %2793 = vmatprep.subr.mxu0 0.0
      %v2794 = vand.u32 %v598, 4294901760
      %2795 = vmatpush1.xpose.msra.mxu0 %v2794
      %2796 = vmatprep.subr.mxu0 0.0
      %v2797 = vand.u32 %v601, 4294901760
      %2798 = vmatpush1.xpose.msra.mxu0 %v2797
      %2799 = vmatprep.subr.mxu0 0.0
      %v2800 = vand.u32 %v604, 4294901760
      %2801 = vmatpush1.xpose.msra.mxu0 %v2800
      %2802 = vmatprep.subr.mxu0 0.0
      %v2803 = vand.u32 %v607, 4294901760
      %2804 = vmatpush1.xpose.msra.mxu0 %v2803
      %2805 = vmatprep.subr.mxu0 0.0
      %v2806 = vand.u32 %v610, 4294901760
      %2807 = vmatpush1.xpose.msra.mxu0 %v2806
      %2808 = vmatprep.subr.mxu0 0.0
      %v2809 = vand.u32 %v613, 4294901760
      %2810 = vmatpush1.xpose.msra.mxu0 %v2809
      %2811 = vmatprep.subr.mxu0 0.0
      %v2812 = vand.u32 %v616, 4294901760
      %2813 = vmatpush1.xpose.msra.mxu0 %v2812
      %2814 = vmatprep.subr.mxu0 0.0
      %v2815 = vand.u32 %v619, 4294901760
      %2816 = vmatpush1.xpose.msra.mxu0 %v2815
      %2817 = vmatprep.subr.mxu0 0.0
      %v2818 = vand.u32 %v622, 4294901760
      %2819 = vmatpush1.xpose.msra.mxu0 %v2818
      %2820 = vmatprep.subr.mxu0 0.0
      %v2821 = vand.u32 %v625, 4294901760
      %2822 = vmatpush1.xpose.msra.mxu0 %v2821
      %2823 = vmatprep.subr.mxu0 0.0
      %v2824 = vand.u32 %v628, 4294901760
      %2825 = vmatpush1.xpose.msra.mxu0 %v2824
      %2826 = vmatprep.subr.mxu0 0.0
      %v2827 = vand.u32 %v631, 4294901760
      %2828 = vmatpush1.xpose.msra.mxu0 %v2827
      %2829 = vmatprep.subr.mxu0 0.0
      %v2830 = vand.u32 %v634, 4294901760
      %2831 = vmatpush1.xpose.msra.mxu0 %v2830
      %2832 = vmatprep.subr.mxu0 0.0
      %v2833 = vand.u32 %v637, 4294901760
      %2834 = vmatpush1.xpose.msra.mxu0 %v2833
      %2835 = vmatprep.subr.mxu0 0.0
      %v2836 = vand.u32 %v640, 4294901760
      %2837 = vmatpush1.xpose.msra.mxu0 %v2836
      %2838 = vmatprep.subr.mxu0 0.0
      %v2839 = vand.u32 %v643, 4294901760
      %2840 = vmatpush1.xpose.msra.mxu0 %v2839
      %2841 = vmatprep.subr.mxu0 0.0
      %v2842 = vand.u32 %v646, 4294901760
      %2843 = vmatpush1.xpose.msra.mxu0 %v2842
      %2844 = vmatprep.subr.mxu0 0.0
      %v2845 = vand.u32 %v649, 4294901760
      %2846 = vmatpush1.xpose.msra.mxu0 %v2845
      %2847 = vmatprep.subr.mxu0 0.0
      %v2848 = vand.u32 %v652, 4294901760
      %2849 = vmatpush1.xpose.msra.mxu0 %v2848
      %2850 = vmatprep.subr.mxu0 0.0
      %v2851 = vand.u32 %v655, 4294901760
      %2852 = vmatpush1.xpose.msra.mxu0 %v2851
      %2853 = vmatprep.subr.mxu0 0.0
      %v2854 = vand.u32 %v658, 4294901760
      %2855 = vmatpush1.xpose.msra.mxu0 %v2854
      %2856 = vmatprep.subr.mxu0 0.0
      %v2857 = vand.u32 %v661, 4294901760
      %2858 = vmatpush1.xpose.msra.mxu0 %v2857
      %2859 = vmatprep.subr.mxu0 0.0
      %v2860 = vand.u32 %v664, 4294901760
      %2861 = vmatpush1.xpose.msra.mxu0 %v2860
      %2862 = vmatprep.subr.mxu0 0.0
      %v2863 = vand.u32 %v667, 4294901760
      %2864 = vmatpush1.xpose.msra.mxu0 %v2863
      %2865 = vmatprep.subr.mxu0 0.0
      %v2866 = vand.u32 %v670, 4294901760
      %2867 = vmatpush1.xpose.msra.mxu0 %v2866
      %2868 = vmatprep.subr.mxu0 0.0
      %v2869 = vand.u32 %v673, 4294901760
      %2870 = vmatpush1.xpose.msra.mxu0 %v2869
      %2871 = vmatprep.subr.mxu0 0.0
      %v2872 = vand.u32 %v676, 4294901760
      %2873 = vmatpush1.xpose.msra.mxu0 %v2872
      %2874 = vmatprep.subr.mxu0 0.0
      %v2875 = vand.u32 %v679, 4294901760
      %2876 = vmatpush1.xpose.msra.mxu0 %v2875
      %2877 = vmatprep.subr.mxu0 0.0
      %v2878 = vand.u32 %v682, 4294901760
      %2879 = vmatpush1.xpose.msra.mxu0 %v2878
      %2880 = vmatprep.subr.mxu0 0.0
      %v2881 = vand.u32 %v685, 4294901760
      %2882 = vmatpush1.xpose.msra.mxu0 %v2881
      %2883 = vmatprep.mubr.f32.mxu0 0.0
      %v2884 = vand.u32 %v388, 4294901760
      %v2885 = vsub.f32 %v388, %v2884
      %v2886 = vand.u32 %v2885, 4294901760
      %v2887 = vsub.f32 %v2885, %v2886
      %v2888 = vand.u32 %v2887, 4294901760
      %2889 = vmatmul.mubr.f32.gmra.mrb[0].mxu0 %v2888
      %v2890 = vpop.f32.mrb[0].mxu0
      %v2891 = vadd.f32 %v369, %v2890
      %v2892 = vpop.f32.mrb[0].mxu0
      %v2893 = vadd.f32 %v369, %v2892
      %2894 = vmatprep.mubr.f32.mxu0 0.0
      %v2895 = vand.u32 %v391, 4294901760
      %v2896 = vsub.f32 %v391, %v2895
      %v2897 = vand.u32 %v2896, 4294901760
      %v2898 = vsub.f32 %v2896, %v2897
      %v2899 = vand.u32 %v2898, 4294901760
      %2900 = vmatmul.mubr.f32.gmra.mrb[0].mxu0 %v2899
      %v2901 = vpop.f32.mrb[0].mxu0
      %v2902 = vadd.f32 %v374, %v2901
      %v2903 = vpop.f32.mrb[0].mxu0
      %v2904 = vadd.f32 %v374, %v2903
      %2905 = vmatprep.mubr.f32.mxu0 0.0
      %v2906 = vand.u32 %v394, 4294901760
      %v2907 = vsub.f32 %v394, %v2906
      %v2908 = vand.u32 %v2907, 4294901760
      %v2909 = vsub.f32 %v2907, %v2908
      %v2910 = vand.u32 %v2909, 4294901760
      %2911 = vmatmul.mubr.f32.gmra.mrb[0].mxu0 %v2910
      %v2912 = vpop.f32.mrb[0].mxu0
      %v2913 = vadd.f32 %v379, %v2912
      %v2914 = vpop.f32.mrb[0].mxu0
      %v2915 = vadd.f32 %v379, %v2914
      %2916 = vmatprep.mubr.f32.mxu0 0.0
      %v2917 = vand.u32 %v397, 4294901760
      %v2918 = vsub.f32 %v397, %v2917
      %v2919 = vand.u32 %v2918, 4294901760
      %v2920 = vsub.f32 %v2918, %v2919
      %v2921 = vand.u32 %v2920, 4294901760
      %2922 = vmatmul.mubr.f32.gmra.mrb[0].mxu0 %v2921
      %v2923 = vpop.f32.mrb[0].mxu0
      %v2924 = vadd.f32 %v384, %v2923
      %v2925 = vpop.f32.mrb[0].mxu0
      %v2926 = vadd.f32 %v384, %v2925
      %2927 = vdwg.mxu0
      %2928 = vmatprep.subr.mxu0 0.0
      %v2929 = vand.u32 %v592, 4294901760
      %v2930 = vsub.f32 %v592, %v2929
      %v2931 = vand.u32 %v2930, 4294901760
      %v2932 = vsub.f32 %v2930, %v2931
      %v2933 = vand.u32 %v2932, 4294901760
      %2934 = vmatpush1.xpose.msra.mxu0 %v2933
      %2935 = vmatprep.subr.mxu0 0.0
      %v2936 = vand.u32 %v595, 4294901760
      %v2937 = vsub.f32 %v595, %v2936
      %v2938 = vand.u32 %v2937, 4294901760
      %v2939 = vsub.f32 %v2937, %v2938
      %v2940 = vand.u32 %v2939, 4294901760
      %2941 = vmatpush1.xpose.msra.mxu0 %v2940
      %2942 = vmatprep.subr.mxu0 0.0
      %v2943 = vand.u32 %v598, 4294901760
      %v2944 = vsub.f32 %v598, %v2943
      %v2945 = vand.u32 %v2944, 4294901760
      %v2946 = vsub.f32 %v2944, %v2945
      %v2947 = vand.u32 %v2946, 4294901760
      %2948 = vmatpush1.xpose.msra.mxu0 %v2947
      %2949 = vmatprep.subr.mxu0 0.0
      %v2950 = vand.u32 %v601, 4294901760
      %v2951 = vsub.f32 %v601, %v2950
      %v2952 = vand.u32 %v2951, 4294901760
      %v2953 = vsub.f32 %v2951, %v2952
      %v2954 = vand.u32 %v2953, 4294901760
      %2955 = vmatpush1.xpose.msra.mxu0 %v2954
      %2956 = vmatprep.subr.mxu0 0.0
      %v2957 = vand.u32 %v604, 4294901760
      %v2958 = vsub.f32 %v604, %v2957
      %v2959 = vand.u32 %v2958, 4294901760
      %v2960 = vsub.f32 %v2958, %v2959
      %v2961 = vand.u32 %v2960, 4294901760
      %2962 = vmatpush1.xpose.msra.mxu0 %v2961
      %2963 = vmatprep.subr.mxu0 0.0
      %v2964 = vand.u32 %v607, 4294901760
      %v2965 = vsub.f32 %v607, %v2964
      %v2966 = vand.u32 %v2965, 4294901760
      %v2967 = vsub.f32 %v2965, %v2966
      %v2968 = vand.u32 %v2967, 4294901760
      %2969 = vmatpush1.xpose.msra.mxu0 %v2968
      %2970 = vmatprep.subr.mxu0 0.0
      %v2971 = vand.u32 %v610, 4294901760
      %v2972 = vsub.f32 %v610, %v2971
      %v2973 = vand.u32 %v2972, 4294901760
      %v2974 = vsub.f32 %v2972, %v2973
      %v2975 = vand.u32 %v2974, 4294901760
      %2976 = vmatpush1.xpose.msra.mxu0 %v2975
      %2977 = vmatprep.subr.mxu0 0.0
      %v2978 = vand.u32 %v613, 4294901760
      %v2979 = vsub.f32 %v613, %v2978
      %v2980 = vand.u32 %v2979, 4294901760
      %v2981 = vsub.f32 %v2979, %v2980
      %v2982 = vand.u32 %v2981, 4294901760
      %2983 = vmatpush1.xpose.msra.mxu0 %v2982
      %2984 = vmatprep.subr.mxu0 0.0
      %v2985 = vand.u32 %v616, 4294901760
      %v2986 = vsub.f32 %v616, %v2985
      %v2987 = vand.u32 %v2986, 4294901760
      %v2988 = vsub.f32 %v2986, %v2987
      %v2989 = vand.u32 %v2988, 4294901760
      %2990 = vmatpush1.xpose.msra.mxu0 %v2989
      %2991 = vmatprep.subr.mxu0 0.0
      %v2992 = vand.u32 %v619, 4294901760
      %v2993 = vsub.f32 %v619, %v2992
      %v2994 = vand.u32 %v2993, 4294901760
      %v2995 = vsub.f32 %v2993, %v2994
      %v2996 = vand.u32 %v2995, 4294901760
      %2997 = vmatpush1.xpose.msra.mxu0 %v2996
      %2998 = vmatprep.subr.mxu0 0.0
      %v2999 = vand.u32 %v622, 4294901760
      %v3000 = vsub.f32 %v622, %v2999
      %v3001 = vand.u32 %v3000, 4294901760
      %v3002 = vsub.f32 %v3000, %v3001
      %v3003 = vand.u32 %v3002, 4294901760
      %3004 = vmatpush1.xpose.msra.mxu0 %v3003
      %3005 = vmatprep.subr.mxu0 0.0
      %v3006 = vand.u32 %v625, 4294901760
      %v3007 = vsub.f32 %v625, %v3006
      %v3008 = vand.u32 %v3007, 4294901760
      %v3009 = vsub.f32 %v3007, %v3008
      %v3010 = vand.u32 %v3009, 4294901760
      %3011 = vmatpush1.xpose.msra.mxu0 %v3010
      %3012 = vmatprep.subr.mxu0 0.0
      %v3013 = vand.u32 %v628, 4294901760
      %v3014 = vsub.f32 %v628, %v3013
      %v3015 = vand.u32 %v3014, 4294901760
      %v3016 = vsub.f32 %v3014, %v3015
      %v3017 = vand.u32 %v3016, 4294901760
      %3018 = vmatpush1.xpose.msra.mxu0 %v3017
      %3019 = vmatprep.subr.mxu0 0.0
      %v3020 = vand.u32 %v631, 4294901760
      %v3021 = vsub.f32 %v631, %v3020
      %v3022 = vand.u32 %v3021, 4294901760
      %v3023 = vsub.f32 %v3021, %v3022
      %v3024 = vand.u32 %v3023, 4294901760
      %3025 = vmatpush1.xpose.msra.mxu0 %v3024
      %3026 = vmatprep.subr.mxu0 0.0
      %v3027 = vand.u32 %v634, 4294901760
      %v3028 = vsub.f32 %v634, %v3027
      %v3029 = vand.u32 %v3028, 4294901760
      %v3030 = vsub.f32 %v3028, %v3029
      %v3031 = vand.u32 %v3030, 4294901760
      %3032 = vmatpush1.xpose.msra.mxu0 %v3031
      %3033 = vmatprep.subr.mxu0 0.0
      %v3034 = vand.u32 %v637, 4294901760
      %v3035 = vsub.f32 %v637, %v3034
      %v3036 = vand.u32 %v3035, 4294901760
      %v3037 = vsub.f32 %v3035, %v3036
      %v3038 = vand.u32 %v3037, 4294901760
      %3039 = vmatpush1.xpose.msra.mxu0 %v3038
      %3040 = vmatprep.subr.mxu0 0.0
      %v3041 = vand.u32 %v640, 4294901760
      %v3042 = vsub.f32 %v640, %v3041
      %v3043 = vand.u32 %v3042, 4294901760
      %v3044 = vsub.f32 %v3042, %v3043
      %v3045 = vand.u32 %v3044, 4294901760
      %3046 = vmatpush1.xpose.msra.mxu0 %v3045
      %3047 = vmatprep.subr.mxu0 0.0
      %v3048 = vand.u32 %v643, 4294901760
      %v3049 = vsub.f32 %v643, %v3048
      %v3050 = vand.u32 %v3049, 4294901760
      %v3051 = vsub.f32 %v3049, %v3050
      %v3052 = vand.u32 %v3051, 4294901760
      %3053 = vmatpush1.xpose.msra.mxu0 %v3052
      %3054 = vmatprep.subr.mxu0 0.0
      %v3055 = vand.u32 %v646, 4294901760
      %v3056 = vsub.f32 %v646, %v3055
      %v3057 = vand.u32 %v3056, 4294901760
      %v3058 = vsub.f32 %v3056, %v3057
      %v3059 = vand.u32 %v3058, 4294901760
      %3060 = vmatpush1.xpose.msra.mxu0 %v3059
      %3061 = vmatprep.subr.mxu0 0.0
      %v3062 = vand.u32 %v649, 4294901760
      %v3063 = vsub.f32 %v649, %v3062
      %v3064 = vand.u32 %v3063, 4294901760
      %v3065 = vsub.f32 %v3063, %v3064
      %v3066 = vand.u32 %v3065, 4294901760
      %3067 = vmatpush1.xpose.msra.mxu0 %v3066
      %3068 = vmatprep.subr.mxu0 0.0
      %v3069 = vand.u32 %v652, 4294901760
      %v3070 = vsub.f32 %v652, %v3069
      %v3071 = vand.u32 %v3070, 4294901760
      %v3072 = vsub.f32 %v3070, %v3071
      %v3073 = vand.u32 %v3072, 4294901760
      %3074 = vmatpush1.xpose.msra.mxu0 %v3073
      %3075 = vmatprep.subr.mxu0 0.0
      %v3076 = vand.u32 %v655, 4294901760
      %v3077 = vsub.f32 %v655, %v3076
      %v3078 = vand.u32 %v3077, 4294901760
      %v3079 = vsub.f32 %v3077, %v3078
      %v3080 = vand.u32 %v3079, 4294901760
      %3081 = vmatpush1.xpose.msra.mxu0 %v3080
      %3082 = vmatprep.subr.mxu0 0.0
      %v3083 = vand.u32 %v658, 4294901760
      %v3084 = vsub.f32 %v658, %v3083
      %v3085 = vand.u32 %v3084, 4294901760
      %v3086 = vsub.f32 %v3084, %v3085
      %v3087 = vand.u32 %v3086, 4294901760
      %3088 = vmatpush1.xpose.msra.mxu0 %v3087
      %3089 = vmatprep.subr.mxu0 0.0
      %v3090 = vand.u32 %v661, 4294901760
      %v3091 = vsub.f32 %v661, %v3090
      %v3092 = vand.u32 %v3091, 4294901760
      %v3093 = vsub.f32 %v3091, %v3092
      %v3094 = vand.u32 %v3093, 4294901760
      %3095 = vmatpush1.xpose.msra.mxu0 %v3094
      %3096 = vmatprep.subr.mxu0 0.0
      %v3097 = vand.u32 %v664, 4294901760
      %v3098 = vsub.f32 %v664, %v3097
      %v3099 = vand.u32 %v3098, 4294901760
      %v3100 = vsub.f32 %v3098, %v3099
      %v3101 = vand.u32 %v3100, 4294901760
      %3102 = vmatpush1.xpose.msra.mxu0 %v3101
      %3103 = vmatprep.subr.mxu0 0.0
      %v3104 = vand.u32 %v667, 4294901760
      %v3105 = vsub.f32 %v667, %v3104
      %v3106 = vand.u32 %v3105, 4294901760
      %v3107 = vsub.f32 %v3105, %v3106
      %v3108 = vand.u32 %v3107, 4294901760
      %3109 = vmatpush1.xpose.msra.mxu0 %v3108
      %3110 = vmatprep.subr.mxu0 0.0
      %v3111 = vand.u32 %v670, 4294901760
      %v3112 = vsub.f32 %v670, %v3111
      %v3113 = vand.u32 %v3112, 4294901760
      %v3114 = vsub.f32 %v3112, %v3113
      %v3115 = vand.u32 %v3114, 4294901760
      %3116 = vmatpush1.xpose.msra.mxu0 %v3115
      %3117 = vmatprep.subr.mxu0 0.0
      %v3118 = vand.u32 %v673, 4294901760
      %v3119 = vsub.f32 %v673, %v3118
      %v3120 = vand.u32 %v3119, 4294901760
      %v3121 = vsub.f32 %v3119, %v3120
      %v3122 = vand.u32 %v3121, 4294901760
      %3123 = vmatpush1.xpose.msra.mxu0 %v3122
      %3124 = vmatprep.subr.mxu0 0.0
      %v3125 = vand.u32 %v676, 4294901760
      %v3126 = vsub.f32 %v676, %v3125
      %v3127 = vand.u32 %v3126, 4294901760
      %v3128 = vsub.f32 %v3126, %v3127
      %v3129 = vand.u32 %v3128, 4294901760
      %3130 = vmatpush1.xpose.msra.mxu0 %v3129
      %3131 = vmatprep.subr.mxu0 0.0
      %v3132 = vand.u32 %v679, 4294901760
      %v3133 = vsub.f32 %v679, %v3132
      %v3134 = vand.u32 %v3133, 4294901760
      %v3135 = vsub.f32 %v3133, %v3134
      %v3136 = vand.u32 %v3135, 4294901760
      %3137 = vmatpush1.xpose.msra.mxu0 %v3136
      %3138 = vmatprep.subr.mxu0 0.0
      %v3139 = vand.u32 %v682, 4294901760
      %v3140 = vsub.f32 %v682, %v3139
      %v3141 = vand.u32 %v3140, 4294901760
      %v3142 = vsub.f32 %v3140, %v3141
      %v3143 = vand.u32 %v3142, 4294901760
      %3144 = vmatpush1.xpose.msra.mxu0 %v3143
      %3145 = vmatprep.subr.mxu0 0.0
      %v3146 = vand.u32 %v685, 4294901760
      %v3147 = vsub.f32 %v685, %v3146
      %v3148 = vand.u32 %v3147, 4294901760
      %v3149 = vsub.f32 %v3147, %v3148
      %v3150 = vand.u32 %v3149, 4294901760
      %3151 = vmatpush1.xpose.msra.mxu0 %v3150
      %3152 = vmatprep.mubr.f32.mxu0 0.0
      %v3153 = vand.u32 %v388, 4294901760
      %3154 = vmatmul.mubr.f32.gmra.mrb[0].mxu0 %v3153
      %v3155 = vpop.f32.mrb[0].mxu0
      %v3156 = vadd.f32 %v2891, %v3155
      %v3157 = vpop.f32.mrb[0].mxu0
      %v3158 = vadd.f32 %v2893, %v3157
      %3159 = vmatprep.mubr.f32.mxu0 0.0
      %v3160 = vand.u32 %v391, 4294901760
      %3161 = vmatmul.mubr.f32.gmra.mrb[0].mxu0 %v3160
      %v3162 = vpop.f32.mrb[0].mxu0
      %v3163 = vadd.f32 %v2902, %v3162
      %v3164 = vpop.f32.mrb[0].mxu0
      %v3165 = vadd.f32 %v2904, %v3164
      %3166 = vmatprep.mubr.f32.mxu0 0.0
      %v3167 = vand.u32 %v394, 4294901760
      %3168 = vmatmul.mubr.f32.gmra.mrb[0].mxu0 %v3167
      %v3169 = vpop.f32.mrb[0].mxu0
      %v3170 = vadd.f32 %v2913, %v3169
      %v3171 = vpop.f32.mrb[0].mxu0
      %v3172 = vadd.f32 %v2915, %v3171
      %3173 = vmatprep.mubr.f32.mxu0 0.0
      %v3174 = vand.u32 %v397, 4294901760
      %3175 = vmatmul.mubr.f32.gmra.mrb[0].mxu0 %v3174
      %v3176 = vpop.f32.mrb[0].mxu0
      %v3177 = vadd.f32 %v2924, %v3176
      %v3178 = vpop.f32.mrb[0].mxu0
      %v3179 = vadd.f32 %v2926, %v3178
      %3180 = vdwg.mxu0
      %3181 = vmatprep.subr.mxu0 0.0
      %v3182 = vand.u32 %v592, 4294901760
      %v3183 = vsub.f32 %v592, %v3182
      %3184 = vmatpush1.xpose.msra.mxu0 %v3183
      %3185 = vmatprep.subr.mxu0 0.0
      %v3186 = vand.u32 %v595, 4294901760
      %v3187 = vsub.f32 %v595, %v3186
      %3188 = vmatpush1.xpose.msra.mxu0 %v3187
      %3189 = vmatprep.subr.mxu0 0.0
      %v3190 = vand.u32 %v598, 4294901760
      %v3191 = vsub.f32 %v598, %v3190
      %3192 = vmatpush1.xpose.msra.mxu0 %v3191
      %3193 = vmatprep.subr.mxu0 0.0
      %v3194 = vand.u32 %v601, 4294901760
      %v3195 = vsub.f32 %v601, %v3194
      %3196 = vmatpush1.xpose.msra.mxu0 %v3195
      %3197 = vmatprep.subr.mxu0 0.0
      %v3198 = vand.u32 %v604, 4294901760
      %v3199 = vsub.f32 %v604, %v3198
      %3200 = vmatpush1.xpose.msra.mxu0 %v3199
      %3201 = vmatprep.subr.mxu0 0.0
      %v3202 = vand.u32 %v607, 4294901760
      %v3203 = vsub.f32 %v607, %v3202
      %3204 = vmatpush1.xpose.msra.mxu0 %v3203
      %3205 = vmatprep.subr.mxu0 0.0
      %v3206 = vand.u32 %v610, 4294901760
      %v3207 = vsub.f32 %v610, %v3206
      %3208 = vmatpush1.xpose.msra.mxu0 %v3207
      %3209 = vmatprep.subr.mxu0 0.0
      %v3210 = vand.u32 %v613, 4294901760
      %v3211 = vsub.f32 %v613, %v3210
      %3212 = vmatpush1.xpose.msra.mxu0 %v3211
      %3213 = vmatprep.subr.mxu0 0.0
      %v3214 = vand.u32 %v616, 4294901760
      %v3215 = vsub.f32 %v616, %v3214
      %3216 = vmatpush1.xpose.msra.mxu0 %v3215
      %3217 = vmatprep.subr.mxu0 0.0
      %v3218 = vand.u32 %v619, 4294901760
      %v3219 = vsub.f32 %v619, %v3218
      %3220 = vmatpush1.xpose.msra.mxu0 %v3219
      %3221 = vmatprep.subr.mxu0 0.0
      %v3222 = vand.u32 %v622, 4294901760
      %v3223 = vsub.f32 %v622, %v3222
      %3224 = vmatpush1.xpose.msra.mxu0 %v3223
      %3225 = vmatprep.subr.mxu0 0.0
      %v3226 = vand.u32 %v625, 4294901760
      %v3227 = vsub.f32 %v625, %v3226
      %3228 = vmatpush1.xpose.msra.mxu0 %v3227
      %3229 = vmatprep.subr.mxu0 0.0
      %v3230 = vand.u32 %v628, 4294901760
      %v3231 = vsub.f32 %v628, %v3230
      %3232 = vmatpush1.xpose.msra.mxu0 %v3231
      %3233 = vmatprep.subr.mxu0 0.0
      %v3234 = vand.u32 %v631, 4294901760
      %v3235 = vsub.f32 %v631, %v3234
      %3236 = vmatpush1.xpose.msra.mxu0 %v3235
      %3237 = vmatprep.subr.mxu0 0.0
      %v3238 = vand.u32 %v634, 4294901760
      %v3239 = vsub.f32 %v634, %v3238
      %3240 = vmatpush1.xpose.msra.mxu0 %v3239
      %3241 = vmatprep.subr.mxu0 0.0
      %v3242 = vand.u32 %v637, 4294901760
      %v3243 = vsub.f32 %v637, %v3242
      %3244 = vmatpush1.xpose.msra.mxu0 %v3243
      %3245 = vmatprep.subr.mxu0 0.0
      %v3246 = vand.u32 %v640, 4294901760
      %v3247 = vsub.f32 %v640, %v3246
      %3248 = vmatpush1.xpose.msra.mxu0 %v3247
      %3249 = vmatprep.subr.mxu0 0.0
      %v3250 = vand.u32 %v643, 4294901760
      %v3251 = vsub.f32 %v643, %v3250
      %3252 = vmatpush1.xpose.msra.mxu0 %v3251
      %3253 = vmatprep.subr.mxu0 0.0
      %v3254 = vand.u32 %v646, 4294901760
      %v3255 = vsub.f32 %v646, %v3254
      %3256 = vmatpush1.xpose.msra.mxu0 %v3255
      %3257 = vmatprep.subr.mxu0 0.0
      %v3258 = vand.u32 %v649, 4294901760
      %v3259 = vsub.f32 %v649, %v3258
      %3260 = vmatpush1.xpose.msra.mxu0 %v3259
      %3261 = vmatprep.subr.mxu0 0.0
      %v3262 = vand.u32 %v652, 4294901760
      %v3263 = vsub.f32 %v652, %v3262
      %3264 = vmatpush1.xpose.msra.mxu0 %v3263
      %3265 = vmatprep.subr.mxu0 0.0
      %v3266 = vand.u32 %v655, 4294901760
      %v3267 = vsub.f32 %v655, %v3266
      %3268 = vmatpush1.xpose.msra.mxu0 %v3267
      %3269 = vmatprep.subr.mxu0 0.0
      %v3270 = vand.u32 %v658, 4294901760
      %v3271 = vsub.f32 %v658, %v3270
      %3272 = vmatpush1.xpose.msra.mxu0 %v3271
      %3273 = vmatprep.subr.mxu0 0.0
      %v3274 = vand.u32 %v661, 4294901760
      %v3275 = vsub.f32 %v661, %v3274
      %3276 = vmatpush1.xpose.msra.mxu0 %v3275
      %3277 = vmatprep.subr.mxu0 0.0
      %v3278 = vand.u32 %v664, 4294901760
      %v3279 = vsub.f32 %v664, %v3278
      %3280 = vmatpush1.xpose.msra.mxu0 %v3279
      %3281 = vmatprep.subr.mxu0 0.0
      %v3282 = vand.u32 %v667, 4294901760
      %v3283 = vsub.f32 %v667, %v3282
      %3284 = vmatpush1.xpose.msra.mxu0 %v3283
      %3285 = vmatprep.subr.mxu0 0.0
      %v3286 = vand.u32 %v670, 4294901760
      %v3287 = vsub.f32 %v670, %v3286
      %3288 = vmatpush1.xpose.msra.mxu0 %v3287
      %3289 = vmatprep.subr.mxu0 0.0
      %v3290 = vand.u32 %v673, 4294901760
      %v3291 = vsub.f32 %v673, %v3290
      %3292 = vmatpush1.xpose.msra.mxu0 %v3291
      %3293 = vmatprep.subr.mxu0 0.0
      %v3294 = vand.u32 %v676, 4294901760
      %v3295 = vsub.f32 %v676, %v3294
      %3296 = vmatpush1.xpose.msra.mxu0 %v3295
      %3297 = vmatprep.subr.mxu0 0.0
      %v3298 = vand.u32 %v679, 4294901760
      %v3299 = vsub.f32 %v679, %v3298
      %3300 = vmatpush1.xpose.msra.mxu0 %v3299
      %3301 = vmatprep.subr.mxu0 0.0
      %v3302 = vand.u32 %v682, 4294901760
      %v3303 = vsub.f32 %v682, %v3302
      %3304 = vmatpush1.xpose.msra.mxu0 %v3303
      %3305 = vmatprep.subr.mxu0 0.0
      %v3306 = vand.u32 %v685, 4294901760
      %v3307 = vsub.f32 %v685, %v3306
      %3308 = vmatpush1.xpose.msra.mxu0 %v3307
      %3309 = vmatprep.mubr.f32.mxu0 0.0
      %v3310 = vand.u32 %v388, 4294901760
      %v3311 = vsub.f32 %v388, %v3310
      %3312 = vmatmul.mubr.f32.gmra.mrb[0].mxu0 %v3311
      %v3313 = vpop.f32.mrb[0].mxu0
      %v3314 = vadd.f32 %v3156, %v3313
      %v3315 = vpop.f32.mrb[0].mxu0
      %v3316 = vadd.f32 %v3158, %v3315
      %3317 = vmatprep.mubr.f32.mxu0 0.0
      %v3318 = vand.u32 %v391, 4294901760
      %v3319 = vsub.f32 %v391, %v3318
      %3320 = vmatmul.mubr.f32.gmra.mrb[0].mxu0 %v3319
      %v3321 = vpop.f32.mrb[0].mxu0
      %v3322 = vadd.f32 %v3163, %v3321
      %v3323 = vpop.f32.mrb[0].mxu0
      %v3324 = vadd.f32 %v3165, %v3323
      %3325 = vmatprep.mubr.f32.mxu0 0.0
      %v3326 = vand.u32 %v394, 4294901760
      %v3327 = vsub.f32 %v394, %v3326
      %3328 = vmatmul.mubr.f32.gmra.mrb[0].mxu0 %v3327
      %v3329 = vpop.f32.mrb[0].mxu0
      %v3330 = vadd.f32 %v3170, %v3329
      %v3331 = vpop.f32.mrb[0].mxu0
      %v3332 = vadd.f32 %v3172, %v3331
      %3333 = vmatprep.mubr.f32.mxu0 0.0
      %v3334 = vand.u32 %v397, 4294901760
      %v3335 = vsub.f32 %v397, %v3334
      %3336 = vmatmul.mubr.f32.gmra.mrb[0].mxu0 %v3335
      %v3337 = vpop.f32.mrb[0].mxu0
      %v3338 = vadd.f32 %v3177, %v3337
      %v3339 = vpop.f32.mrb[0].mxu0
      %v3340 = vadd.f32 %v3179, %v3339
      %3341 = vdwg.mxu0
      %3342 = vmatprep.subr.mxu0 0.0
      %v3343 = vand.u32 %v592, 4294901760
      %3344 = vmatpush1.xpose.msra.mxu0 %v3343
      %3345 = vmatprep.subr.mxu0 0.0
      %v3346 = vand.u32 %v595, 4294901760
      %3347 = vmatpush1.xpose.msra.mxu0 %v3346
      %3348 = vmatprep.subr.mxu0 0.0
      %v3349 = vand.u32 %v598, 4294901760
      %3350 = vmatpush1.xpose.msra.mxu0 %v3349
      %3351 = vmatprep.subr.mxu0 0.0
      %v3352 = vand.u32 %v601, 4294901760
      %3353 = vmatpush1.xpose.msra.mxu0 %v3352
      %3354 = vmatprep.subr.mxu0 0.0
      %v3355 = vand.u32 %v604, 4294901760
      %3356 = vmatpush1.xpose.msra.mxu0 %v3355
      %3357 = vmatprep.subr.mxu0 0.0
      %v3358 = vand.u32 %v607, 4294901760
      %3359 = vmatpush1.xpose.msra.mxu0 %v3358
      %3360 = vmatprep.subr.mxu0 0.0
      %v3361 = vand.u32 %v610, 4294901760
      %3362 = vmatpush1.xpose.msra.mxu0 %v3361
      %3363 = vmatprep.subr.mxu0 0.0
      %v3364 = vand.u32 %v613, 4294901760
      %3365 = vmatpush1.xpose.msra.mxu0 %v3364
      %3366 = vmatprep.subr.mxu0 0.0
      %v3367 = vand.u32 %v616, 4294901760
      %3368 = vmatpush1.xpose.msra.mxu0 %v3367
      %3369 = vmatprep.subr.mxu0 0.0
      %v3370 = vand.u32 %v619, 4294901760
      %3371 = vmatpush1.xpose.msra.mxu0 %v3370
      %3372 = vmatprep.subr.mxu0 0.0
      %v3373 = vand.u32 %v622, 4294901760
      %3374 = vmatpush1.xpose.msra.mxu0 %v3373
      %3375 = vmatprep.subr.mxu0 0.0
      %v3376 = vand.u32 %v625, 4294901760
      %3377 = vmatpush1.xpose.msra.mxu0 %v3376
      %3378 = vmatprep.subr.mxu0 0.0
      %v3379 = vand.u32 %v628, 4294901760
      %3380 = vmatpush1.xpose.msra.mxu0 %v3379
      %3381 = vmatprep.subr.mxu0 0.0
      %v3382 = vand.u32 %v631, 4294901760
      %3383 = vmatpush1.xpose.msra.mxu0 %v3382
      %3384 = vmatprep.subr.mxu0 0.0
      %v3385 = vand.u32 %v634, 4294901760
      %3386 = vmatpush1.xpose.msra.mxu0 %v3385
      %3387 = vmatprep.subr.mxu0 0.0
      %v3388 = vand.u32 %v637, 4294901760
      %3389 = vmatpush1.xpose.msra.mxu0 %v3388
      %3390 = vmatprep.subr.mxu0 0.0
      %v3391 = vand.u32 %v640, 4294901760
      %3392 = vmatpush1.xpose.msra.mxu0 %v3391
      %3393 = vmatprep.subr.mxu0 0.0
      %v3394 = vand.u32 %v643, 4294901760
      %3395 = vmatpush1.xpose.msra.mxu0 %v3394
      %3396 = vmatprep.subr.mxu0 0.0
      %v3397 = vand.u32 %v646, 4294901760
      %3398 = vmatpush1.xpose.msra.mxu0 %v3397
      %3399 = vmatprep.subr.mxu0 0.0
      %v3400 = vand.u32 %v649, 4294901760
      %3401 = vmatpush1.xpose.msra.mxu0 %v3400
      %3402 = vmatprep.subr.mxu0 0.0
      %v3403 = vand.u32 %v652, 4294901760
      %3404 = vmatpush1.xpose.msra.mxu0 %v3403
      %3405 = vmatprep.subr.mxu0 0.0
      %v3406 = vand.u32 %v655, 4294901760
      %3407 = vmatpush1.xpose.msra.mxu0 %v3406
      %3408 = vmatprep.subr.mxu0 0.0
      %v3409 = vand.u32 %v658, 4294901760
      %3410 = vmatpush1.xpose.msra.mxu0 %v3409
      %3411 = vmatprep.subr.mxu0 0.0
      %v3412 = vand.u32 %v661, 4294901760
      %3413 = vmatpush1.xpose.msra.mxu0 %v3412
      %3414 = vmatprep.subr.mxu0 0.0
      %v3415 = vand.u32 %v664, 4294901760
      %3416 = vmatpush1.xpose.msra.mxu0 %v3415
      %3417 = vmatprep.subr.mxu0 0.0
      %v3418 = vand.u32 %v667, 4294901760
      %3419 = vmatpush1.xpose.msra.mxu0 %v3418
      %3420 = vmatprep.subr.mxu0 0.0
      %v3421 = vand.u32 %v670, 4294901760
      %3422 = vmatpush1.xpose.msra.mxu0 %v3421
      %3423 = vmatprep.subr.mxu0 0.0
      %v3424 = vand.u32 %v673, 4294901760
      %3425 = vmatpush1.xpose.msra.mxu0 %v3424
      %3426 = vmatprep.subr.mxu0 0.0
      %v3427 = vand.u32 %v676, 4294901760
      %3428 = vmatpush1.xpose.msra.mxu0 %v3427
      %3429 = vmatprep.subr.mxu0 0.0
      %v3430 = vand.u32 %v679, 4294901760
      %3431 = vmatpush1.xpose.msra.mxu0 %v3430
      %3432 = vmatprep.subr.mxu0 0.0
      %v3433 = vand.u32 %v682, 4294901760
      %3434 = vmatpush1.xpose.msra.mxu0 %v3433
      %3435 = vmatprep.subr.mxu0 0.0
      %v3436 = vand.u32 %v685, 4294901760
      %3437 = vmatpush1.xpose.msra.mxu0 %v3436
      %3438 = vmatprep.mubr.f32.mxu0 0.0
      %v3439 = vand.u32 %v388, 4294901760
      %v3440 = vsub.f32 %v388, %v3439
      %v3441 = vand.u32 %v3440, 4294901760
      %3442 = vmatmul.mubr.f32.gmra.mrb[0].mxu0 %v3441
      %v3443 = vpop.f32.mrb[0].mxu0
      %v3444 = vadd.f32 %v3314, %v3443
      %v3445 = vpop.f32.mrb[0].mxu0
      %v3446 = vadd.f32 %v3316, %v3445
      %3447 = vmatprep.mubr.f32.mxu0 0.0
      %v3448 = vand.u32 %v391, 4294901760
      %v3449 = vsub.f32 %v391, %v3448
      %v3450 = vand.u32 %v3449, 4294901760
      %3451 = vmatmul.mubr.f32.gmra.mrb[0].mxu0 %v3450
      %v3452 = vpop.f32.mrb[0].mxu0
      %v3453 = vadd.f32 %v3322, %v3452
      %v3454 = vpop.f32.mrb[0].mxu0
      %v3455 = vadd.f32 %v3324, %v3454
      %3456 = vmatprep.mubr.f32.mxu0 0.0
      %v3457 = vand.u32 %v394, 4294901760
      %v3458 = vsub.f32 %v394, %v3457
      %v3459 = vand.u32 %v3458, 4294901760
      %3460 = vmatmul.mubr.f32.gmra.mrb[0].mxu0 %v3459
      %v3461 = vpop.f32.mrb[0].mxu0
      %v3462 = vadd.f32 %v3330, %v3461
      %v3463 = vpop.f32.mrb[0].mxu0
      %v3464 = vadd.f32 %v3332, %v3463
      %3465 = vmatprep.mubr.f32.mxu0 0.0
      %v3466 = vand.u32 %v397, 4294901760
      %v3467 = vsub.f32 %v397, %v3466
      %v3468 = vand.u32 %v3467, 4294901760
      %3469 = vmatmul.mubr.f32.gmra.mrb[0].mxu0 %v3468
      %v3470 = vpop.f32.mrb[0].mxu0
      %v3471 = vadd.f32 %v3338, %v3470
      %v3472 = vpop.f32.mrb[0].mxu0
      %v3473 = vadd.f32 %v3340, %v3472
      %3474 = vdwg.mxu0
      %3475 = vmatprep.subr.mxu0 0.0
      %v3476 = vand.u32 %v592, 4294901760
      %v3477 = vsub.f32 %v592, %v3476
      %v3478 = vand.u32 %v3477, 4294901760
      %3479 = vmatpush1.xpose.msra.mxu0 %v3478
      %3480 = vmatprep.subr.mxu0 0.0
      %v3481 = vand.u32 %v595, 4294901760
      %v3482 = vsub.f32 %v595, %v3481
      %v3483 = vand.u32 %v3482, 4294901760
      %3484 = vmatpush1.xpose.msra.mxu0 %v3483
      %3485 = vmatprep.subr.mxu0 0.0
      %v3486 = vand.u32 %v598, 4294901760
      %v3487 = vsub.f32 %v598, %v3486
      %v3488 = vand.u32 %v3487, 4294901760
      %3489 = vmatpush1.xpose.msra.mxu0 %v3488
      %3490 = vmatprep.subr.mxu0 0.0
      %v3491 = vand.u32 %v601, 4294901760
      %v3492 = vsub.f32 %v601, %v3491
      %v3493 = vand.u32 %v3492, 4294901760
      %3494 = vmatpush1.xpose.msra.mxu0 %v3493
      %3495 = vmatprep.subr.mxu0 0.0
      %v3496 = vand.u32 %v604, 4294901760
      %v3497 = vsub.f32 %v604, %v3496
      %v3498 = vand.u32 %v3497, 4294901760
      %3499 = vmatpush1.xpose.msra.mxu0 %v3498
      %3500 = vmatprep.subr.mxu0 0.0
      %v3501 = vand.u32 %v607, 4294901760
      %v3502 = vsub.f32 %v607, %v3501
      %v3503 = vand.u32 %v3502, 4294901760
      %3504 = vmatpush1.xpose.msra.mxu0 %v3503
      %3505 = vmatprep.subr.mxu0 0.0
      %v3506 = vand.u32 %v610, 4294901760
      %v3507 = vsub.f32 %v610, %v3506
      %v3508 = vand.u32 %v3507, 4294901760
      %3509 = vmatpush1.xpose.msra.mxu0 %v3508
      %3510 = vmatprep.subr.mxu0 0.0
      %v3511 = vand.u32 %v613, 4294901760
      %v3512 = vsub.f32 %v613, %v3511
      %v3513 = vand.u32 %v3512, 4294901760
      %3514 = vmatpush1.xpose.msra.mxu0 %v3513
      %3515 = vmatprep.subr.mxu0 0.0
      %v3516 = vand.u32 %v616, 4294901760
      %v3517 = vsub.f32 %v616, %v3516
      %v3518 = vand.u32 %v3517, 4294901760
      %3519 = vmatpush1.xpose.msra.mxu0 %v3518
      %3520 = vmatprep.subr.mxu0 0.0
      %v3521 = vand.u32 %v619, 4294901760
      %v3522 = vsub.f32 %v619, %v3521
      %v3523 = vand.u32 %v3522, 4294901760
      %3524 = vmatpush1.xpose.msra.mxu0 %v3523
      %3525 = vmatprep.subr.mxu0 0.0
      %v3526 = vand.u32 %v622, 4294901760
      %v3527 = vsub.f32 %v622, %v3526
      %v3528 = vand.u32 %v3527, 4294901760
      %3529 = vmatpush1.xpose.msra.mxu0 %v3528
      %3530 = vmatprep.subr.mxu0 0.0
      %v3531 = vand.u32 %v625, 4294901760
      %v3532 = vsub.f32 %v625, %v3531
      %v3533 = vand.u32 %v3532, 4294901760
      %3534 = vmatpush1.xpose.msra.mxu0 %v3533
      %3535 = vmatprep.subr.mxu0 0.0
      %v3536 = vand.u32 %v628, 4294901760
      %v3537 = vsub.f32 %v628, %v3536
      %v3538 = vand.u32 %v3537, 4294901760
      %3539 = vmatpush1.xpose.msra.mxu0 %v3538
      %3540 = vmatprep.subr.mxu0 0.0
      %v3541 = vand.u32 %v631, 4294901760
      %v3542 = vsub.f32 %v631, %v3541
      %v3543 = vand.u32 %v3542, 4294901760
      %3544 = vmatpush1.xpose.msra.mxu0 %v3543
      %3545 = vmatprep.subr.mxu0 0.0
      %v3546 = vand.u32 %v634, 4294901760
      %v3547 = vsub.f32 %v634, %v3546
      %v3548 = vand.u32 %v3547, 4294901760
      %3549 = vmatpush1.xpose.msra.mxu0 %v3548
      %3550 = vmatprep.subr.mxu0 0.0
      %v3551 = vand.u32 %v637, 4294901760
      %v3552 = vsub.f32 %v637, %v3551
      %v3553 = vand.u32 %v3552, 4294901760
      %3554 = vmatpush1.xpose.msra.mxu0 %v3553
      %3555 = vmatprep.subr.mxu0 0.0
      %v3556 = vand.u32 %v640, 4294901760
      %v3557 = vsub.f32 %v640, %v3556
      %v3558 = vand.u32 %v3557, 4294901760
      %3559 = vmatpush1.xpose.msra.mxu0 %v3558
      %3560 = vmatprep.subr.mxu0 0.0
      %v3561 = vand.u32 %v643, 4294901760
      %v3562 = vsub.f32 %v643, %v3561
      %v3563 = vand.u32 %v3562, 4294901760
      %3564 = vmatpush1.xpose.msra.mxu0 %v3563
      %3565 = vmatprep.subr.mxu0 0.0
      %v3566 = vand.u32 %v646, 4294901760
      %v3567 = vsub.f32 %v646, %v3566
      %v3568 = vand.u32 %v3567, 4294901760
      %3569 = vmatpush1.xpose.msra.mxu0 %v3568
      %3570 = vmatprep.subr.mxu0 0.0
      %v3571 = vand.u32 %v649, 4294901760
      %v3572 = vsub.f32 %v649, %v3571
      %v3573 = vand.u32 %v3572, 4294901760
      %3574 = vmatpush1.xpose.msra.mxu0 %v3573
      %3575 = vmatprep.subr.mxu0 0.0
      %v3576 = vand.u32 %v652, 4294901760
      %v3577 = vsub.f32 %v652, %v3576
      %v3578 = vand.u32 %v3577, 4294901760
      %3579 = vmatpush1.xpose.msra.mxu0 %v3578
      %3580 = vmatprep.subr.mxu0 0.0
      %v3581 = vand.u32 %v655, 4294901760
      %v3582 = vsub.f32 %v655, %v3581
      %v3583 = vand.u32 %v3582, 4294901760
      %3584 = vmatpush1.xpose.msra.mxu0 %v3583
      %3585 = vmatprep.subr.mxu0 0.0
      %v3586 = vand.u32 %v658, 4294901760
      %v3587 = vsub.f32 %v658, %v3586
      %v3588 = vand.u32 %v3587, 4294901760
      %3589 = vmatpush1.xpose.msra.mxu0 %v3588
      %3590 = vmatprep.subr.mxu0 0.0
      %v3591 = vand.u32 %v661, 4294901760
      %v3592 = vsub.f32 %v661, %v3591
      %v3593 = vand.u32 %v3592, 4294901760
      %3594 = vmatpush1.xpose.msra.mxu0 %v3593
      %3595 = vmatprep.subr.mxu0 0.0
      %v3596 = vand.u32 %v664, 4294901760
      %v3597 = vsub.f32 %v664, %v3596
      %v3598 = vand.u32 %v3597, 4294901760
      %3599 = vmatpush1.xpose.msra.mxu0 %v3598
      %3600 = vmatprep.subr.mxu0 0.0
      %v3601 = vand.u32 %v667, 4294901760
      %v3602 = vsub.f32 %v667, %v3601
      %v3603 = vand.u32 %v3602, 4294901760
      %3604 = vmatpush1.xpose.msra.mxu0 %v3603
      %3605 = vmatprep.subr.mxu0 0.0
      %v3606 = vand.u32 %v670, 4294901760
      %v3607 = vsub.f32 %v670, %v3606
      %v3608 = vand.u32 %v3607, 4294901760
      %3609 = vmatpush1.xpose.msra.mxu0 %v3608
      %3610 = vmatprep.subr.mxu0 0.0
      %v3611 = vand.u32 %v673, 4294901760
      %v3612 = vsub.f32 %v673, %v3611
      %v3613 = vand.u32 %v3612, 4294901760
      %3614 = vmatpush1.xpose.msra.mxu0 %v3613
      %3615 = vmatprep.subr.mxu0 0.0
      %v3616 = vand.u32 %v676, 4294901760
      %v3617 = vsub.f32 %v676, %v3616
      %v3618 = vand.u32 %v3617, 4294901760
      %3619 = vmatpush1.xpose.msra.mxu0 %v3618
      %3620 = vmatprep.subr.mxu0 0.0
      %v3621 = vand.u32 %v679, 4294901760
      %v3622 = vsub.f32 %v679, %v3621
      %v3623 = vand.u32 %v3622, 4294901760
      %3624 = vmatpush1.xpose.msra.mxu0 %v3623
      %3625 = vmatprep.subr.mxu0 0.0
      %v3626 = vand.u32 %v682, 4294901760
      %v3627 = vsub.f32 %v682, %v3626
      %v3628 = vand.u32 %v3627, 4294901760
      %3629 = vmatpush1.xpose.msra.mxu0 %v3628
      %3630 = vmatprep.subr.mxu0 0.0
      %v3631 = vand.u32 %v685, 4294901760
      %v3632 = vsub.f32 %v685, %v3631
      %v3633 = vand.u32 %v3632, 4294901760
      %3634 = vmatpush1.xpose.msra.mxu0 %v3633
      %3635 = vmatprep.mubr.f32.mxu0 0.0
      %v3636 = vand.u32 %v388, 4294901760
      %3637 = vmatmul.mubr.f32.gmra.mrb[0].mxu0 %v3636
      %v3638 = vpop.f32.mrb[0].mxu0
      %v3639 = vadd.f32 %v3444, %v3638
      %v3640 = vpop.f32.mrb[0].mxu0
      %v3641 = vadd.f32 %v3446, %v3640
      %3642 = vmatprep.mubr.f32.mxu0 0.0
      %v3643 = vand.u32 %v391, 4294901760
      %3644 = vmatmul.mubr.f32.gmra.mrb[0].mxu0 %v3643
      %v3645 = vpop.f32.mrb[0].mxu0
      %v3646 = vadd.f32 %v3453, %v3645
      %v3647 = vpop.f32.mrb[0].mxu0
      %v3648 = vadd.f32 %v3455, %v3647
      %3649 = vmatprep.mubr.f32.mxu0 0.0
      %v3650 = vand.u32 %v394, 4294901760
      %3651 = vmatmul.mubr.f32.gmra.mrb[0].mxu0 %v3650
      %v3652 = vpop.f32.mrb[0].mxu0
      %v3653 = vadd.f32 %v3462, %v3652
      %v3654 = vpop.f32.mrb[0].mxu0
      %v3655 = vadd.f32 %v3464, %v3654
      %3656 = vmatprep.mubr.f32.mxu0 0.0
      %v3657 = vand.u32 %v397, 4294901760
      %3658 = vmatmul.mubr.f32.gmra.mrb[0].mxu0 %v3657
      %v3659 = vpop.f32.mrb[0].mxu0
      %v3660 = vadd.f32 %v3471, %v3659
      %v3661 = vpop.f32.mrb[0].mxu0
      %v3662 = vadd.f32 %v3473, %v3661
      %3663 = vdwg.mxu0
      %3664 = vmatprep.subr.mxu0 0.0
      %v3665 = vand.u32 %v592, 4294901760
      %3666 = vmatpush1.xpose.msra.mxu0 %v3665
      %3667 = vmatprep.subr.mxu0 0.0
      %v3668 = vand.u32 %v595, 4294901760
      %3669 = vmatpush1.xpose.msra.mxu0 %v3668
      %3670 = vmatprep.subr.mxu0 0.0
      %v3671 = vand.u32 %v598, 4294901760
      %3672 = vmatpush1.xpose.msra.mxu0 %v3671
      %3673 = vmatprep.subr.mxu0 0.0
      %v3674 = vand.u32 %v601, 4294901760
      %3675 = vmatpush1.xpose.msra.mxu0 %v3674
      %3676 = vmatprep.subr.mxu0 0.0
      %v3677 = vand.u32 %v604, 4294901760
      %3678 = vmatpush1.xpose.msra.mxu0 %v3677
      %3679 = vmatprep.subr.mxu0 0.0
      %v3680 = vand.u32 %v607, 4294901760
      %3681 = vmatpush1.xpose.msra.mxu0 %v3680
      %3682 = vmatprep.subr.mxu0 0.0
      %v3683 = vand.u32 %v610, 4294901760
      %3684 = vmatpush1.xpose.msra.mxu0 %v3683
      %3685 = vmatprep.subr.mxu0 0.0
      %v3686 = vand.u32 %v613, 4294901760
      %3687 = vmatpush1.xpose.msra.mxu0 %v3686
      %3688 = vmatprep.subr.mxu0 0.0
      %v3689 = vand.u32 %v616, 4294901760
      %3690 = vmatpush1.xpose.msra.mxu0 %v3689
      %3691 = vmatprep.subr.mxu0 0.0
      %v3692 = vand.u32 %v619, 4294901760
      %3693 = vmatpush1.xpose.msra.mxu0 %v3692
      %3694 = vmatprep.subr.mxu0 0.0
      %v3695 = vand.u32 %v622, 4294901760
      %3696 = vmatpush1.xpose.msra.mxu0 %v3695
      %3697 = vmatprep.subr.mxu0 0.0
      %v3698 = vand.u32 %v625, 4294901760
      %3699 = vmatpush1.xpose.msra.mxu0 %v3698
      %3700 = vmatprep.subr.mxu0 0.0
      %v3701 = vand.u32 %v628, 4294901760
      %3702 = vmatpush1.xpose.msra.mxu0 %v3701
      %3703 = vmatprep.subr.mxu0 0.0
      %v3704 = vand.u32 %v631, 4294901760
      %3705 = vmatpush1.xpose.msra.mxu0 %v3704
      %3706 = vmatprep.subr.mxu0 0.0
      %v3707 = vand.u32 %v634, 4294901760
      %3708 = vmatpush1.xpose.msra.mxu0 %v3707
      %3709 = vmatprep.subr.mxu0 0.0
      %v3710 = vand.u32 %v637, 4294901760
      %3711 = vmatpush1.xpose.msra.mxu0 %v3710
      %3712 = vmatprep.subr.mxu0 0.0
      %v3713 = vand.u32 %v640, 4294901760
      %3714 = vmatpush1.xpose.msra.mxu0 %v3713
      %3715 = vmatprep.subr.mxu0 0.0
      %v3716 = vand.u32 %v643, 4294901760
      %3717 = vmatpush1.xpose.msra.mxu0 %v3716
      %3718 = vmatprep.subr.mxu0 0.0
      %v3719 = vand.u32 %v646, 4294901760
      %3720 = vmatpush1.xpose.msra.mxu0 %v3719
      %3721 = vmatprep.subr.mxu0 0.0
      %v3722 = vand.u32 %v649, 4294901760
      %3723 = vmatpush1.xpose.msra.mxu0 %v3722
      %3724 = vmatprep.subr.mxu0 0.0
      %v3725 = vand.u32 %v652, 4294901760
      %3726 = vmatpush1.xpose.msra.mxu0 %v3725
      %3727 = vmatprep.subr.mxu0 0.0
      %v3728 = vand.u32 %v655, 4294901760
      %3729 = vmatpush1.xpose.msra.mxu0 %v3728
      %3730 = vmatprep.subr.mxu0 0.0
      %v3731 = vand.u32 %v658, 4294901760
      %3732 = vmatpush1.xpose.msra.mxu0 %v3731
      %3733 = vmatprep.subr.mxu0 0.0
      %v3734 = vand.u32 %v661, 4294901760
      %3735 = vmatpush1.xpose.msra.mxu0 %v3734
      %3736 = vmatprep.subr.mxu0 0.0
      %v3737 = vand.u32 %v664, 4294901760
      %3738 = vmatpush1.xpose.msra.mxu0 %v3737
      %3739 = vmatprep.subr.mxu0 0.0
      %v3740 = vand.u32 %v667, 4294901760
      %3741 = vmatpush1.xpose.msra.mxu0 %v3740
      %3742 = vmatprep.subr.mxu0 0.0
      %v3743 = vand.u32 %v670, 4294901760
      %3744 = vmatpush1.xpose.msra.mxu0 %v3743
      %3745 = vmatprep.subr.mxu0 0.0
      %v3746 = vand.u32 %v673, 4294901760
      %3747 = vmatpush1.xpose.msra.mxu0 %v3746
      %3748 = vmatprep.subr.mxu0 0.0
      %v3749 = vand.u32 %v676, 4294901760
      %3750 = vmatpush1.xpose.msra.mxu0 %v3749
      %3751 = vmatprep.subr.mxu0 0.0
      %v3752 = vand.u32 %v679, 4294901760
      %3753 = vmatpush1.xpose.msra.mxu0 %v3752
      %3754 = vmatprep.subr.mxu0 0.0
      %v3755 = vand.u32 %v682, 4294901760
      %3756 = vmatpush1.xpose.msra.mxu0 %v3755
      %3757 = vmatprep.subr.mxu0 0.0
      %v3758 = vand.u32 %v685, 4294901760
      %3759 = vmatpush1.xpose.msra.mxu0 %v3758
      %3760 = vmatprep.mubr.f32.mxu0 0.0
      %v3761 = vand.u32 %v388, 4294901760
      %3762 = vmatmul.mubr.f32.gmra.mrb[0].mxu0 %v3761
      %v3763 = vpop.f32.mrb[0].mxu0
      %v3764 = vadd.f32 %v3639, %v3763
      %v3765 = vpop.f32.mrb[0].mxu0
      %v3766 = vadd.f32 %v3641, %v3765
      %3767 = vmatprep.mubr.f32.mxu0 0.0
      %v3768 = vand.u32 %v391, 4294901760
      %3769 = vmatmul.mubr.f32.gmra.mrb[0].mxu0 %v3768
      %v3770 = vpop.f32.mrb[0].mxu0
      %v3771 = vadd.f32 %v3646, %v3770
      %v3772 = vpop.f32.mrb[0].mxu0
      %v3773 = vadd.f32 %v3648, %v3772
      %3774 = vmatprep.mubr.f32.mxu0 0.0
      %v3775 = vand.u32 %v394, 4294901760
      %3776 = vmatmul.mubr.f32.gmra.mrb[0].mxu0 %v3775
      %v3777 = vpop.f32.mrb[0].mxu0
      %v3778 = vadd.f32 %v3653, %v3777
      %v3779 = vpop.f32.mrb[0].mxu0
      %v3780 = vadd.f32 %v3655, %v3779
      %3781 = vmatprep.mubr.f32.mxu0 0.0
      %v3782 = vand.u32 %v397, 4294901760
      %3783 = vmatmul.mubr.f32.gmra.mrb[0].mxu0 %v3782
      %v3784 = vpop.f32.mrb[0].mxu0
      %v3785 = vadd.f32 %v3660, %v3784
      %v3786 = vpop.f32.mrb[0].mxu0
      %v3787 = vadd.f32 %v3662, %v3786
      %3788 = vdwg.mxu0
      %3789 = vmatprep.subr.mxu0 0.0
      %v3790 = vand.u32 %v688, 4294901760
      %3791 = vmatpush1.xpose.msra.mxu0 %v3790
      %3792 = vmatprep.subr.mxu0 0.0
      %v3793 = vand.u32 %v691, 4294901760
      %3794 = vmatpush1.xpose.msra.mxu0 %v3793
      %3795 = vmatprep.subr.mxu0 0.0
      %v3796 = vand.u32 %v694, 4294901760
      %3797 = vmatpush1.xpose.msra.mxu0 %v3796
      %3798 = vmatprep.subr.mxu0 0.0
      %v3799 = vand.u32 %v697, 4294901760
      %3800 = vmatpush1.xpose.msra.mxu0 %v3799
      %3801 = vmatprep.subr.mxu0 0.0
      %v3802 = vand.u32 %v700, 4294901760
      %3803 = vmatpush1.xpose.msra.mxu0 %v3802
      %3804 = vmatprep.subr.mxu0 0.0
      %v3805 = vand.u32 %v703, 4294901760
      %3806 = vmatpush1.xpose.msra.mxu0 %v3805
      %3807 = vmatprep.subr.mxu0 0.0
      %v3808 = vand.u32 %v706, 4294901760
      %3809 = vmatpush1.xpose.msra.mxu0 %v3808
      %3810 = vmatprep.subr.mxu0 0.0
      %v3811 = vand.u32 %v709, 4294901760
      %3812 = vmatpush1.xpose.msra.mxu0 %v3811
      %3813 = vmatprep.subr.mxu0 0.0
      %v3814 = vand.u32 %v712, 4294901760
      %3815 = vmatpush1.xpose.msra.mxu0 %v3814
      %3816 = vmatprep.subr.mxu0 0.0
      %v3817 = vand.u32 %v715, 4294901760
      %3818 = vmatpush1.xpose.msra.mxu0 %v3817
      %3819 = vmatprep.subr.mxu0 0.0
      %v3820 = vand.u32 %v718, 4294901760
      %3821 = vmatpush1.xpose.msra.mxu0 %v3820
      %3822 = vmatprep.subr.mxu0 0.0
      %v3823 = vand.u32 %v721, 4294901760
      %3824 = vmatpush1.xpose.msra.mxu0 %v3823
      %3825 = vmatprep.subr.mxu0 0.0
      %v3826 = vand.u32 %v724, 4294901760
      %3827 = vmatpush1.xpose.msra.mxu0 %v3826
      %3828 = vmatprep.subr.mxu0 0.0
      %v3829 = vand.u32 %v727, 4294901760
      %3830 = vmatpush1.xpose.msra.mxu0 %v3829
      %3831 = vmatprep.subr.mxu0 0.0
      %v3832 = vand.u32 %v730, 4294901760
      %3833 = vmatpush1.xpose.msra.mxu0 %v3832
      %3834 = vmatprep.subr.mxu0 0.0
      %v3835 = vand.u32 %v733, 4294901760
      %3836 = vmatpush1.xpose.msra.mxu0 %v3835
      %3837 = vmatprep.subr.mxu0 0.0
      %v3838 = vand.u32 %v736, 4294901760
      %3839 = vmatpush1.xpose.msra.mxu0 %v3838
      %3840 = vmatprep.subr.mxu0 0.0
      %v3841 = vand.u32 %v739, 4294901760
      %3842 = vmatpush1.xpose.msra.mxu0 %v3841
      %3843 = vmatprep.subr.mxu0 0.0
      %v3844 = vand.u32 %v742, 4294901760
      %3845 = vmatpush1.xpose.msra.mxu0 %v3844
      %3846 = vmatprep.subr.mxu0 0.0
      %v3847 = vand.u32 %v745, 4294901760
      %3848 = vmatpush1.xpose.msra.mxu0 %v3847
      %3849 = vmatprep.subr.mxu0 0.0
      %v3850 = vand.u32 %v748, 4294901760
      %3851 = vmatpush1.xpose.msra.mxu0 %v3850
      %3852 = vmatprep.subr.mxu0 0.0
      %v3853 = vand.u32 %v751, 4294901760
      %3854 = vmatpush1.xpose.msra.mxu0 %v3853
      %3855 = vmatprep.subr.mxu0 0.0
      %v3856 = vand.u32 %v754, 4294901760
      %3857 = vmatpush1.xpose.msra.mxu0 %v3856
      %3858 = vmatprep.subr.mxu0 0.0
      %v3859 = vand.u32 %v757, 4294901760
      %3860 = vmatpush1.xpose.msra.mxu0 %v3859
      %3861 = vmatprep.subr.mxu0 0.0
      %v3862 = vand.u32 %v760, 4294901760
      %3863 = vmatpush1.xpose.msra.mxu0 %v3862
      %3864 = vmatprep.subr.mxu0 0.0
      %v3865 = vand.u32 %v763, 4294901760
      %3866 = vmatpush1.xpose.msra.mxu0 %v3865
      %3867 = vmatprep.subr.mxu0 0.0
      %v3868 = vand.u32 %v766, 4294901760
      %3869 = vmatpush1.xpose.msra.mxu0 %v3868
      %3870 = vmatprep.subr.mxu0 0.0
      %v3871 = vand.u32 %v769, 4294901760
      %3872 = vmatpush1.xpose.msra.mxu0 %v3871
      %3873 = vmatprep.subr.mxu0 0.0
      %v3874 = vand.u32 %v772, 4294901760
      %3875 = vmatpush1.xpose.msra.mxu0 %v3874
      %3876 = vmatprep.subr.mxu0 0.0
      %v3877 = vand.u32 %v775, 4294901760
      %3878 = vmatpush1.xpose.msra.mxu0 %v3877
      %3879 = vmatprep.subr.mxu0 0.0
      %v3880 = vand.u32 %v778, 4294901760
      %3881 = vmatpush1.xpose.msra.mxu0 %v3880
      %3882 = vmatprep.subr.mxu0 0.0
      %v3883 = vand.u32 %v781, 4294901760
      %3884 = vmatpush1.xpose.msra.mxu0 %v3883
      %3885 = vmatprep.mubr.f32.mxu0 0.0
      %v3886 = vand.u32 %v388, 4294901760
      %v3887 = vsub.f32 %v388, %v3886
      %v3888 = vand.u32 %v3887, 4294901760
      %v3889 = vsub.f32 %v3887, %v3888
      %v3890 = vand.u32 %v3889, 4294901760
      %3891 = vmatmul.mubr.f32.gmra.mrb[0].mxu0 %v3890
      %v3892 = vpop.f32.mrb[0].mxu0
      %v3893 = vadd.f32 %v369, %v3892
      %v3894 = vpop.f32.mrb[0].mxu0
      %v3895 = vadd.f32 %v369, %v3894
      %3896 = vmatprep.mubr.f32.mxu0 0.0
      %v3897 = vand.u32 %v391, 4294901760
      %v3898 = vsub.f32 %v391, %v3897
      %v3899 = vand.u32 %v3898, 4294901760
      %v3900 = vsub.f32 %v3898, %v3899
      %v3901 = vand.u32 %v3900, 4294901760
      %3902 = vmatmul.mubr.f32.gmra.mrb[0].mxu0 %v3901
      %v3903 = vpop.f32.mrb[0].mxu0
      %v3904 = vadd.f32 %v374, %v3903
      %v3905 = vpop.f32.mrb[0].mxu0
      %v3906 = vadd.f32 %v374, %v3905
      %3907 = vmatprep.mubr.f32.mxu0 0.0
      %v3908 = vand.u32 %v394, 4294901760
      %v3909 = vsub.f32 %v394, %v3908
      %v3910 = vand.u32 %v3909, 4294901760
      %v3911 = vsub.f32 %v3909, %v3910
      %v3912 = vand.u32 %v3911, 4294901760
      %3913 = vmatmul.mubr.f32.gmra.mrb[0].mxu0 %v3912
      %v3914 = vpop.f32.mrb[0].mxu0
      %v3915 = vadd.f32 %v379, %v3914
      %v3916 = vpop.f32.mrb[0].mxu0
      %v3917 = vadd.f32 %v379, %v3916
      %3918 = vmatprep.mubr.f32.mxu0 0.0
      %v3919 = vand.u32 %v397, 4294901760
      %v3920 = vsub.f32 %v397, %v3919
      %v3921 = vand.u32 %v3920, 4294901760
      %v3922 = vsub.f32 %v3920, %v3921
      %v3923 = vand.u32 %v3922, 4294901760
      %3924 = vmatmul.mubr.f32.gmra.mrb[0].mxu0 %v3923
      %v3925 = vpop.f32.mrb[0].mxu0
      %v3926 = vadd.f32 %v384, %v3925
      %v3927 = vpop.f32.mrb[0].mxu0
      %v3928 = vadd.f32 %v384, %v3927
      %3929 = vdwg.mxu0
      %3930 = vmatprep.subr.mxu0 0.0
      %v3931 = vand.u32 %v688, 4294901760
      %v3932 = vsub.f32 %v688, %v3931
      %v3933 = vand.u32 %v3932, 4294901760
      %v3934 = vsub.f32 %v3932, %v3933
      %v3935 = vand.u32 %v3934, 4294901760
      %3936 = vmatpush1.xpose.msra.mxu0 %v3935
      %3937 = vmatprep.subr.mxu0 0.0
      %v3938 = vand.u32 %v691, 4294901760
      %v3939 = vsub.f32 %v691, %v3938
      %v3940 = vand.u32 %v3939, 4294901760
      %v3941 = vsub.f32 %v3939, %v3940
      %v3942 = vand.u32 %v3941, 4294901760
      %3943 = vmatpush1.xpose.msra.mxu0 %v3942
      %3944 = vmatprep.subr.mxu0 0.0
      %v3945 = vand.u32 %v694, 4294901760
      %v3946 = vsub.f32 %v694, %v3945
      %v3947 = vand.u32 %v3946, 4294901760
      %v3948 = vsub.f32 %v3946, %v3947
      %v3949 = vand.u32 %v3948, 4294901760
      %3950 = vmatpush1.xpose.msra.mxu0 %v3949
      %3951 = vmatprep.subr.mxu0 0.0
      %v3952 = vand.u32 %v697, 4294901760
      %v3953 = vsub.f32 %v697, %v3952
      %v3954 = vand.u32 %v3953, 4294901760
      %v3955 = vsub.f32 %v3953, %v3954
      %v3956 = vand.u32 %v3955, 4294901760
      %3957 = vmatpush1.xpose.msra.mxu0 %v3956
      %3958 = vmatprep.subr.mxu0 0.0
      %v3959 = vand.u32 %v700, 4294901760
      %v3960 = vsub.f32 %v700, %v3959
      %v3961 = vand.u32 %v3960, 4294901760
      %v3962 = vsub.f32 %v3960, %v3961
      %v3963 = vand.u32 %v3962, 4294901760
      %3964 = vmatpush1.xpose.msra.mxu0 %v3963
      %3965 = vmatprep.subr.mxu0 0.0
      %v3966 = vand.u32 %v703, 4294901760
      %v3967 = vsub.f32 %v703, %v3966
      %v3968 = vand.u32 %v3967, 4294901760
      %v3969 = vsub.f32 %v3967, %v3968
      %v3970 = vand.u32 %v3969, 4294901760
      %3971 = vmatpush1.xpose.msra.mxu0 %v3970
      %3972 = vmatprep.subr.mxu0 0.0
      %v3973 = vand.u32 %v706, 4294901760
      %v3974 = vsub.f32 %v706, %v3973
      %v3975 = vand.u32 %v3974, 4294901760
      %v3976 = vsub.f32 %v3974, %v3975
      %v3977 = vand.u32 %v3976, 4294901760
      %3978 = vmatpush1.xpose.msra.mxu0 %v3977
      %3979 = vmatprep.subr.mxu0 0.0
      %v3980 = vand.u32 %v709, 4294901760
      %v3981 = vsub.f32 %v709, %v3980
      %v3982 = vand.u32 %v3981, 4294901760
      %v3983 = vsub.f32 %v3981, %v3982
      %v3984 = vand.u32 %v3983, 4294901760
      %3985 = vmatpush1.xpose.msra.mxu0 %v3984
      %3986 = vmatprep.subr.mxu0 0.0
      %v3987 = vand.u32 %v712, 4294901760
      %v3988 = vsub.f32 %v712, %v3987
      %v3989 = vand.u32 %v3988, 4294901760
      %v3990 = vsub.f32 %v3988, %v3989
      %v3991 = vand.u32 %v3990, 4294901760
      %3992 = vmatpush1.xpose.msra.mxu0 %v3991
      %3993 = vmatprep.subr.mxu0 0.0
      %v3994 = vand.u32 %v715, 4294901760
      %v3995 = vsub.f32 %v715, %v3994
      %v3996 = vand.u32 %v3995, 4294901760
      %v3997 = vsub.f32 %v3995, %v3996
      %v3998 = vand.u32 %v3997, 4294901760
      %3999 = vmatpush1.xpose.msra.mxu0 %v3998
      %4000 = vmatprep.subr.mxu0 0.0
      %v4001 = vand.u32 %v718, 4294901760
      %v4002 = vsub.f32 %v718, %v4001
      %v4003 = vand.u32 %v4002, 4294901760
      %v4004 = vsub.f32 %v4002, %v4003
      %v4005 = vand.u32 %v4004, 4294901760
      %4006 = vmatpush1.xpose.msra.mxu0 %v4005
      %4007 = vmatprep.subr.mxu0 0.0
      %v4008 = vand.u32 %v721, 4294901760
      %v4009 = vsub.f32 %v721, %v4008
      %v4010 = vand.u32 %v4009, 4294901760
      %v4011 = vsub.f32 %v4009, %v4010
      %v4012 = vand.u32 %v4011, 4294901760
      %4013 = vmatpush1.xpose.msra.mxu0 %v4012
      %4014 = vmatprep.subr.mxu0 0.0
      %v4015 = vand.u32 %v724, 4294901760
      %v4016 = vsub.f32 %v724, %v4015
      %v4017 = vand.u32 %v4016, 4294901760
      %v4018 = vsub.f32 %v4016, %v4017
      %v4019 = vand.u32 %v4018, 4294901760
      %4020 = vmatpush1.xpose.msra.mxu0 %v4019
      %4021 = vmatprep.subr.mxu0 0.0
      %v4022 = vand.u32 %v727, 4294901760
      %v4023 = vsub.f32 %v727, %v4022
      %v4024 = vand.u32 %v4023, 4294901760
      %v4025 = vsub.f32 %v4023, %v4024
      %v4026 = vand.u32 %v4025, 4294901760
      %4027 = vmatpush1.xpose.msra.mxu0 %v4026
      %4028 = vmatprep.subr.mxu0 0.0
      %v4029 = vand.u32 %v730, 4294901760
      %v4030 = vsub.f32 %v730, %v4029
      %v4031 = vand.u32 %v4030, 4294901760
      %v4032 = vsub.f32 %v4030, %v4031
      %v4033 = vand.u32 %v4032, 4294901760
      %4034 = vmatpush1.xpose.msra.mxu0 %v4033
      %4035 = vmatprep.subr.mxu0 0.0
      %v4036 = vand.u32 %v733, 4294901760
      %v4037 = vsub.f32 %v733, %v4036
      %v4038 = vand.u32 %v4037, 4294901760
      %v4039 = vsub.f32 %v4037, %v4038
      %v4040 = vand.u32 %v4039, 4294901760
      %4041 = vmatpush1.xpose.msra.mxu0 %v4040
      %4042 = vmatprep.subr.mxu0 0.0
      %v4043 = vand.u32 %v736, 4294901760
      %v4044 = vsub.f32 %v736, %v4043
      %v4045 = vand.u32 %v4044, 4294901760
      %v4046 = vsub.f32 %v4044, %v4045
      %v4047 = vand.u32 %v4046, 4294901760
      %4048 = vmatpush1.xpose.msra.mxu0 %v4047
      %4049 = vmatprep.subr.mxu0 0.0
      %v4050 = vand.u32 %v739, 4294901760
      %v4051 = vsub.f32 %v739, %v4050
      %v4052 = vand.u32 %v4051, 4294901760
      %v4053 = vsub.f32 %v4051, %v4052
      %v4054 = vand.u32 %v4053, 4294901760
      %4055 = vmatpush1.xpose.msra.mxu0 %v4054
      %4056 = vmatprep.subr.mxu0 0.0
      %v4057 = vand.u32 %v742, 4294901760
      %v4058 = vsub.f32 %v742, %v4057
      %v4059 = vand.u32 %v4058, 4294901760
      %v4060 = vsub.f32 %v4058, %v4059
      %v4061 = vand.u32 %v4060, 4294901760
      %4062 = vmatpush1.xpose.msra.mxu0 %v4061
      %4063 = vmatprep.subr.mxu0 0.0
      %v4064 = vand.u32 %v745, 4294901760
      %v4065 = vsub.f32 %v745, %v4064
      %v4066 = vand.u32 %v4065, 4294901760
      %v4067 = vsub.f32 %v4065, %v4066
      %v4068 = vand.u32 %v4067, 4294901760
      %4069 = vmatpush1.xpose.msra.mxu0 %v4068
      %4070 = vmatprep.subr.mxu0 0.0
      %v4071 = vand.u32 %v748, 4294901760
      %v4072 = vsub.f32 %v748, %v4071
      %v4073 = vand.u32 %v4072, 4294901760
      %v4074 = vsub.f32 %v4072, %v4073
      %v4075 = vand.u32 %v4074, 4294901760
      %4076 = vmatpush1.xpose.msra.mxu0 %v4075
      %4077 = vmatprep.subr.mxu0 0.0
      %v4078 = vand.u32 %v751, 4294901760
      %v4079 = vsub.f32 %v751, %v4078
      %v4080 = vand.u32 %v4079, 4294901760
      %v4081 = vsub.f32 %v4079, %v4080
      %v4082 = vand.u32 %v4081, 4294901760
      %4083 = vmatpush1.xpose.msra.mxu0 %v4082
      %4084 = vmatprep.subr.mxu0 0.0
      %v4085 = vand.u32 %v754, 4294901760
      %v4086 = vsub.f32 %v754, %v4085
      %v4087 = vand.u32 %v4086, 4294901760
      %v4088 = vsub.f32 %v4086, %v4087
      %v4089 = vand.u32 %v4088, 4294901760
      %4090 = vmatpush1.xpose.msra.mxu0 %v4089
      %4091 = vmatprep.subr.mxu0 0.0
      %v4092 = vand.u32 %v757, 4294901760
      %v4093 = vsub.f32 %v757, %v4092
      %v4094 = vand.u32 %v4093, 4294901760
      %v4095 = vsub.f32 %v4093, %v4094
      %v4096 = vand.u32 %v4095, 4294901760
      %4097 = vmatpush1.xpose.msra.mxu0 %v4096
      %4098 = vmatprep.subr.mxu0 0.0
      %v4099 = vand.u32 %v760, 4294901760
      %v4100 = vsub.f32 %v760, %v4099
      %v4101 = vand.u32 %v4100, 4294901760
      %v4102 = vsub.f32 %v4100, %v4101
      %v4103 = vand.u32 %v4102, 4294901760
      %4104 = vmatpush1.xpose.msra.mxu0 %v4103
      %4105 = vmatprep.subr.mxu0 0.0
      %v4106 = vand.u32 %v763, 4294901760
      %v4107 = vsub.f32 %v763, %v4106
      %v4108 = vand.u32 %v4107, 4294901760
      %v4109 = vsub.f32 %v4107, %v4108
      %v4110 = vand.u32 %v4109, 4294901760
      %4111 = vmatpush1.xpose.msra.mxu0 %v4110
      %4112 = vmatprep.subr.mxu0 0.0
      %v4113 = vand.u32 %v766, 4294901760
      %v4114 = vsub.f32 %v766, %v4113
      %v4115 = vand.u32 %v4114, 4294901760
      %v4116 = vsub.f32 %v4114, %v4115
      %v4117 = vand.u32 %v4116, 4294901760
      %4118 = vmatpush1.xpose.msra.mxu0 %v4117
      %4119 = vmatprep.subr.mxu0 0.0
      %v4120 = vand.u32 %v769, 4294901760
      %v4121 = vsub.f32 %v769, %v4120
      %v4122 = vand.u32 %v4121, 4294901760
      %v4123 = vsub.f32 %v4121, %v4122
      %v4124 = vand.u32 %v4123, 4294901760
      %4125 = vmatpush1.xpose.msra.mxu0 %v4124
      %4126 = vmatprep.subr.mxu0 0.0
      %v4127 = vand.u32 %v772, 4294901760
      %v4128 = vsub.f32 %v772, %v4127
      %v4129 = vand.u32 %v4128, 4294901760
      %v4130 = vsub.f32 %v4128, %v4129
      %v4131 = vand.u32 %v4130, 4294901760
      %4132 = vmatpush1.xpose.msra.mxu0 %v4131
      %4133 = vmatprep.subr.mxu0 0.0
      %v4134 = vand.u32 %v775, 4294901760
      %v4135 = vsub.f32 %v775, %v4134
      %v4136 = vand.u32 %v4135, 4294901760
      %v4137 = vsub.f32 %v4135, %v4136
      %v4138 = vand.u32 %v4137, 4294901760
      %4139 = vmatpush1.xpose.msra.mxu0 %v4138
      %4140 = vmatprep.subr.mxu0 0.0
      %v4141 = vand.u32 %v778, 4294901760
      %v4142 = vsub.f32 %v778, %v4141
      %v4143 = vand.u32 %v4142, 4294901760
      %v4144 = vsub.f32 %v4142, %v4143
      %v4145 = vand.u32 %v4144, 4294901760
      %4146 = vmatpush1.xpose.msra.mxu0 %v4145
      %4147 = vmatprep.subr.mxu0 0.0
      %v4148 = vand.u32 %v781, 4294901760
      %v4149 = vsub.f32 %v781, %v4148
      %v4150 = vand.u32 %v4149, 4294901760
      %v4151 = vsub.f32 %v4149, %v4150
      %v4152 = vand.u32 %v4151, 4294901760
      %4153 = vmatpush1.xpose.msra.mxu0 %v4152
      %4154 = vmatprep.mubr.f32.mxu0 0.0
      %v4155 = vand.u32 %v388, 4294901760
      %4156 = vmatmul.mubr.f32.gmra.mrb[0].mxu0 %v4155
      %v4157 = vpop.f32.mrb[0].mxu0
      %v4158 = vadd.f32 %v3893, %v4157
      %v4159 = vpop.f32.mrb[0].mxu0
      %v4160 = vadd.f32 %v3895, %v4159
      %4161 = vmatprep.mubr.f32.mxu0 0.0
      %v4162 = vand.u32 %v391, 4294901760
      %4163 = vmatmul.mubr.f32.gmra.mrb[0].mxu0 %v4162
      %v4164 = vpop.f32.mrb[0].mxu0
      %v4165 = vadd.f32 %v3904, %v4164
      %v4166 = vpop.f32.mrb[0].mxu0
      %v4167 = vadd.f32 %v3906, %v4166
      %4168 = vmatprep.mubr.f32.mxu0 0.0
      %v4169 = vand.u32 %v394, 4294901760
      %4170 = vmatmul.mubr.f32.gmra.mrb[0].mxu0 %v4169
      %v4171 = vpop.f32.mrb[0].mxu0
      %v4172 = vadd.f32 %v3915, %v4171
      %v4173 = vpop.f32.mrb[0].mxu0
      %v4174 = vadd.f32 %v3917, %v4173
      %4175 = vmatprep.mubr.f32.mxu0 0.0
      %v4176 = vand.u32 %v397, 4294901760
      %4177 = vmatmul.mubr.f32.gmra.mrb[0].mxu0 %v4176
      %v4178 = vpop.f32.mrb[0].mxu0
      %v4179 = vadd.f32 %v3926, %v4178
      %v4180 = vpop.f32.mrb[0].mxu0
      %v4181 = vadd.f32 %v3928, %v4180
      %4182 = vdwg.mxu0
      %4183 = vmatprep.subr.mxu0 0.0
      %v4184 = vand.u32 %v688, 4294901760
      %v4185 = vsub.f32 %v688, %v4184
      %4186 = vmatpush1.xpose.msra.mxu0 %v4185
      %4187 = vmatprep.subr.mxu0 0.0
      %v4188 = vand.u32 %v691, 4294901760
      %v4189 = vsub.f32 %v691, %v4188
      %4190 = vmatpush1.xpose.msra.mxu0 %v4189
      %4191 = vmatprep.subr.mxu0 0.0
      %v4192 = vand.u32 %v694, 4294901760
      %v4193 = vsub.f32 %v694, %v4192
      %4194 = vmatpush1.xpose.msra.mxu0 %v4193
      %4195 = vmatprep.subr.mxu0 0.0
      %v4196 = vand.u32 %v697, 4294901760
      %v4197 = vsub.f32 %v697, %v4196
      %4198 = vmatpush1.xpose.msra.mxu0 %v4197
      %4199 = vmatprep.subr.mxu0 0.0
      %v4200 = vand.u32 %v700, 4294901760
      %v4201 = vsub.f32 %v700, %v4200
      %4202 = vmatpush1.xpose.msra.mxu0 %v4201
      %4203 = vmatprep.subr.mxu0 0.0
      %v4204 = vand.u32 %v703, 4294901760
      %v4205 = vsub.f32 %v703, %v4204
      %4206 = vmatpush1.xpose.msra.mxu0 %v4205
      %4207 = vmatprep.subr.mxu0 0.0
      %v4208 = vand.u32 %v706, 4294901760
      %v4209 = vsub.f32 %v706, %v4208
      %4210 = vmatpush1.xpose.msra.mxu0 %v4209
      %4211 = vmatprep.subr.mxu0 0.0
      %v4212 = vand.u32 %v709, 4294901760
      %v4213 = vsub.f32 %v709, %v4212
      %4214 = vmatpush1.xpose.msra.mxu0 %v4213
      %4215 = vmatprep.subr.mxu0 0.0
      %v4216 = vand.u32 %v712, 4294901760
      %v4217 = vsub.f32 %v712, %v4216
      %4218 = vmatpush1.xpose.msra.mxu0 %v4217
      %4219 = vmatprep.subr.mxu0 0.0
      %v4220 = vand.u32 %v715, 4294901760
      %v4221 = vsub.f32 %v715, %v4220
      %4222 = vmatpush1.xpose.msra.mxu0 %v4221
      %4223 = vmatprep.subr.mxu0 0.0
      %v4224 = vand.u32 %v718, 4294901760
      %v4225 = vsub.f32 %v718, %v4224
      %4226 = vmatpush1.xpose.msra.mxu0 %v4225
      %4227 = vmatprep.subr.mxu0 0.0
      %v4228 = vand.u32 %v721, 4294901760
      %v4229 = vsub.f32 %v721, %v4228
      %4230 = vmatpush1.xpose.msra.mxu0 %v4229
      %4231 = vmatprep.subr.mxu0 0.0
      %v4232 = vand.u32 %v724, 4294901760
      %v4233 = vsub.f32 %v724, %v4232
      %4234 = vmatpush1.xpose.msra.mxu0 %v4233
      %4235 = vmatprep.subr.mxu0 0.0
      %v4236 = vand.u32 %v727, 4294901760
      %v4237 = vsub.f32 %v727, %v4236
      %4238 = vmatpush1.xpose.msra.mxu0 %v4237
      %4239 = vmatprep.subr.mxu0 0.0
      %v4240 = vand.u32 %v730, 4294901760
      %v4241 = vsub.f32 %v730, %v4240
      %4242 = vmatpush1.xpose.msra.mxu0 %v4241
      %4243 = vmatprep.subr.mxu0 0.0
      %v4244 = vand.u32 %v733, 4294901760
      %v4245 = vsub.f32 %v733, %v4244
      %4246 = vmatpush1.xpose.msra.mxu0 %v4245
      %4247 = vmatprep.subr.mxu0 0.0
      %v4248 = vand.u32 %v736, 4294901760
      %v4249 = vsub.f32 %v736, %v4248
      %4250 = vmatpush1.xpose.msra.mxu0 %v4249
      %4251 = vmatprep.subr.mxu0 0.0
      %v4252 = vand.u32 %v739, 4294901760
      %v4253 = vsub.f32 %v739, %v4252
      %4254 = vmatpush1.xpose.msra.mxu0 %v4253
      %4255 = vmatprep.subr.mxu0 0.0
      %v4256 = vand.u32 %v742, 4294901760
      %v4257 = vsub.f32 %v742, %v4256
      %4258 = vmatpush1.xpose.msra.mxu0 %v4257
      %4259 = vmatprep.subr.mxu0 0.0
      %v4260 = vand.u32 %v745, 4294901760
      %v4261 = vsub.f32 %v745, %v4260
      %4262 = vmatpush1.xpose.msra.mxu0 %v4261
      %4263 = vmatprep.subr.mxu0 0.0
      %v4264 = vand.u32 %v748, 4294901760
      %v4265 = vsub.f32 %v748, %v4264
      %4266 = vmatpush1.xpose.msra.mxu0 %v4265
      %4267 = vmatprep.subr.mxu0 0.0
      %v4268 = vand.u32 %v751, 4294901760
      %v4269 = vsub.f32 %v751, %v4268
      %4270 = vmatpush1.xpose.msra.mxu0 %v4269
      %4271 = vmatprep.subr.mxu0 0.0
      %v4272 = vand.u32 %v754, 4294901760
      %v4273 = vsub.f32 %v754, %v4272
      %4274 = vmatpush1.xpose.msra.mxu0 %v4273
      %4275 = vmatprep.subr.mxu0 0.0
      %v4276 = vand.u32 %v757, 4294901760
      %v4277 = vsub.f32 %v757, %v4276
      %4278 = vmatpush1.xpose.msra.mxu0 %v4277
      %4279 = vmatprep.subr.mxu0 0.0
      %v4280 = vand.u32 %v760, 4294901760
      %v4281 = vsub.f32 %v760, %v4280
      %4282 = vmatpush1.xpose.msra.mxu0 %v4281
      %4283 = vmatprep.subr.mxu0 0.0
      %v4284 = vand.u32 %v763, 4294901760
      %v4285 = vsub.f32 %v763, %v4284
      %4286 = vmatpush1.xpose.msra.mxu0 %v4285
      %4287 = vmatprep.subr.mxu0 0.0
      %v4288 = vand.u32 %v766, 4294901760
      %v4289 = vsub.f32 %v766, %v4288
      %4290 = vmatpush1.xpose.msra.mxu0 %v4289
      %4291 = vmatprep.subr.mxu0 0.0
      %v4292 = vand.u32 %v769, 4294901760
      %v4293 = vsub.f32 %v769, %v4292
      %4294 = vmatpush1.xpose.msra.mxu0 %v4293
      %4295 = vmatprep.subr.mxu0 0.0
      %v4296 = vand.u32 %v772, 4294901760
      %v4297 = vsub.f32 %v772, %v4296
      %4298 = vmatpush1.xpose.msra.mxu0 %v4297
      %4299 = vmatprep.subr.mxu0 0.0
      %v4300 = vand.u32 %v775, 4294901760
      %v4301 = vsub.f32 %v775, %v4300
      %4302 = vmatpush1.xpose.msra.mxu0 %v4301
      %4303 = vmatprep.subr.mxu0 0.0
      %v4304 = vand.u32 %v778, 4294901760
      %v4305 = vsub.f32 %v778, %v4304
      %4306 = vmatpush1.xpose.msra.mxu0 %v4305
      %4307 = vmatprep.subr.mxu0 0.0
      %v4308 = vand.u32 %v781, 4294901760
      %v4309 = vsub.f32 %v781, %v4308
      %4310 = vmatpush1.xpose.msra.mxu0 %v4309
      %4311 = vmatprep.mubr.f32.mxu0 0.0
      %v4312 = vand.u32 %v388, 4294901760
      %v4313 = vsub.f32 %v388, %v4312
      %4314 = vmatmul.mubr.f32.gmra.mrb[0].mxu0 %v4313
      %v4315 = vpop.f32.mrb[0].mxu0
      %v4316 = vadd.f32 %v4158, %v4315
      %v4317 = vpop.f32.mrb[0].mxu0
      %v4318 = vadd.f32 %v4160, %v4317
      %4319 = vmatprep.mubr.f32.mxu0 0.0
      %v4320 = vand.u32 %v391, 4294901760
      %v4321 = vsub.f32 %v391, %v4320
      %4322 = vmatmul.mubr.f32.gmra.mrb[0].mxu0 %v4321
      %v4323 = vpop.f32.mrb[0].mxu0
      %v4324 = vadd.f32 %v4165, %v4323
      %v4325 = vpop.f32.mrb[0].mxu0
      %v4326 = vadd.f32 %v4167, %v4325
      %4327 = vmatprep.mubr.f32.mxu0 0.0
      %v4328 = vand.u32 %v394, 4294901760
      %v4329 = vsub.f32 %v394, %v4328
      %4330 = vmatmul.mubr.f32.gmra.mrb[0].mxu0 %v4329
      %v4331 = vpop.f32.mrb[0].mxu0
      %v4332 = vadd.f32 %v4172, %v4331
      %v4333 = vpop.f32.mrb[0].mxu0
      %v4334 = vadd.f32 %v4174, %v4333
      %4335 = vmatprep.mubr.f32.mxu0 0.0
      %v4336 = vand.u32 %v397, 4294901760
      %v4337 = vsub.f32 %v397, %v4336
      %4338 = vmatmul.mubr.f32.gmra.mrb[0].mxu0 %v4337
      %v4339 = vpop.f32.mrb[0].mxu0
      %v4340 = vadd.f32 %v4179, %v4339
      %v4341 = vpop.f32.mrb[0].mxu0
      %v4342 = vadd.f32 %v4181, %v4341
      %4343 = vdwg.mxu0
      %4344 = vmatprep.subr.mxu0 0.0
      %v4345 = vand.u32 %v688, 4294901760
      %4346 = vmatpush1.xpose.msra.mxu0 %v4345
      %4347 = vmatprep.subr.mxu0 0.0
      %v4348 = vand.u32 %v691, 4294901760
      %4349 = vmatpush1.xpose.msra.mxu0 %v4348
      %4350 = vmatprep.subr.mxu0 0.0
      %v4351 = vand.u32 %v694, 4294901760
      %4352 = vmatpush1.xpose.msra.mxu0 %v4351
      %4353 = vmatprep.subr.mxu0 0.0
      %v4354 = vand.u32 %v697, 4294901760
      %4355 = vmatpush1.xpose.msra.mxu0 %v4354
      %4356 = vmatprep.subr.mxu0 0.0
      %v4357 = vand.u32 %v700, 4294901760
      %4358 = vmatpush1.xpose.msra.mxu0 %v4357
      %4359 = vmatprep.subr.mxu0 0.0
      %v4360 = vand.u32 %v703, 4294901760
      %4361 = vmatpush1.xpose.msra.mxu0 %v4360
      %4362 = vmatprep.subr.mxu0 0.0
      %v4363 = vand.u32 %v706, 4294901760
      %4364 = vmatpush1.xpose.msra.mxu0 %v4363
      %4365 = vmatprep.subr.mxu0 0.0
      %v4366 = vand.u32 %v709, 4294901760
      %4367 = vmatpush1.xpose.msra.mxu0 %v4366
      %4368 = vmatprep.subr.mxu0 0.0
      %v4369 = vand.u32 %v712, 4294901760
      %4370 = vmatpush1.xpose.msra.mxu0 %v4369
      %4371 = vmatprep.subr.mxu0 0.0
      %v4372 = vand.u32 %v715, 4294901760
      %4373 = vmatpush1.xpose.msra.mxu0 %v4372
      %4374 = vmatprep.subr.mxu0 0.0
      %v4375 = vand.u32 %v718, 4294901760
      %4376 = vmatpush1.xpose.msra.mxu0 %v4375
      %4377 = vmatprep.subr.mxu0 0.0
      %v4378 = vand.u32 %v721, 4294901760
      %4379 = vmatpush1.xpose.msra.mxu0 %v4378
      %4380 = vmatprep.subr.mxu0 0.0
      %v4381 = vand.u32 %v724, 4294901760
      %4382 = vmatpush1.xpose.msra.mxu0 %v4381
      %4383 = vmatprep.subr.mxu0 0.0
      %v4384 = vand.u32 %v727, 4294901760
      %4385 = vmatpush1.xpose.msra.mxu0 %v4384
      %4386 = vmatprep.subr.mxu0 0.0
      %v4387 = vand.u32 %v730, 4294901760
      %4388 = vmatpush1.xpose.msra.mxu0 %v4387
      %4389 = vmatprep.subr.mxu0 0.0
      %v4390 = vand.u32 %v733, 4294901760
      %4391 = vmatpush1.xpose.msra.mxu0 %v4390
      %4392 = vmatprep.subr.mxu0 0.0
      %v4393 = vand.u32 %v736, 4294901760
      %4394 = vmatpush1.xpose.msra.mxu0 %v4393
      %4395 = vmatprep.subr.mxu0 0.0
      %v4396 = vand.u32 %v739, 4294901760
      %4397 = vmatpush1.xpose.msra.mxu0 %v4396
      %4398 = vmatprep.subr.mxu0 0.0
      %v4399 = vand.u32 %v742, 4294901760
      %4400 = vmatpush1.xpose.msra.mxu0 %v4399
      %4401 = vmatprep.subr.mxu0 0.0
      %v4402 = vand.u32 %v745, 4294901760
      %4403 = vmatpush1.xpose.msra.mxu0 %v4402
      %4404 = vmatprep.subr.mxu0 0.0
      %v4405 = vand.u32 %v748, 4294901760
      %4406 = vmatpush1.xpose.msra.mxu0 %v4405
      %4407 = vmatprep.subr.mxu0 0.0
      %v4408 = vand.u32 %v751, 4294901760
      %4409 = vmatpush1.xpose.msra.mxu0 %v4408
      %4410 = vmatprep.subr.mxu0 0.0
      %v4411 = vand.u32 %v754, 4294901760
      %4412 = vmatpush1.xpose.msra.mxu0 %v4411
      %4413 = vmatprep.subr.mxu0 0.0
      %v4414 = vand.u32 %v757, 4294901760
      %4415 = vmatpush1.xpose.msra.mxu0 %v4414
      %4416 = vmatprep.subr.mxu0 0.0
      %v4417 = vand.u32 %v760, 4294901760
      %4418 = vmatpush1.xpose.msra.mxu0 %v4417
      %4419 = vmatprep.subr.mxu0 0.0
      %v4420 = vand.u32 %v763, 4294901760
      %4421 = vmatpush1.xpose.msra.mxu0 %v4420
      %4422 = vmatprep.subr.mxu0 0.0
      %v4423 = vand.u32 %v766, 4294901760
      %4424 = vmatpush1.xpose.msra.mxu0 %v4423
      %4425 = vmatprep.subr.mxu0 0.0
      %v4426 = vand.u32 %v769, 4294901760
      %4427 = vmatpush1.xpose.msra.mxu0 %v4426
      %4428 = vmatprep.subr.mxu0 0.0
      %v4429 = vand.u32 %v772, 4294901760
      %4430 = vmatpush1.xpose.msra.mxu0 %v4429
      %4431 = vmatprep.subr.mxu0 0.0
      %v4432 = vand.u32 %v775, 4294901760
      %4433 = vmatpush1.xpose.msra.mxu0 %v4432
      %4434 = vmatprep.subr.mxu0 0.0
      %v4435 = vand.u32 %v778, 4294901760
      %4436 = vmatpush1.xpose.msra.mxu0 %v4435
      %4437 = vmatprep.subr.mxu0 0.0
      %v4438 = vand.u32 %v781, 4294901760
      %4439 = vmatpush1.xpose.msra.mxu0 %v4438
      %4440 = vmatprep.mubr.f32.mxu0 0.0
      %v4441 = vand.u32 %v388, 4294901760
      %v4442 = vsub.f32 %v388, %v4441
      %v4443 = vand.u32 %v4442, 4294901760
      %4444 = vmatmul.mubr.f32.gmra.mrb[0].mxu0 %v4443
      %v4445 = vpop.f32.mrb[0].mxu0
      %v4446 = vadd.f32 %v4316, %v4445
      %v4447 = vpop.f32.mrb[0].mxu0
      %v4448 = vadd.f32 %v4318, %v4447
      %4449 = vmatprep.mubr.f32.mxu0 0.0
      %v4450 = vand.u32 %v391, 4294901760
      %v4451 = vsub.f32 %v391, %v4450
      %v4452 = vand.u32 %v4451, 4294901760
      %4453 = vmatmul.mubr.f32.gmra.mrb[0].mxu0 %v4452
      %v4454 = vpop.f32.mrb[0].mxu0
      %v4455 = vadd.f32 %v4324, %v4454
      %v4456 = vpop.f32.mrb[0].mxu0
      %v4457 = vadd.f32 %v4326, %v4456
      %4458 = vmatprep.mubr.f32.mxu0 0.0
      %v4459 = vand.u32 %v394, 4294901760
      %v4460 = vsub.f32 %v394, %v4459
      %v4461 = vand.u32 %v4460, 4294901760
      %4462 = vmatmul.mubr.f32.gmra.mrb[0].mxu0 %v4461
      %v4463 = vpop.f32.mrb[0].mxu0
      %v4464 = vadd.f32 %v4332, %v4463
      %v4465 = vpop.f32.mrb[0].mxu0
      %v4466 = vadd.f32 %v4334, %v4465
      %4467 = vmatprep.mubr.f32.mxu0 0.0
      %v4468 = vand.u32 %v397, 4294901760
      %v4469 = vsub.f32 %v397, %v4468
      %v4470 = vand.u32 %v4469, 4294901760
      %4471 = vmatmul.mubr.f32.gmra.mrb[0].mxu0 %v4470
      %v4472 = vpop.f32.mrb[0].mxu0
      %v4473 = vadd.f32 %v4340, %v4472
      %v4474 = vpop.f32.mrb[0].mxu0
      %v4475 = vadd.f32 %v4342, %v4474
      %4476 = vdwg.mxu0
      %4477 = vmatprep.subr.mxu0 0.0
      %v4478 = vand.u32 %v688, 4294901760
      %v4479 = vsub.f32 %v688, %v4478
      %v4480 = vand.u32 %v4479, 4294901760
      %4481 = vmatpush1.xpose.msra.mxu0 %v4480
      %4482 = vmatprep.subr.mxu0 0.0
      %v4483 = vand.u32 %v691, 4294901760
      %v4484 = vsub.f32 %v691, %v4483
      %v4485 = vand.u32 %v4484, 4294901760
      %4486 = vmatpush1.xpose.msra.mxu0 %v4485
      %4487 = vmatprep.subr.mxu0 0.0
      %v4488 = vand.u32 %v694, 4294901760
      %v4489 = vsub.f32 %v694, %v4488
      %v4490 = vand.u32 %v4489, 4294901760
      %4491 = vmatpush1.xpose.msra.mxu0 %v4490
      %4492 = vmatprep.subr.mxu0 0.0
      %v4493 = vand.u32 %v697, 4294901760
      %v4494 = vsub.f32 %v697, %v4493
      %v4495 = vand.u32 %v4494, 4294901760
      %4496 = vmatpush1.xpose.msra.mxu0 %v4495
      %4497 = vmatprep.subr.mxu0 0.0
      %v4498 = vand.u32 %v700, 4294901760
      %v4499 = vsub.f32 %v700, %v4498
      %v4500 = vand.u32 %v4499, 4294901760
      %4501 = vmatpush1.xpose.msra.mxu0 %v4500
      %4502 = vmatprep.subr.mxu0 0.0
      %v4503 = vand.u32 %v703, 4294901760
      %v4504 = vsub.f32 %v703, %v4503
      %v4505 = vand.u32 %v4504, 4294901760
      %4506 = vmatpush1.xpose.msra.mxu0 %v4505
      %4507 = vmatprep.subr.mxu0 0.0
      %v4508 = vand.u32 %v706, 4294901760
      %v4509 = vsub.f32 %v706, %v4508
      %v4510 = vand.u32 %v4509, 4294901760
      %4511 = vmatpush1.xpose.msra.mxu0 %v4510
      %4512 = vmatprep.subr.mxu0 0.0
      %v4513 = vand.u32 %v709, 4294901760
      %v4514 = vsub.f32 %v709, %v4513
      %v4515 = vand.u32 %v4514, 4294901760
      %4516 = vmatpush1.xpose.msra.mxu0 %v4515
      %4517 = vmatprep.subr.mxu0 0.0
      %v4518 = vand.u32 %v712, 4294901760
      %v4519 = vsub.f32 %v712, %v4518
      %v4520 = vand.u32 %v4519, 4294901760
      %4521 = vmatpush1.xpose.msra.mxu0 %v4520
      %4522 = vmatprep.subr.mxu0 0.0
      %v4523 = vand.u32 %v715, 4294901760
      %v4524 = vsub.f32 %v715, %v4523
      %v4525 = vand.u32 %v4524, 4294901760
      %4526 = vmatpush1.xpose.msra.mxu0 %v4525
      %4527 = vmatprep.subr.mxu0 0.0
      %v4528 = vand.u32 %v718, 4294901760
      %v4529 = vsub.f32 %v718, %v4528
      %v4530 = vand.u32 %v4529, 4294901760
      %4531 = vmatpush1.xpose.msra.mxu0 %v4530
      %4532 = vmatprep.subr.mxu0 0.0
      %v4533 = vand.u32 %v721, 4294901760
      %v4534 = vsub.f32 %v721, %v4533
      %v4535 = vand.u32 %v4534, 4294901760
      %4536 = vmatpush1.xpose.msra.mxu0 %v4535
      %4537 = vmatprep.subr.mxu0 0.0
      %v4538 = vand.u32 %v724, 4294901760
      %v4539 = vsub.f32 %v724, %v4538
      %v4540 = vand.u32 %v4539, 4294901760
      %4541 = vmatpush1.xpose.msra.mxu0 %v4540
      %4542 = vmatprep.subr.mxu0 0.0
      %v4543 = vand.u32 %v727, 4294901760
      %v4544 = vsub.f32 %v727, %v4543
      %v4545 = vand.u32 %v4544, 4294901760
      %4546 = vmatpush1.xpose.msra.mxu0 %v4545
      %4547 = vmatprep.subr.mxu0 0.0
      %v4548 = vand.u32 %v730, 4294901760
      %v4549 = vsub.f32 %v730, %v4548
      %v4550 = vand.u32 %v4549, 4294901760
      %4551 = vmatpush1.xpose.msra.mxu0 %v4550
      %4552 = vmatprep.subr.mxu0 0.0
      %v4553 = vand.u32 %v733, 4294901760
      %v4554 = vsub.f32 %v733, %v4553
      %v4555 = vand.u32 %v4554, 4294901760
      %4556 = vmatpush1.xpose.msra.mxu0 %v4555
      %4557 = vmatprep.subr.mxu0 0.0
      %v4558 = vand.u32 %v736, 4294901760
      %v4559 = vsub.f32 %v736, %v4558
      %v4560 = vand.u32 %v4559, 4294901760
      %4561 = vmatpush1.xpose.msra.mxu0 %v4560
      %4562 = vmatprep.subr.mxu0 0.0
      %v4563 = vand.u32 %v739, 4294901760
      %v4564 = vsub.f32 %v739, %v4563
      %v4565 = vand.u32 %v4564, 4294901760
      %4566 = vmatpush1.xpose.msra.mxu0 %v4565
      %4567 = vmatprep.subr.mxu0 0.0
      %v4568 = vand.u32 %v742, 4294901760
      %v4569 = vsub.f32 %v742, %v4568
      %v4570 = vand.u32 %v4569, 4294901760
      %4571 = vmatpush1.xpose.msra.mxu0 %v4570
      %4572 = vmatprep.subr.mxu0 0.0
      %v4573 = vand.u32 %v745, 4294901760
      %v4574 = vsub.f32 %v745, %v4573
      %v4575 = vand.u32 %v4574, 4294901760
      %4576 = vmatpush1.xpose.msra.mxu0 %v4575
      %4577 = vmatprep.subr.mxu0 0.0
      %v4578 = vand.u32 %v748, 4294901760
      %v4579 = vsub.f32 %v748, %v4578
      %v4580 = vand.u32 %v4579, 4294901760
      %4581 = vmatpush1.xpose.msra.mxu0 %v4580
      %4582 = vmatprep.subr.mxu0 0.0
      %v4583 = vand.u32 %v751, 4294901760
      %v4584 = vsub.f32 %v751, %v4583
      %v4585 = vand.u32 %v4584, 4294901760
      %4586 = vmatpush1.xpose.msra.mxu0 %v4585
      %4587 = vmatprep.subr.mxu0 0.0
      %v4588 = vand.u32 %v754, 4294901760
      %v4589 = vsub.f32 %v754, %v4588
      %v4590 = vand.u32 %v4589, 4294901760
      %4591 = vmatpush1.xpose.msra.mxu0 %v4590
      %4592 = vmatprep.subr.mxu0 0.0
      %v4593 = vand.u32 %v757, 4294901760
      %v4594 = vsub.f32 %v757, %v4593
      %v4595 = vand.u32 %v4594, 4294901760
      %4596 = vmatpush1.xpose.msra.mxu0 %v4595
      %4597 = vmatprep.subr.mxu0 0.0
      %v4598 = vand.u32 %v760, 4294901760
      %v4599 = vsub.f32 %v760, %v4598
      %v4600 = vand.u32 %v4599, 4294901760
      %4601 = vmatpush1.xpose.msra.mxu0 %v4600
      %4602 = vmatprep.subr.mxu0 0.0
      %v4603 = vand.u32 %v763, 4294901760
      %v4604 = vsub.f32 %v763, %v4603
      %v4605 = vand.u32 %v4604, 4294901760
      %4606 = vmatpush1.xpose.msra.mxu0 %v4605
      %4607 = vmatprep.subr.mxu0 0.0
      %v4608 = vand.u32 %v766, 4294901760
      %v4609 = vsub.f32 %v766, %v4608
      %v4610 = vand.u32 %v4609, 4294901760
      %4611 = vmatpush1.xpose.msra.mxu0 %v4610
      %4612 = vmatprep.subr.mxu0 0.0
      %v4613 = vand.u32 %v769, 4294901760
      %v4614 = vsub.f32 %v769, %v4613
      %v4615 = vand.u32 %v4614, 4294901760
      %4616 = vmatpush1.xpose.msra.mxu0 %v4615
      %4617 = vmatprep.subr.mxu0 0.0
      %v4618 = vand.u32 %v772, 4294901760
      %v4619 = vsub.f32 %v772, %v4618
      %v4620 = vand.u32 %v4619, 4294901760
      %4621 = vmatpush1.xpose.msra.mxu0 %v4620
      %4622 = vmatprep.subr.mxu0 0.0
      %v4623 = vand.u32 %v775, 4294901760
      %v4624 = vsub.f32 %v775, %v4623
      %v4625 = vand.u32 %v4624, 4294901760
      %4626 = vmatpush1.xpose.msra.mxu0 %v4625
      %4627 = vmatprep.subr.mxu0 0.0
      %v4628 = vand.u32 %v778, 4294901760
      %v4629 = vsub.f32 %v778, %v4628
      %v4630 = vand.u32 %v4629, 4294901760
      %4631 = vmatpush1.xpose.msra.mxu0 %v4630
      %4632 = vmatprep.subr.mxu0 0.0
      %v4633 = vand.u32 %v781, 4294901760
      %v4634 = vsub.f32 %v781, %v4633
      %v4635 = vand.u32 %v4634, 4294901760
      %4636 = vmatpush1.xpose.msra.mxu0 %v4635
      %4637 = vmatprep.mubr.f32.mxu0 0.0
      %v4638 = vand.u32 %v388, 4294901760
      %4639 = vmatmul.mubr.f32.gmra.mrb[0].mxu0 %v4638
      %v4640 = vpop.f32.mrb[0].mxu0
      %v4641 = vadd.f32 %v4446, %v4640
      %v4642 = vpop.f32.mrb[0].mxu0
      %v4643 = vadd.f32 %v4448, %v4642
      %4644 = vmatprep.mubr.f32.mxu0 0.0
      %v4645 = vand.u32 %v391, 4294901760
      %4646 = vmatmul.mubr.f32.gmra.mrb[0].mxu0 %v4645
      %v4647 = vpop.f32.mrb[0].mxu0
      %v4648 = vadd.f32 %v4455, %v4647
      %v4649 = vpop.f32.mrb[0].mxu0
      %v4650 = vadd.f32 %v4457, %v4649
      %4651 = vmatprep.mubr.f32.mxu0 0.0
      %v4652 = vand.u32 %v394, 4294901760
      %4653 = vmatmul.mubr.f32.gmra.mrb[0].mxu0 %v4652
      %v4654 = vpop.f32.mrb[0].mxu0
      %v4655 = vadd.f32 %v4464, %v4654
      %v4656 = vpop.f32.mrb[0].mxu0
      %v4657 = vadd.f32 %v4466, %v4656
      %4658 = vmatprep.mubr.f32.mxu0 0.0
      %v4659 = vand.u32 %v397, 4294901760
      %4660 = vmatmul.mubr.f32.gmra.mrb[0].mxu0 %v4659
      %v4661 = vpop.f32.mrb[0].mxu0
      %v4662 = vadd.f32 %v4473, %v4661
      %v4663 = vpop.f32.mrb[0].mxu0
      %v4664 = vadd.f32 %v4475, %v4663
      %4665 = vdwg.mxu0
      %4666 = vmatprep.subr.mxu0 0.0
      %v4667 = vand.u32 %v688, 4294901760
      %4668 = vmatpush1.xpose.msra.mxu0 %v4667
      %4669 = vmatprep.subr.mxu0 0.0
      %v4670 = vand.u32 %v691, 4294901760
      %4671 = vmatpush1.xpose.msra.mxu0 %v4670
      %4672 = vmatprep.subr.mxu0 0.0
      %v4673 = vand.u32 %v694, 4294901760
      %4674 = vmatpush1.xpose.msra.mxu0 %v4673
      %4675 = vmatprep.subr.mxu0 0.0
      %v4676 = vand.u32 %v697, 4294901760
      %4677 = vmatpush1.xpose.msra.mxu0 %v4676
      %4678 = vmatprep.subr.mxu0 0.0
      %v4679 = vand.u32 %v700, 4294901760
      %4680 = vmatpush1.xpose.msra.mxu0 %v4679
      %4681 = vmatprep.subr.mxu0 0.0
      %v4682 = vand.u32 %v703, 4294901760
      %4683 = vmatpush1.xpose.msra.mxu0 %v4682
      %4684 = vmatprep.subr.mxu0 0.0
      %v4685 = vand.u32 %v706, 4294901760
      %4686 = vmatpush1.xpose.msra.mxu0 %v4685
      %4687 = vmatprep.subr.mxu0 0.0
      %v4688 = vand.u32 %v709, 4294901760
      %4689 = vmatpush1.xpose.msra.mxu0 %v4688
      %4690 = vmatprep.subr.mxu0 0.0
      %v4691 = vand.u32 %v712, 4294901760
      %4692 = vmatpush1.xpose.msra.mxu0 %v4691
      %4693 = vmatprep.subr.mxu0 0.0
      %v4694 = vand.u32 %v715, 4294901760
      %4695 = vmatpush1.xpose.msra.mxu0 %v4694
      %4696 = vmatprep.subr.mxu0 0.0
      %v4697 = vand.u32 %v718, 4294901760
      %4698 = vmatpush1.xpose.msra.mxu0 %v4697
      %4699 = vmatprep.subr.mxu0 0.0
      %v4700 = vand.u32 %v721, 4294901760
      %4701 = vmatpush1.xpose.msra.mxu0 %v4700
      %4702 = vmatprep.subr.mxu0 0.0
      %v4703 = vand.u32 %v724, 4294901760
      %4704 = vmatpush1.xpose.msra.mxu0 %v4703
      %4705 = vmatprep.subr.mxu0 0.0
      %v4706 = vand.u32 %v727, 4294901760
      %4707 = vmatpush1.xpose.msra.mxu0 %v4706
      %4708 = vmatprep.subr.mxu0 0.0
      %v4709 = vand.u32 %v730, 4294901760
      %4710 = vmatpush1.xpose.msra.mxu0 %v4709
      %4711 = vmatprep.subr.mxu0 0.0
      %v4712 = vand.u32 %v733, 4294901760
      %4713 = vmatpush1.xpose.msra.mxu0 %v4712
      %4714 = vmatprep.subr.mxu0 0.0
      %v4715 = vand.u32 %v736, 4294901760
      %4716 = vmatpush1.xpose.msra.mxu0 %v4715
      %4717 = vmatprep.subr.mxu0 0.0
      %v4718 = vand.u32 %v739, 4294901760
      %4719 = vmatpush1.xpose.msra.mxu0 %v4718
      %4720 = vmatprep.subr.mxu0 0.0
      %v4721 = vand.u32 %v742, 4294901760
      %4722 = vmatpush1.xpose.msra.mxu0 %v4721
      %4723 = vmatprep.subr.mxu0 0.0
      %v4724 = vand.u32 %v745, 4294901760
      %4725 = vmatpush1.xpose.msra.mxu0 %v4724
      %4726 = vmatprep.subr.mxu0 0.0
      %v4727 = vand.u32 %v748, 4294901760
      %4728 = vmatpush1.xpose.msra.mxu0 %v4727
      %4729 = vmatprep.subr.mxu0 0.0
      %v4730 = vand.u32 %v751, 4294901760
      %4731 = vmatpush1.xpose.msra.mxu0 %v4730
      %4732 = vmatprep.subr.mxu0 0.0
      %v4733 = vand.u32 %v754, 4294901760
      %4734 = vmatpush1.xpose.msra.mxu0 %v4733
      %4735 = vmatprep.subr.mxu0 0.0
      %v4736 = vand.u32 %v757, 4294901760
      %4737 = vmatpush1.xpose.msra.mxu0 %v4736
      %4738 = vmatprep.subr.mxu0 0.0
      %v4739 = vand.u32 %v760, 4294901760
      %4740 = vmatpush1.xpose.msra.mxu0 %v4739
      %4741 = vmatprep.subr.mxu0 0.0
      %v4742 = vand.u32 %v763, 4294901760
      %4743 = vmatpush1.xpose.msra.mxu0 %v4742
      %4744 = vmatprep.subr.mxu0 0.0
      %v4745 = vand.u32 %v766, 4294901760
      %4746 = vmatpush1.xpose.msra.mxu0 %v4745
      %4747 = vmatprep.subr.mxu0 0.0
      %v4748 = vand.u32 %v769, 4294901760
      %4749 = vmatpush1.xpose.msra.mxu0 %v4748
      %4750 = vmatprep.subr.mxu0 0.0
      %v4751 = vand.u32 %v772, 4294901760
      %4752 = vmatpush1.xpose.msra.mxu0 %v4751
      %4753 = vmatprep.subr.mxu0 0.0
      %v4754 = vand.u32 %v775, 4294901760
      %4755 = vmatpush1.xpose.msra.mxu0 %v4754
      %4756 = vmatprep.subr.mxu0 0.0
      %v4757 = vand.u32 %v778, 4294901760
      %4758 = vmatpush1.xpose.msra.mxu0 %v4757
      %4759 = vmatprep.subr.mxu0 0.0
      %v4760 = vand.u32 %v781, 4294901760
      %4761 = vmatpush1.xpose.msra.mxu0 %v4760
      %4762 = vmatprep.mubr.f32.mxu0 0.0
      %v4763 = vand.u32 %v388, 4294901760
      %4764 = vmatmul.mubr.f32.gmra.mrb[0].mxu0 %v4763
      %v4765 = vpop.f32.mrb[0].mxu0
      %v4766 = vadd.f32 %v4641, %v4765
      %v4767 = vpop.f32.mrb[0].mxu0
      %v4768 = vadd.f32 %v4643, %v4767
      %4769 = vmatprep.mubr.f32.mxu0 0.0
      %v4770 = vand.u32 %v391, 4294901760
      %4771 = vmatmul.mubr.f32.gmra.mrb[0].mxu0 %v4770
      %v4772 = vpop.f32.mrb[0].mxu0
      %v4773 = vadd.f32 %v4648, %v4772
      %v4774 = vpop.f32.mrb[0].mxu0
      %v4775 = vadd.f32 %v4650, %v4774
      %4776 = vmatprep.mubr.f32.mxu0 0.0
      %v4777 = vand.u32 %v394, 4294901760
      %4778 = vmatmul.mubr.f32.gmra.mrb[0].mxu0 %v4777
      %v4779 = vpop.f32.mrb[0].mxu0
      %v4780 = vadd.f32 %v4655, %v4779
      %v4781 = vpop.f32.mrb[0].mxu0
      %v4782 = vadd.f32 %v4657, %v4781
      %4783 = vmatprep.mubr.f32.mxu0 0.0
      %v4784 = vand.u32 %v397, 4294901760
      %4785 = vmatmul.mubr.f32.gmra.mrb[0].mxu0 %v4784
      %v4786 = vpop.f32.mrb[0].mxu0
      %v4787 = vadd.f32 %v4662, %v4786
      %v4788 = vpop.f32.mrb[0].mxu0
      %v4789 = vadd.f32 %v4664, %v4788
      %4790 = vdwg.mxu0
      %v4791 = vand.u32 2147483647, %v1760
      %vm4792 = vcmp.le.f32.partialorder %v4791, 0.7853982
      %vm4793 = vcmp.lt.s32.totalorder %v1760, 0
      %v4794 = vand.u32 %v1760, 2139095040
      %v4795 = vshrl.u32 %v4794, 23
      %v4796 = vsub.s32 %v4795, 127
      %v4797 = vand.u32 2147483647, %v1760
      %v4798 = vand.u32 %v4797, 8388607
      %v4799 = vor.u32 %v4798, 8388608
      %v4800 = vsub.s32 0, %v4799
      %v4801 = vadd.s32 %v4796, 1
      %vm4802 = vcmp.gt.s32.totalorder %v4801, 0
      %v4803 = vsel %vm4802, %v4801, 0
      %v4804 = vshrl.u32 %v4803, 5
      %v4805 = vand.u32 %v4803, 31
      %v4806 = vsub.s32 32, %v4805
      %v4807 = vshrl.u32 683565275, %v4806
      %v4808 = vshll.u32 683565275, %v4805
      %v4809 = vshrl.u32 2475754826, %v4806
      %v4810 = vor.u32 %v4808, %v4809
      %v4811 = vshll.u32 2475754826, %v4805
      %v4812 = vshrl.u32 2131351028, %v4806
      %v4813 = vor.u32 %v4811, %v4812
      %v4814 = vshll.u32 2131351028, %v4805
      %v4815 = vshrl.u32 2102212464, %v4806
      %v4816 = vor.u32 %v4814, %v4815
      %v4817 = vshll.u32 2102212464, %v4805
      %v4818 = vshrl.u32 920167782, %v4806
      %v4819 = vor.u32 %v4817, %v4818
      %v4820 = vshll.u32 920167782, %v4805
      %v4821 = vshrl.u32 1326507024, %v4806
      %v4822 = vor.u32 %v4820, %v4821
      %vm4823 = vcmp.lt.s32.totalorder %v4804, 1
      %vm4824 = vcmp.lt.s32.totalorder %v4804, 2
      %vm4825 = vcmp.lt.s32.totalorder %v4804, 3
      %vm4826 = vcmp.lt.s32.totalorder %v4804, 4
      %v4827 = vsel %vm4823, %v4807, %v4810
      %v4828 = vsel %vm4826, %v4816, 2102212464
      %v4829 = vsel %vm4825, %v4813, %v4828
      %v4830 = vsel %vm4824, %v4827, %v4829
      %v4831 = vsel %vm4823, %v4810, %v4813
      %v4832 = vsel %vm4826, %v4819, 920167782
      %v4833 = vsel %vm4825, %v4816, %v4832
      %v4834 = vsel %vm4824, %v4831, %v4833
      %v4835 = vsel %vm4823, %v4813, %v4816
      %v4836 = vsel %vm4826, %v4822, 1326507024
      %v4837 = vsel %vm4825, %v4819, %v4836
      %v4838 = vsel %vm4824, %v4835, %v4837
      %v4839 = vshll.u32 %v4799, 8
      %v4840 = vmul.u32.u64.compose %v4839, %v4838
      %v4841 = vextract.low.u32 %v4840
      %v4842 = vextract.high.u32 %v4840
      %v4843 = vmul.u32.u64.compose %v4839, %v4834
      %v4844 = vextract.low.u32 %v4843
      %v4845 = vextract.high.u32 %v4843
      %v4846 = vmul.u32 %v4839, %v4830
      %v4847 = vadd.s32 %v4842, %v4844
      %vm4848 = vc.u32 %v4842, %v4844
      %v4849 = vadd.s32 %v4845, 1
      %v4850 = vsel %vm4848, %v4849, %v4845
      %v4851 = vadd.s32 %v4846, %v4850
      %v4852 = vadd.s32 %v4851, 536870912
      %v4853 = vshrl.u32 %v4852, 30
      %v4854 = vshll.u32 %v4853, 30
      %v4855 = vsub.s32 %v4851, %v4854
      %vm4856 = vcmp.lt.s32.totalorder %v4855, 0
      %v4857 = vsub.s32 0, %v4855
      %v4858 = vsel %vm4856, %v4857, %v4855
      %v4859 = vclz %v4858
      %v4860 = vsub.s32 %v4859, 2
      %vm4861 = vcmp.gt.s32.totalorder 0, %v4860
      %v4862 = vsel %vm4861, 0, %v4860
      %v4863 = vsub.s32 32, %v4862
      %v4864 = vshll.u32 %v4855, %v4862
      %v4865 = vshrl.u32 %v4847, %v4863
      %v4866 = vor.u32 %v4864, %v4865
      %v4867 = vsub.s32 4294967266, %v4862
      %v4868 = vadd.s32 %v4867, 127
      %v4869 = vshll.u32 %v4868, 23
      %v4870 = vor.u32 4788187, %v4869
      %v4871 = vand.u32 2147483647, %v4870
      %v4873 = vcvt.s32.f32 %v4866
      %v4874 = vmul.f32 %v4873, %v4871
      %v4875 = vxor.u32 %v4874, 2147483648
      %v4876 = vsel %vm4793, %v4875, %v4874
      %v4877 = vsub.s32 4, %v4853
      %v4878 = vsel %vm4793, %v4877, %v4853
      %v4879 = vsel %vm4792, %v1760, %v4876
      %v4880 = vsel %vm4792, 0, %v4878
      %v4881 = vcosq.f32.pop %v4879
      %v4882 = vsinq.f32.pop %v4879
      %vm4883 = vweird.f32 %v1760
      %v4884 = vadd.s32 %v4880, 3
      %v4885 = vand.u32 %v4884, 3
      %vm4886 = vcmp.lt.s32.totalorder %v4885, 2
      %vm4887 = vcmp.eq.s32.totalorder %v4885, 0
      %v4888 = vxor.u32 %v4882, 2147483648
      %v4889 = vsel %vm4887, %v4881, %v4888
      %vm4890 = vcmp.eq.s32.totalorder %v4885, 2
      %v4891 = vxor.u32 %v4881, 2147483648
      %v4892 = vsel %vm4890, %v4891, %v4882
      %v4893 = vsel %vm4886, %v4889, %v4892
      %v4894 = vsel %vm4883, nan, %v4893
      %v4895 = vand.u32 2147483647, %v1762
      %vm4896 = vcmp.le.f32.partialorder %v4895, 0.7853982
      %vm4897 = vcmp.lt.s32.totalorder %v1762, 0
      %v4898 = vand.u32 %v1762, 2139095040
      %v4899 = vshrl.u32 %v4898, 23
      %v4900 = vsub.s32 %v4899, 127
      %v4901 = vand.u32 2147483647, %v1762
      %v4902 = vand.u32 %v4901, 8388607
      %v4903 = vor.u32 %v4902, 8388608
      %v4904 = vsub.s32 0, %v4903
      %v4905 = vadd.s32 %v4900, 1
      %vm4906 = vcmp.gt.s32.totalorder %v4905, 0
      %v4907 = vsel %vm4906, %v4905, 0
      %v4908 = vshrl.u32 %v4907, 5
      %v4909 = vand.u32 %v4907, 31
      %v4910 = vsub.s32 32, %v4909
      %v4911 = vshrl.u32 683565275, %v4910
      %v4912 = vshll.u32 683565275, %v4909
      %v4913 = vshrl.u32 2475754826, %v4910
      %v4914 = vor.u32 %v4912, %v4913
      %v4915 = vshll.u32 2475754826, %v4909
      %v4916 = vshrl.u32 2131351028, %v4910
      %v4917 = vor.u32 %v4915, %v4916
      %v4918 = vshll.u32 2131351028, %v4909
      %v4919 = vshrl.u32 2102212464, %v4910
      %v4920 = vor.u32 %v4918, %v4919
      %v4921 = vshll.u32 2102212464, %v4909
      %v4922 = vshrl.u32 920167782, %v4910
      %v4923 = vor.u32 %v4921, %v4922
      %v4924 = vshll.u32 920167782, %v4909
      %v4925 = vshrl.u32 1326507024, %v4910
      %v4926 = vor.u32 %v4924, %v4925
      %vm4927 = vcmp.lt.s32.totalorder %v4908, 1
      %vm4928 = vcmp.lt.s32.totalorder %v4908, 2
      %vm4929 = vcmp.lt.s32.totalorder %v4908, 3
      %vm4930 = vcmp.lt.s32.totalorder %v4908, 4
      %v4931 = vsel %vm4927, %v4911, %v4914
      %v4932 = vsel %vm4930, %v4920, 2102212464
      %v4933 = vsel %vm4929, %v4917, %v4932
      %v4934 = vsel %vm4928, %v4931, %v4933
      %v4935 = vsel %vm4927, %v4914, %v4917
      %v4936 = vsel %vm4930, %v4923, 920167782
      %v4937 = vsel %vm4929, %v4920, %v4936
      %v4938 = vsel %vm4928, %v4935, %v4937
      %v4939 = vsel %vm4927, %v4917, %v4920
      %v4940 = vsel %vm4930, %v4926, 1326507024
      %v4941 = vsel %vm4929, %v4923, %v4940
      %v4942 = vsel %vm4928, %v4939, %v4941
      %v4943 = vshll.u32 %v4903, 8
      %v4944 = vmul.u32.u64.compose %v4943, %v4942
      %v4945 = vextract.low.u32 %v4944
      %v4946 = vextract.high.u32 %v4944
      %v4947 = vmul.u32.u64.compose %v4943, %v4938
      %v4948 = vextract.low.u32 %v4947
      %v4949 = vextract.high.u32 %v4947
      %v4950 = vmul.u32 %v4943, %v4934
      %v4951 = vadd.s32 %v4946, %v4948
      %vm4952 = vc.u32 %v4946, %v4948
      %v4953 = vadd.s32 %v4949, 1
      %v4954 = vsel %vm4952, %v4953, %v4949
      %v4955 = vadd.s32 %v4950, %v4954
      %v4956 = vadd.s32 %v4955, 536870912
      %v4957 = vshrl.u32 %v4956, 30
      %v4958 = vshll.u32 %v4957, 30
      %v4959 = vsub.s32 %v4955, %v4958
      %vm4960 = vcmp.lt.s32.totalorder %v4959, 0
      %v4961 = vsub.s32 0, %v4959
      %v4962 = vsel %vm4960, %v4961, %v4959
      %v4963 = vclz %v4962
      %v4964 = vsub.s32 %v4963, 2
      %vm4965 = vcmp.gt.s32.totalorder 0, %v4964
      %v4966 = vsel %vm4965, 0, %v4964
      %v4967 = vsub.s32 32, %v4966
      %v4968 = vshll.u32 %v4959, %v4966
      %v4969 = vshrl.u32 %v4951, %v4967
      %v4970 = vor.u32 %v4968, %v4969
      %v4971 = vsub.s32 4294967266, %v4966
      %v4972 = vadd.s32 %v4971, 127
      %v4973 = vshll.u32 %v4972, 23
      %v4974 = vor.u32 4788187, %v4973
      %v4975 = vand.u32 2147483647, %v4974
      %v4977 = vcvt.s32.f32 %v4970
      %v4978 = vmul.f32 %v4977, %v4975
      %v4979 = vxor.u32 %v4978, 2147483648
      %v4980 = vsel %vm4897, %v4979, %v4978
      %v4981 = vsub.s32 4, %v4957
      %v4982 = vsel %vm4897, %v4981, %v4957
      %v4983 = vsel %vm4896, %v1762, %v4980
      %v4984 = vsel %vm4896, 0, %v4982
      %v4985 = vcosq.f32.pop %v4983
      %v4986 = vsinq.f32.pop %v4983
      %vm4987 = vweird.f32 %v1762
      %v4988 = vadd.s32 %v4984, 3
      %v4989 = vand.u32 %v4988, 3
      %vm4990 = vcmp.lt.s32.totalorder %v4989, 2
      %vm4991 = vcmp.eq.s32.totalorder %v4989, 0
      %v4992 = vxor.u32 %v4986, 2147483648
      %v4993 = vsel %vm4991, %v4985, %v4992
      %vm4994 = vcmp.eq.s32.totalorder %v4989, 2
      %v4995 = vxor.u32 %v4985, 2147483648
      %v4996 = vsel %vm4994, %v4995, %v4986
      %v4997 = vsel %vm4990, %v4993, %v4996
      %v4998 = vsel %vm4987, nan, %v4997
      %v4999 = vand.u32 2147483647, %v2762
      %vm5000 = vcmp.le.f32.partialorder %v4999, 0.7853982
      %vm5001 = vcmp.lt.s32.totalorder %v2762, 0
      %v5002 = vand.u32 %v2762, 2139095040
      %v5003 = vshrl.u32 %v5002, 23
      %v5004 = vsub.s32 %v5003, 127
      %v5005 = vand.u32 2147483647, %v2762
      %v5006 = vand.u32 %v5005, 8388607
      %v5007 = vor.u32 %v5006, 8388608
      %v5008 = vsub.s32 0, %v5007
      %v5009 = vadd.s32 %v5004, 1
      %vm5010 = vcmp.gt.s32.totalorder %v5009, 0
      %v5011 = vsel %vm5010, %v5009, 0
      %v5012 = vshrl.u32 %v5011, 5
      %v5013 = vand.u32 %v5011, 31
      %v5014 = vsub.s32 32, %v5013
      %v5015 = vshrl.u32 683565275, %v5014
      %v5016 = vshll.u32 683565275, %v5013
      %v5017 = vshrl.u32 2475754826, %v5014
      %v5018 = vor.u32 %v5016, %v5017
      %v5019 = vshll.u32 2475754826, %v5013
      %v5020 = vshrl.u32 2131351028, %v5014
      %v5021 = vor.u32 %v5019, %v5020
      %v5022 = vshll.u32 2131351028, %v5013
      %v5023 = vshrl.u32 2102212464, %v5014
      %v5024 = vor.u32 %v5022, %v5023
      %v5025 = vshll.u32 2102212464, %v5013
      %v5026 = vshrl.u32 920167782, %v5014
      %v5027 = vor.u32 %v5025, %v5026
      %v5028 = vshll.u32 920167782, %v5013
      %v5029 = vshrl.u32 1326507024, %v5014
      %v5030 = vor.u32 %v5028, %v5029
      %vm5031 = vcmp.lt.s32.totalorder %v5012, 1
      %vm5032 = vcmp.lt.s32.totalorder %v5012, 2
      %vm5033 = vcmp.lt.s32.totalorder %v5012, 3
      %vm5034 = vcmp.lt.s32.totalorder %v5012, 4
      %v5035 = vsel %vm5031, %v5015, %v5018
      %v5036 = vsel %vm5034, %v5024, 2102212464
      %v5037 = vsel %vm5033, %v5021, %v5036
      %v5038 = vsel %vm5032, %v5035, %v5037
      %v5039 = vsel %vm5031, %v5018, %v5021
      %v5040 = vsel %vm5034, %v5027, 920167782
      %v5041 = vsel %vm5033, %v5024, %v5040
      %v5042 = vsel %vm5032, %v5039, %v5041
      %v5043 = vsel %vm5031, %v5021, %v5024
      %v5044 = vsel %vm5034, %v5030, 1326507024
      %v5045 = vsel %vm5033, %v5027, %v5044
      %v5046 = vsel %vm5032, %v5043, %v5045
      %v5047 = vshll.u32 %v5007, 8
      %v5048 = vmul.u32.u64.compose %v5047, %v5046
      %v5049 = vextract.low.u32 %v5048
      %v5050 = vextract.high.u32 %v5048
      %v5051 = vmul.u32.u64.compose %v5047, %v5042
      %v5052 = vextract.low.u32 %v5051
      %v5053 = vextract.high.u32 %v5051
      %v5054 = vmul.u32 %v5047, %v5038
      %v5055 = vadd.s32 %v5050, %v5052
      %vm5056 = vc.u32 %v5050, %v5052
      %v5057 = vadd.s32 %v5053, 1
      %v5058 = vsel %vm5056, %v5057, %v5053
      %v5059 = vadd.s32 %v5054, %v5058
      %v5060 = vadd.s32 %v5059, 536870912
      %v5061 = vshrl.u32 %v5060, 30
      %v5062 = vshll.u32 %v5061, 30
      %v5063 = vsub.s32 %v5059, %v5062
      %vm5064 = vcmp.lt.s32.totalorder %v5063, 0
      %v5065 = vsub.s32 0, %v5063
      %v5066 = vsel %vm5064, %v5065, %v5063
      %v5067 = vclz %v5066
      %v5068 = vsub.s32 %v5067, 2
      %vm5069 = vcmp.gt.s32.totalorder 0, %v5068
      %v5070 = vsel %vm5069, 0, %v5068
      %v5071 = vsub.s32 32, %v5070
      %v5072 = vshll.u32 %v5063, %v5070
      %v5073 = vshrl.u32 %v5055, %v5071
      %v5074 = vor.u32 %v5072, %v5073
      %v5075 = vsub.s32 4294967266, %v5070
      %v5076 = vadd.s32 %v5075, 127
      %v5077 = vshll.u32 %v5076, 23
      %v5078 = vor.u32 4788187, %v5077
      %v5079 = vand.u32 2147483647, %v5078
      %v5081 = vcvt.s32.f32 %v5074
      %v5082 = vmul.f32 %v5081, %v5079
      %v5083 = vxor.u32 %v5082, 2147483648
      %v5084 = vsel %vm5001, %v5083, %v5082
      %v5085 = vsub.s32 4, %v5061
      %v5086 = vsel %vm5001, %v5085, %v5061
      %v5087 = vsel %vm5000, %v2762, %v5084
      %v5088 = vsel %vm5000, 0, %v5086
      %v5089 = vcosq.f32.pop %v5087
      %v5090 = vsinq.f32.pop %v5087
      %vm5091 = vweird.f32 %v2762
      %v5092 = vadd.s32 %v5088, 3
      %v5093 = vand.u32 %v5092, 3
      %vm5094 = vcmp.lt.s32.totalorder %v5093, 2
      %vm5095 = vcmp.eq.s32.totalorder %v5093, 0
      %v5096 = vxor.u32 %v5090, 2147483648
      %v5097 = vsel %vm5095, %v5089, %v5096
      %vm5098 = vcmp.eq.s32.totalorder %v5093, 2
      %v5099 = vxor.u32 %v5089, 2147483648
      %v5100 = vsel %vm5098, %v5099, %v5090
      %v5101 = vsel %vm5094, %v5097, %v5100
      %v5102 = vsel %vm5091, nan, %v5101
      %v5103 = vand.u32 2147483647, %v2764
      %vm5104 = vcmp.le.f32.partialorder %v5103, 0.7853982
      %vm5105 = vcmp.lt.s32.totalorder %v2764, 0
      %v5106 = vand.u32 %v2764, 2139095040
      %v5107 = vshrl.u32 %v5106, 23
      %v5108 = vsub.s32 %v5107, 127
      %v5109 = vand.u32 2147483647, %v2764
      %v5110 = vand.u32 %v5109, 8388607
      %v5111 = vor.u32 %v5110, 8388608
      %v5112 = vsub.s32 0, %v5111
      %v5113 = vadd.s32 %v5108, 1
      %vm5114 = vcmp.gt.s32.totalorder %v5113, 0
      %v5115 = vsel %vm5114, %v5113, 0
      %v5116 = vshrl.u32 %v5115, 5
      %v5117 = vand.u32 %v5115, 31
      %v5118 = vsub.s32 32, %v5117
      %v5119 = vshrl.u32 683565275, %v5118
      %v5120 = vshll.u32 683565275, %v5117
      %v5121 = vshrl.u32 2475754826, %v5118
      %v5122 = vor.u32 %v5120, %v5121
      %v5123 = vshll.u32 2475754826, %v5117
      %v5124 = vshrl.u32 2131351028, %v5118
      %v5125 = vor.u32 %v5123, %v5124
      %v5126 = vshll.u32 2131351028, %v5117
      %v5127 = vshrl.u32 2102212464, %v5118
      %v5128 = vor.u32 %v5126, %v5127
      %v5129 = vshll.u32 2102212464, %v5117
      %v5130 = vshrl.u32 920167782, %v5118
      %v5131 = vor.u32 %v5129, %v5130
      %v5132 = vshll.u32 920167782, %v5117
      %v5133 = vshrl.u32 1326507024, %v5118
      %v5134 = vor.u32 %v5132, %v5133
      %vm5135 = vcmp.lt.s32.totalorder %v5116, 1
      %vm5136 = vcmp.lt.s32.totalorder %v5116, 2
      %vm5137 = vcmp.lt.s32.totalorder %v5116, 3
      %vm5138 = vcmp.lt.s32.totalorder %v5116, 4
      %v5139 = vsel %vm5135, %v5119, %v5122
      %v5140 = vsel %vm5138, %v5128, 2102212464
      %v5141 = vsel %vm5137, %v5125, %v5140
      %v5142 = vsel %vm5136, %v5139, %v5141
      %v5143 = vsel %vm5135, %v5122, %v5125
      %v5144 = vsel %vm5138, %v5131, 920167782
      %v5145 = vsel %vm5137, %v5128, %v5144
      %v5146 = vsel %vm5136, %v5143, %v5145
      %v5147 = vsel %vm5135, %v5125, %v5128
      %v5148 = vsel %vm5138, %v5134, 1326507024
      %v5149 = vsel %vm5137, %v5131, %v5148
      %v5150 = vsel %vm5136, %v5147, %v5149
      %v5151 = vshll.u32 %v5111, 8
      %v5152 = vmul.u32.u64.compose %v5151, %v5150
      %v5153 = vextract.low.u32 %v5152
      %v5154 = vextract.high.u32 %v5152
      %v5155 = vmul.u32.u64.compose %v5151, %v5146
      %v5156 = vextract.low.u32 %v5155
      %v5157 = vextract.high.u32 %v5155
      %v5158 = vmul.u32 %v5151, %v5142
      %v5159 = vadd.s32 %v5154, %v5156
      %vm5160 = vc.u32 %v5154, %v5156
      %v5161 = vadd.s32 %v5157, 1
      %v5162 = vsel %vm5160, %v5161, %v5157
      %v5163 = vadd.s32 %v5158, %v5162
      %v5164 = vadd.s32 %v5163, 536870912
      %v5165 = vshrl.u32 %v5164, 30
      %v5166 = vshll.u32 %v5165, 30
      %v5167 = vsub.s32 %v5163, %v5166
      %vm5168 = vcmp.lt.s32.totalorder %v5167, 0
      %v5169 = vsub.s32 0, %v5167
      %v5170 = vsel %vm5168, %v5169, %v5167
      %v5171 = vclz %v5170
      %v5172 = vsub.s32 %v5171, 2
      %vm5173 = vcmp.gt.s32.totalorder 0, %v5172
      %v5174 = vsel %vm5173, 0, %v5172
      %v5175 = vsub.s32 32, %v5174
      %v5176 = vshll.u32 %v5167, %v5174
      %v5177 = vshrl.u32 %v5159, %v5175
      %v5178 = vor.u32 %v5176, %v5177
      %v5179 = vsub.s32 4294967266, %v5174
      %v5180 = vadd.s32 %v5179, 127
      %v5181 = vshll.u32 %v5180, 23
      %v5182 = vor.u32 4788187, %v5181
      %v5183 = vand.u32 2147483647, %v5182
      %v5185 = vcvt.s32.f32 %v5178
      %v5186 = vmul.f32 %v5185, %v5183
      %v5187 = vxor.u32 %v5186, 2147483648
      %v5188 = vsel %vm5105, %v5187, %v5186
      %v5189 = vsub.s32 4, %v5165
      %v5190 = vsel %vm5105, %v5189, %v5165
      %v5191 = vsel %vm5104, %v2764, %v5188
      %v5192 = vsel %vm5104, 0, %v5190
      %v5193 = vcosq.f32.pop %v5191
      %v5194 = vsinq.f32.pop %v5191
      %vm5195 = vweird.f32 %v2764
      %v5196 = vadd.s32 %v5192, 3
      %v5197 = vand.u32 %v5196, 3
      %vm5198 = vcmp.lt.s32.totalorder %v5197, 2
      %vm5199 = vcmp.eq.s32.totalorder %v5197, 0
      %v5200 = vxor.u32 %v5194, 2147483648
      %v5201 = vsel %vm5199, %v5193, %v5200
      %vm5202 = vcmp.eq.s32.totalorder %v5197, 2
      %v5203 = vxor.u32 %v5193, 2147483648
      %v5204 = vsel %vm5202, %v5203, %v5194
      %v5205 = vsel %vm5198, %v5201, %v5204
      %v5206 = vsel %vm5195, nan, %v5205
      %v5207 = vand.u32 2147483647, %v3764
      %vm5208 = vcmp.le.f32.partialorder %v5207, 0.7853982
      %vm5209 = vcmp.lt.s32.totalorder %v3764, 0
      %v5210 = vand.u32 %v3764, 2139095040
      %v5211 = vshrl.u32 %v5210, 23
      %v5212 = vsub.s32 %v5211, 127
      %v5213 = vand.u32 2147483647, %v3764
      %v5214 = vand.u32 %v5213, 8388607
      %v5215 = vor.u32 %v5214, 8388608
      %v5216 = vsub.s32 0, %v5215
      %v5217 = vadd.s32 %v5212, 1
      %vm5218 = vcmp.gt.s32.totalorder %v5217, 0
      %v5219 = vsel %vm5218, %v5217, 0
      %v5220 = vshrl.u32 %v5219, 5
      %v5221 = vand.u32 %v5219, 31
      %v5222 = vsub.s32 32, %v5221
      %v5223 = vshrl.u32 683565275, %v5222
      %v5224 = vshll.u32 683565275, %v5221
      %v5225 = vshrl.u32 2475754826, %v5222
      %v5226 = vor.u32 %v5224, %v5225
      %v5227 = vshll.u32 2475754826, %v5221
      %v5228 = vshrl.u32 2131351028, %v5222
      %v5229 = vor.u32 %v5227, %v5228
      %v5230 = vshll.u32 2131351028, %v5221
      %v5231 = vshrl.u32 2102212464, %v5222
      %v5232 = vor.u32 %v5230, %v5231
      %v5233 = vshll.u32 2102212464, %v5221
      %v5234 = vshrl.u32 920167782, %v5222
      %v5235 = vor.u32 %v5233, %v5234
      %v5236 = vshll.u32 920167782, %v5221
      %v5237 = vshrl.u32 1326507024, %v5222
      %v5238 = vor.u32 %v5236, %v5237
      %vm5239 = vcmp.lt.s32.totalorder %v5220, 1
      %vm5240 = vcmp.lt.s32.totalorder %v5220, 2
      %vm5241 = vcmp.lt.s32.totalorder %v5220, 3
      %vm5242 = vcmp.lt.s32.totalorder %v5220, 4
      %v5243 = vsel %vm5239, %v5223, %v5226
      %v5244 = vsel %vm5242, %v5232, 2102212464
      %v5245 = vsel %vm5241, %v5229, %v5244
      %v5246 = vsel %vm5240, %v5243, %v5245
      %v5247 = vsel %vm5239, %v5226, %v5229
      %v5248 = vsel %vm5242, %v5235, 920167782
      %v5249 = vsel %vm5241, %v5232, %v5248
      %v5250 = vsel %vm5240, %v5247, %v5249
      %v5251 = vsel %vm5239, %v5229, %v5232
      %v5252 = vsel %vm5242, %v5238, 1326507024
      %v5253 = vsel %vm5241, %v5235, %v5252
      %v5254 = vsel %vm5240, %v5251, %v5253
      %v5255 = vshll.u32 %v5215, 8
      %v5256 = vmul.u32.u64.compose %v5255, %v5254
      %v5257 = vextract.low.u32 %v5256
      %v5258 = vextract.high.u32 %v5256
      %v5259 = vmul.u32.u64.compose %v5255, %v5250
      %v5260 = vextract.low.u32 %v5259
      %v5261 = vextract.high.u32 %v5259
      %v5262 = vmul.u32 %v5255, %v5246
      %v5263 = vadd.s32 %v5258, %v5260
      %vm5264 = vc.u32 %v5258, %v5260
      %v5265 = vadd.s32 %v5261, 1
      %v5266 = vsel %vm5264, %v5265, %v5261
      %v5267 = vadd.s32 %v5262, %v5266
      %v5268 = vadd.s32 %v5267, 536870912
      %v5269 = vshrl.u32 %v5268, 30
      %v5270 = vshll.u32 %v5269, 30
      %v5271 = vsub.s32 %v5267, %v5270
      %vm5272 = vcmp.lt.s32.totalorder %v5271, 0
      %v5273 = vsub.s32 0, %v5271
      %v5274 = vsel %vm5272, %v5273, %v5271
      %v5275 = vclz %v5274
      %v5276 = vsub.s32 %v5275, 2
      %vm5277 = vcmp.gt.s32.totalorder 0, %v5276
      %v5278 = vsel %vm5277, 0, %v5276
      %v5279 = vsub.s32 32, %v5278
      %v5280 = vshll.u32 %v5271, %v5278
      %v5281 = vshrl.u32 %v5263, %v5279
      %v5282 = vor.u32 %v5280, %v5281
      %v5283 = vsub.s32 4294967266, %v5278
      %v5284 = vadd.s32 %v5283, 127
      %v5285 = vshll.u32 %v5284, 23
      %v5286 = vor.u32 4788187, %v5285
      %v5287 = vand.u32 2147483647, %v5286
      %v5289 = vcvt.s32.f32 %v5282
      %v5290 = vmul.f32 %v5289, %v5287
      %v5291 = vxor.u32 %v5290, 2147483648
      %v5292 = vsel %vm5209, %v5291, %v5290
      %v5293 = vsub.s32 4, %v5269
      %v5294 = vsel %vm5209, %v5293, %v5269
      %v5295 = vsel %vm5208, %v3764, %v5292
      %v5296 = vsel %vm5208, 0, %v5294
      %v5297 = vcosq.f32.pop %v5295
      %v5298 = vsinq.f32.pop %v5295
      %vm5299 = vweird.f32 %v3764
      %v5300 = vadd.s32 %v5296, 3
      %v5301 = vand.u32 %v5300, 3
      %vm5302 = vcmp.lt.s32.totalorder %v5301, 2
      %vm5303 = vcmp.eq.s32.totalorder %v5301, 0
      %v5304 = vxor.u32 %v5298, 2147483648
      %v5305 = vsel %vm5303, %v5297, %v5304
      %vm5306 = vcmp.eq.s32.totalorder %v5301, 2
      %v5307 = vxor.u32 %v5297, 2147483648
      %v5308 = vsel %vm5306, %v5307, %v5298
      %v5309 = vsel %vm5302, %v5305, %v5308
      %v5310 = vsel %vm5299, nan, %v5309
      %v5311 = vand.u32 2147483647, %v3766
      %vm5312 = vcmp.le.f32.partialorder %v5311, 0.7853982
      %vm5313 = vcmp.lt.s32.totalorder %v3766, 0
      %v5314 = vand.u32 %v3766, 2139095040
      %v5315 = vshrl.u32 %v5314, 23
      %v5316 = vsub.s32 %v5315, 127
      %v5317 = vand.u32 2147483647, %v3766
      %v5318 = vand.u32 %v5317, 8388607
      %v5319 = vor.u32 %v5318, 8388608
      %v5320 = vsub.s32 0, %v5319
      %v5321 = vadd.s32 %v5316, 1
      %vm5322 = vcmp.gt.s32.totalorder %v5321, 0
      %v5323 = vsel %vm5322, %v5321, 0
      %v5324 = vshrl.u32 %v5323, 5
      %v5325 = vand.u32 %v5323, 31
      %v5326 = vsub.s32 32, %v5325
      %v5327 = vshrl.u32 683565275, %v5326
      %v5328 = vshll.u32 683565275, %v5325
      %v5329 = vshrl.u32 2475754826, %v5326
      %v5330 = vor.u32 %v5328, %v5329
      %v5331 = vshll.u32 2475754826, %v5325
      %v5332 = vshrl.u32 2131351028, %v5326
      %v5333 = vor.u32 %v5331, %v5332
      %v5334 = vshll.u32 2131351028, %v5325
      %v5335 = vshrl.u32 2102212464, %v5326
      %v5336 = vor.u32 %v5334, %v5335
      %v5337 = vshll.u32 2102212464, %v5325
      %v5338 = vshrl.u32 920167782, %v5326
      %v5339 = vor.u32 %v5337, %v5338
      %v5340 = vshll.u32 920167782, %v5325
      %v5341 = vshrl.u32 1326507024, %v5326
      %v5342 = vor.u32 %v5340, %v5341
      %vm5343 = vcmp.lt.s32.totalorder %v5324, 1
      %vm5344 = vcmp.lt.s32.totalorder %v5324, 2
      %vm5345 = vcmp.lt.s32.totalorder %v5324, 3
      %vm5346 = vcmp.lt.s32.totalorder %v5324, 4
      %v5347 = vsel %vm5343, %v5327, %v5330
      %v5348 = vsel %vm5346, %v5336, 2102212464
      %v5349 = vsel %vm5345, %v5333, %v5348
      %v5350 = vsel %vm5344, %v5347, %v5349
      %v5351 = vsel %vm5343, %v5330, %v5333
      %v5352 = vsel %vm5346, %v5339, 920167782
      %v5353 = vsel %vm5345, %v5336, %v5352
      %v5354 = vsel %vm5344, %v5351, %v5353
      %v5355 = vsel %vm5343, %v5333, %v5336
      %v5356 = vsel %vm5346, %v5342, 1326507024
      %v5357 = vsel %vm5345, %v5339, %v5356
      %v5358 = vsel %vm5344, %v5355, %v5357
      %v5359 = vshll.u32 %v5319, 8
      %v5360 = vmul.u32.u64.compose %v5359, %v5358
      %v5361 = vextract.low.u32 %v5360
      %v5362 = vextract.high.u32 %v5360
      %v5363 = vmul.u32.u64.compose %v5359, %v5354
      %v5364 = vextract.low.u32 %v5363
      %v5365 = vextract.high.u32 %v5363
      %v5366 = vmul.u32 %v5359, %v5350
      %v5367 = vadd.s32 %v5362, %v5364
      %vm5368 = vc.u32 %v5362, %v5364
      %v5369 = vadd.s32 %v5365, 1
      %v5370 = vsel %vm5368, %v5369, %v5365
      %v5371 = vadd.s32 %v5366, %v5370
      %v5372 = vadd.s32 %v5371, 536870912
      %v5373 = vshrl.u32 %v5372, 30
      %v5374 = vshll.u32 %v5373, 30
      %v5375 = vsub.s32 %v5371, %v5374
      %vm5376 = vcmp.lt.s32.totalorder %v5375, 0
      %v5377 = vsub.s32 0, %v5375
      %v5378 = vsel %vm5376, %v5377, %v5375
      %v5379 = vclz %v5378
      %v5380 = vsub.s32 %v5379, 2
      %vm5381 = vcmp.gt.s32.totalorder 0, %v5380
      %v5382 = vsel %vm5381, 0, %v5380
      %v5383 = vsub.s32 32, %v5382
      %v5384 = vshll.u32 %v5375, %v5382
      %v5385 = vshrl.u32 %v5367, %v5383
      %v5386 = vor.u32 %v5384, %v5385
      %v5387 = vsub.s32 4294967266, %v5382
      %v5388 = vadd.s32 %v5387, 127
      %v5389 = vshll.u32 %v5388, 23
      %v5390 = vor.u32 4788187, %v5389
      %v5391 = vand.u32 2147483647, %v5390
      %v5393 = vcvt.s32.f32 %v5386
      %v5394 = vmul.f32 %v5393, %v5391
      %v5395 = vxor.u32 %v5394, 2147483648
      %v5396 = vsel %vm5313, %v5395, %v5394
      %v5397 = vsub.s32 4, %v5373
      %v5398 = vsel %vm5313, %v5397, %v5373
      %v5399 = vsel %vm5312, %v3766, %v5396
      %v5400 = vsel %vm5312, 0, %v5398
      %v5401 = vcosq.f32.pop %v5399
      %v5402 = vsinq.f32.pop %v5399
      %vm5403 = vweird.f32 %v3766
      %v5404 = vadd.s32 %v5400, 3
      %v5405 = vand.u32 %v5404, 3
      %vm5406 = vcmp.lt.s32.totalorder %v5405, 2
      %vm5407 = vcmp.eq.s32.totalorder %v5405, 0
      %v5408 = vxor.u32 %v5402, 2147483648
      %v5409 = vsel %vm5407, %v5401, %v5408
      %vm5410 = vcmp.eq.s32.totalorder %v5405, 2
      %v5411 = vxor.u32 %v5401, 2147483648
      %v5412 = vsel %vm5410, %v5411, %v5402
      %v5413 = vsel %vm5406, %v5409, %v5412
      %v5414 = vsel %vm5403, nan, %v5413
      %v5415 = vand.u32 2147483647, %v4766
      %vm5416 = vcmp.le.f32.partialorder %v5415, 0.7853982
      %vm5417 = vcmp.lt.s32.totalorder %v4766, 0
      %v5418 = vand.u32 %v4766, 2139095040
      %v5419 = vshrl.u32 %v5418, 23
      %v5420 = vsub.s32 %v5419, 127
      %v5421 = vand.u32 2147483647, %v4766
      %v5422 = vand.u32 %v5421, 8388607
      %v5423 = vor.u32 %v5422, 8388608
      %v5424 = vsub.s32 0, %v5423
      %v5425 = vadd.s32 %v5420, 1
      %vm5426 = vcmp.gt.s32.totalorder %v5425, 0
      %v5427 = vsel %vm5426, %v5425, 0
      %v5428 = vshrl.u32 %v5427, 5
      %v5429 = vand.u32 %v5427, 31
      %v5430 = vsub.s32 32, %v5429
      %v5431 = vshrl.u32 683565275, %v5430
      %v5432 = vshll.u32 683565275, %v5429
      %v5433 = vshrl.u32 2475754826, %v5430
      %v5434 = vor.u32 %v5432, %v5433
      %v5435 = vshll.u32 2475754826, %v5429
      %v5436 = vshrl.u32 2131351028, %v5430
      %v5437 = vor.u32 %v5435, %v5436
      %v5438 = vshll.u32 2131351028, %v5429
      %v5439 = vshrl.u32 2102212464, %v5430
      %v5440 = vor.u32 %v5438, %v5439
      %v5441 = vshll.u32 2102212464, %v5429
      %v5442 = vshrl.u32 920167782, %v5430
      %v5443 = vor.u32 %v5441, %v5442
      %v5444 = vshll.u32 920167782, %v5429
      %v5445 = vshrl.u32 1326507024, %v5430
      %v5446 = vor.u32 %v5444, %v5445
      %vm5447 = vcmp.lt.s32.totalorder %v5428, 1
      %vm5448 = vcmp.lt.s32.totalorder %v5428, 2
      %vm5449 = vcmp.lt.s32.totalorder %v5428, 3
      %vm5450 = vcmp.lt.s32.totalorder %v5428, 4
      %v5451 = vsel %vm5447, %v5431, %v5434
      %v5452 = vsel %vm5450, %v5440, 2102212464
      %v5453 = vsel %vm5449, %v5437, %v5452
      %v5454 = vsel %vm5448, %v5451, %v5453
      %v5455 = vsel %vm5447, %v5434, %v5437
      %v5456 = vsel %vm5450, %v5443, 920167782
      %v5457 = vsel %vm5449, %v5440, %v5456
      %v5458 = vsel %vm5448, %v5455, %v5457
      %v5459 = vsel %vm5447, %v5437, %v5440
      %v5460 = vsel %vm5450, %v5446, 1326507024
      %v5461 = vsel %vm5449, %v5443, %v5460
      %v5462 = vsel %vm5448, %v5459, %v5461
      %v5463 = vshll.u32 %v5423, 8
      %v5464 = vmul.u32.u64.compose %v5463, %v5462
      %v5465 = vextract.low.u32 %v5464
      %v5466 = vextract.high.u32 %v5464
      %v5467 = vmul.u32.u64.compose %v5463, %v5458
      %v5468 = vextract.low.u32 %v5467
      %v5469 = vextract.high.u32 %v5467
      %v5470 = vmul.u32 %v5463, %v5454
      %v5471 = vadd.s32 %v5466, %v5468
      %vm5472 = vc.u32 %v5466, %v5468
      %v5473 = vadd.s32 %v5469, 1
      %v5474 = vsel %vm5472, %v5473, %v5469
      %v5475 = vadd.s32 %v5470, %v5474
      %v5476 = vadd.s32 %v5475, 536870912
      %v5477 = vshrl.u32 %v5476, 30
      %v5478 = vshll.u32 %v5477, 30
      %v5479 = vsub.s32 %v5475, %v5478
      %vm5480 = vcmp.lt.s32.totalorder %v5479, 0
      %v5481 = vsub.s32 0, %v5479
      %v5482 = vsel %vm5480, %v5481, %v5479
      %v5483 = vclz %v5482
      %v5484 = vsub.s32 %v5483, 2
      %vm5485 = vcmp.gt.s32.totalorder 0, %v5484
      %v5486 = vsel %vm5485, 0, %v5484
      %v5487 = vsub.s32 32, %v5486
      %v5488 = vshll.u32 %v5479, %v5486
      %v5489 = vshrl.u32 %v5471, %v5487
      %v5490 = vor.u32 %v5488, %v5489
      %v5491 = vsub.s32 4294967266, %v5486
      %v5492 = vadd.s32 %v5491, 127
      %v5493 = vshll.u32 %v5492, 23
      %v5494 = vor.u32 4788187, %v5493
      %v5495 = vand.u32 2147483647, %v5494
      %v5497 = vcvt.s32.f32 %v5490
      %v5498 = vmul.f32 %v5497, %v5495
      %v5499 = vxor.u32 %v5498, 2147483648
      %v5500 = vsel %vm5417, %v5499, %v5498
      %v5501 = vsub.s32 4, %v5477
      %v5502 = vsel %vm5417, %v5501, %v5477
      %v5503 = vsel %vm5416, %v4766, %v5500
      %v5504 = vsel %vm5416, 0, %v5502
      %v5505 = vcosq.f32.pop %v5503
      %v5506 = vsinq.f32.pop %v5503
      %vm5507 = vweird.f32 %v4766
      %v5508 = vadd.s32 %v5504, 3
      %v5509 = vand.u32 %v5508, 3
      %vm5510 = vcmp.lt.s32.totalorder %v5509, 2
      %vm5511 = vcmp.eq.s32.totalorder %v5509, 0
      %v5512 = vxor.u32 %v5506, 2147483648
      %v5513 = vsel %vm5511, %v5505, %v5512
      %vm5514 = vcmp.eq.s32.totalorder %v5509, 2
      %v5515 = vxor.u32 %v5505, 2147483648
      %v5516 = vsel %vm5514, %v5515, %v5506
      %v5517 = vsel %vm5510, %v5513, %v5516
      %v5518 = vsel %vm5507, nan, %v5517
      %v5519 = vand.u32 2147483647, %v4768
      %vm5520 = vcmp.le.f32.partialorder %v5519, 0.7853982
      %vm5521 = vcmp.lt.s32.totalorder %v4768, 0
      %v5522 = vand.u32 %v4768, 2139095040
      %v5523 = vshrl.u32 %v5522, 23
      %v5524 = vsub.s32 %v5523, 127
      %v5525 = vand.u32 2147483647, %v4768
      %v5526 = vand.u32 %v5525, 8388607
      %v5527 = vor.u32 %v5526, 8388608
      %v5528 = vsub.s32 0, %v5527
      %v5529 = vadd.s32 %v5524, 1
      %vm5530 = vcmp.gt.s32.totalorder %v5529, 0
      %v5531 = vsel %vm5530, %v5529, 0
      %v5532 = vshrl.u32 %v5531, 5
      %v5533 = vand.u32 %v5531, 31
      %v5534 = vsub.s32 32, %v5533
      %v5535 = vshrl.u32 683565275, %v5534
      %v5536 = vshll.u32 683565275, %v5533
      %v5537 = vshrl.u32 2475754826, %v5534
      %v5538 = vor.u32 %v5536, %v5537
      %v5539 = vshll.u32 2475754826, %v5533
      %v5540 = vshrl.u32 2131351028, %v5534
      %v5541 = vor.u32 %v5539, %v5540
      %v5542 = vshll.u32 2131351028, %v5533
      %v5543 = vshrl.u32 2102212464, %v5534
      %v5544 = vor.u32 %v5542, %v5543
      %v5545 = vshll.u32 2102212464, %v5533
      %v5546 = vshrl.u32 920167782, %v5534
      %v5547 = vor.u32 %v5545, %v5546
      %v5548 = vshll.u32 920167782, %v5533
      %v5549 = vshrl.u32 1326507024, %v5534
      %v5550 = vor.u32 %v5548, %v5549
      %vm5551 = vcmp.lt.s32.totalorder %v5532, 1
      %vm5552 = vcmp.lt.s32.totalorder %v5532, 2
      %vm5553 = vcmp.lt.s32.totalorder %v5532, 3
      %vm5554 = vcmp.lt.s32.totalorder %v5532, 4
      %v5555 = vsel %vm5551, %v5535, %v5538
      %v5556 = vsel %vm5554, %v5544, 2102212464
      %v5557 = vsel %vm5553, %v5541, %v5556
      %v5558 = vsel %vm5552, %v5555, %v5557
      %v5559 = vsel %vm5551, %v5538, %v5541
      %v5560 = vsel %vm5554, %v5547, 920167782
      %v5561 = vsel %vm5553, %v5544, %v5560
      %v5562 = vsel %vm5552, %v5559, %v5561
      %v5563 = vsel %vm5551, %v5541, %v5544
      %v5564 = vsel %vm5554, %v5550, 1326507024
      %v5565 = vsel %vm5553, %v5547, %v5564
      %v5566 = vsel %vm5552, %v5563, %v5565
      %v5567 = vshll.u32 %v5527, 8
      %v5568 = vmul.u32.u64.compose %v5567, %v5566
      %v5569 = vextract.low.u32 %v5568
      %v5570 = vextract.high.u32 %v5568
      %v5571 = vmul.u32.u64.compose %v5567, %v5562
      %v5572 = vextract.low.u32 %v5571
      %v5573 = vextract.high.u32 %v5571
      %v5574 = vmul.u32 %v5567, %v5558
      %v5575 = vadd.s32 %v5570, %v5572
      %vm5576 = vc.u32 %v5570, %v5572
      %v5577 = vadd.s32 %v5573, 1
      %v5578 = vsel %vm5576, %v5577, %v5573
      %v5579 = vadd.s32 %v5574, %v5578
      %v5580 = vadd.s32 %v5579, 536870912
      %v5581 = vshrl.u32 %v5580, 30
      %v5582 = vshll.u32 %v5581, 30
      %v5583 = vsub.s32 %v5579, %v5582
      %vm5584 = vcmp.lt.s32.totalorder %v5583, 0
      %v5585 = vsub.s32 0, %v5583
      %v5586 = vsel %vm5584, %v5585, %v5583
      %v5587 = vclz %v5586
      %v5588 = vsub.s32 %v5587, 2
      %vm5589 = vcmp.gt.s32.totalorder 0, %v5588
      %v5590 = vsel %vm5589, 0, %v5588
      %v5591 = vsub.s32 32, %v5590
      %v5592 = vshll.u32 %v5583, %v5590
      %v5593 = vshrl.u32 %v5575, %v5591
      %v5594 = vor.u32 %v5592, %v5593
      %v5595 = vsub.s32 4294967266, %v5590
      %v5596 = vadd.s32 %v5595, 127
      %v5597 = vshll.u32 %v5596, 23
      %v5598 = vor.u32 4788187, %v5597
      %v5599 = vand.u32 2147483647, %v5598
      %v5601 = vcvt.s32.f32 %v5594
      %v5602 = vmul.f32 %v5601, %v5599
      %v5603 = vxor.u32 %v5602, 2147483648
      %v5604 = vsel %vm5521, %v5603, %v5602
      %v5605 = vsub.s32 4, %v5581
      %v5606 = vsel %vm5521, %v5605, %v5581
      %v5607 = vsel %vm5520, %v4768, %v5604
      %v5608 = vsel %vm5520, 0, %v5606
      %v5609 = vcosq.f32.pop %v5607
      %v5610 = vsinq.f32.pop %v5607
      %vm5611 = vweird.f32 %v4768
      %v5612 = vadd.s32 %v5608, 3
      %v5613 = vand.u32 %v5612, 3
      %vm5614 = vcmp.lt.s32.totalorder %v5613, 2
      %vm5615 = vcmp.eq.s32.totalorder %v5613, 0
      %v5616 = vxor.u32 %v5610, 2147483648
      %v5617 = vsel %vm5615, %v5609, %v5616
      %vm5618 = vcmp.eq.s32.totalorder %v5613, 2
      %v5619 = vxor.u32 %v5609, 2147483648
      %v5620 = vsel %vm5618, %v5619, %v5610
      %v5621 = vsel %vm5614, %v5617, %v5620
      %v5622 = vsel %vm5611, nan, %v5621
      %v5623 = vand.u32 2147483647, %v1767
      %vm5624 = vcmp.le.f32.partialorder %v5623, 0.7853982
      %vm5625 = vcmp.lt.s32.totalorder %v1767, 0
      %v5626 = vand.u32 %v1767, 2139095040
      %v5627 = vshrl.u32 %v5626, 23
      %v5628 = vsub.s32 %v5627, 127
      %v5629 = vand.u32 2147483647, %v1767
      %v5630 = vand.u32 %v5629, 8388607
      %v5631 = vor.u32 %v5630, 8388608
      %v5632 = vsub.s32 0, %v5631
      %v5633 = vadd.s32 %v5628, 1
      %vm5634 = vcmp.gt.s32.totalorder %v5633, 0
      %v5635 = vsel %vm5634, %v5633, 0
      %v5636 = vshrl.u32 %v5635, 5
      %v5637 = vand.u32 %v5635, 31
      %v5638 = vsub.s32 32, %v5637
      %v5639 = vshrl.u32 683565275, %v5638
      %v5640 = vshll.u32 683565275, %v5637
      %v5641 = vshrl.u32 2475754826, %v5638
      %v5642 = vor.u32 %v5640, %v5641
      %v5643 = vshll.u32 2475754826, %v5637
      %v5644 = vshrl.u32 2131351028, %v5638
      %v5645 = vor.u32 %v5643, %v5644
      %v5646 = vshll.u32 2131351028, %v5637
      %v5647 = vshrl.u32 2102212464, %v5638
      %v5648 = vor.u32 %v5646, %v5647
      %v5649 = vshll.u32 2102212464, %v5637
      %v5650 = vshrl.u32 920167782, %v5638
      %v5651 = vor.u32 %v5649, %v5650
      %v5652 = vshll.u32 920167782, %v5637
      %v5653 = vshrl.u32 1326507024, %v5638
      %v5654 = vor.u32 %v5652, %v5653
      %vm5655 = vcmp.lt.s32.totalorder %v5636, 1
      %vm5656 = vcmp.lt.s32.totalorder %v5636, 2
      %vm5657 = vcmp.lt.s32.totalorder %v5636, 3
      %vm5658 = vcmp.lt.s32.totalorder %v5636, 4
      %v5659 = vsel %vm5655, %v5639, %v5642
      %v5660 = vsel %vm5658, %v5648, 2102212464
      %v5661 = vsel %vm5657, %v5645, %v5660
      %v5662 = vsel %vm5656, %v5659, %v5661
      %v5663 = vsel %vm5655, %v5642, %v5645
      %v5664 = vsel %vm5658, %v5651, 920167782
      %v5665 = vsel %vm5657, %v5648, %v5664
      %v5666 = vsel %vm5656, %v5663, %v5665
      %v5667 = vsel %vm5655, %v5645, %v5648
      %v5668 = vsel %vm5658, %v5654, 1326507024
      %v5669 = vsel %vm5657, %v5651, %v5668
      %v5670 = vsel %vm5656, %v5667, %v5669
      %v5671 = vshll.u32 %v5631, 8
      %v5672 = vmul.u32.u64.compose %v5671, %v5670
      %v5673 = vextract.low.u32 %v5672
      %v5674 = vextract.high.u32 %v5672
      %v5675 = vmul.u32.u64.compose %v5671, %v5666
      %v5676 = vextract.low.u32 %v5675
      %v5677 = vextract.high.u32 %v5675
      %v5678 = vmul.u32 %v5671, %v5662
      %v5679 = vadd.s32 %v5674, %v5676
      %vm5680 = vc.u32 %v5674, %v5676
      %v5681 = vadd.s32 %v5677, 1
      %v5682 = vsel %vm5680, %v5681, %v5677
      %v5683 = vadd.s32 %v5678, %v5682
      %v5684 = vadd.s32 %v5683, 536870912
      %v5685 = vshrl.u32 %v5684, 30
      %v5686 = vshll.u32 %v5685, 30
      %v5687 = vsub.s32 %v5683, %v5686
      %vm5688 = vcmp.lt.s32.totalorder %v5687, 0
      %v5689 = vsub.s32 0, %v5687
      %v5690 = vsel %vm5688, %v5689, %v5687
      %v5691 = vclz %v5690
      %v5692 = vsub.s32 %v5691, 2
      %vm5693 = vcmp.gt.s32.totalorder 0, %v5692
      %v5694 = vsel %vm5693, 0, %v5692
      %v5695 = vsub.s32 32, %v5694
      %v5696 = vshll.u32 %v5687, %v5694
      %v5697 = vshrl.u32 %v5679, %v5695
      %v5698 = vor.u32 %v5696, %v5697
      %v5699 = vsub.s32 4294967266, %v5694
      %v5700 = vadd.s32 %v5699, 127
      %v5701 = vshll.u32 %v5700, 23
      %v5702 = vor.u32 4788187, %v5701
      %v5703 = vand.u32 2147483647, %v5702
      %v5705 = vcvt.s32.f32 %v5698
      %v5706 = vmul.f32 %v5705, %v5703
      %v5707 = vxor.u32 %v5706, 2147483648
      %v5708 = vsel %vm5625, %v5707, %v5706
      %v5709 = vsub.s32 4, %v5685
      %v5710 = vsel %vm5625, %v5709, %v5685
      %v5711 = vsel %vm5624, %v1767, %v5708
      %v5712 = vsel %vm5624, 0, %v5710
      %v5713 = vcosq.f32.pop %v5711
      %v5714 = vsinq.f32.pop %v5711
      %vm5715 = vweird.f32 %v1767
      %v5716 = vadd.s32 %v5712, 3
      %v5717 = vand.u32 %v5716, 3
      %vm5718 = vcmp.lt.s32.totalorder %v5717, 2
      %vm5719 = vcmp.eq.s32.totalorder %v5717, 0
      %v5720 = vxor.u32 %v5714, 2147483648
      %v5721 = vsel %vm5719, %v5713, %v5720
      %vm5722 = vcmp.eq.s32.totalorder %v5717, 2
      %v5723 = vxor.u32 %v5713, 2147483648
      %v5724 = vsel %vm5722, %v5723, %v5714
      %v5725 = vsel %vm5718, %v5721, %v5724
      %v5726 = vsel %vm5715, nan, %v5725
      %v5727 = vand.u32 2147483647, %v1769
      %vm5728 = vcmp.le.f32.partialorder %v5727, 0.7853982
      %vm5729 = vcmp.lt.s32.totalorder %v1769, 0
      %v5730 = vand.u32 %v1769, 2139095040
      %v5731 = vshrl.u32 %v5730, 23
      %v5732 = vsub.s32 %v5731, 127
      %v5733 = vand.u32 2147483647, %v1769
      %v5734 = vand.u32 %v5733, 8388607
      %v5735 = vor.u32 %v5734, 8388608
      %v5736 = vsub.s32 0, %v5735
      %v5737 = vadd.s32 %v5732, 1
      %vm5738 = vcmp.gt.s32.totalorder %v5737, 0
      %v5739 = vsel %vm5738, %v5737, 0
      %v5740 = vshrl.u32 %v5739, 5
      %v5741 = vand.u32 %v5739, 31
      %v5742 = vsub.s32 32, %v5741
      %v5743 = vshrl.u32 683565275, %v5742
      %v5744 = vshll.u32 683565275, %v5741
      %v5745 = vshrl.u32 2475754826, %v5742
      %v5746 = vor.u32 %v5744, %v5745
      %v5747 = vshll.u32 2475754826, %v5741
      %v5748 = vshrl.u32 2131351028, %v5742
      %v5749 = vor.u32 %v5747, %v5748
      %v5750 = vshll.u32 2131351028, %v5741
      %v5751 = vshrl.u32 2102212464, %v5742
      %v5752 = vor.u32 %v5750, %v5751
      %v5753 = vshll.u32 2102212464, %v5741
      %v5754 = vshrl.u32 920167782, %v5742
      %v5755 = vor.u32 %v5753, %v5754
      %v5756 = vshll.u32 920167782, %v5741
      %v5757 = vshrl.u32 1326507024, %v5742
      %v5758 = vor.u32 %v5756, %v5757
      %vm5759 = vcmp.lt.s32.totalorder %v5740, 1
      %vm5760 = vcmp.lt.s32.totalorder %v5740, 2
      %vm5761 = vcmp.lt.s32.totalorder %v5740, 3
      %vm5762 = vcmp.lt.s32.totalorder %v5740, 4
      %v5763 = vsel %vm5759, %v5743, %v5746
      %v5764 = vsel %vm5762, %v5752, 2102212464
      %v5765 = vsel %vm5761, %v5749, %v5764
      %v5766 = vsel %vm5760, %v5763, %v5765
      %v5767 = vsel %vm5759, %v5746, %v5749
      %v5768 = vsel %vm5762, %v5755, 920167782
      %v5769 = vsel %vm5761, %v5752, %v5768
      %v5770 = vsel %vm5760, %v5767, %v5769
      %v5771 = vsel %vm5759, %v5749, %v5752
      %v5772 = vsel %vm5762, %v5758, 1326507024
      %v5773 = vsel %vm5761, %v5755, %v5772
      %v5774 = vsel %vm5760, %v5771, %v5773
      %v5775 = vshll.u32 %v5735, 8
      %v5776 = vmul.u32.u64.compose %v5775, %v5774
      %v5777 = vextract.low.u32 %v5776
      %v5778 = vextract.high.u32 %v5776
      %v5779 = vmul.u32.u64.compose %v5775, %v5770
      %v5780 = vextract.low.u32 %v5779
      %v5781 = vextract.high.u32 %v5779
      %v5782 = vmul.u32 %v5775, %v5766
      %v5783 = vadd.s32 %v5778, %v5780
      %vm5784 = vc.u32 %v5778, %v5780
      %v5785 = vadd.s32 %v5781, 1
      %v5786 = vsel %vm5784, %v5785, %v5781
      %v5787 = vadd.s32 %v5782, %v5786
      %v5788 = vadd.s32 %v5787, 536870912
      %v5789 = vshrl.u32 %v5788, 30
      %v5790 = vshll.u32 %v5789, 30
      %v5791 = vsub.s32 %v5787, %v5790
      %vm5792 = vcmp.lt.s32.totalorder %v5791, 0
      %v5793 = vsub.s32 0, %v5791
      %v5794 = vsel %vm5792, %v5793, %v5791
      %v5795 = vclz %v5794
      %v5796 = vsub.s32 %v5795, 2
      %vm5797 = vcmp.gt.s32.totalorder 0, %v5796
      %v5798 = vsel %vm5797, 0, %v5796
      %v5799 = vsub.s32 32, %v5798
      %v5800 = vshll.u32 %v5791, %v5798
      %v5801 = vshrl.u32 %v5783, %v5799
      %v5802 = vor.u32 %v5800, %v5801
      %v5803 = vsub.s32 4294967266, %v5798
      %v5804 = vadd.s32 %v5803, 127
      %v5805 = vshll.u32 %v5804, 23
      %v5806 = vor.u32 4788187, %v5805
      %v5807 = vand.u32 2147483647, %v5806
      %v5809 = vcvt.s32.f32 %v5802
      %v5810 = vmul.f32 %v5809, %v5807
      %v5811 = vxor.u32 %v5810, 2147483648
      %v5812 = vsel %vm5729, %v5811, %v5810
      %v5813 = vsub.s32 4, %v5789
      %v5814 = vsel %vm5729, %v5813, %v5789
      %v5815 = vsel %vm5728, %v1769, %v5812
      %v5816 = vsel %vm5728, 0, %v5814
      %v5817 = vcosq.f32.pop %v5815
      %v5818 = vsinq.f32.pop %v5815
      %vm5819 = vweird.f32 %v1769
      %v5820 = vadd.s32 %v5816, 3
      %v5821 = vand.u32 %v5820, 3
      %vm5822 = vcmp.lt.s32.totalorder %v5821, 2
      %vm5823 = vcmp.eq.s32.totalorder %v5821, 0
      %v5824 = vxor.u32 %v5818, 2147483648
      %v5825 = vsel %vm5823, %v5817, %v5824
      %vm5826 = vcmp.eq.s32.totalorder %v5821, 2
      %v5827 = vxor.u32 %v5817, 2147483648
      %v5828 = vsel %vm5826, %v5827, %v5818
      %v5829 = vsel %vm5822, %v5825, %v5828
      %v5830 = vsel %vm5819, nan, %v5829
      %v5831 = vand.u32 2147483647, %v2769
      %vm5832 = vcmp.le.f32.partialorder %v5831, 0.7853982
      %vm5833 = vcmp.lt.s32.totalorder %v2769, 0
      %v5834 = vand.u32 %v2769, 2139095040
      %v5835 = vshrl.u32 %v5834, 23
      %v5836 = vsub.s32 %v5835, 127
      %v5837 = vand.u32 2147483647, %v2769
      %v5838 = vand.u32 %v5837, 8388607
      %v5839 = vor.u32 %v5838, 8388608
      %v5840 = vsub.s32 0, %v5839
      %v5841 = vadd.s32 %v5836, 1
      %vm5842 = vcmp.gt.s32.totalorder %v5841, 0
      %v5843 = vsel %vm5842, %v5841, 0
      %v5844 = vshrl.u32 %v5843, 5
      %v5845 = vand.u32 %v5843, 31
      %v5846 = vsub.s32 32, %v5845
      %v5847 = vshrl.u32 683565275, %v5846
      %v5848 = vshll.u32 683565275, %v5845
      %v5849 = vshrl.u32 2475754826, %v5846
      %v5850 = vor.u32 %v5848, %v5849
      %v5851 = vshll.u32 2475754826, %v5845
      %v5852 = vshrl.u32 2131351028, %v5846
      %v5853 = vor.u32 %v5851, %v5852
      %v5854 = vshll.u32 2131351028, %v5845
      %v5855 = vshrl.u32 2102212464, %v5846
      %v5856 = vor.u32 %v5854, %v5855
      %v5857 = vshll.u32 2102212464, %v5845
      %v5858 = vshrl.u32 920167782, %v5846
      %v5859 = vor.u32 %v5857, %v5858
      %v5860 = vshll.u32 920167782, %v5845
      %v5861 = vshrl.u32 1326507024, %v5846
      %v5862 = vor.u32 %v5860, %v5861
      %vm5863 = vcmp.lt.s32.totalorder %v5844, 1
      %vm5864 = vcmp.lt.s32.totalorder %v5844, 2
      %vm5865 = vcmp.lt.s32.totalorder %v5844, 3
      %vm5866 = vcmp.lt.s32.totalorder %v5844, 4
      %v5867 = vsel %vm5863, %v5847, %v5850
      %v5868 = vsel %vm5866, %v5856, 2102212464
      %v5869 = vsel %vm5865, %v5853, %v5868
      %v5870 = vsel %vm5864, %v5867, %v5869
      %v5871 = vsel %vm5863, %v5850, %v5853
      %v5872 = vsel %vm5866, %v5859, 920167782
      %v5873 = vsel %vm5865, %v5856, %v5872
      %v5874 = vsel %vm5864, %v5871, %v5873
      %v5875 = vsel %vm5863, %v5853, %v5856
      %v5876 = vsel %vm5866, %v5862, 1326507024
      %v5877 = vsel %vm5865, %v5859, %v5876
      %v5878 = vsel %vm5864, %v5875, %v5877
      %v5879 = vshll.u32 %v5839, 8
      %v5880 = vmul.u32.u64.compose %v5879, %v5878
      %v5881 = vextract.low.u32 %v5880
      %v5882 = vextract.high.u32 %v5880
      %v5883 = vmul.u32.u64.compose %v5879, %v5874
      %v5884 = vextract.low.u32 %v5883
      %v5885 = vextract.high.u32 %v5883
      %v5886 = vmul.u32 %v5879, %v5870
      %v5887 = vadd.s32 %v5882, %v5884
      %vm5888 = vc.u32 %v5882, %v5884
      %v5889 = vadd.s32 %v5885, 1
      %v5890 = vsel %vm5888, %v5889, %v5885
      %v5891 = vadd.s32 %v5886, %v5890
      %v5892 = vadd.s32 %v5891, 536870912
      %v5893 = vshrl.u32 %v5892, 30
      %v5894 = vshll.u32 %v5893, 30
      %v5895 = vsub.s32 %v5891, %v5894
      %vm5896 = vcmp.lt.s32.totalorder %v5895, 0
      %v5897 = vsub.s32 0, %v5895
      %v5898 = vsel %vm5896, %v5897, %v5895
      %v5899 = vclz %v5898
      %v5900 = vsub.s32 %v5899, 2
      %vm5901 = vcmp.gt.s32.totalorder 0, %v5900
      %v5902 = vsel %vm5901, 0, %v5900
      %v5903 = vsub.s32 32, %v5902
      %v5904 = vshll.u32 %v5895, %v5902
      %v5905 = vshrl.u32 %v5887, %v5903
      %v5906 = vor.u32 %v5904, %v5905
      %v5907 = vsub.s32 4294967266, %v5902
      %v5908 = vadd.s32 %v5907, 127
      %v5909 = vshll.u32 %v5908, 23
      %v5910 = vor.u32 4788187, %v5909
      %v5911 = vand.u32 2147483647, %v5910
      %v5913 = vcvt.s32.f32 %v5906
      %v5914 = vmul.f32 %v5913, %v5911
      %v5915 = vxor.u32 %v5914, 2147483648
      %v5916 = vsel %vm5833, %v5915, %v5914
      %v5917 = vsub.s32 4, %v5893
      %v5918 = vsel %vm5833, %v5917, %v5893
      %v5919 = vsel %vm5832, %v2769, %v5916
      %v5920 = vsel %vm5832, 0, %v5918
      %v5921 = vcosq.f32.pop %v5919
      %v5922 = vsinq.f32.pop %v5919
      %vm5923 = vweird.f32 %v2769
      %v5924 = vadd.s32 %v5920, 3
      %v5925 = vand.u32 %v5924, 3
      %vm5926 = vcmp.lt.s32.totalorder %v5925, 2
      %vm5927 = vcmp.eq.s32.totalorder %v5925, 0
      %v5928 = vxor.u32 %v5922, 2147483648
      %v5929 = vsel %vm5927, %v5921, %v5928
      %vm5930 = vcmp.eq.s32.totalorder %v5925, 2
      %v5931 = vxor.u32 %v5921, 2147483648
      %v5932 = vsel %vm5930, %v5931, %v5922
      %v5933 = vsel %vm5926, %v5929, %v5932
      %v5934 = vsel %vm5923, nan, %v5933
      %v5935 = vand.u32 2147483647, %v2771
      %vm5936 = vcmp.le.f32.partialorder %v5935, 0.7853982
      %vm5937 = vcmp.lt.s32.totalorder %v2771, 0
      %v5938 = vand.u32 %v2771, 2139095040
      %v5939 = vshrl.u32 %v5938, 23
      %v5940 = vsub.s32 %v5939, 127
      %v5941 = vand.u32 2147483647, %v2771
      %v5942 = vand.u32 %v5941, 8388607
      %v5943 = vor.u32 %v5942, 8388608
      %v5944 = vsub.s32 0, %v5943
      %v5945 = vadd.s32 %v5940, 1
      %vm5946 = vcmp.gt.s32.totalorder %v5945, 0
      %v5947 = vsel %vm5946, %v5945, 0
      %v5948 = vshrl.u32 %v5947, 5
      %v5949 = vand.u32 %v5947, 31
      %v5950 = vsub.s32 32, %v5949
      %v5951 = vshrl.u32 683565275, %v5950
      %v5952 = vshll.u32 683565275, %v5949
      %v5953 = vshrl.u32 2475754826, %v5950
      %v5954 = vor.u32 %v5952, %v5953
      %v5955 = vshll.u32 2475754826, %v5949
      %v5956 = vshrl.u32 2131351028, %v5950
      %v5957 = vor.u32 %v5955, %v5956
      %v5958 = vshll.u32 2131351028, %v5949
      %v5959 = vshrl.u32 2102212464, %v5950
      %v5960 = vor.u32 %v5958, %v5959
      %v5961 = vshll.u32 2102212464, %v5949
      %v5962 = vshrl.u32 920167782, %v5950
      %v5963 = vor.u32 %v5961, %v5962
      %v5964 = vshll.u32 920167782, %v5949
      %v5965 = vshrl.u32 1326507024, %v5950
      %v5966 = vor.u32 %v5964, %v5965
      %vm5967 = vcmp.lt.s32.totalorder %v5948, 1
      %vm5968 = vcmp.lt.s32.totalorder %v5948, 2
      %vm5969 = vcmp.lt.s32.totalorder %v5948, 3
      %vm5970 = vcmp.lt.s32.totalorder %v5948, 4
      %v5971 = vsel %vm5967, %v5951, %v5954
      %v5972 = vsel %vm5970, %v5960, 2102212464
      %v5973 = vsel %vm5969, %v5957, %v5972
      %v5974 = vsel %vm5968, %v5971, %v5973
      %v5975 = vsel %vm5967, %v5954, %v5957
      %v5976 = vsel %vm5970, %v5963, 920167782
      %v5977 = vsel %vm5969, %v5960, %v5976
      %v5978 = vsel %vm5968, %v5975, %v5977
      %v5979 = vsel %vm5967, %v5957, %v5960
      %v5980 = vsel %vm5970, %v5966, 1326507024
      %v5981 = vsel %vm5969, %v5963, %v5980
      %v5982 = vsel %vm5968, %v5979, %v5981
      %v5983 = vshll.u32 %v5943, 8
      %v5984 = vmul.u32.u64.compose %v5983, %v5982
      %v5985 = vextract.low.u32 %v5984
      %v5986 = vextract.high.u32 %v5984
      %v5987 = vmul.u32.u64.compose %v5983, %v5978
      %v5988 = vextract.low.u32 %v5987
      %v5989 = vextract.high.u32 %v5987
      %v5990 = vmul.u32 %v5983, %v5974
      %v5991 = vadd.s32 %v5986, %v5988
      %vm5992 = vc.u32 %v5986, %v5988
      %v5993 = vadd.s32 %v5989, 1
      %v5994 = vsel %vm5992, %v5993, %v5989
      %v5995 = vadd.s32 %v5990, %v5994
      %v5996 = vadd.s32 %v5995, 536870912
      %v5997 = vshrl.u32 %v5996, 30
      %v5998 = vshll.u32 %v5997, 30
      %v5999 = vsub.s32 %v5995, %v5998
      %vm6000 = vcmp.lt.s32.totalorder %v5999, 0
      %v6001 = vsub.s32 0, %v5999
      %v6002 = vsel %vm6000, %v6001, %v5999
      %v6003 = vclz %v6002
      %v6004 = vsub.s32 %v6003, 2
      %vm6005 = vcmp.gt.s32.totalorder 0, %v6004
      %v6006 = vsel %vm6005, 0, %v6004
      %v6007 = vsub.s32 32, %v6006
      %v6008 = vshll.u32 %v5999, %v6006
      %v6009 = vshrl.u32 %v5991, %v6007
      %v6010 = vor.u32 %v6008, %v6009
      %v6011 = vsub.s32 4294967266, %v6006
      %v6012 = vadd.s32 %v6011, 127
      %v6013 = vshll.u32 %v6012, 23
      %v6014 = vor.u32 4788187, %v6013
      %v6015 = vand.u32 2147483647, %v6014
      %v6017 = vcvt.s32.f32 %v6010
      %v6018 = vmul.f32 %v6017, %v6015
      %v6019 = vxor.u32 %v6018, 2147483648
      %v6020 = vsel %vm5937, %v6019, %v6018
      %v6021 = vsub.s32 4, %v5997
      %v6022 = vsel %vm5937, %v6021, %v5997
      %v6023 = vsel %vm5936, %v2771, %v6020
      %v6024 = vsel %vm5936, 0, %v6022
      %v6025 = vcosq.f32.pop %v6023
      %v6026 = vsinq.f32.pop %v6023
      %vm6027 = vweird.f32 %v2771
      %v6028 = vadd.s32 %v6024, 3
      %v6029 = vand.u32 %v6028, 3
      %vm6030 = vcmp.lt.s32.totalorder %v6029, 2
      %vm6031 = vcmp.eq.s32.totalorder %v6029, 0
      %v6032 = vxor.u32 %v6026, 2147483648
      %v6033 = vsel %vm6031, %v6025, %v6032
      %vm6034 = vcmp.eq.s32.totalorder %v6029, 2
      %v6035 = vxor.u32 %v6025, 2147483648
      %v6036 = vsel %vm6034, %v6035, %v6026
      %v6037 = vsel %vm6030, %v6033, %v6036
      %v6038 = vsel %vm6027, nan, %v6037
      %v6039 = vand.u32 2147483647, %v3771
      %vm6040 = vcmp.le.f32.partialorder %v6039, 0.7853982
      %vm6041 = vcmp.lt.s32.totalorder %v3771, 0
      %v6042 = vand.u32 %v3771, 2139095040
      %v6043 = vshrl.u32 %v6042, 23
      %v6044 = vsub.s32 %v6043, 127
      %v6045 = vand.u32 2147483647, %v3771
      %v6046 = vand.u32 %v6045, 8388607
      %v6047 = vor.u32 %v6046, 8388608
      %v6048 = vsub.s32 0, %v6047
      %v6049 = vadd.s32 %v6044, 1
      %vm6050 = vcmp.gt.s32.totalorder %v6049, 0
      %v6051 = vsel %vm6050, %v6049, 0
      %v6052 = vshrl.u32 %v6051, 5
      %v6053 = vand.u32 %v6051, 31
      %v6054 = vsub.s32 32, %v6053
      %v6055 = vshrl.u32 683565275, %v6054
      %v6056 = vshll.u32 683565275, %v6053
      %v6057 = vshrl.u32 2475754826, %v6054
      %v6058 = vor.u32 %v6056, %v6057
      %v6059 = vshll.u32 2475754826, %v6053
      %v6060 = vshrl.u32 2131351028, %v6054
      %v6061 = vor.u32 %v6059, %v6060
      %v6062 = vshll.u32 2131351028, %v6053
      %v6063 = vshrl.u32 2102212464, %v6054
      %v6064 = vor.u32 %v6062, %v6063
      %v6065 = vshll.u32 2102212464, %v6053
      %v6066 = vshrl.u32 920167782, %v6054
      %v6067 = vor.u32 %v6065, %v6066
      %v6068 = vshll.u32 920167782, %v6053
      %v6069 = vshrl.u32 1326507024, %v6054
      %v6070 = vor.u32 %v6068, %v6069
      %vm6071 = vcmp.lt.s32.totalorder %v6052, 1
      %vm6072 = vcmp.lt.s32.totalorder %v6052, 2
      %vm6073 = vcmp.lt.s32.totalorder %v6052, 3
      %vm6074 = vcmp.lt.s32.totalorder %v6052, 4
      %v6075 = vsel %vm6071, %v6055, %v6058
      %v6076 = vsel %vm6074, %v6064, 2102212464
      %v6077 = vsel %vm6073, %v6061, %v6076
      %v6078 = vsel %vm6072, %v6075, %v6077
      %v6079 = vsel %vm6071, %v6058, %v6061
      %v6080 = vsel %vm6074, %v6067, 920167782
      %v6081 = vsel %vm6073, %v6064, %v6080
      %v6082 = vsel %vm6072, %v6079, %v6081
      %v6083 = vsel %vm6071, %v6061, %v6064
      %v6084 = vsel %vm6074, %v6070, 1326507024
      %v6085 = vsel %vm6073, %v6067, %v6084
      %v6086 = vsel %vm6072, %v6083, %v6085
      %v6087 = vshll.u32 %v6047, 8
      %v6088 = vmul.u32.u64.compose %v6087, %v6086
      %v6089 = vextract.low.u32 %v6088
      %v6090 = vextract.high.u32 %v6088
      %v6091 = vmul.u32.u64.compose %v6087, %v6082
      %v6092 = vextract.low.u32 %v6091
      %v6093 = vextract.high.u32 %v6091
      %v6094 = vmul.u32 %v6087, %v6078
      %v6095 = vadd.s32 %v6090, %v6092
      %vm6096 = vc.u32 %v6090, %v6092
      %v6097 = vadd.s32 %v6093, 1
      %v6098 = vsel %vm6096, %v6097, %v6093
      %v6099 = vadd.s32 %v6094, %v6098
      %v6100 = vadd.s32 %v6099, 536870912
      %v6101 = vshrl.u32 %v6100, 30
      %v6102 = vshll.u32 %v6101, 30
      %v6103 = vsub.s32 %v6099, %v6102
      %vm6104 = vcmp.lt.s32.totalorder %v6103, 0
      %v6105 = vsub.s32 0, %v6103
      %v6106 = vsel %vm6104, %v6105, %v6103
      %v6107 = vclz %v6106
      %v6108 = vsub.s32 %v6107, 2
      %vm6109 = vcmp.gt.s32.totalorder 0, %v6108
      %v6110 = vsel %vm6109, 0, %v6108
      %v6111 = vsub.s32 32, %v6110
      %v6112 = vshll.u32 %v6103, %v6110
      %v6113 = vshrl.u32 %v6095, %v6111
      %v6114 = vor.u32 %v6112, %v6113
      %v6115 = vsub.s32 4294967266, %v6110
      %v6116 = vadd.s32 %v6115, 127
      %v6117 = vshll.u32 %v6116, 23
      %v6118 = vor.u32 4788187, %v6117
      %v6119 = vand.u32 2147483647, %v6118
      %v6121 = vcvt.s32.f32 %v6114
      %v6122 = vmul.f32 %v6121, %v6119
      %v6123 = vxor.u32 %v6122, 2147483648
      %v6124 = vsel %vm6041, %v6123, %v6122
      %v6125 = vsub.s32 4, %v6101
      %v6126 = vsel %vm6041, %v6125, %v6101
      %v6127 = vsel %vm6040, %v3771, %v6124
      %v6128 = vsel %vm6040, 0, %v6126
      %v6129 = vcosq.f32.pop %v6127
      %v6130 = vsinq.f32.pop %v6127
      %vm6131 = vweird.f32 %v3771
      %v6132 = vadd.s32 %v6128, 3
      %v6133 = vand.u32 %v6132, 3
      %vm6134 = vcmp.lt.s32.totalorder %v6133, 2
      %vm6135 = vcmp.eq.s32.totalorder %v6133, 0
      %v6136 = vxor.u32 %v6130, 2147483648
      %v6137 = vsel %vm6135, %v6129, %v6136
      %vm6138 = vcmp.eq.s32.totalorder %v6133, 2
      %v6139 = vxor.u32 %v6129, 2147483648
      %v6140 = vsel %vm6138, %v6139, %v6130
      %v6141 = vsel %vm6134, %v6137, %v6140
      %v6142 = vsel %vm6131, nan, %v6141
      %v6143 = vand.u32 2147483647, %v3773
      %vm6144 = vcmp.le.f32.partialorder %v6143, 0.7853982
      %vm6145 = vcmp.lt.s32.totalorder %v3773, 0
      %v6146 = vand.u32 %v3773, 2139095040
      %v6147 = vshrl.u32 %v6146, 23
      %v6148 = vsub.s32 %v6147, 127
      %v6149 = vand.u32 2147483647, %v3773
      %v6150 = vand.u32 %v6149, 8388607
      %v6151 = vor.u32 %v6150, 8388608
      %v6152 = vsub.s32 0, %v6151
      %v6153 = vadd.s32 %v6148, 1
      %vm6154 = vcmp.gt.s32.totalorder %v6153, 0
      %v6155 = vsel %vm6154, %v6153, 0
      %v6156 = vshrl.u32 %v6155, 5
      %v6157 = vand.u32 %v6155, 31
      %v6158 = vsub.s32 32, %v6157
      %v6159 = vshrl.u32 683565275, %v6158
      %v6160 = vshll.u32 683565275, %v6157
      %v6161 = vshrl.u32 2475754826, %v6158
      %v6162 = vor.u32 %v6160, %v6161
      %v6163 = vshll.u32 2475754826, %v6157
      %v6164 = vshrl.u32 2131351028, %v6158
      %v6165 = vor.u32 %v6163, %v6164
      %v6166 = vshll.u32 2131351028, %v6157
      %v6167 = vshrl.u32 2102212464, %v6158
      %v6168 = vor.u32 %v6166, %v6167
      %v6169 = vshll.u32 2102212464, %v6157
      %v6170 = vshrl.u32 920167782, %v6158
      %v6171 = vor.u32 %v6169, %v6170
      %v6172 = vshll.u32 920167782, %v6157
      %v6173 = vshrl.u32 1326507024, %v6158
      %v6174 = vor.u32 %v6172, %v6173
      %vm6175 = vcmp.lt.s32.totalorder %v6156, 1
      %vm6176 = vcmp.lt.s32.totalorder %v6156, 2
      %vm6177 = vcmp.lt.s32.totalorder %v6156, 3
      %vm6178 = vcmp.lt.s32.totalorder %v6156, 4
      %v6179 = vsel %vm6175, %v6159, %v6162
      %v6180 = vsel %vm6178, %v6168, 2102212464
      %v6181 = vsel %vm6177, %v6165, %v6180
      %v6182 = vsel %vm6176, %v6179, %v6181
      %v6183 = vsel %vm6175, %v6162, %v6165
      %v6184 = vsel %vm6178, %v6171, 920167782
      %v6185 = vsel %vm6177, %v6168, %v6184
      %v6186 = vsel %vm6176, %v6183, %v6185
      %v6187 = vsel %vm6175, %v6165, %v6168
      %v6188 = vsel %vm6178, %v6174, 1326507024
      %v6189 = vsel %vm6177, %v6171, %v6188
      %v6190 = vsel %vm6176, %v6187, %v6189
      %v6191 = vshll.u32 %v6151, 8
      %v6192 = vmul.u32.u64.compose %v6191, %v6190
      %v6193 = vextract.low.u32 %v6192
      %v6194 = vextract.high.u32 %v6192
      %v6195 = vmul.u32.u64.compose %v6191, %v6186
      %v6196 = vextract.low.u32 %v6195
      %v6197 = vextract.high.u32 %v6195
      %v6198 = vmul.u32 %v6191, %v6182
      %v6199 = vadd.s32 %v6194, %v6196
      %vm6200 = vc.u32 %v6194, %v6196
      %v6201 = vadd.s32 %v6197, 1
      %v6202 = vsel %vm6200, %v6201, %v6197
      %v6203 = vadd.s32 %v6198, %v6202
      %v6204 = vadd.s32 %v6203, 536870912
      %v6205 = vshrl.u32 %v6204, 30
      %v6206 = vshll.u32 %v6205, 30
      %v6207 = vsub.s32 %v6203, %v6206
      %vm6208 = vcmp.lt.s32.totalorder %v6207, 0
      %v6209 = vsub.s32 0, %v6207
      %v6210 = vsel %vm6208, %v6209, %v6207
      %v6211 = vclz %v6210
      %v6212 = vsub.s32 %v6211, 2
      %vm6213 = vcmp.gt.s32.totalorder 0, %v6212
      %v6214 = vsel %vm6213, 0, %v6212
      %v6215 = vsub.s32 32, %v6214
      %v6216 = vshll.u32 %v6207, %v6214
      %v6217 = vshrl.u32 %v6199, %v6215
      %v6218 = vor.u32 %v6216, %v6217
      %v6219 = vsub.s32 4294967266, %v6214
      %v6220 = vadd.s32 %v6219, 127
      %v6221 = vshll.u32 %v6220, 23
      %v6222 = vor.u32 4788187, %v6221
      %v6223 = vand.u32 2147483647, %v6222
      %v6225 = vcvt.s32.f32 %v6218
      %v6226 = vmul.f32 %v6225, %v6223
      %v6227 = vxor.u32 %v6226, 2147483648
      %v6228 = vsel %vm6145, %v6227, %v6226
      %v6229 = vsub.s32 4, %v6205
      %v6230 = vsel %vm6145, %v6229, %v6205
      %v6231 = vsel %vm6144, %v3773, %v6228
      %v6232 = vsel %vm6144, 0, %v6230
      %v6233 = vcosq.f32.pop %v6231
      %v6234 = vsinq.f32.pop %v6231
      %vm6235 = vweird.f32 %v3773
      %v6236 = vadd.s32 %v6232, 3
      %v6237 = vand.u32 %v6236, 3
      %vm6238 = vcmp.lt.s32.totalorder %v6237, 2
      %vm6239 = vcmp.eq.s32.totalorder %v6237, 0
      %v6240 = vxor.u32 %v6234, 2147483648
      %v6241 = vsel %vm6239, %v6233, %v6240
      %vm6242 = vcmp.eq.s32.totalorder %v6237, 2
      %v6243 = vxor.u32 %v6233, 2147483648
      %v6244 = vsel %vm6242, %v6243, %v6234
      %v6245 = vsel %vm6238, %v6241, %v6244
      %v6246 = vsel %vm6235, nan, %v6245
      %v6247 = vand.u32 2147483647, %v4773
      %vm6248 = vcmp.le.f32.partialorder %v6247, 0.7853982
      %vm6249 = vcmp.lt.s32.totalorder %v4773, 0
      %v6250 = vand.u32 %v4773, 2139095040
      %v6251 = vshrl.u32 %v6250, 23
      %v6252 = vsub.s32 %v6251, 127
      %v6253 = vand.u32 2147483647, %v4773
      %v6254 = vand.u32 %v6253, 8388607
      %v6255 = vor.u32 %v6254, 8388608
      %v6256 = vsub.s32 0, %v6255
      %v6257 = vadd.s32 %v6252, 1
      %vm6258 = vcmp.gt.s32.totalorder %v6257, 0
      %v6259 = vsel %vm6258, %v6257, 0
      %v6260 = vshrl.u32 %v6259, 5
      %v6261 = vand.u32 %v6259, 31
      %v6262 = vsub.s32 32, %v6261
      %v6263 = vshrl.u32 683565275, %v6262
      %v6264 = vshll.u32 683565275, %v6261
      %v6265 = vshrl.u32 2475754826, %v6262
      %v6266 = vor.u32 %v6264, %v6265
      %v6267 = vshll.u32 2475754826, %v6261
      %v6268 = vshrl.u32 2131351028, %v6262
      %v6269 = vor.u32 %v6267, %v6268
      %v6270 = vshll.u32 2131351028, %v6261
      %v6271 = vshrl.u32 2102212464, %v6262
      %v6272 = vor.u32 %v6270, %v6271
      %v6273 = vshll.u32 2102212464, %v6261
      %v6274 = vshrl.u32 920167782, %v6262
      %v6275 = vor.u32 %v6273, %v6274
      %v6276 = vshll.u32 920167782, %v6261
      %v6277 = vshrl.u32 1326507024, %v6262
      %v6278 = vor.u32 %v6276, %v6277
      %vm6279 = vcmp.lt.s32.totalorder %v6260, 1
      %vm6280 = vcmp.lt.s32.totalorder %v6260, 2
      %vm6281 = vcmp.lt.s32.totalorder %v6260, 3
      %vm6282 = vcmp.lt.s32.totalorder %v6260, 4
      %v6283 = vsel %vm6279, %v6263, %v6266
      %v6284 = vsel %vm6282, %v6272, 2102212464
      %v6285 = vsel %vm6281, %v6269, %v6284
      %v6286 = vsel %vm6280, %v6283, %v6285
      %v6287 = vsel %vm6279, %v6266, %v6269
      %v6288 = vsel %vm6282, %v6275, 920167782
      %v6289 = vsel %vm6281, %v6272, %v6288
      %v6290 = vsel %vm6280, %v6287, %v6289
      %v6291 = vsel %vm6279, %v6269, %v6272
      %v6292 = vsel %vm6282, %v6278, 1326507024
      %v6293 = vsel %vm6281, %v6275, %v6292
      %v6294 = vsel %vm6280, %v6291, %v6293
      %v6295 = vshll.u32 %v6255, 8
      %v6296 = vmul.u32.u64.compose %v6295, %v6294
      %v6297 = vextract.low.u32 %v6296
      %v6298 = vextract.high.u32 %v6296
      %v6299 = vmul.u32.u64.compose %v6295, %v6290
      %v6300 = vextract.low.u32 %v6299
      %v6301 = vextract.high.u32 %v6299
      %v6302 = vmul.u32 %v6295, %v6286
      %v6303 = vadd.s32 %v6298, %v6300
      %vm6304 = vc.u32 %v6298, %v6300
      %v6305 = vadd.s32 %v6301, 1
      %v6306 = vsel %vm6304, %v6305, %v6301
      %v6307 = vadd.s32 %v6302, %v6306
      %v6308 = vadd.s32 %v6307, 536870912
      %v6309 = vshrl.u32 %v6308, 30
      %v6310 = vshll.u32 %v6309, 30
      %v6311 = vsub.s32 %v6307, %v6310
      %vm6312 = vcmp.lt.s32.totalorder %v6311, 0
      %v6313 = vsub.s32 0, %v6311
      %v6314 = vsel %vm6312, %v6313, %v6311
      %v6315 = vclz %v6314
      %v6316 = vsub.s32 %v6315, 2
      %vm6317 = vcmp.gt.s32.totalorder 0, %v6316
      %v6318 = vsel %vm6317, 0, %v6316
      %v6319 = vsub.s32 32, %v6318
      %v6320 = vshll.u32 %v6311, %v6318
      %v6321 = vshrl.u32 %v6303, %v6319
      %v6322 = vor.u32 %v6320, %v6321
      %v6323 = vsub.s32 4294967266, %v6318
      %v6324 = vadd.s32 %v6323, 127
      %v6325 = vshll.u32 %v6324, 23
      %v6326 = vor.u32 4788187, %v6325
      %v6327 = vand.u32 2147483647, %v6326
      %v6329 = vcvt.s32.f32 %v6322
      %v6330 = vmul.f32 %v6329, %v6327
      %v6331 = vxor.u32 %v6330, 2147483648
      %v6332 = vsel %vm6249, %v6331, %v6330
      %v6333 = vsub.s32 4, %v6309
      %v6334 = vsel %vm6249, %v6333, %v6309
      %v6335 = vsel %vm6248, %v4773, %v6332
      %v6336 = vsel %vm6248, 0, %v6334
      %v6337 = vcosq.f32.pop %v6335
      %v6338 = vsinq.f32.pop %v6335
      %vm6339 = vweird.f32 %v4773
      %v6340 = vadd.s32 %v6336, 3
      %v6341 = vand.u32 %v6340, 3
      %vm6342 = vcmp.lt.s32.totalorder %v6341, 2
      %vm6343 = vcmp.eq.s32.totalorder %v6341, 0
      %v6344 = vxor.u32 %v6338, 2147483648
      %v6345 = vsel %vm6343, %v6337, %v6344
      %vm6346 = vcmp.eq.s32.totalorder %v6341, 2
      %v6347 = vxor.u32 %v6337, 2147483648
      %v6348 = vsel %vm6346, %v6347, %v6338
      %v6349 = vsel %vm6342, %v6345, %v6348
      %v6350 = vsel %vm6339, nan, %v6349
      %v6351 = vand.u32 2147483647, %v4775
      %vm6352 = vcmp.le.f32.partialorder %v6351, 0.7853982
      %vm6353 = vcmp.lt.s32.totalorder %v4775, 0
      %v6354 = vand.u32 %v4775, 2139095040
      %v6355 = vshrl.u32 %v6354, 23
      %v6356 = vsub.s32 %v6355, 127
      %v6357 = vand.u32 2147483647, %v4775
      %v6358 = vand.u32 %v6357, 8388607
      %v6359 = vor.u32 %v6358, 8388608
      %v6360 = vsub.s32 0, %v6359
      %v6361 = vadd.s32 %v6356, 1
      %vm6362 = vcmp.gt.s32.totalorder %v6361, 0
      %v6363 = vsel %vm6362, %v6361, 0
      %v6364 = vshrl.u32 %v6363, 5
      %v6365 = vand.u32 %v6363, 31
      %v6366 = vsub.s32 32, %v6365
      %v6367 = vshrl.u32 683565275, %v6366
      %v6368 = vshll.u32 683565275, %v6365
      %v6369 = vshrl.u32 2475754826, %v6366
      %v6370 = vor.u32 %v6368, %v6369
      %v6371 = vshll.u32 2475754826, %v6365
      %v6372 = vshrl.u32 2131351028, %v6366
      %v6373 = vor.u32 %v6371, %v6372
      %v6374 = vshll.u32 2131351028, %v6365
      %v6375 = vshrl.u32 2102212464, %v6366
      %v6376 = vor.u32 %v6374, %v6375
      %v6377 = vshll.u32 2102212464, %v6365
      %v6378 = vshrl.u32 920167782, %v6366
      %v6379 = vor.u32 %v6377, %v6378
      %v6380 = vshll.u32 920167782, %v6365
      %v6381 = vshrl.u32 1326507024, %v6366
      %v6382 = vor.u32 %v6380, %v6381
      %vm6383 = vcmp.lt.s32.totalorder %v6364, 1
      %vm6384 = vcmp.lt.s32.totalorder %v6364, 2
      %vm6385 = vcmp.lt.s32.totalorder %v6364, 3
      %vm6386 = vcmp.lt.s32.totalorder %v6364, 4
      %v6387 = vsel %vm6383, %v6367, %v6370
      %v6388 = vsel %vm6386, %v6376, 2102212464
      %v6389 = vsel %vm6385, %v6373, %v6388
      %v6390 = vsel %vm6384, %v6387, %v6389
      %v6391 = vsel %vm6383, %v6370, %v6373
      %v6392 = vsel %vm6386, %v6379, 920167782
      %v6393 = vsel %vm6385, %v6376, %v6392
      %v6394 = vsel %vm6384, %v6391, %v6393
      %v6395 = vsel %vm6383, %v6373, %v6376
      %v6396 = vsel %vm6386, %v6382, 1326507024
      %v6397 = vsel %vm6385, %v6379, %v6396
      %v6398 = vsel %vm6384, %v6395, %v6397
      %v6399 = vshll.u32 %v6359, 8
      %v6400 = vmul.u32.u64.compose %v6399, %v6398
      %v6401 = vextract.low.u32 %v6400
      %v6402 = vextract.high.u32 %v6400
      %v6403 = vmul.u32.u64.compose %v6399, %v6394
      %v6404 = vextract.low.u32 %v6403
      %v6405 = vextract.high.u32 %v6403
      %v6406 = vmul.u32 %v6399, %v6390
      %v6407 = vadd.s32 %v6402, %v6404
      %vm6408 = vc.u32 %v6402, %v6404
      %v6409 = vadd.s32 %v6405, 1
      %v6410 = vsel %vm6408, %v6409, %v6405
      %v6411 = vadd.s32 %v6406, %v6410
      %v6412 = vadd.s32 %v6411, 536870912
      %v6413 = vshrl.u32 %v6412, 30
      %v6414 = vshll.u32 %v6413, 30
      %v6415 = vsub.s32 %v6411, %v6414
      %vm6416 = vcmp.lt.s32.totalorder %v6415, 0
      %v6417 = vsub.s32 0, %v6415
      %v6418 = vsel %vm6416, %v6417, %v6415
      %v6419 = vclz %v6418
      %v6420 = vsub.s32 %v6419, 2
      %vm6421 = vcmp.gt.s32.totalorder 0, %v6420
      %v6422 = vsel %vm6421, 0, %v6420
      %v6423 = vsub.s32 32, %v6422
      %v6424 = vshll.u32 %v6415, %v6422
      %v6425 = vshrl.u32 %v6407, %v6423
      %v6426 = vor.u32 %v6424, %v6425
      %v6427 = vsub.s32 4294967266, %v6422
      %v6428 = vadd.s32 %v6427, 127
      %v6429 = vshll.u32 %v6428, 23
      %v6430 = vor.u32 4788187, %v6429
      %v6431 = vand.u32 2147483647, %v6430
      %v6433 = vcvt.s32.f32 %v6426
      %v6434 = vmul.f32 %v6433, %v6431
      %v6435 = vxor.u32 %v6434, 2147483648
      %v6436 = vsel %vm6353, %v6435, %v6434
      %v6437 = vsub.s32 4, %v6413
      %v6438 = vsel %vm6353, %v6437, %v6413
      %v6439 = vsel %vm6352, %v4775, %v6436
      %v6440 = vsel %vm6352, 0, %v6438
      %v6441 = vcosq.f32.pop %v6439
      %v6442 = vsinq.f32.pop %v6439
      %vm6443 = vweird.f32 %v4775
      %v6444 = vadd.s32 %v6440, 3
      %v6445 = vand.u32 %v6444, 3
      %vm6446 = vcmp.lt.s32.totalorder %v6445, 2
      %vm6447 = vcmp.eq.s32.totalorder %v6445, 0
      %v6448 = vxor.u32 %v6442, 2147483648
      %v6449 = vsel %vm6447, %v6441, %v6448
      %vm6450 = vcmp.eq.s32.totalorder %v6445, 2
      %v6451 = vxor.u32 %v6441, 2147483648
      %v6452 = vsel %vm6450, %v6451, %v6442
      %v6453 = vsel %vm6446, %v6449, %v6452
      %v6454 = vsel %vm6443, nan, %v6453
      %v6455 = vand.u32 2147483647, %v1774
      %vm6456 = vcmp.le.f32.partialorder %v6455, 0.7853982
      %vm6457 = vcmp.lt.s32.totalorder %v1774, 0
      %v6458 = vand.u32 %v1774, 2139095040
      %v6459 = vshrl.u32 %v6458, 23
      %v6460 = vsub.s32 %v6459, 127
      %v6461 = vand.u32 2147483647, %v1774
      %v6462 = vand.u32 %v6461, 8388607
      %v6463 = vor.u32 %v6462, 8388608
      %v6464 = vsub.s32 0, %v6463
      %v6465 = vadd.s32 %v6460, 1
      %vm6466 = vcmp.gt.s32.totalorder %v6465, 0
      %v6467 = vsel %vm6466, %v6465, 0
      %v6468 = vshrl.u32 %v6467, 5
      %v6469 = vand.u32 %v6467, 31
      %v6470 = vsub.s32 32, %v6469
      %v6471 = vshrl.u32 683565275, %v6470
      %v6472 = vshll.u32 683565275, %v6469
      %v6473 = vshrl.u32 2475754826, %v6470
      %v6474 = vor.u32 %v6472, %v6473
      %v6475 = vshll.u32 2475754826, %v6469
      %v6476 = vshrl.u32 2131351028, %v6470
      %v6477 = vor.u32 %v6475, %v6476
      %v6478 = vshll.u32 2131351028, %v6469
      %v6479 = vshrl.u32 2102212464, %v6470
      %v6480 = vor.u32 %v6478, %v6479
      %v6481 = vshll.u32 2102212464, %v6469
      %v6482 = vshrl.u32 920167782, %v6470
      %v6483 = vor.u32 %v6481, %v6482
      %v6484 = vshll.u32 920167782, %v6469
      %v6485 = vshrl.u32 1326507024, %v6470
      %v6486 = vor.u32 %v6484, %v6485
      %vm6487 = vcmp.lt.s32.totalorder %v6468, 1
      %vm6488 = vcmp.lt.s32.totalorder %v6468, 2
      %vm6489 = vcmp.lt.s32.totalorder %v6468, 3
      %vm6490 = vcmp.lt.s32.totalorder %v6468, 4
      %v6491 = vsel %vm6487, %v6471, %v6474
      %v6492 = vsel %vm6490, %v6480, 2102212464
      %v6493 = vsel %vm6489, %v6477, %v6492
      %v6494 = vsel %vm6488, %v6491, %v6493
      %v6495 = vsel %vm6487, %v6474, %v6477
      %v6496 = vsel %vm6490, %v6483, 920167782
      %v6497 = vsel %vm6489, %v6480, %v6496
      %v6498 = vsel %vm6488, %v6495, %v6497
      %v6499 = vsel %vm6487, %v6477, %v6480
      %v6500 = vsel %vm6490, %v6486, 1326507024
      %v6501 = vsel %vm6489, %v6483, %v6500
      %v6502 = vsel %vm6488, %v6499, %v6501
      %v6503 = vshll.u32 %v6463, 8
      %v6504 = vmul.u32.u64.compose %v6503, %v6502
      %v6505 = vextract.low.u32 %v6504
      %v6506 = vextract.high.u32 %v6504
      %v6507 = vmul.u32.u64.compose %v6503, %v6498
      %v6508 = vextract.low.u32 %v6507
      %v6509 = vextract.high.u32 %v6507
      %v6510 = vmul.u32 %v6503, %v6494
      %v6511 = vadd.s32 %v6506, %v6508
      %vm6512 = vc.u32 %v6506, %v6508
      %v6513 = vadd.s32 %v6509, 1
      %v6514 = vsel %vm6512, %v6513, %v6509
      %v6515 = vadd.s32 %v6510, %v6514
      %v6516 = vadd.s32 %v6515, 536870912
      %v6517 = vshrl.u32 %v6516, 30
      %v6518 = vshll.u32 %v6517, 30
      %v6519 = vsub.s32 %v6515, %v6518
      %vm6520 = vcmp.lt.s32.totalorder %v6519, 0
      %v6521 = vsub.s32 0, %v6519
      %v6522 = vsel %vm6520, %v6521, %v6519
      %v6523 = vclz %v6522
      %v6524 = vsub.s32 %v6523, 2
      %vm6525 = vcmp.gt.s32.totalorder 0, %v6524
      %v6526 = vsel %vm6525, 0, %v6524
      %v6527 = vsub.s32 32, %v6526
      %v6528 = vshll.u32 %v6519, %v6526
      %v6529 = vshrl.u32 %v6511, %v6527
      %v6530 = vor.u32 %v6528, %v6529
      %v6531 = vsub.s32 4294967266, %v6526
      %v6532 = vadd.s32 %v6531, 127
      %v6533 = vshll.u32 %v6532, 23
      %v6534 = vor.u32 4788187, %v6533
      %v6535 = vand.u32 2147483647, %v6534
      %v6537 = vcvt.s32.f32 %v6530
      %v6538 = vmul.f32 %v6537, %v6535
      %v6539 = vxor.u32 %v6538, 2147483648
      %v6540 = vsel %vm6457, %v6539, %v6538
      %v6541 = vsub.s32 4, %v6517
      %v6542 = vsel %vm6457, %v6541, %v6517
      %v6543 = vsel %vm6456, %v1774, %v6540
      %v6544 = vsel %vm6456, 0, %v6542
      %v6545 = vcosq.f32.pop %v6543
      %v6546 = vsinq.f32.pop %v6543
      %vm6547 = vweird.f32 %v1774
      %v6548 = vadd.s32 %v6544, 3
      %v6549 = vand.u32 %v6548, 3
      %vm6550 = vcmp.lt.s32.totalorder %v6549, 2
      %vm6551 = vcmp.eq.s32.totalorder %v6549, 0
      %v6552 = vxor.u32 %v6546, 2147483648
      %v6553 = vsel %vm6551, %v6545, %v6552
      %vm6554 = vcmp.eq.s32.totalorder %v6549, 2
      %v6555 = vxor.u32 %v6545, 2147483648
      %v6556 = vsel %vm6554, %v6555, %v6546
      %v6557 = vsel %vm6550, %v6553, %v6556
      %v6558 = vsel %vm6547, nan, %v6557
      %v6559 = vand.u32 2147483647, %v1776
      %vm6560 = vcmp.le.f32.partialorder %v6559, 0.7853982
      %vm6561 = vcmp.lt.s32.totalorder %v1776, 0
      %v6562 = vand.u32 %v1776, 2139095040
      %v6563 = vshrl.u32 %v6562, 23
      %v6564 = vsub.s32 %v6563, 127
      %v6565 = vand.u32 2147483647, %v1776
      %v6566 = vand.u32 %v6565, 8388607
      %v6567 = vor.u32 %v6566, 8388608
      %v6568 = vsub.s32 0, %v6567
      %v6569 = vadd.s32 %v6564, 1
      %vm6570 = vcmp.gt.s32.totalorder %v6569, 0
      %v6571 = vsel %vm6570, %v6569, 0
      %v6572 = vshrl.u32 %v6571, 5
      %v6573 = vand.u32 %v6571, 31
      %v6574 = vsub.s32 32, %v6573
      %v6575 = vshrl.u32 683565275, %v6574
      %v6576 = vshll.u32 683565275, %v6573
      %v6577 = vshrl.u32 2475754826, %v6574
      %v6578 = vor.u32 %v6576, %v6577
      %v6579 = vshll.u32 2475754826, %v6573
      %v6580 = vshrl.u32 2131351028, %v6574
      %v6581 = vor.u32 %v6579, %v6580
      %v6582 = vshll.u32 2131351028, %v6573
      %v6583 = vshrl.u32 2102212464, %v6574
      %v6584 = vor.u32 %v6582, %v6583
      %v6585 = vshll.u32 2102212464, %v6573
      %v6586 = vshrl.u32 920167782, %v6574
      %v6587 = vor.u32 %v6585, %v6586
      %v6588 = vshll.u32 920167782, %v6573
      %v6589 = vshrl.u32 1326507024, %v6574
      %v6590 = vor.u32 %v6588, %v6589
      %vm6591 = vcmp.lt.s32.totalorder %v6572, 1
      %vm6592 = vcmp.lt.s32.totalorder %v6572, 2
      %vm6593 = vcmp.lt.s32.totalorder %v6572, 3
      %vm6594 = vcmp.lt.s32.totalorder %v6572, 4
      %v6595 = vsel %vm6591, %v6575, %v6578
      %v6596 = vsel %vm6594, %v6584, 2102212464
      %v6597 = vsel %vm6593, %v6581, %v6596
      %v6598 = vsel %vm6592, %v6595, %v6597
      %v6599 = vsel %vm6591, %v6578, %v6581
      %v6600 = vsel %vm6594, %v6587, 920167782
      %v6601 = vsel %vm6593, %v6584, %v6600
      %v6602 = vsel %vm6592, %v6599, %v6601
      %v6603 = vsel %vm6591, %v6581, %v6584
      %v6604 = vsel %vm6594, %v6590, 1326507024
      %v6605 = vsel %vm6593, %v6587, %v6604
      %v6606 = vsel %vm6592, %v6603, %v6605
      %v6607 = vshll.u32 %v6567, 8
      %v6608 = vmul.u32.u64.compose %v6607, %v6606
      %v6609 = vextract.low.u32 %v6608
      %v6610 = vextract.high.u32 %v6608
      %v6611 = vmul.u32.u64.compose %v6607, %v6602
      %v6612 = vextract.low.u32 %v6611
      %v6613 = vextract.high.u32 %v6611
      %v6614 = vmul.u32 %v6607, %v6598
      %v6615 = vadd.s32 %v6610, %v6612
      %vm6616 = vc.u32 %v6610, %v6612
      %v6617 = vadd.s32 %v6613, 1
      %v6618 = vsel %vm6616, %v6617, %v6613
      %v6619 = vadd.s32 %v6614, %v6618
      %v6620 = vadd.s32 %v6619, 536870912
      %v6621 = vshrl.u32 %v6620, 30
      %v6622 = vshll.u32 %v6621, 30
      %v6623 = vsub.s32 %v6619, %v6622
      %vm6624 = vcmp.lt.s32.totalorder %v6623, 0
      %v6625 = vsub.s32 0, %v6623
      %v6626 = vsel %vm6624, %v6625, %v6623
      %v6627 = vclz %v6626
      %v6628 = vsub.s32 %v6627, 2
      %vm6629 = vcmp.gt.s32.totalorder 0, %v6628
      %v6630 = vsel %vm6629, 0, %v6628
      %v6631 = vsub.s32 32, %v6630
      %v6632 = vshll.u32 %v6623, %v6630
      %v6633 = vshrl.u32 %v6615, %v6631
      %v6634 = vor.u32 %v6632, %v6633
      %v6635 = vsub.s32 4294967266, %v6630
      %v6636 = vadd.s32 %v6635, 127
      %v6637 = vshll.u32 %v6636, 23
      %v6638 = vor.u32 4788187, %v6637
      %v6639 = vand.u32 2147483647, %v6638
      %v6641 = vcvt.s32.f32 %v6634
      %v6642 = vmul.f32 %v6641, %v6639
      %v6643 = vxor.u32 %v6642, 2147483648
      %v6644 = vsel %vm6561, %v6643, %v6642
      %v6645 = vsub.s32 4, %v6621
      %v6646 = vsel %vm6561, %v6645, %v6621
      %v6647 = vsel %vm6560, %v1776, %v6644
      %v6648 = vsel %vm6560, 0, %v6646
      %v6649 = vcosq.f32.pop %v6647
      %v6650 = vsinq.f32.pop %v6647
      %vm6651 = vweird.f32 %v1776
      %v6652 = vadd.s32 %v6648, 3
      %v6653 = vand.u32 %v6652, 3
      %vm6654 = vcmp.lt.s32.totalorder %v6653, 2
      %vm6655 = vcmp.eq.s32.totalorder %v6653, 0
      %v6656 = vxor.u32 %v6650, 2147483648
      %v6657 = vsel %vm6655, %v6649, %v6656
      %vm6658 = vcmp.eq.s32.totalorder %v6653, 2
      %v6659 = vxor.u32 %v6649, 2147483648
      %v6660 = vsel %vm6658, %v6659, %v6650
      %v6661 = vsel %vm6654, %v6657, %v6660
      %v6662 = vsel %vm6651, nan, %v6661
      %v6663 = vand.u32 2147483647, %v2776
      %vm6664 = vcmp.le.f32.partialorder %v6663, 0.7853982
      %vm6665 = vcmp.lt.s32.totalorder %v2776, 0
      %v6666 = vand.u32 %v2776, 2139095040
      %v6667 = vshrl.u32 %v6666, 23
      %v6668 = vsub.s32 %v6667, 127
      %v6669 = vand.u32 2147483647, %v2776
      %v6670 = vand.u32 %v6669, 8388607
      %v6671 = vor.u32 %v6670, 8388608
      %v6672 = vsub.s32 0, %v6671
      %v6673 = vadd.s32 %v6668, 1
      %vm6674 = vcmp.gt.s32.totalorder %v6673, 0
      %v6675 = vsel %vm6674, %v6673, 0
      %v6676 = vshrl.u32 %v6675, 5
      %v6677 = vand.u32 %v6675, 31
      %v6678 = vsub.s32 32, %v6677
      %v6679 = vshrl.u32 683565275, %v6678
      %v6680 = vshll.u32 683565275, %v6677
      %v6681 = vshrl.u32 2475754826, %v6678
      %v6682 = vor.u32 %v6680, %v6681
      %v6683 = vshll.u32 2475754826, %v6677
      %v6684 = vshrl.u32 2131351028, %v6678
      %v6685 = vor.u32 %v6683, %v6684
      %v6686 = vshll.u32 2131351028, %v6677
      %v6687 = vshrl.u32 2102212464, %v6678
      %v6688 = vor.u32 %v6686, %v6687
      %v6689 = vshll.u32 2102212464, %v6677
      %v6690 = vshrl.u32 920167782, %v6678
      %v6691 = vor.u32 %v6689, %v6690
      %v6692 = vshll.u32 920167782, %v6677
      %v6693 = vshrl.u32 1326507024, %v6678
      %v6694 = vor.u32 %v6692, %v6693
      %vm6695 = vcmp.lt.s32.totalorder %v6676, 1
      %vm6696 = vcmp.lt.s32.totalorder %v6676, 2
      %vm6697 = vcmp.lt.s32.totalorder %v6676, 3
      %vm6698 = vcmp.lt.s32.totalorder %v6676, 4
      %v6699 = vsel %vm6695, %v6679, %v6682
      %v6700 = vsel %vm6698, %v6688, 2102212464
      %v6701 = vsel %vm6697, %v6685, %v6700
      %v6702 = vsel %vm6696, %v6699, %v6701
      %v6703 = vsel %vm6695, %v6682, %v6685
      %v6704 = vsel %vm6698, %v6691, 920167782
      %v6705 = vsel %vm6697, %v6688, %v6704
      %v6706 = vsel %vm6696, %v6703, %v6705
      %v6707 = vsel %vm6695, %v6685, %v6688
      %v6708 = vsel %vm6698, %v6694, 1326507024
      %v6709 = vsel %vm6697, %v6691, %v6708
      %v6710 = vsel %vm6696, %v6707, %v6709
      %v6711 = vshll.u32 %v6671, 8
      %v6712 = vmul.u32.u64.compose %v6711, %v6710
      %v6713 = vextract.low.u32 %v6712
      %v6714 = vextract.high.u32 %v6712
      %v6715 = vmul.u32.u64.compose %v6711, %v6706
      %v6716 = vextract.low.u32 %v6715
      %v6717 = vextract.high.u32 %v6715
      %v6718 = vmul.u32 %v6711, %v6702
      %v6719 = vadd.s32 %v6714, %v6716
      %vm6720 = vc.u32 %v6714, %v6716
      %v6721 = vadd.s32 %v6717, 1
      %v6722 = vsel %vm6720, %v6721, %v6717
      %v6723 = vadd.s32 %v6718, %v6722
      %v6724 = vadd.s32 %v6723, 536870912
      %v6725 = vshrl.u32 %v6724, 30
      %v6726 = vshll.u32 %v6725, 30
      %v6727 = vsub.s32 %v6723, %v6726
      %vm6728 = vcmp.lt.s32.totalorder %v6727, 0
      %v6729 = vsub.s32 0, %v6727
      %v6730 = vsel %vm6728, %v6729, %v6727
      %v6731 = vclz %v6730
      %v6732 = vsub.s32 %v6731, 2
      %vm6733 = vcmp.gt.s32.totalorder 0, %v6732
      %v6734 = vsel %vm6733, 0, %v6732
      %v6735 = vsub.s32 32, %v6734
      %v6736 = vshll.u32 %v6727, %v6734
      %v6737 = vshrl.u32 %v6719, %v6735
      %v6738 = vor.u32 %v6736, %v6737
      %v6739 = vsub.s32 4294967266, %v6734
      %v6740 = vadd.s32 %v6739, 127
      %v6741 = vshll.u32 %v6740, 23
      %v6742 = vor.u32 4788187, %v6741
      %v6743 = vand.u32 2147483647, %v6742
      %v6745 = vcvt.s32.f32 %v6738
      %v6746 = vmul.f32 %v6745, %v6743
      %v6747 = vxor.u32 %v6746, 2147483648
      %v6748 = vsel %vm6665, %v6747, %v6746
      %v6749 = vsub.s32 4, %v6725
      %v6750 = vsel %vm6665, %v6749, %v6725
      %v6751 = vsel %vm6664, %v2776, %v6748
      %v6752 = vsel %vm6664, 0, %v6750
      %v6753 = vcosq.f32.pop %v6751
      %v6754 = vsinq.f32.pop %v6751
      %vm6755 = vweird.f32 %v2776
      %v6756 = vadd.s32 %v6752, 3
      %v6757 = vand.u32 %v6756, 3
      %vm6758 = vcmp.lt.s32.totalorder %v6757, 2
      %vm6759 = vcmp.eq.s32.totalorder %v6757, 0
      %v6760 = vxor.u32 %v6754, 2147483648
      %v6761 = vsel %vm6759, %v6753, %v6760
      %vm6762 = vcmp.eq.s32.totalorder %v6757, 2
      %v6763 = vxor.u32 %v6753, 2147483648
      %v6764 = vsel %vm6762, %v6763, %v6754
      %v6765 = vsel %vm6758, %v6761, %v6764
      %v6766 = vsel %vm6755, nan, %v6765
      %v6767 = vand.u32 2147483647, %v2778
      %vm6768 = vcmp.le.f32.partialorder %v6767, 0.7853982
      %vm6769 = vcmp.lt.s32.totalorder %v2778, 0
      %v6770 = vand.u32 %v2778, 2139095040
      %v6771 = vshrl.u32 %v6770, 23
      %v6772 = vsub.s32 %v6771, 127
      %v6773 = vand.u32 2147483647, %v2778
      %v6774 = vand.u32 %v6773, 8388607
      %v6775 = vor.u32 %v6774, 8388608
      %v6776 = vsub.s32 0, %v6775
      %v6777 = vadd.s32 %v6772, 1
      %vm6778 = vcmp.gt.s32.totalorder %v6777, 0
      %v6779 = vsel %vm6778, %v6777, 0
      %v6780 = vshrl.u32 %v6779, 5
      %v6781 = vand.u32 %v6779, 31
      %v6782 = vsub.s32 32, %v6781
      %v6783 = vshrl.u32 683565275, %v6782
      %v6784 = vshll.u32 683565275, %v6781
      %v6785 = vshrl.u32 2475754826, %v6782
      %v6786 = vor.u32 %v6784, %v6785
      %v6787 = vshll.u32 2475754826, %v6781
      %v6788 = vshrl.u32 2131351028, %v6782
      %v6789 = vor.u32 %v6787, %v6788
      %v6790 = vshll.u32 2131351028, %v6781
      %v6791 = vshrl.u32 2102212464, %v6782
      %v6792 = vor.u32 %v6790, %v6791
      %v6793 = vshll.u32 2102212464, %v6781
      %v6794 = vshrl.u32 920167782, %v6782
      %v6795 = vor.u32 %v6793, %v6794
      %v6796 = vshll.u32 920167782, %v6781
      %v6797 = vshrl.u32 1326507024, %v6782
      %v6798 = vor.u32 %v6796, %v6797
      %vm6799 = vcmp.lt.s32.totalorder %v6780, 1
      %vm6800 = vcmp.lt.s32.totalorder %v6780, 2
      %vm6801 = vcmp.lt.s32.totalorder %v6780, 3
      %vm6802 = vcmp.lt.s32.totalorder %v6780, 4
      %v6803 = vsel %vm6799, %v6783, %v6786
      %v6804 = vsel %vm6802, %v6792, 2102212464
      %v6805 = vsel %vm6801, %v6789, %v6804
      %v6806 = vsel %vm6800, %v6803, %v6805
      %v6807 = vsel %vm6799, %v6786, %v6789
      %v6808 = vsel %vm6802, %v6795, 920167782
      %v6809 = vsel %vm6801, %v6792, %v6808
      %v6810 = vsel %vm6800, %v6807, %v6809
      %v6811 = vsel %vm6799, %v6789, %v6792
      %v6812 = vsel %vm6802, %v6798, 1326507024
      %v6813 = vsel %vm6801, %v6795, %v6812
      %v6814 = vsel %vm6800, %v6811, %v6813
      %v6815 = vshll.u32 %v6775, 8
      %v6816 = vmul.u32.u64.compose %v6815, %v6814
      %v6817 = vextract.low.u32 %v6816
      %v6818 = vextract.high.u32 %v6816
      %v6819 = vmul.u32.u64.compose %v6815, %v6810
      %v6820 = vextract.low.u32 %v6819
      %v6821 = vextract.high.u32 %v6819
      %v6822 = vmul.u32 %v6815, %v6806
      %v6823 = vadd.s32 %v6818, %v6820
      %vm6824 = vc.u32 %v6818, %v6820
      %v6825 = vadd.s32 %v6821, 1
      %v6826 = vsel %vm6824, %v6825, %v6821
      %v6827 = vadd.s32 %v6822, %v6826
      %v6828 = vadd.s32 %v6827, 536870912
      %v6829 = vshrl.u32 %v6828, 30
      %v6830 = vshll.u32 %v6829, 30
      %v6831 = vsub.s32 %v6827, %v6830
      %vm6832 = vcmp.lt.s32.totalorder %v6831, 0
      %v6833 = vsub.s32 0, %v6831
      %v6834 = vsel %vm6832, %v6833, %v6831
      %v6835 = vclz %v6834
      %v6836 = vsub.s32 %v6835, 2
      %vm6837 = vcmp.gt.s32.totalorder 0, %v6836
      %v6838 = vsel %vm6837, 0, %v6836
      %v6839 = vsub.s32 32, %v6838
      %v6840 = vshll.u32 %v6831, %v6838
      %v6841 = vshrl.u32 %v6823, %v6839
      %v6842 = vor.u32 %v6840, %v6841
      %v6843 = vsub.s32 4294967266, %v6838
      %v6844 = vadd.s32 %v6843, 127
      %v6845 = vshll.u32 %v6844, 23
      %v6846 = vor.u32 4788187, %v6845
      %v6847 = vand.u32 2147483647, %v6846
      %v6849 = vcvt.s32.f32 %v6842
      %v6850 = vmul.f32 %v6849, %v6847
      %v6851 = vxor.u32 %v6850, 2147483648
      %v6852 = vsel %vm6769, %v6851, %v6850
      %v6853 = vsub.s32 4, %v6829
      %v6854 = vsel %vm6769, %v6853, %v6829
      %v6855 = vsel %vm6768, %v2778, %v6852
      %v6856 = vsel %vm6768, 0, %v6854
      %v6857 = vcosq.f32.pop %v6855
      %v6858 = vsinq.f32.pop %v6855
      %vm6859 = vweird.f32 %v2778
      %v6860 = vadd.s32 %v6856, 3
      %v6861 = vand.u32 %v6860, 3
      %vm6862 = vcmp.lt.s32.totalorder %v6861, 2
      %vm6863 = vcmp.eq.s32.totalorder %v6861, 0
      %v6864 = vxor.u32 %v6858, 2147483648
      %v6865 = vsel %vm6863, %v6857, %v6864
      %vm6866 = vcmp.eq.s32.totalorder %v6861, 2
      %v6867 = vxor.u32 %v6857, 2147483648
      %v6868 = vsel %vm6866, %v6867, %v6858
      %v6869 = vsel %vm6862, %v6865, %v6868
      %v6870 = vsel %vm6859, nan, %v6869
      %v6871 = vand.u32 2147483647, %v3778
      %vm6872 = vcmp.le.f32.partialorder %v6871, 0.7853982
      %vm6873 = vcmp.lt.s32.totalorder %v3778, 0
      %v6874 = vand.u32 %v3778, 2139095040
      %v6875 = vshrl.u32 %v6874, 23
      %v6876 = vsub.s32 %v6875, 127
      %v6877 = vand.u32 2147483647, %v3778
      %v6878 = vand.u32 %v6877, 8388607
      %v6879 = vor.u32 %v6878, 8388608
      %v6880 = vsub.s32 0, %v6879
      %v6881 = vadd.s32 %v6876, 1
      %vm6882 = vcmp.gt.s32.totalorder %v6881, 0
      %v6883 = vsel %vm6882, %v6881, 0
      %v6884 = vshrl.u32 %v6883, 5
      %v6885 = vand.u32 %v6883, 31
      %v6886 = vsub.s32 32, %v6885
      %v6887 = vshrl.u32 683565275, %v6886
      %v6888 = vshll.u32 683565275, %v6885
      %v6889 = vshrl.u32 2475754826, %v6886
      %v6890 = vor.u32 %v6888, %v6889
      %v6891 = vshll.u32 2475754826, %v6885
      %v6892 = vshrl.u32 2131351028, %v6886
      %v6893 = vor.u32 %v6891, %v6892
      %v6894 = vshll.u32 2131351028, %v6885
      %v6895 = vshrl.u32 2102212464, %v6886
      %v6896 = vor.u32 %v6894, %v6895
      %v6897 = vshll.u32 2102212464, %v6885
      %v6898 = vshrl.u32 920167782, %v6886
      %v6899 = vor.u32 %v6897, %v6898
      %v6900 = vshll.u32 920167782, %v6885
      %v6901 = vshrl.u32 1326507024, %v6886
      %v6902 = vor.u32 %v6900, %v6901
      %vm6903 = vcmp.lt.s32.totalorder %v6884, 1
      %vm6904 = vcmp.lt.s32.totalorder %v6884, 2
      %vm6905 = vcmp.lt.s32.totalorder %v6884, 3
      %vm6906 = vcmp.lt.s32.totalorder %v6884, 4
      %v6907 = vsel %vm6903, %v6887, %v6890
      %v6908 = vsel %vm6906, %v6896, 2102212464
      %v6909 = vsel %vm6905, %v6893, %v6908
      %v6910 = vsel %vm6904, %v6907, %v6909
      %v6911 = vsel %vm6903, %v6890, %v6893
      %v6912 = vsel %vm6906, %v6899, 920167782
      %v6913 = vsel %vm6905, %v6896, %v6912
      %v6914 = vsel %vm6904, %v6911, %v6913
      %v6915 = vsel %vm6903, %v6893, %v6896
      %v6916 = vsel %vm6906, %v6902, 1326507024
      %v6917 = vsel %vm6905, %v6899, %v6916
      %v6918 = vsel %vm6904, %v6915, %v6917
      %v6919 = vshll.u32 %v6879, 8
      %v6920 = vmul.u32.u64.compose %v6919, %v6918
      %v6921 = vextract.low.u32 %v6920
      %v6922 = vextract.high.u32 %v6920
      %v6923 = vmul.u32.u64.compose %v6919, %v6914
      %v6924 = vextract.low.u32 %v6923
      %v6925 = vextract.high.u32 %v6923
      %v6926 = vmul.u32 %v6919, %v6910
      %v6927 = vadd.s32 %v6922, %v6924
      %vm6928 = vc.u32 %v6922, %v6924
      %v6929 = vadd.s32 %v6925, 1
      %v6930 = vsel %vm6928, %v6929, %v6925
      %v6931 = vadd.s32 %v6926, %v6930
      %v6932 = vadd.s32 %v6931, 536870912
      %v6933 = vshrl.u32 %v6932, 30
      %v6934 = vshll.u32 %v6933, 30
      %v6935 = vsub.s32 %v6931, %v6934
      %vm6936 = vcmp.lt.s32.totalorder %v6935, 0
      %v6937 = vsub.s32 0, %v6935
      %v6938 = vsel %vm6936, %v6937, %v6935
      %v6939 = vclz %v6938
      %v6940 = vsub.s32 %v6939, 2
      %vm6941 = vcmp.gt.s32.totalorder 0, %v6940
      %v6942 = vsel %vm6941, 0, %v6940
      %v6943 = vsub.s32 32, %v6942
      %v6944 = vshll.u32 %v6935, %v6942
      %v6945 = vshrl.u32 %v6927, %v6943
      %v6946 = vor.u32 %v6944, %v6945
      %v6947 = vsub.s32 4294967266, %v6942
      %v6948 = vadd.s32 %v6947, 127
      %v6949 = vshll.u32 %v6948, 23
      %v6950 = vor.u32 4788187, %v6949
      %v6951 = vand.u32 2147483647, %v6950
      %v6953 = vcvt.s32.f32 %v6946
      %v6954 = vmul.f32 %v6953, %v6951
      %v6955 = vxor.u32 %v6954, 2147483648
      %v6956 = vsel %vm6873, %v6955, %v6954
      %v6957 = vsub.s32 4, %v6933
      %v6958 = vsel %vm6873, %v6957, %v6933
      %v6959 = vsel %vm6872, %v3778, %v6956
      %v6960 = vsel %vm6872, 0, %v6958
      %v6961 = vcosq.f32.pop %v6959
      %v6962 = vsinq.f32.pop %v6959
      %vm6963 = vweird.f32 %v3778
      %v6964 = vadd.s32 %v6960, 3
      %v6965 = vand.u32 %v6964, 3
      %vm6966 = vcmp.lt.s32.totalorder %v6965, 2
      %vm6967 = vcmp.eq.s32.totalorder %v6965, 0
      %v6968 = vxor.u32 %v6962, 2147483648
      %v6969 = vsel %vm6967, %v6961, %v6968
      %vm6970 = vcmp.eq.s32.totalorder %v6965, 2
      %v6971 = vxor.u32 %v6961, 2147483648
      %v6972 = vsel %vm6970, %v6971, %v6962
      %v6973 = vsel %vm6966, %v6969, %v6972
      %v6974 = vsel %vm6963, nan, %v6973
      %v6975 = vand.u32 2147483647, %v3780
      %vm6976 = vcmp.le.f32.partialorder %v6975, 0.7853982
      %vm6977 = vcmp.lt.s32.totalorder %v3780, 0
      %v6978 = vand.u32 %v3780, 2139095040
      %v6979 = vshrl.u32 %v6978, 23
      %v6980 = vsub.s32 %v6979, 127
      %v6981 = vand.u32 2147483647, %v3780
      %v6982 = vand.u32 %v6981, 8388607
      %v6983 = vor.u32 %v6982, 8388608
      %v6984 = vsub.s32 0, %v6983
      %v6985 = vadd.s32 %v6980, 1
      %vm6986 = vcmp.gt.s32.totalorder %v6985, 0
      %v6987 = vsel %vm6986, %v6985, 0
      %v6988 = vshrl.u32 %v6987, 5
      %v6989 = vand.u32 %v6987, 31
      %v6990 = vsub.s32 32, %v6989
      %v6991 = vshrl.u32 683565275, %v6990
      %v6992 = vshll.u32 683565275, %v6989
      %v6993 = vshrl.u32 2475754826, %v6990
      %v6994 = vor.u32 %v6992, %v6993
      %v6995 = vshll.u32 2475754826, %v6989
      %v6996 = vshrl.u32 2131351028, %v6990
      %v6997 = vor.u32 %v6995, %v6996
      %v6998 = vshll.u32 2131351028, %v6989
      %v6999 = vshrl.u32 2102212464, %v6990
      %v7000 = vor.u32 %v6998, %v6999
      %v7001 = vshll.u32 2102212464, %v6989
      %v7002 = vshrl.u32 920167782, %v6990
      %v7003 = vor.u32 %v7001, %v7002
      %v7004 = vshll.u32 920167782, %v6989
      %v7005 = vshrl.u32 1326507024, %v6990
      %v7006 = vor.u32 %v7004, %v7005
      %vm7007 = vcmp.lt.s32.totalorder %v6988, 1
      %vm7008 = vcmp.lt.s32.totalorder %v6988, 2
      %vm7009 = vcmp.lt.s32.totalorder %v6988, 3
      %vm7010 = vcmp.lt.s32.totalorder %v6988, 4
      %v7011 = vsel %vm7007, %v6991, %v6994
      %v7012 = vsel %vm7010, %v7000, 2102212464
      %v7013 = vsel %vm7009, %v6997, %v7012
      %v7014 = vsel %vm7008, %v7011, %v7013
      %v7015 = vsel %vm7007, %v6994, %v6997
      %v7016 = vsel %vm7010, %v7003, 920167782
      %v7017 = vsel %vm7009, %v7000, %v7016
      %v7018 = vsel %vm7008, %v7015, %v7017
      %v7019 = vsel %vm7007, %v6997, %v7000
      %v7020 = vsel %vm7010, %v7006, 1326507024
      %v7021 = vsel %vm7009, %v7003, %v7020
      %v7022 = vsel %vm7008, %v7019, %v7021
      %v7023 = vshll.u32 %v6983, 8
      %v7024 = vmul.u32.u64.compose %v7023, %v7022
      %v7025 = vextract.low.u32 %v7024
      %v7026 = vextract.high.u32 %v7024
      %v7027 = vmul.u32.u64.compose %v7023, %v7018
      %v7028 = vextract.low.u32 %v7027
      %v7029 = vextract.high.u32 %v7027
      %v7030 = vmul.u32 %v7023, %v7014
      %v7031 = vadd.s32 %v7026, %v7028
      %vm7032 = vc.u32 %v7026, %v7028
      %v7033 = vadd.s32 %v7029, 1
      %v7034 = vsel %vm7032, %v7033, %v7029
      %v7035 = vadd.s32 %v7030, %v7034
      %v7036 = vadd.s32 %v7035, 536870912
      %v7037 = vshrl.u32 %v7036, 30
      %v7038 = vshll.u32 %v7037, 30
      %v7039 = vsub.s32 %v7035, %v7038
      %vm7040 = vcmp.lt.s32.totalorder %v7039, 0
      %v7041 = vsub.s32 0, %v7039
      %v7042 = vsel %vm7040, %v7041, %v7039
      %v7043 = vclz %v7042
      %v7044 = vsub.s32 %v7043, 2
      %vm7045 = vcmp.gt.s32.totalorder 0, %v7044
      %v7046 = vsel %vm7045, 0, %v7044
      %v7047 = vsub.s32 32, %v7046
      %v7048 = vshll.u32 %v7039, %v7046
      %v7049 = vshrl.u32 %v7031, %v7047
      %v7050 = vor.u32 %v7048, %v7049
      %v7051 = vsub.s32 4294967266, %v7046
      %v7052 = vadd.s32 %v7051, 127
      %v7053 = vshll.u32 %v7052, 23
      %v7054 = vor.u32 4788187, %v7053
      %v7055 = vand.u32 2147483647, %v7054
      %v7057 = vcvt.s32.f32 %v7050
      %v7058 = vmul.f32 %v7057, %v7055
      %v7059 = vxor.u32 %v7058, 2147483648
      %v7060 = vsel %vm6977, %v7059, %v7058
      %v7061 = vsub.s32 4, %v7037
      %v7062 = vsel %vm6977, %v7061, %v7037
      %v7063 = vsel %vm6976, %v3780, %v7060
      %v7064 = vsel %vm6976, 0, %v7062
      %v7065 = vcosq.f32.pop %v7063
      %v7066 = vsinq.f32.pop %v7063
      %vm7067 = vweird.f32 %v3780
      %v7068 = vadd.s32 %v7064, 3
      %v7069 = vand.u32 %v7068, 3
      %vm7070 = vcmp.lt.s32.totalorder %v7069, 2
      %vm7071 = vcmp.eq.s32.totalorder %v7069, 0
      %v7072 = vxor.u32 %v7066, 2147483648
      %v7073 = vsel %vm7071, %v7065, %v7072
      %vm7074 = vcmp.eq.s32.totalorder %v7069, 2
      %v7075 = vxor.u32 %v7065, 2147483648
      %v7076 = vsel %vm7074, %v7075, %v7066
      %v7077 = vsel %vm7070, %v7073, %v7076
      %v7078 = vsel %vm7067, nan, %v7077
      %v7079 = vand.u32 2147483647, %v4780
      %vm7080 = vcmp.le.f32.partialorder %v7079, 0.7853982
      %vm7081 = vcmp.lt.s32.totalorder %v4780, 0
      %v7082 = vand.u32 %v4780, 2139095040
      %v7083 = vshrl.u32 %v7082, 23
      %v7084 = vsub.s32 %v7083, 127
      %v7085 = vand.u32 2147483647, %v4780
      %v7086 = vand.u32 %v7085, 8388607
      %v7087 = vor.u32 %v7086, 8388608
      %v7088 = vsub.s32 0, %v7087
      %v7089 = vadd.s32 %v7084, 1
      %vm7090 = vcmp.gt.s32.totalorder %v7089, 0
      %v7091 = vsel %vm7090, %v7089, 0
      %v7092 = vshrl.u32 %v7091, 5
      %v7093 = vand.u32 %v7091, 31
      %v7094 = vsub.s32 32, %v7093
      %v7095 = vshrl.u32 683565275, %v7094
      %v7096 = vshll.u32 683565275, %v7093
      %v7097 = vshrl.u32 2475754826, %v7094
      %v7098 = vor.u32 %v7096, %v7097
      %v7099 = vshll.u32 2475754826, %v7093
      %v7100 = vshrl.u32 2131351028, %v7094
      %v7101 = vor.u32 %v7099, %v7100
      %v7102 = vshll.u32 2131351028, %v7093
      %v7103 = vshrl.u32 2102212464, %v7094
      %v7104 = vor.u32 %v7102, %v7103
      %v7105 = vshll.u32 2102212464, %v7093
      %v7106 = vshrl.u32 920167782, %v7094
      %v7107 = vor.u32 %v7105, %v7106
      %v7108 = vshll.u32 920167782, %v7093
      %v7109 = vshrl.u32 1326507024, %v7094
      %v7110 = vor.u32 %v7108, %v7109
      %vm7111 = vcmp.lt.s32.totalorder %v7092, 1
      %vm7112 = vcmp.lt.s32.totalorder %v7092, 2
      %vm7113 = vcmp.lt.s32.totalorder %v7092, 3
      %vm7114 = vcmp.lt.s32.totalorder %v7092, 4
      %v7115 = vsel %vm7111, %v7095, %v7098
      %v7116 = vsel %vm7114, %v7104, 2102212464
      %v7117 = vsel %vm7113, %v7101, %v7116
      %v7118 = vsel %vm7112, %v7115, %v7117
      %v7119 = vsel %vm7111, %v7098, %v7101
      %v7120 = vsel %vm7114, %v7107, 920167782
      %v7121 = vsel %vm7113, %v7104, %v7120
      %v7122 = vsel %vm7112, %v7119, %v7121
      %v7123 = vsel %vm7111, %v7101, %v7104
      %v7124 = vsel %vm7114, %v7110, 1326507024
      %v7125 = vsel %vm7113, %v7107, %v7124
      %v7126 = vsel %vm7112, %v7123, %v7125
      %v7127 = vshll.u32 %v7087, 8
      %v7128 = vmul.u32.u64.compose %v7127, %v7126
      %v7129 = vextract.low.u32 %v7128
      %v7130 = vextract.high.u32 %v7128
      %v7131 = vmul.u32.u64.compose %v7127, %v7122
      %v7132 = vextract.low.u32 %v7131
      %v7133 = vextract.high.u32 %v7131
      %v7134 = vmul.u32 %v7127, %v7118
      %v7135 = vadd.s32 %v7130, %v7132
      %vm7136 = vc.u32 %v7130, %v7132
      %v7137 = vadd.s32 %v7133, 1
      %v7138 = vsel %vm7136, %v7137, %v7133
      %v7139 = vadd.s32 %v7134, %v7138
      %v7140 = vadd.s32 %v7139, 536870912
      %v7141 = vshrl.u32 %v7140, 30
      %v7142 = vshll.u32 %v7141, 30
      %v7143 = vsub.s32 %v7139, %v7142
      %vm7144 = vcmp.lt.s32.totalorder %v7143, 0
      %v7145 = vsub.s32 0, %v7143
      %v7146 = vsel %vm7144, %v7145, %v7143
      %v7147 = vclz %v7146
      %v7148 = vsub.s32 %v7147, 2
      %vm7149 = vcmp.gt.s32.totalorder 0, %v7148
      %v7150 = vsel %vm7149, 0, %v7148
      %v7151 = vsub.s32 32, %v7150
      %v7152 = vshll.u32 %v7143, %v7150
      %v7153 = vshrl.u32 %v7135, %v7151
      %v7154 = vor.u32 %v7152, %v7153
      %v7155 = vsub.s32 4294967266, %v7150
      %v7156 = vadd.s32 %v7155, 127
      %v7157 = vshll.u32 %v7156, 23
      %v7158 = vor.u32 4788187, %v7157
      %v7159 = vand.u32 2147483647, %v7158
      %v7161 = vcvt.s32.f32 %v7154
      %v7162 = vmul.f32 %v7161, %v7159
      %v7163 = vxor.u32 %v7162, 2147483648
      %v7164 = vsel %vm7081, %v7163, %v7162
      %v7165 = vsub.s32 4, %v7141
      %v7166 = vsel %vm7081, %v7165, %v7141
      %v7167 = vsel %vm7080, %v4780, %v7164
      %v7168 = vsel %vm7080, 0, %v7166
      %v7169 = vcosq.f32.pop %v7167
      %v7170 = vsinq.f32.pop %v7167
      %vm7171 = vweird.f32 %v4780
      %v7172 = vadd.s32 %v7168, 3
      %v7173 = vand.u32 %v7172, 3
      %vm7174 = vcmp.lt.s32.totalorder %v7173, 2
      %vm7175 = vcmp.eq.s32.totalorder %v7173, 0
      %v7176 = vxor.u32 %v7170, 2147483648
      %v7177 = vsel %vm7175, %v7169, %v7176
      %vm7178 = vcmp.eq.s32.totalorder %v7173, 2
      %v7179 = vxor.u32 %v7169, 2147483648
      %v7180 = vsel %vm7178, %v7179, %v7170
      %v7181 = vsel %vm7174, %v7177, %v7180
      %v7182 = vsel %vm7171, nan, %v7181
      %v7183 = vand.u32 2147483647, %v4782
      %vm7184 = vcmp.le.f32.partialorder %v7183, 0.7853982
      %vm7185 = vcmp.lt.s32.totalorder %v4782, 0
      %v7186 = vand.u32 %v4782, 2139095040
      %v7187 = vshrl.u32 %v7186, 23
      %v7188 = vsub.s32 %v7187, 127
      %v7189 = vand.u32 2147483647, %v4782
      %v7190 = vand.u32 %v7189, 8388607
      %v7191 = vor.u32 %v7190, 8388608
      %v7192 = vsub.s32 0, %v7191
      %v7193 = vadd.s32 %v7188, 1
      %vm7194 = vcmp.gt.s32.totalorder %v7193, 0
      %v7195 = vsel %vm7194, %v7193, 0
      %v7196 = vshrl.u32 %v7195, 5
      %v7197 = vand.u32 %v7195, 31
      %v7198 = vsub.s32 32, %v7197
      %v7199 = vshrl.u32 683565275, %v7198
      %v7200 = vshll.u32 683565275, %v7197
      %v7201 = vshrl.u32 2475754826, %v7198
      %v7202 = vor.u32 %v7200, %v7201
      %v7203 = vshll.u32 2475754826, %v7197
      %v7204 = vshrl.u32 2131351028, %v7198
      %v7205 = vor.u32 %v7203, %v7204
      %v7206 = vshll.u32 2131351028, %v7197
      %v7207 = vshrl.u32 2102212464, %v7198
      %v7208 = vor.u32 %v7206, %v7207
      %v7209 = vshll.u32 2102212464, %v7197
      %v7210 = vshrl.u32 920167782, %v7198
      %v7211 = vor.u32 %v7209, %v7210
      %v7212 = vshll.u32 920167782, %v7197
      %v7213 = vshrl.u32 1326507024, %v7198
      %v7214 = vor.u32 %v7212, %v7213
      %vm7215 = vcmp.lt.s32.totalorder %v7196, 1
      %vm7216 = vcmp.lt.s32.totalorder %v7196, 2
      %vm7217 = vcmp.lt.s32.totalorder %v7196, 3
      %vm7218 = vcmp.lt.s32.totalorder %v7196, 4
      %v7219 = vsel %vm7215, %v7199, %v7202
      %v7220 = vsel %vm7218, %v7208, 2102212464
      %v7221 = vsel %vm7217, %v7205, %v7220
      %v7222 = vsel %vm7216, %v7219, %v7221
      %v7223 = vsel %vm7215, %v7202, %v7205
      %v7224 = vsel %vm7218, %v7211, 920167782
      %v7225 = vsel %vm7217, %v7208, %v7224
      %v7226 = vsel %vm7216, %v7223, %v7225
      %v7227 = vsel %vm7215, %v7205, %v7208
      %v7228 = vsel %vm7218, %v7214, 1326507024
      %v7229 = vsel %vm7217, %v7211, %v7228
      %v7230 = vsel %vm7216, %v7227, %v7229
      %v7231 = vshll.u32 %v7191, 8
      %v7232 = vmul.u32.u64.compose %v7231, %v7230
      %v7233 = vextract.low.u32 %v7232
      %v7234 = vextract.high.u32 %v7232
      %v7235 = vmul.u32.u64.compose %v7231, %v7226
      %v7236 = vextract.low.u32 %v7235
      %v7237 = vextract.high.u32 %v7235
      %v7238 = vmul.u32 %v7231, %v7222
      %v7239 = vadd.s32 %v7234, %v7236
      %vm7240 = vc.u32 %v7234, %v7236
      %v7241 = vadd.s32 %v7237, 1
      %v7242 = vsel %vm7240, %v7241, %v7237
      %v7243 = vadd.s32 %v7238, %v7242
      %v7244 = vadd.s32 %v7243, 536870912
      %v7245 = vshrl.u32 %v7244, 30
      %v7246 = vshll.u32 %v7245, 30
      %v7247 = vsub.s32 %v7243, %v7246
      %vm7248 = vcmp.lt.s32.totalorder %v7247, 0
      %v7249 = vsub.s32 0, %v7247
      %v7250 = vsel %vm7248, %v7249, %v7247
      %v7251 = vclz %v7250
      %v7252 = vsub.s32 %v7251, 2
      %vm7253 = vcmp.gt.s32.totalorder 0, %v7252
      %v7254 = vsel %vm7253, 0, %v7252
      %v7255 = vsub.s32 32, %v7254
      %v7256 = vshll.u32 %v7247, %v7254
      %v7257 = vshrl.u32 %v7239, %v7255
      %v7258 = vor.u32 %v7256, %v7257
      %v7259 = vsub.s32 4294967266, %v7254
      %v7260 = vadd.s32 %v7259, 127
      %v7261 = vshll.u32 %v7260, 23
      %v7262 = vor.u32 4788187, %v7261
      %v7263 = vand.u32 2147483647, %v7262
      %v7265 = vcvt.s32.f32 %v7258
      %v7266 = vmul.f32 %v7265, %v7263
      %v7267 = vxor.u32 %v7266, 2147483648
      %v7268 = vsel %vm7185, %v7267, %v7266
      %v7269 = vsub.s32 4, %v7245
      %v7270 = vsel %vm7185, %v7269, %v7245
      %v7271 = vsel %vm7184, %v4782, %v7268
      %v7272 = vsel %vm7184, 0, %v7270
      %v7273 = vcosq.f32.pop %v7271
      %v7274 = vsinq.f32.pop %v7271
      %vm7275 = vweird.f32 %v4782
      %v7276 = vadd.s32 %v7272, 3
      %v7277 = vand.u32 %v7276, 3
      %vm7278 = vcmp.lt.s32.totalorder %v7277, 2
      %vm7279 = vcmp.eq.s32.totalorder %v7277, 0
      %v7280 = vxor.u32 %v7274, 2147483648
      %v7281 = vsel %vm7279, %v7273, %v7280
      %vm7282 = vcmp.eq.s32.totalorder %v7277, 2
      %v7283 = vxor.u32 %v7273, 2147483648
      %v7284 = vsel %vm7282, %v7283, %v7274
      %v7285 = vsel %vm7278, %v7281, %v7284
      %v7286 = vsel %vm7275, nan, %v7285
      %v7287 = vand.u32 2147483647, %v1781
      %vm7288 = vcmp.le.f32.partialorder %v7287, 0.7853982
      %vm7289 = vcmp.lt.s32.totalorder %v1781, 0
      %v7290 = vand.u32 %v1781, 2139095040
      %v7291 = vshrl.u32 %v7290, 23
      %v7292 = vsub.s32 %v7291, 127
      %v7293 = vand.u32 2147483647, %v1781
      %v7294 = vand.u32 %v7293, 8388607
      %v7295 = vor.u32 %v7294, 8388608
      %v7296 = vsub.s32 0, %v7295
      %v7297 = vadd.s32 %v7292, 1
      %vm7298 = vcmp.gt.s32.totalorder %v7297, 0
      %v7299 = vsel %vm7298, %v7297, 0
      %v7300 = vshrl.u32 %v7299, 5
      %v7301 = vand.u32 %v7299, 31
      %v7302 = vsub.s32 32, %v7301
      %v7303 = vshrl.u32 683565275, %v7302
      %v7304 = vshll.u32 683565275, %v7301
      %v7305 = vshrl.u32 2475754826, %v7302
      %v7306 = vor.u32 %v7304, %v7305
      %v7307 = vshll.u32 2475754826, %v7301
      %v7308 = vshrl.u32 2131351028, %v7302
      %v7309 = vor.u32 %v7307, %v7308
      %v7310 = vshll.u32 2131351028, %v7301
      %v7311 = vshrl.u32 2102212464, %v7302
      %v7312 = vor.u32 %v7310, %v7311
      %v7313 = vshll.u32 2102212464, %v7301
      %v7314 = vshrl.u32 920167782, %v7302
      %v7315 = vor.u32 %v7313, %v7314
      %v7316 = vshll.u32 920167782, %v7301
      %v7317 = vshrl.u32 1326507024, %v7302
      %v7318 = vor.u32 %v7316, %v7317
      %vm7319 = vcmp.lt.s32.totalorder %v7300, 1
      %vm7320 = vcmp.lt.s32.totalorder %v7300, 2
      %vm7321 = vcmp.lt.s32.totalorder %v7300, 3
      %vm7322 = vcmp.lt.s32.totalorder %v7300, 4
      %v7323 = vsel %vm7319, %v7303, %v7306
      %v7324 = vsel %vm7322, %v7312, 2102212464
      %v7325 = vsel %vm7321, %v7309, %v7324
      %v7326 = vsel %vm7320, %v7323, %v7325
      %v7327 = vsel %vm7319, %v7306, %v7309
      %v7328 = vsel %vm7322, %v7315, 920167782
      %v7329 = vsel %vm7321, %v7312, %v7328
      %v7330 = vsel %vm7320, %v7327, %v7329
      %v7331 = vsel %vm7319, %v7309, %v7312
      %v7332 = vsel %vm7322, %v7318, 1326507024
      %v7333 = vsel %vm7321, %v7315, %v7332
      %v7334 = vsel %vm7320, %v7331, %v7333
      %v7335 = vshll.u32 %v7295, 8
      %v7336 = vmul.u32.u64.compose %v7335, %v7334
      %v7337 = vextract.low.u32 %v7336
      %v7338 = vextract.high.u32 %v7336
      %v7339 = vmul.u32.u64.compose %v7335, %v7330
      %v7340 = vextract.low.u32 %v7339
      %v7341 = vextract.high.u32 %v7339
      %v7342 = vmul.u32 %v7335, %v7326
      %v7343 = vadd.s32 %v7338, %v7340
      %vm7344 = vc.u32 %v7338, %v7340
      %v7345 = vadd.s32 %v7341, 1
      %v7346 = vsel %vm7344, %v7345, %v7341
      %v7347 = vadd.s32 %v7342, %v7346
      %v7348 = vadd.s32 %v7347, 536870912
      %v7349 = vshrl.u32 %v7348, 30
      %v7350 = vshll.u32 %v7349, 30
      %v7351 = vsub.s32 %v7347, %v7350
      %vm7352 = vcmp.lt.s32.totalorder %v7351, 0
      %v7353 = vsub.s32 0, %v7351
      %v7354 = vsel %vm7352, %v7353, %v7351
      %v7355 = vclz %v7354
      %v7356 = vsub.s32 %v7355, 2
      %vm7357 = vcmp.gt.s32.totalorder 0, %v7356
      %v7358 = vsel %vm7357, 0, %v7356
      %v7359 = vsub.s32 32, %v7358
      %v7360 = vshll.u32 %v7351, %v7358
      %v7361 = vshrl.u32 %v7343, %v7359
      %v7362 = vor.u32 %v7360, %v7361
      %v7363 = vsub.s32 4294967266, %v7358
      %v7364 = vadd.s32 %v7363, 127
      %v7365 = vshll.u32 %v7364, 23
      %v7366 = vor.u32 4788187, %v7365
      %v7367 = vand.u32 2147483647, %v7366
      %v7369 = vcvt.s32.f32 %v7362
      %v7370 = vmul.f32 %v7369, %v7367
      %v7371 = vxor.u32 %v7370, 2147483648
      %v7372 = vsel %vm7289, %v7371, %v7370
      %v7373 = vsub.s32 4, %v7349
      %v7374 = vsel %vm7289, %v7373, %v7349
      %v7375 = vsel %vm7288, %v1781, %v7372
      %v7376 = vsel %vm7288, 0, %v7374
      %v7377 = vcosq.f32.pop %v7375
      %v7378 = vsinq.f32.pop %v7375
      %vm7379 = vweird.f32 %v1781
      %v7380 = vadd.s32 %v7376, 3
      %v7381 = vand.u32 %v7380, 3
      %vm7382 = vcmp.lt.s32.totalorder %v7381, 2
      %vm7383 = vcmp.eq.s32.totalorder %v7381, 0
      %v7384 = vxor.u32 %v7378, 2147483648
      %v7385 = vsel %vm7383, %v7377, %v7384
      %vm7386 = vcmp.eq.s32.totalorder %v7381, 2
      %v7387 = vxor.u32 %v7377, 2147483648
      %v7388 = vsel %vm7386, %v7387, %v7378
      %v7389 = vsel %vm7382, %v7385, %v7388
      %v7390 = vsel %vm7379, nan, %v7389
      %v7391 = vand.u32 2147483647, %v1783
      %vm7392 = vcmp.le.f32.partialorder %v7391, 0.7853982
      %vm7393 = vcmp.lt.s32.totalorder %v1783, 0
      %v7394 = vand.u32 %v1783, 2139095040
      %v7395 = vshrl.u32 %v7394, 23
      %v7396 = vsub.s32 %v7395, 127
      %v7397 = vand.u32 2147483647, %v1783
      %v7398 = vand.u32 %v7397, 8388607
      %v7399 = vor.u32 %v7398, 8388608
      %v7400 = vsub.s32 0, %v7399
      %v7401 = vadd.s32 %v7396, 1
      %vm7402 = vcmp.gt.s32.totalorder %v7401, 0
      %v7403 = vsel %vm7402, %v7401, 0
      %v7404 = vshrl.u32 %v7403, 5
      %v7405 = vand.u32 %v7403, 31
      %v7406 = vsub.s32 32, %v7405
      %v7407 = vshrl.u32 683565275, %v7406
      %v7408 = vshll.u32 683565275, %v7405
      %v7409 = vshrl.u32 2475754826, %v7406
      %v7410 = vor.u32 %v7408, %v7409
      %v7411 = vshll.u32 2475754826, %v7405
      %v7412 = vshrl.u32 2131351028, %v7406
      %v7413 = vor.u32 %v7411, %v7412
      %v7414 = vshll.u32 2131351028, %v7405
      %v7415 = vshrl.u32 2102212464, %v7406
      %v7416 = vor.u32 %v7414, %v7415
      %v7417 = vshll.u32 2102212464, %v7405
      %v7418 = vshrl.u32 920167782, %v7406
      %v7419 = vor.u32 %v7417, %v7418
      %v7420 = vshll.u32 920167782, %v7405
      %v7421 = vshrl.u32 1326507024, %v7406
      %v7422 = vor.u32 %v7420, %v7421
      %vm7423 = vcmp.lt.s32.totalorder %v7404, 1
      %vm7424 = vcmp.lt.s32.totalorder %v7404, 2
      %vm7425 = vcmp.lt.s32.totalorder %v7404, 3
      %vm7426 = vcmp.lt.s32.totalorder %v7404, 4
      %v7427 = vsel %vm7423, %v7407, %v7410
      %v7428 = vsel %vm7426, %v7416, 2102212464
      %v7429 = vsel %vm7425, %v7413, %v7428
      %v7430 = vsel %vm7424, %v7427, %v7429
      %v7431 = vsel %vm7423, %v7410, %v7413
      %v7432 = vsel %vm7426, %v7419, 920167782
      %v7433 = vsel %vm7425, %v7416, %v7432
      %v7434 = vsel %vm7424, %v7431, %v7433
      %v7435 = vsel %vm7423, %v7413, %v7416
      %v7436 = vsel %vm7426, %v7422, 1326507024
      %v7437 = vsel %vm7425, %v7419, %v7436
      %v7438 = vsel %vm7424, %v7435, %v7437
      %v7439 = vshll.u32 %v7399, 8
      %v7440 = vmul.u32.u64.compose %v7439, %v7438
      %v7441 = vextract.low.u32 %v7440
      %v7442 = vextract.high.u32 %v7440
      %v7443 = vmul.u32.u64.compose %v7439, %v7434
      %v7444 = vextract.low.u32 %v7443
      %v7445 = vextract.high.u32 %v7443
      %v7446 = vmul.u32 %v7439, %v7430
      %v7447 = vadd.s32 %v7442, %v7444
      %vm7448 = vc.u32 %v7442, %v7444
      %v7449 = vadd.s32 %v7445, 1
      %v7450 = vsel %vm7448, %v7449, %v7445
      %v7451 = vadd.s32 %v7446, %v7450
      %v7452 = vadd.s32 %v7451, 536870912
      %v7453 = vshrl.u32 %v7452, 30
      %v7454 = vshll.u32 %v7453, 30
      %v7455 = vsub.s32 %v7451, %v7454
      %vm7456 = vcmp.lt.s32.totalorder %v7455, 0
      %v7457 = vsub.s32 0, %v7455
      %v7458 = vsel %vm7456, %v7457, %v7455
      %v7459 = vclz %v7458
      %v7460 = vsub.s32 %v7459, 2
      %vm7461 = vcmp.gt.s32.totalorder 0, %v7460
      %v7462 = vsel %vm7461, 0, %v7460
      %v7463 = vsub.s32 32, %v7462
      %v7464 = vshll.u32 %v7455, %v7462
      %v7465 = vshrl.u32 %v7447, %v7463
      %v7466 = vor.u32 %v7464, %v7465
      %v7467 = vsub.s32 4294967266, %v7462
      %v7468 = vadd.s32 %v7467, 127
      %v7469 = vshll.u32 %v7468, 23
      %v7470 = vor.u32 4788187, %v7469
      %v7471 = vand.u32 2147483647, %v7470
      %v7473 = vcvt.s32.f32 %v7466
      %v7474 = vmul.f32 %v7473, %v7471
      %v7475 = vxor.u32 %v7474, 2147483648
      %v7476 = vsel %vm7393, %v7475, %v7474
      %v7477 = vsub.s32 4, %v7453
      %v7478 = vsel %vm7393, %v7477, %v7453
      %v7479 = vsel %vm7392, %v1783, %v7476
      %v7480 = vsel %vm7392, 0, %v7478
      %v7481 = vcosq.f32.pop %v7479
      %v7482 = vsinq.f32.pop %v7479
      %vm7483 = vweird.f32 %v1783
      %v7484 = vadd.s32 %v7480, 3
      %v7485 = vand.u32 %v7484, 3
      %vm7486 = vcmp.lt.s32.totalorder %v7485, 2
      %vm7487 = vcmp.eq.s32.totalorder %v7485, 0
      %v7488 = vxor.u32 %v7482, 2147483648
      %v7489 = vsel %vm7487, %v7481, %v7488
      %vm7490 = vcmp.eq.s32.totalorder %v7485, 2
      %v7491 = vxor.u32 %v7481, 2147483648
      %v7492 = vsel %vm7490, %v7491, %v7482
      %v7493 = vsel %vm7486, %v7489, %v7492
      %v7494 = vsel %vm7483, nan, %v7493
      %v7495 = vand.u32 2147483647, %v2783
      %vm7496 = vcmp.le.f32.partialorder %v7495, 0.7853982
      %vm7497 = vcmp.lt.s32.totalorder %v2783, 0
      %v7498 = vand.u32 %v2783, 2139095040
      %v7499 = vshrl.u32 %v7498, 23
      %v7500 = vsub.s32 %v7499, 127
      %v7501 = vand.u32 2147483647, %v2783
      %v7502 = vand.u32 %v7501, 8388607
      %v7503 = vor.u32 %v7502, 8388608
      %v7504 = vsub.s32 0, %v7503
      %v7505 = vadd.s32 %v7500, 1
      %vm7506 = vcmp.gt.s32.totalorder %v7505, 0
      %v7507 = vsel %vm7506, %v7505, 0
      %v7508 = vshrl.u32 %v7507, 5
      %v7509 = vand.u32 %v7507, 31
      %v7510 = vsub.s32 32, %v7509
      %v7511 = vshrl.u32 683565275, %v7510
      %v7512 = vshll.u32 683565275, %v7509
      %v7513 = vshrl.u32 2475754826, %v7510
      %v7514 = vor.u32 %v7512, %v7513
      %v7515 = vshll.u32 2475754826, %v7509
      %v7516 = vshrl.u32 2131351028, %v7510
      %v7517 = vor.u32 %v7515, %v7516
      %v7518 = vshll.u32 2131351028, %v7509
      %v7519 = vshrl.u32 2102212464, %v7510
      %v7520 = vor.u32 %v7518, %v7519
      %v7521 = vshll.u32 2102212464, %v7509
      %v7522 = vshrl.u32 920167782, %v7510
      %v7523 = vor.u32 %v7521, %v7522
      %v7524 = vshll.u32 920167782, %v7509
      %v7525 = vshrl.u32 1326507024, %v7510
      %v7526 = vor.u32 %v7524, %v7525
      %vm7527 = vcmp.lt.s32.totalorder %v7508, 1
      %vm7528 = vcmp.lt.s32.totalorder %v7508, 2
      %vm7529 = vcmp.lt.s32.totalorder %v7508, 3
      %vm7530 = vcmp.lt.s32.totalorder %v7508, 4
      %v7531 = vsel %vm7527, %v7511, %v7514
      %v7532 = vsel %vm7530, %v7520, 2102212464
      %v7533 = vsel %vm7529, %v7517, %v7532
      %v7534 = vsel %vm7528, %v7531, %v7533
      %v7535 = vsel %vm7527, %v7514, %v7517
      %v7536 = vsel %vm7530, %v7523, 920167782
      %v7537 = vsel %vm7529, %v7520, %v7536
      %v7538 = vsel %vm7528, %v7535, %v7537
      %v7539 = vsel %vm7527, %v7517, %v7520
      %v7540 = vsel %vm7530, %v7526, 1326507024
      %v7541 = vsel %vm7529, %v7523, %v7540
      %v7542 = vsel %vm7528, %v7539, %v7541
      %v7543 = vshll.u32 %v7503, 8
      %v7544 = vmul.u32.u64.compose %v7543, %v7542
      %v7545 = vextract.low.u32 %v7544
      %v7546 = vextract.high.u32 %v7544
      %v7547 = vmul.u32.u64.compose %v7543, %v7538
      %v7548 = vextract.low.u32 %v7547
      %v7549 = vextract.high.u32 %v7547
      %v7550 = vmul.u32 %v7543, %v7534
      %v7551 = vadd.s32 %v7546, %v7548
      %vm7552 = vc.u32 %v7546, %v7548
      %v7553 = vadd.s32 %v7549, 1
      %v7554 = vsel %vm7552, %v7553, %v7549
      %v7555 = vadd.s32 %v7550, %v7554
      %v7556 = vadd.s32 %v7555, 536870912
      %v7557 = vshrl.u32 %v7556, 30
      %v7558 = vshll.u32 %v7557, 30
      %v7559 = vsub.s32 %v7555, %v7558
      %vm7560 = vcmp.lt.s32.totalorder %v7559, 0
      %v7561 = vsub.s32 0, %v7559
      %v7562 = vsel %vm7560, %v7561, %v7559
      %v7563 = vclz %v7562
      %v7564 = vsub.s32 %v7563, 2
      %vm7565 = vcmp.gt.s32.totalorder 0, %v7564
      %v7566 = vsel %vm7565, 0, %v7564
      %v7567 = vsub.s32 32, %v7566
      %v7568 = vshll.u32 %v7559, %v7566
      %v7569 = vshrl.u32 %v7551, %v7567
      %v7570 = vor.u32 %v7568, %v7569
      %v7571 = vsub.s32 4294967266, %v7566
      %v7572 = vadd.s32 %v7571, 127
      %v7573 = vshll.u32 %v7572, 23
      %v7574 = vor.u32 4788187, %v7573
      %v7575 = vand.u32 2147483647, %v7574
      %v7577 = vcvt.s32.f32 %v7570
      %v7578 = vmul.f32 %v7577, %v7575
      %v7579 = vxor.u32 %v7578, 2147483648
      %v7580 = vsel %vm7497, %v7579, %v7578
      %v7581 = vsub.s32 4, %v7557
      %v7582 = vsel %vm7497, %v7581, %v7557
      %v7583 = vsel %vm7496, %v2783, %v7580
      %v7584 = vsel %vm7496, 0, %v7582
      %v7585 = vcosq.f32.pop %v7583
      %v7586 = vsinq.f32.pop %v7583
      %vm7587 = vweird.f32 %v2783
      %v7588 = vadd.s32 %v7584, 3
      %v7589 = vand.u32 %v7588, 3
      %vm7590 = vcmp.lt.s32.totalorder %v7589, 2
      %vm7591 = vcmp.eq.s32.totalorder %v7589, 0
      %v7592 = vxor.u32 %v7586, 2147483648
      %v7593 = vsel %vm7591, %v7585, %v7592
      %vm7594 = vcmp.eq.s32.totalorder %v7589, 2
      %v7595 = vxor.u32 %v7585, 2147483648
      %v7596 = vsel %vm7594, %v7595, %v7586
      %v7597 = vsel %vm7590, %v7593, %v7596
      %v7598 = vsel %vm7587, nan, %v7597
      %v7599 = vand.u32 2147483647, %v2785
      %vm7600 = vcmp.le.f32.partialorder %v7599, 0.7853982
      %vm7601 = vcmp.lt.s32.totalorder %v2785, 0
      %v7602 = vand.u32 %v2785, 2139095040
      %v7603 = vshrl.u32 %v7602, 23
      %v7604 = vsub.s32 %v7603, 127
      %v7605 = vand.u32 2147483647, %v2785
      %v7606 = vand.u32 %v7605, 8388607
      %v7607 = vor.u32 %v7606, 8388608
      %v7608 = vsub.s32 0, %v7607
      %v7609 = vadd.s32 %v7604, 1
      %vm7610 = vcmp.gt.s32.totalorder %v7609, 0
      %v7611 = vsel %vm7610, %v7609, 0
      %v7612 = vshrl.u32 %v7611, 5
      %v7613 = vand.u32 %v7611, 31
      %v7614 = vsub.s32 32, %v7613
      %v7615 = vshrl.u32 683565275, %v7614
      %v7616 = vshll.u32 683565275, %v7613
      %v7617 = vshrl.u32 2475754826, %v7614
      %v7618 = vor.u32 %v7616, %v7617
      %v7619 = vshll.u32 2475754826, %v7613
      %v7620 = vshrl.u32 2131351028, %v7614
      %v7621 = vor.u32 %v7619, %v7620
      %v7622 = vshll.u32 2131351028, %v7613
      %v7623 = vshrl.u32 2102212464, %v7614
      %v7624 = vor.u32 %v7622, %v7623
      %v7625 = vshll.u32 2102212464, %v7613
      %v7626 = vshrl.u32 920167782, %v7614
      %v7627 = vor.u32 %v7625, %v7626
      %v7628 = vshll.u32 920167782, %v7613
      %v7629 = vshrl.u32 1326507024, %v7614
      %v7630 = vor.u32 %v7628, %v7629
      %vm7631 = vcmp.lt.s32.totalorder %v7612, 1
      %vm7632 = vcmp.lt.s32.totalorder %v7612, 2
      %vm7633 = vcmp.lt.s32.totalorder %v7612, 3
      %vm7634 = vcmp.lt.s32.totalorder %v7612, 4
      %v7635 = vsel %vm7631, %v7615, %v7618
      %v7636 = vsel %vm7634, %v7624, 2102212464
      %v7637 = vsel %vm7633, %v7621, %v7636
      %v7638 = vsel %vm7632, %v7635, %v7637
      %v7639 = vsel %vm7631, %v7618, %v7621
      %v7640 = vsel %vm7634, %v7627, 920167782
      %v7641 = vsel %vm7633, %v7624, %v7640
      %v7642 = vsel %vm7632, %v7639, %v7641
      %v7643 = vsel %vm7631, %v7621, %v7624
      %v7644 = vsel %vm7634, %v7630, 1326507024
      %v7645 = vsel %vm7633, %v7627, %v7644
      %v7646 = vsel %vm7632, %v7643, %v7645
      %v7647 = vshll.u32 %v7607, 8
      %v7648 = vmul.u32.u64.compose %v7647, %v7646
      %v7649 = vextract.low.u32 %v7648
      %v7650 = vextract.high.u32 %v7648
      %v7651 = vmul.u32.u64.compose %v7647, %v7642
      %v7652 = vextract.low.u32 %v7651
      %v7653 = vextract.high.u32 %v7651
      %v7654 = vmul.u32 %v7647, %v7638
      %v7655 = vadd.s32 %v7650, %v7652
      %vm7656 = vc.u32 %v7650, %v7652
      %v7657 = vadd.s32 %v7653, 1
      %v7658 = vsel %vm7656, %v7657, %v7653
      %v7659 = vadd.s32 %v7654, %v7658
      %v7660 = vadd.s32 %v7659, 536870912
      %v7661 = vshrl.u32 %v7660, 30
      %v7662 = vshll.u32 %v7661, 30
      %v7663 = vsub.s32 %v7659, %v7662
      %vm7664 = vcmp.lt.s32.totalorder %v7663, 0
      %v7665 = vsub.s32 0, %v7663
      %v7666 = vsel %vm7664, %v7665, %v7663
      %v7667 = vclz %v7666
      %v7668 = vsub.s32 %v7667, 2
      %vm7669 = vcmp.gt.s32.totalorder 0, %v7668
      %v7670 = vsel %vm7669, 0, %v7668
      %v7671 = vsub.s32 32, %v7670
      %v7672 = vshll.u32 %v7663, %v7670
      %v7673 = vshrl.u32 %v7655, %v7671
      %v7674 = vor.u32 %v7672, %v7673
      %v7675 = vsub.s32 4294967266, %v7670
      %v7676 = vadd.s32 %v7675, 127
      %v7677 = vshll.u32 %v7676, 23
      %v7678 = vor.u32 4788187, %v7677
      %v7679 = vand.u32 2147483647, %v7678
      %v7681 = vcvt.s32.f32 %v7674
      %v7682 = vmul.f32 %v7681, %v7679
      %v7683 = vxor.u32 %v7682, 2147483648
      %v7684 = vsel %vm7601, %v7683, %v7682
      %v7685 = vsub.s32 4, %v7661
      %v7686 = vsel %vm7601, %v7685, %v7661
      %v7687 = vsel %vm7600, %v2785, %v7684
      %v7688 = vsel %vm7600, 0, %v7686
      %v7689 = vcosq.f32.pop %v7687
      %v7690 = vsinq.f32.pop %v7687
      %vm7691 = vweird.f32 %v2785
      %v7692 = vadd.s32 %v7688, 3
      %v7693 = vand.u32 %v7692, 3
      %vm7694 = vcmp.lt.s32.totalorder %v7693, 2
      %vm7695 = vcmp.eq.s32.totalorder %v7693, 0
      %v7696 = vxor.u32 %v7690, 2147483648
      %v7697 = vsel %vm7695, %v7689, %v7696
      %vm7698 = vcmp.eq.s32.totalorder %v7693, 2
      %v7699 = vxor.u32 %v7689, 2147483648
      %v7700 = vsel %vm7698, %v7699, %v7690
      %v7701 = vsel %vm7694, %v7697, %v7700
      %v7702 = vsel %vm7691, nan, %v7701
      %v7703 = vand.u32 2147483647, %v3785
      %vm7704 = vcmp.le.f32.partialorder %v7703, 0.7853982
      %vm7705 = vcmp.lt.s32.totalorder %v3785, 0
      %v7706 = vand.u32 %v3785, 2139095040
      %v7707 = vshrl.u32 %v7706, 23
      %v7708 = vsub.s32 %v7707, 127
      %v7709 = vand.u32 2147483647, %v3785
      %v7710 = vand.u32 %v7709, 8388607
      %v7711 = vor.u32 %v7710, 8388608
      %v7712 = vsub.s32 0, %v7711
      %v7713 = vadd.s32 %v7708, 1
      %vm7714 = vcmp.gt.s32.totalorder %v7713, 0
      %v7715 = vsel %vm7714, %v7713, 0
      %v7716 = vshrl.u32 %v7715, 5
      %v7717 = vand.u32 %v7715, 31
      %v7718 = vsub.s32 32, %v7717
      %v7719 = vshrl.u32 683565275, %v7718
      %v7720 = vshll.u32 683565275, %v7717
      %v7721 = vshrl.u32 2475754826, %v7718
      %v7722 = vor.u32 %v7720, %v7721
      %v7723 = vshll.u32 2475754826, %v7717
      %v7724 = vshrl.u32 2131351028, %v7718
      %v7725 = vor.u32 %v7723, %v7724
      %v7726 = vshll.u32 2131351028, %v7717
      %v7727 = vshrl.u32 2102212464, %v7718
      %v7728 = vor.u32 %v7726, %v7727
      %v7729 = vshll.u32 2102212464, %v7717
      %v7730 = vshrl.u32 920167782, %v7718
      %v7731 = vor.u32 %v7729, %v7730
      %v7732 = vshll.u32 920167782, %v7717
      %v7733 = vshrl.u32 1326507024, %v7718
      %v7734 = vor.u32 %v7732, %v7733
      %vm7735 = vcmp.lt.s32.totalorder %v7716, 1
      %vm7736 = vcmp.lt.s32.totalorder %v7716, 2
      %vm7737 = vcmp.lt.s32.totalorder %v7716, 3
      %vm7738 = vcmp.lt.s32.totalorder %v7716, 4
      %v7739 = vsel %vm7735, %v7719, %v7722
      %v7740 = vsel %vm7738, %v7728, 2102212464
      %v7741 = vsel %vm7737, %v7725, %v7740
      %v7742 = vsel %vm7736, %v7739, %v7741
      %v7743 = vsel %vm7735, %v7722, %v7725
      %v7744 = vsel %vm7738, %v7731, 920167782
      %v7745 = vsel %vm7737, %v7728, %v7744
      %v7746 = vsel %vm7736, %v7743, %v7745
      %v7747 = vsel %vm7735, %v7725, %v7728
      %v7748 = vsel %vm7738, %v7734, 1326507024
      %v7749 = vsel %vm7737, %v7731, %v7748
      %v7750 = vsel %vm7736, %v7747, %v7749
      %v7751 = vshll.u32 %v7711, 8
      %v7752 = vmul.u32.u64.compose %v7751, %v7750
      %v7753 = vextract.low.u32 %v7752
      %v7754 = vextract.high.u32 %v7752
      %v7755 = vmul.u32.u64.compose %v7751, %v7746
      %v7756 = vextract.low.u32 %v7755
      %v7757 = vextract.high.u32 %v7755
      %v7758 = vmul.u32 %v7751, %v7742
      %v7759 = vadd.s32 %v7754, %v7756
      %vm7760 = vc.u32 %v7754, %v7756
      %v7761 = vadd.s32 %v7757, 1
      %v7762 = vsel %vm7760, %v7761, %v7757
      %v7763 = vadd.s32 %v7758, %v7762
      %v7764 = vadd.s32 %v7763, 536870912
      %v7765 = vshrl.u32 %v7764, 30
      %v7766 = vshll.u32 %v7765, 30
      %v7767 = vsub.s32 %v7763, %v7766
      %vm7768 = vcmp.lt.s32.totalorder %v7767, 0
      %v7769 = vsub.s32 0, %v7767
      %v7770 = vsel %vm7768, %v7769, %v7767
      %v7771 = vclz %v7770
      %v7772 = vsub.s32 %v7771, 2
      %vm7773 = vcmp.gt.s32.totalorder 0, %v7772
      %v7774 = vsel %vm7773, 0, %v7772
      %v7775 = vsub.s32 32, %v7774
      %v7776 = vshll.u32 %v7767, %v7774
      %v7777 = vshrl.u32 %v7759, %v7775
      %v7778 = vor.u32 %v7776, %v7777
      %v7779 = vsub.s32 4294967266, %v7774
      %v7780 = vadd.s32 %v7779, 127
      %v7781 = vshll.u32 %v7780, 23
      %v7782 = vor.u32 4788187, %v7781
      %v7783 = vand.u32 2147483647, %v7782
      %v7785 = vcvt.s32.f32 %v7778
      %v7786 = vmul.f32 %v7785, %v7783
      %v7787 = vxor.u32 %v7786, 2147483648
      %v7788 = vsel %vm7705, %v7787, %v7786
      %v7789 = vsub.s32 4, %v7765
      %v7790 = vsel %vm7705, %v7789, %v7765
      %v7791 = vsel %vm7704, %v3785, %v7788
      %v7792 = vsel %vm7704, 0, %v7790
      %v7793 = vcosq.f32.pop %v7791
      %v7794 = vsinq.f32.pop %v7791
      %vm7795 = vweird.f32 %v3785
      %v7796 = vadd.s32 %v7792, 3
      %v7797 = vand.u32 %v7796, 3
      %vm7798 = vcmp.lt.s32.totalorder %v7797, 2
      %vm7799 = vcmp.eq.s32.totalorder %v7797, 0
      %v7800 = vxor.u32 %v7794, 2147483648
      %v7801 = vsel %vm7799, %v7793, %v7800
      %vm7802 = vcmp.eq.s32.totalorder %v7797, 2
      %v7803 = vxor.u32 %v7793, 2147483648
      %v7804 = vsel %vm7802, %v7803, %v7794
      %v7805 = vsel %vm7798, %v7801, %v7804
      %v7806 = vsel %vm7795, nan, %v7805
      %v7807 = vand.u32 2147483647, %v3787
      %vm7808 = vcmp.le.f32.partialorder %v7807, 0.7853982
      %vm7809 = vcmp.lt.s32.totalorder %v3787, 0
      %v7810 = vand.u32 %v3787, 2139095040
      %v7811 = vshrl.u32 %v7810, 23
      %v7812 = vsub.s32 %v7811, 127
      %v7813 = vand.u32 2147483647, %v3787
      %v7814 = vand.u32 %v7813, 8388607
      %v7815 = vor.u32 %v7814, 8388608
      %v7816 = vsub.s32 0, %v7815
      %v7817 = vadd.s32 %v7812, 1
      %vm7818 = vcmp.gt.s32.totalorder %v7817, 0
      %v7819 = vsel %vm7818, %v7817, 0
      %v7820 = vshrl.u32 %v7819, 5
      %v7821 = vand.u32 %v7819, 31
      %v7822 = vsub.s32 32, %v7821
      %v7823 = vshrl.u32 683565275, %v7822
      %v7824 = vshll.u32 683565275, %v7821
      %v7825 = vshrl.u32 2475754826, %v7822
      %v7826 = vor.u32 %v7824, %v7825
      %v7827 = vshll.u32 2475754826, %v7821
      %v7828 = vshrl.u32 2131351028, %v7822
      %v7829 = vor.u32 %v7827, %v7828
      %v7830 = vshll.u32 2131351028, %v7821
      %v7831 = vshrl.u32 2102212464, %v7822
      %v7832 = vor.u32 %v7830, %v7831
      %v7833 = vshll.u32 2102212464, %v7821
      %v7834 = vshrl.u32 920167782, %v7822
      %v7835 = vor.u32 %v7833, %v7834
      %v7836 = vshll.u32 920167782, %v7821
      %v7837 = vshrl.u32 1326507024, %v7822
      %v7838 = vor.u32 %v7836, %v7837
      %vm7839 = vcmp.lt.s32.totalorder %v7820, 1
      %vm7840 = vcmp.lt.s32.totalorder %v7820, 2
      %vm7841 = vcmp.lt.s32.totalorder %v7820, 3
      %vm7842 = vcmp.lt.s32.totalorder %v7820, 4
      %v7843 = vsel %vm7839, %v7823, %v7826
      %v7844 = vsel %vm7842, %v7832, 2102212464
      %v7845 = vsel %vm7841, %v7829, %v7844
      %v7846 = vsel %vm7840, %v7843, %v7845
      %v7847 = vsel %vm7839, %v7826, %v7829
      %v7848 = vsel %vm7842, %v7835, 920167782
      %v7849 = vsel %vm7841, %v7832, %v7848
      %v7850 = vsel %vm7840, %v7847, %v7849
      %v7851 = vsel %vm7839, %v7829, %v7832
      %v7852 = vsel %vm7842, %v7838, 1326507024
      %v7853 = vsel %vm7841, %v7835, %v7852
      %v7854 = vsel %vm7840, %v7851, %v7853
      %v7855 = vshll.u32 %v7815, 8
      %v7856 = vmul.u32.u64.compose %v7855, %v7854
      %v7857 = vextract.low.u32 %v7856
      %v7858 = vextract.high.u32 %v7856
      %v7859 = vmul.u32.u64.compose %v7855, %v7850
      %v7860 = vextract.low.u32 %v7859
      %v7861 = vextract.high.u32 %v7859
      %v7862 = vmul.u32 %v7855, %v7846
      %v7863 = vadd.s32 %v7858, %v7860
      %vm7864 = vc.u32 %v7858, %v7860
      %v7865 = vadd.s32 %v7861, 1
      %v7866 = vsel %vm7864, %v7865, %v7861
      %v7867 = vadd.s32 %v7862, %v7866
      %v7868 = vadd.s32 %v7867, 536870912
      %v7869 = vshrl.u32 %v7868, 30
      %v7870 = vshll.u32 %v7869, 30
      %v7871 = vsub.s32 %v7867, %v7870
      %vm7872 = vcmp.lt.s32.totalorder %v7871, 0
      %v7873 = vsub.s32 0, %v7871
      %v7874 = vsel %vm7872, %v7873, %v7871
      %v7875 = vclz %v7874
      %v7876 = vsub.s32 %v7875, 2
      %vm7877 = vcmp.gt.s32.totalorder 0, %v7876
      %v7878 = vsel %vm7877, 0, %v7876
      %v7879 = vsub.s32 32, %v7878
      %v7880 = vshll.u32 %v7871, %v7878
      %v7881 = vshrl.u32 %v7863, %v7879
      %v7882 = vor.u32 %v7880, %v7881
      %v7883 = vsub.s32 4294967266, %v7878
      %v7884 = vadd.s32 %v7883, 127
      %v7885 = vshll.u32 %v7884, 23
      %v7886 = vor.u32 4788187, %v7885
      %v7887 = vand.u32 2147483647, %v7886
      %v7889 = vcvt.s32.f32 %v7882
      %v7890 = vmul.f32 %v7889, %v7887
      %v7891 = vxor.u32 %v7890, 2147483648
      %v7892 = vsel %vm7809, %v7891, %v7890
      %v7893 = vsub.s32 4, %v7869
      %v7894 = vsel %vm7809, %v7893, %v7869
      %v7895 = vsel %vm7808, %v3787, %v7892
      %v7896 = vsel %vm7808, 0, %v7894
      %v7897 = vcosq.f32.pop %v7895
      %v7898 = vsinq.f32.pop %v7895
      %vm7899 = vweird.f32 %v3787
      %v7900 = vadd.s32 %v7896, 3
      %v7901 = vand.u32 %v7900, 3
      %vm7902 = vcmp.lt.s32.totalorder %v7901, 2
      %vm7903 = vcmp.eq.s32.totalorder %v7901, 0
      %v7904 = vxor.u32 %v7898, 2147483648
      %v7905 = vsel %vm7903, %v7897, %v7904
      %vm7906 = vcmp.eq.s32.totalorder %v7901, 2
      %v7907 = vxor.u32 %v7897, 2147483648
      %v7908 = vsel %vm7906, %v7907, %v7898
      %v7909 = vsel %vm7902, %v7905, %v7908
      %v7910 = vsel %vm7899, nan, %v7909
      %v7911 = vand.u32 2147483647, %v4787
      %vm7912 = vcmp.le.f32.partialorder %v7911, 0.7853982
      %vm7913 = vcmp.lt.s32.totalorder %v4787, 0
      %v7914 = vand.u32 %v4787, 2139095040
      %v7915 = vshrl.u32 %v7914, 23
      %v7916 = vsub.s32 %v7915, 127
      %v7917 = vand.u32 2147483647, %v4787
      %v7918 = vand.u32 %v7917, 8388607
      %v7919 = vor.u32 %v7918, 8388608
      %v7920 = vsub.s32 0, %v7919
      %v7921 = vadd.s32 %v7916, 1
      %vm7922 = vcmp.gt.s32.totalorder %v7921, 0
      %v7923 = vsel %vm7922, %v7921, 0
      %v7924 = vshrl.u32 %v7923, 5
      %v7925 = vand.u32 %v7923, 31
      %v7926 = vsub.s32 32, %v7925
      %v7927 = vshrl.u32 683565275, %v7926
      %v7928 = vshll.u32 683565275, %v7925
      %v7929 = vshrl.u32 2475754826, %v7926
      %v7930 = vor.u32 %v7928, %v7929
      %v7931 = vshll.u32 2475754826, %v7925
      %v7932 = vshrl.u32 2131351028, %v7926
      %v7933 = vor.u32 %v7931, %v7932
      %v7934 = vshll.u32 2131351028, %v7925
      %v7935 = vshrl.u32 2102212464, %v7926
      %v7936 = vor.u32 %v7934, %v7935
      %v7937 = vshll.u32 2102212464, %v7925
      %v7938 = vshrl.u32 920167782, %v7926
      %v7939 = vor.u32 %v7937, %v7938
      %v7940 = vshll.u32 920167782, %v7925
      %v7941 = vshrl.u32 1326507024, %v7926
      %v7942 = vor.u32 %v7940, %v7941
      %vm7943 = vcmp.lt.s32.totalorder %v7924, 1
      %vm7944 = vcmp.lt.s32.totalorder %v7924, 2
      %vm7945 = vcmp.lt.s32.totalorder %v7924, 3
      %vm7946 = vcmp.lt.s32.totalorder %v7924, 4
      %v7947 = vsel %vm7943, %v7927, %v7930
      %v7948 = vsel %vm7946, %v7936, 2102212464
      %v7949 = vsel %vm7945, %v7933, %v7948
      %v7950 = vsel %vm7944, %v7947, %v7949
      %v7951 = vsel %vm7943, %v7930, %v7933
      %v7952 = vsel %vm7946, %v7939, 920167782
      %v7953 = vsel %vm7945, %v7936, %v7952
      %v7954 = vsel %vm7944, %v7951, %v7953
      %v7955 = vsel %vm7943, %v7933, %v7936
      %v7956 = vsel %vm7946, %v7942, 1326507024
      %v7957 = vsel %vm7945, %v7939, %v7956
      %v7958 = vsel %vm7944, %v7955, %v7957
      %v7959 = vshll.u32 %v7919, 8
      %v7960 = vmul.u32.u64.compose %v7959, %v7958
      %v7961 = vextract.low.u32 %v7960
      %v7962 = vextract.high.u32 %v7960
      %v7963 = vmul.u32.u64.compose %v7959, %v7954
      %v7964 = vextract.low.u32 %v7963
      %v7965 = vextract.high.u32 %v7963
      %v7966 = vmul.u32 %v7959, %v7950
      %v7967 = vadd.s32 %v7962, %v7964
      %vm7968 = vc.u32 %v7962, %v7964
      %v7969 = vadd.s32 %v7965, 1
      %v7970 = vsel %vm7968, %v7969, %v7965
      %v7971 = vadd.s32 %v7966, %v7970
      %v7972 = vadd.s32 %v7971, 536870912
      %v7973 = vshrl.u32 %v7972, 30
      %v7974 = vshll.u32 %v7973, 30
      %v7975 = vsub.s32 %v7971, %v7974
      %vm7976 = vcmp.lt.s32.totalorder %v7975, 0
      %v7977 = vsub.s32 0, %v7975
      %v7978 = vsel %vm7976, %v7977, %v7975
      %v7979 = vclz %v7978
      %v7980 = vsub.s32 %v7979, 2
      %vm7981 = vcmp.gt.s32.totalorder 0, %v7980
      %v7982 = vsel %vm7981, 0, %v7980
      %v7983 = vsub.s32 32, %v7982
      %v7984 = vshll.u32 %v7975, %v7982
      %v7985 = vshrl.u32 %v7967, %v7983
      %v7986 = vor.u32 %v7984, %v7985
      %v7987 = vsub.s32 4294967266, %v7982
      %v7988 = vadd.s32 %v7987, 127
      %v7989 = vshll.u32 %v7988, 23
      %v7990 = vor.u32 4788187, %v7989
      %v7991 = vand.u32 2147483647, %v7990
      %v7993 = vcvt.s32.f32 %v7986
      %v7994 = vmul.f32 %v7993, %v7991
      %v7995 = vxor.u32 %v7994, 2147483648
      %v7996 = vsel %vm7913, %v7995, %v7994
      %v7997 = vsub.s32 4, %v7973
      %v7998 = vsel %vm7913, %v7997, %v7973
      %v7999 = vsel %vm7912, %v4787, %v7996
      %v8000 = vsel %vm7912, 0, %v7998
      %v8001 = vcosq.f32.pop %v7999
      %v8002 = vsinq.f32.pop %v7999
      %vm8003 = vweird.f32 %v4787
      %v8004 = vadd.s32 %v8000, 3
      %v8005 = vand.u32 %v8004, 3
      %vm8006 = vcmp.lt.s32.totalorder %v8005, 2
      %vm8007 = vcmp.eq.s32.totalorder %v8005, 0
      %v8008 = vxor.u32 %v8002, 2147483648
      %v8009 = vsel %vm8007, %v8001, %v8008
      %vm8010 = vcmp.eq.s32.totalorder %v8005, 2
      %v8011 = vxor.u32 %v8001, 2147483648
      %v8012 = vsel %vm8010, %v8011, %v8002
      %v8013 = vsel %vm8006, %v8009, %v8012
      %v8014 = vsel %vm8003, nan, %v8013
      %v8015 = vand.u32 2147483647, %v4789
      %vm8016 = vcmp.le.f32.partialorder %v8015, 0.7853982
      %vm8017 = vcmp.lt.s32.totalorder %v4789, 0
      %v8018 = vand.u32 %v4789, 2139095040
      %v8019 = vshrl.u32 %v8018, 23
      %v8020 = vsub.s32 %v8019, 127
      %v8021 = vand.u32 2147483647, %v4789
      %v8022 = vand.u32 %v8021, 8388607
      %v8023 = vor.u32 %v8022, 8388608
      %v8024 = vsub.s32 0, %v8023
      %v8025 = vadd.s32 %v8020, 1
      %vm8026 = vcmp.gt.s32.totalorder %v8025, 0
      %v8027 = vsel %vm8026, %v8025, 0
      %v8028 = vshrl.u32 %v8027, 5
      %v8029 = vand.u32 %v8027, 31
      %v8030 = vsub.s32 32, %v8029
      %v8031 = vshrl.u32 683565275, %v8030
      %v8032 = vshll.u32 683565275, %v8029
      %v8033 = vshrl.u32 2475754826, %v8030
      %v8034 = vor.u32 %v8032, %v8033
      %v8035 = vshll.u32 2475754826, %v8029
      %v8036 = vshrl.u32 2131351028, %v8030
      %v8037 = vor.u32 %v8035, %v8036
      %v8038 = vshll.u32 2131351028, %v8029
      %v8039 = vshrl.u32 2102212464, %v8030
      %v8040 = vor.u32 %v8038, %v8039
      %v8041 = vshll.u32 2102212464, %v8029
      %v8042 = vshrl.u32 920167782, %v8030
      %v8043 = vor.u32 %v8041, %v8042
      %v8044 = vshll.u32 920167782, %v8029
      %v8045 = vshrl.u32 1326507024, %v8030
      %v8046 = vor.u32 %v8044, %v8045
      %vm8047 = vcmp.lt.s32.totalorder %v8028, 1
      %vm8048 = vcmp.lt.s32.totalorder %v8028, 2
      %vm8049 = vcmp.lt.s32.totalorder %v8028, 3
      %vm8050 = vcmp.lt.s32.totalorder %v8028, 4
      %v8051 = vsel %vm8047, %v8031, %v8034
      %v8052 = vsel %vm8050, %v8040, 2102212464
      %v8053 = vsel %vm8049, %v8037, %v8052
      %v8054 = vsel %vm8048, %v8051, %v8053
      %v8055 = vsel %vm8047, %v8034, %v8037
      %v8056 = vsel %vm8050, %v8043, 920167782
      %v8057 = vsel %vm8049, %v8040, %v8056
      %v8058 = vsel %vm8048, %v8055, %v8057
      %v8059 = vsel %vm8047, %v8037, %v8040
      %v8060 = vsel %vm8050, %v8046, 1326507024
      %v8061 = vsel %vm8049, %v8043, %v8060
      %v8062 = vsel %vm8048, %v8059, %v8061
      %v8063 = vshll.u32 %v8023, 8
      %v8064 = vmul.u32.u64.compose %v8063, %v8062
      %v8065 = vextract.low.u32 %v8064
      %v8066 = vextract.high.u32 %v8064
      %v8067 = vmul.u32.u64.compose %v8063, %v8058
      %v8068 = vextract.low.u32 %v8067
      %v8069 = vextract.high.u32 %v8067
      %v8070 = vmul.u32 %v8063, %v8054
      %v8071 = vadd.s32 %v8066, %v8068
      %vm8072 = vc.u32 %v8066, %v8068
      %v8073 = vadd.s32 %v8069, 1
      %v8074 = vsel %vm8072, %v8073, %v8069
      %v8075 = vadd.s32 %v8070, %v8074
      %v8076 = vadd.s32 %v8075, 536870912
      %v8077 = vshrl.u32 %v8076, 30
      %v8078 = vshll.u32 %v8077, 30
      %v8079 = vsub.s32 %v8075, %v8078
      %vm8080 = vcmp.lt.s32.totalorder %v8079, 0
      %v8081 = vsub.s32 0, %v8079
      %v8082 = vsel %vm8080, %v8081, %v8079
      %v8083 = vclz %v8082
      %v8084 = vsub.s32 %v8083, 2
      %vm8085 = vcmp.gt.s32.totalorder 0, %v8084
      %v8086 = vsel %vm8085, 0, %v8084
      %v8087 = vsub.s32 32, %v8086
      %v8088 = vshll.u32 %v8079, %v8086
      %v8089 = vshrl.u32 %v8071, %v8087
      %v8090 = vor.u32 %v8088, %v8089
      %v8091 = vsub.s32 4294967266, %v8086
      %v8092 = vadd.s32 %v8091, 127
      %v8093 = vshll.u32 %v8092, 23
      %v8094 = vor.u32 4788187, %v8093
      %v8095 = vand.u32 2147483647, %v8094
      %v8097 = vcvt.s32.f32 %v8090
      %v8098 = vmul.f32 %v8097, %v8095
      %v8099 = vxor.u32 %v8098, 2147483648
      %v8100 = vsel %vm8017, %v8099, %v8098
      %v8101 = vsub.s32 4, %v8077
      %v8102 = vsel %vm8017, %v8101, %v8077
      %v8103 = vsel %vm8016, %v4789, %v8100
      %v8104 = vsel %vm8016, 0, %v8102
      %v8105 = vcosq.f32.pop %v8103
      %v8106 = vsinq.f32.pop %v8103
      %vm8107 = vweird.f32 %v4789
      %v8108 = vadd.s32 %v8104, 3
      %v8109 = vand.u32 %v8108, 3
      %vm8110 = vcmp.lt.s32.totalorder %v8109, 2
      %vm8111 = vcmp.eq.s32.totalorder %v8109, 0
      %v8112 = vxor.u32 %v8106, 2147483648
      %v8113 = vsel %vm8111, %v8105, %v8112
      %vm8114 = vcmp.eq.s32.totalorder %v8109, 2
      %v8115 = vxor.u32 %v8105, 2147483648
      %v8116 = vsel %vm8114, %v8115, %v8106
      %v8117 = vsel %vm8110, %v8113, %v8116
      %v8118 = vsel %vm8107, nan, %v8117
      %8119 = vxpose.xlu0.b32.start [1/16] %v4894, 128
      %8120 = vxpose.xlu0.b32.cont [2/16] %v5726, 128
      %8121 = vxpose.xlu0.b32.cont [3/16] %v6558, 128
      %8122 = vxpose.xlu0.b32.cont [4/16] %v7390, 128
      %8123 = vxpose.xlu0.b32.cont [5/16] 0.0, 128
      %8124 = vxpose.xlu0.b32.cont [6/16] 0.0, 128
      %8125 = vxpose.xlu0.b32.cont [7/16] 0.0, 128
      %8126 = vxpose.xlu0.b32.cont [8/16] 0.0, 128
      %8127 = vxpose.xlu0.b32.cont [9/16] 0.0, 128
      %8128 = vxpose.xlu0.b32.cont [10/16] 0.0, 128
      %8129 = vxpose.xlu0.b32.cont [11/16] 0.0, 128
      %8130 = vxpose.xlu0.b32.cont [12/16] 0.0, 128
      %8131 = vxpose.xlu0.b32.cont [13/16] 0.0, 128
      %8132 = vxpose.xlu0.b32.cont [14/16] 0.0, 128
      %8133 = vxpose.xlu0.b32.cont [15/16] 0.0, 128
      %8134 = vxpose.xlu0.b32.end [16/16] 0.0, 128
      %v8135 = vpop.trf.xlu0
      %v8136 = vpop.trf.xlu0
      %v8137 = vpop.trf.xlu0
      %v8138 = vpop.trf.xlu0
      %v8139 = vpop.trf.xlu0
      %v8140 = vpop.trf.xlu0
      %v8141 = vpop.trf.xlu0
      %v8142 = vpop.trf.xlu0
      %v8143 = vpop.trf.xlu0
      %v8144 = vpop.trf.xlu0
      %v8145 = vpop.trf.xlu0
      %v8146 = vpop.trf.xlu0
      %v8147 = vpop.trf.xlu0
      %v8148 = vpop.trf.xlu0
      %v8149 = vpop.trf.xlu0
      %v8150 = vpop.trf.xlu0
      %8151 = vxpose.xlu0.b32.start [1/16] %v4998, 128
      %8152 = vxpose.xlu0.b32.cont [2/16] %v5830, 128
      %8153 = vxpose.xlu0.b32.cont [3/16] %v6662, 128
      %8154 = vxpose.xlu0.b32.cont [4/16] %v7494, 128
      %8155 = vxpose.xlu0.b32.cont [5/16] 0.0, 128
      %8156 = vxpose.xlu0.b32.cont [6/16] 0.0, 128
      %8157 = vxpose.xlu0.b32.cont [7/16] 0.0, 128
      %8158 = vxpose.xlu0.b32.cont [8/16] 0.0, 128
      %8159 = vxpose.xlu0.b32.cont [9/16] 0.0, 128
      %8160 = vxpose.xlu0.b32.cont [10/16] 0.0, 128
      %8161 = vxpose.xlu0.b32.cont [11/16] 0.0, 128
      %8162 = vxpose.xlu0.b32.cont [12/16] 0.0, 128
      %8163 = vxpose.xlu0.b32.cont [13/16] 0.0, 128
      %8164 = vxpose.xlu0.b32.cont [14/16] 0.0, 128
      %8165 = vxpose.xlu0.b32.cont [15/16] 0.0, 128
      %8166 = vxpose.xlu0.b32.end [16/16] 0.0, 128
      %v8167 = vpop.trf.xlu0
      %v8168 = vpop.trf.xlu0
      %v8169 = vpop.trf.xlu0
      %v8170 = vpop.trf.xlu0
      %v8171 = vpop.trf.xlu0
      %v8172 = vpop.trf.xlu0
      %v8173 = vpop.trf.xlu0
      %v8174 = vpop.trf.xlu0
      %v8175 = vpop.trf.xlu0
      %v8176 = vpop.trf.xlu0
      %v8177 = vpop.trf.xlu0
      %v8178 = vpop.trf.xlu0
      %v8179 = vpop.trf.xlu0
      %v8180 = vpop.trf.xlu0
      %v8181 = vpop.trf.xlu0
      %v8182 = vpop.trf.xlu0
      %8183 = vxpose.xlu0.b32.start [1/16] %v5102, 128
      %8184 = vxpose.xlu0.b32.cont [2/16] %v5934, 128
      %8185 = vxpose.xlu0.b32.cont [3/16] %v6766, 128
      %8186 = vxpose.xlu0.b32.cont [4/16] %v7598, 128
      %8187 = vxpose.xlu0.b32.cont [5/16] 0.0, 128
      %8188 = vxpose.xlu0.b32.cont [6/16] 0.0, 128
      %8189 = vxpose.xlu0.b32.cont [7/16] 0.0, 128
      %8190 = vxpose.xlu0.b32.cont [8/16] 0.0, 128
      %8191 = vxpose.xlu0.b32.cont [9/16] 0.0, 128
      %8192 = vxpose.xlu0.b32.cont [10/16] 0.0, 128
      %8193 = vxpose.xlu0.b32.cont [11/16] 0.0, 128
      %8194 = vxpose.xlu0.b32.cont [12/16] 0.0, 128
      %8195 = vxpose.xlu0.b32.cont [13/16] 0.0, 128
      %8196 = vxpose.xlu0.b32.cont [14/16] 0.0, 128
      %8197 = vxpose.xlu0.b32.cont [15/16] 0.0, 128
      %8198 = vxpose.xlu0.b32.end [16/16] 0.0, 128
      %v8199 = vpop.trf.xlu0
      %v8200 = vpop.trf.xlu0
      %v8201 = vpop.trf.xlu0
      %v8202 = vpop.trf.xlu0
      %v8203 = vpop.trf.xlu0
      %v8204 = vpop.trf.xlu0
      %v8205 = vpop.trf.xlu0
      %v8206 = vpop.trf.xlu0
      %v8207 = vpop.trf.xlu0
      %v8208 = vpop.trf.xlu0
      %v8209 = vpop.trf.xlu0
      %v8210 = vpop.trf.xlu0
      %v8211 = vpop.trf.xlu0
      %v8212 = vpop.trf.xlu0
      %v8213 = vpop.trf.xlu0
      %v8214 = vpop.trf.xlu0
      %8215 = vxpose.xlu0.b32.start [1/16] %v5206, 128
      %8216 = vxpose.xlu0.b32.cont [2/16] %v6038, 128
      %8217 = vxpose.xlu0.b32.cont [3/16] %v6870, 128
      %8218 = vxpose.xlu0.b32.cont [4/16] %v7702, 128
      %8219 = vxpose.xlu0.b32.cont [5/16] 0.0, 128
      %8220 = vxpose.xlu0.b32.cont [6/16] 0.0, 128
      %8221 = vxpose.xlu0.b32.cont [7/16] 0.0, 128
      %8222 = vxpose.xlu0.b32.cont [8/16] 0.0, 128
      %8223 = vxpose.xlu0.b32.cont [9/16] 0.0, 128
      %8224 = vxpose.xlu0.b32.cont [10/16] 0.0, 128
      %8225 = vxpose.xlu0.b32.cont [11/16] 0.0, 128
      %8226 = vxpose.xlu0.b32.cont [12/16] 0.0, 128
      %8227 = vxpose.xlu0.b32.cont [13/16] 0.0, 128
      %8228 = vxpose.xlu0.b32.cont [14/16] 0.0, 128
      %8229 = vxpose.xlu0.b32.cont [15/16] 0.0, 128
      %8230 = vxpose.xlu0.b32.end [16/16] 0.0, 128
      %v8231 = vpop.trf.xlu0
      %v8232 = vpop.trf.xlu0
      %v8233 = vpop.trf.xlu0
      %v8234 = vpop.trf.xlu0
      %v8235 = vpop.trf.xlu0
      %v8236 = vpop.trf.xlu0
      %v8237 = vpop.trf.xlu0
      %v8238 = vpop.trf.xlu0
      %v8239 = vpop.trf.xlu0
      %v8240 = vpop.trf.xlu0
      %v8241 = vpop.trf.xlu0
      %v8242 = vpop.trf.xlu0
      %v8243 = vpop.trf.xlu0
      %v8244 = vpop.trf.xlu0
      %v8245 = vpop.trf.xlu0
      %v8246 = vpop.trf.xlu0
      %8247 = vxpose.xlu0.b32.start [1/16] %v5310, 128
      %8248 = vxpose.xlu0.b32.cont [2/16] %v6142, 128
      %8249 = vxpose.xlu0.b32.cont [3/16] %v6974, 128
      %8250 = vxpose.xlu0.b32.cont [4/16] %v7806, 128
      %8251 = vxpose.xlu0.b32.cont [5/16] 0.0, 128
      %8252 = vxpose.xlu0.b32.cont [6/16] 0.0, 128
      %8253 = vxpose.xlu0.b32.cont [7/16] 0.0, 128
      %8254 = vxpose.xlu0.b32.cont [8/16] 0.0, 128
      %8255 = vxpose.xlu0.b32.cont [9/16] 0.0, 128
      %8256 = vxpose.xlu0.b32.cont [10/16] 0.0, 128
      %8257 = vxpose.xlu0.b32.cont [11/16] 0.0, 128
      %8258 = vxpose.xlu0.b32.cont [12/16] 0.0, 128
      %8259 = vxpose.xlu0.b32.cont [13/16] 0.0, 128
      %8260 = vxpose.xlu0.b32.cont [14/16] 0.0, 128
      %8261 = vxpose.xlu0.b32.cont [15/16] 0.0, 128
      %8262 = vxpose.xlu0.b32.end [16/16] 0.0, 128
      %v8263 = vpop.trf.xlu0
      %v8264 = vpop.trf.xlu0
      %v8265 = vpop.trf.xlu0
      %v8266 = vpop.trf.xlu0
      %v8267 = vpop.trf.xlu0
      %v8268 = vpop.trf.xlu0
      %v8269 = vpop.trf.xlu0
      %v8270 = vpop.trf.xlu0
      %v8271 = vpop.trf.xlu0
      %v8272 = vpop.trf.xlu0
      %v8273 = vpop.trf.xlu0
      %v8274 = vpop.trf.xlu0
      %v8275 = vpop.trf.xlu0
      %v8276 = vpop.trf.xlu0
      %v8277 = vpop.trf.xlu0
      %v8278 = vpop.trf.xlu0
      %8279 = vxpose.xlu0.b32.start [1/16] %v5414, 128
      %8280 = vxpose.xlu0.b32.cont [2/16] %v6246, 128
      %8281 = vxpose.xlu0.b32.cont [3/16] %v7078, 128
      %8282 = vxpose.xlu0.b32.cont [4/16] %v7910, 128
      %8283 = vxpose.xlu0.b32.cont [5/16] 0.0, 128
      %8284 = vxpose.xlu0.b32.cont [6/16] 0.0, 128
      %8285 = vxpose.xlu0.b32.cont [7/16] 0.0, 128
      %8286 = vxpose.xlu0.b32.cont [8/16] 0.0, 128
      %8287 = vxpose.xlu0.b32.cont [9/16] 0.0, 128
      %8288 = vxpose.xlu0.b32.cont [10/16] 0.0, 128
      %8289 = vxpose.xlu0.b32.cont [11/16] 0.0, 128
      %8290 = vxpose.xlu0.b32.cont [12/16] 0.0, 128
      %8291 = vxpose.xlu0.b32.cont [13/16] 0.0, 128
      %8292 = vxpose.xlu0.b32.cont [14/16] 0.0, 128
      %8293 = vxpose.xlu0.b32.cont [15/16] 0.0, 128
      %8294 = vxpose.xlu0.b32.end [16/16] 0.0, 128
      %v8295 = vpop.trf.xlu0
      %v8296 = vpop.trf.xlu0
      %v8297 = vpop.trf.xlu0
      %v8298 = vpop.trf.xlu0
      %v8299 = vpop.trf.xlu0
      %v8300 = vpop.trf.xlu0
      %v8301 = vpop.trf.xlu0
      %v8302 = vpop.trf.xlu0
      %v8303 = vpop.trf.xlu0
      %v8304 = vpop.trf.xlu0
      %v8305 = vpop.trf.xlu0
      %v8306 = vpop.trf.xlu0
      %v8307 = vpop.trf.xlu0
      %v8308 = vpop.trf.xlu0
      %v8309 = vpop.trf.xlu0
      %v8310 = vpop.trf.xlu0
      %8311 = vxpose.xlu0.b32.start [1/16] %v5518, 128
      %8312 = vxpose.xlu0.b32.cont [2/16] %v6350, 128
      %8313 = vxpose.xlu0.b32.cont [3/16] %v7182, 128
      %8314 = vxpose.xlu0.b32.cont [4/16] %v8014, 128
      %8315 = vxpose.xlu0.b32.cont [5/16] 0.0, 128
      %8316 = vxpose.xlu0.b32.cont [6/16] 0.0, 128
      %8317 = vxpose.xlu0.b32.cont [7/16] 0.0, 128
      %8318 = vxpose.xlu0.b32.cont [8/16] 0.0, 128
      %8319 = vxpose.xlu0.b32.cont [9/16] 0.0, 128
      %8320 = vxpose.xlu0.b32.cont [10/16] 0.0, 128
      %8321 = vxpose.xlu0.b32.cont [11/16] 0.0, 128
      %8322 = vxpose.xlu0.b32.cont [12/16] 0.0, 128
      %8323 = vxpose.xlu0.b32.cont [13/16] 0.0, 128
      %8324 = vxpose.xlu0.b32.cont [14/16] 0.0, 128
      %8325 = vxpose.xlu0.b32.cont [15/16] 0.0, 128
      %8326 = vxpose.xlu0.b32.end [16/16] 0.0, 128
      %v8327 = vpop.trf.xlu0
      %v8328 = vpop.trf.xlu0
      %v8329 = vpop.trf.xlu0
      %v8330 = vpop.trf.xlu0
      %v8331 = vpop.trf.xlu0
      %v8332 = vpop.trf.xlu0
      %v8333 = vpop.trf.xlu0
      %v8334 = vpop.trf.xlu0
      %v8335 = vpop.trf.xlu0
      %v8336 = vpop.trf.xlu0
      %v8337 = vpop.trf.xlu0
      %v8338 = vpop.trf.xlu0
      %v8339 = vpop.trf.xlu0
      %v8340 = vpop.trf.xlu0
      %v8341 = vpop.trf.xlu0
      %v8342 = vpop.trf.xlu0
      %8343 = vxpose.xlu0.b32.start [1/16] %v5622, 128
      %8344 = vxpose.xlu0.b32.cont [2/16] %v6454, 128
      %8345 = vxpose.xlu0.b32.cont [3/16] %v7286, 128
      %8346 = vxpose.xlu0.b32.cont [4/16] %v8118, 128
      %8347 = vxpose.xlu0.b32.cont [5/16] 0.0, 128
      %8348 = vxpose.xlu0.b32.cont [6/16] 0.0, 128
      %8349 = vxpose.xlu0.b32.cont [7/16] 0.0, 128
      %8350 = vxpose.xlu0.b32.cont [8/16] 0.0, 128
      %8351 = vxpose.xlu0.b32.cont [9/16] 0.0, 128
      %8352 = vxpose.xlu0.b32.cont [10/16] 0.0, 128
      %8353 = vxpose.xlu0.b32.cont [11/16] 0.0, 128
      %8354 = vxpose.xlu0.b32.cont [12/16] 0.0, 128
      %8355 = vxpose.xlu0.b32.cont [13/16] 0.0, 128
      %8356 = vxpose.xlu0.b32.cont [14/16] 0.0, 128
      %8357 = vxpose.xlu0.b32.cont [15/16] 0.0, 128
      %8358 = vxpose.xlu0.b32.end [16/16] 0.0, 128
      %v8359 = vpop.trf.xlu0
      %v8360 = vpop.trf.xlu0
      %v8361 = vpop.trf.xlu0
      %v8362 = vpop.trf.xlu0
      %v8363 = vpop.trf.xlu0
      %v8364 = vpop.trf.xlu0
      %v8365 = vpop.trf.xlu0
      %v8366 = vpop.trf.xlu0
      %v8367 = vpop.trf.xlu0
      %v8368 = vpop.trf.xlu0
      %v8369 = vpop.trf.xlu0
      %v8370 = vpop.trf.xlu0
      %v8371 = vpop.trf.xlu0
      %v8372 = vpop.trf.xlu0
      %v8373 = vpop.trf.xlu0
      %v8374 = vpop.trf.xlu0
      %8375 = vst.msk [vmem:[%s228] sm:$0xff] %vm386, %v8135
      %8376 = vst.msk [vmem:[%s228 + $0x8] sm:$0xff] %vm386, %v8136
      %8377 = vst.msk [vmem:[%s228 + $0x10] sm:$0xff] %vm386, %v8137
      %8378 = vst.msk [vmem:[%s228 + $0x18] sm:$0xff] %vm386, %v8138
      %8379 = vst.msk [vmem:[%s228 + $0x20] sm:$0xff] %vm386, %v8139
      %8380 = vst.msk [vmem:[%s228 + $0x28] sm:$0xff] %vm386, %v8140
      %8381 = vst.msk [vmem:[%s228 + $0x30] sm:$0xff] %vm386, %v8141
      %8382 = vst.msk [vmem:[%s228 + $0x38] sm:$0xff] %vm386, %v8142
      %8383 = vst.msk [vmem:[%s228 + $0x40] sm:$0xff] %vm386, %v8143
      %8384 = vst.msk [vmem:[%s228 + $0x48] sm:$0xff] %vm386, %v8144
      %8385 = vst.msk [vmem:[%s228 + $0x50] sm:$0xff] %vm386, %v8145
      %8386 = vst.msk [vmem:[%s228 + $0x58] sm:$0xff] %vm386, %v8146
      %8387 = vst.msk [vmem:[%s228 + $0x60] sm:$0xff] %vm386, %v8147
      %8388 = vst.msk [vmem:[%s228 + $0x68] sm:$0xff] %vm386, %v8148
      %8389 = vst.msk [vmem:[%s228 + $0x70] sm:$0xff] %vm386, %v8149
      %8390 = vst.msk [vmem:[%s228 + $0x78] sm:$0xff] %vm386, %v8150
      %8391 = vst.msk [vmem:[%s228 + $0x80] sm:$0xff] %vm386, %v8167
      %8392 = vst.msk [vmem:[%s228 + $0x88] sm:$0xff] %vm386, %v8168
      %8393 = vst.msk [vmem:[%s228 + $0x90] sm:$0xff] %vm386, %v8169
      %8394 = vst.msk [vmem:[%s228 + $0x98] sm:$0xff] %vm386, %v8170
      %8395 = vst.msk [vmem:[%s228 + $0xa0] sm:$0xff] %vm386, %v8171
      %8396 = vst.msk [vmem:[%s228 + $0xa8] sm:$0xff] %vm386, %v8172
      %8397 = vst.msk [vmem:[%s228 + $0xb0] sm:$0xff] %vm386, %v8173
      %8398 = vst.msk [vmem:[%s228 + $0xb8] sm:$0xff] %vm386, %v8174
      %8399 = vst.msk [vmem:[%s228 + $0xc0] sm:$0xff] %vm386, %v8175
      %8400 = vst.msk [vmem:[%s228 + $0xc8] sm:$0xff] %vm386, %v8176
      %8401 = vst.msk [vmem:[%s228 + $0xd0] sm:$0xff] %vm386, %v8177
      %8402 = vst.msk [vmem:[%s228 + $0xd8] sm:$0xff] %vm386, %v8178
      %8403 = vst.msk [vmem:[%s228 + $0xe0] sm:$0xff] %vm386, %v8179
      %8404 = vst.msk [vmem:[%s228 + $0xe8] sm:$0xff] %vm386, %v8180
      %8405 = vst.msk [vmem:[%s228 + $0xf0] sm:$0xff] %vm386, %v8181
      %8406 = vst.msk [vmem:[%s228 + $0xf8] sm:$0xff] %vm386, %v8182
      %8407 = vst.msk [vmem:[%s228 + $0x100] sm:$0xff] %vm386, %v8199
      %8408 = vst.msk [vmem:[%s228 + $0x108] sm:$0xff] %vm386, %v8200
      %8409 = vst.msk [vmem:[%s228 + $0x110] sm:$0xff] %vm386, %v8201
      %8410 = vst.msk [vmem:[%s228 + $0x118] sm:$0xff] %vm386, %v8202
      %8411 = vst.msk [vmem:[%s228 + $0x120] sm:$0xff] %vm386, %v8203
      %8412 = vst.msk [vmem:[%s228 + $0x128] sm:$0xff] %vm386, %v8204
      %8413 = vst.msk [vmem:[%s228 + $0x130] sm:$0xff] %vm386, %v8205
      %8414 = vst.msk [vmem:[%s228 + $0x138] sm:$0xff] %vm386, %v8206
      %8415 = vst.msk [vmem:[%s228 + $0x140] sm:$0xff] %vm386, %v8207
      %8416 = vst.msk [vmem:[%s228 + $0x148] sm:$0xff] %vm386, %v8208
      %8417 = vst.msk [vmem:[%s228 + $0x150] sm:$0xff] %vm386, %v8209
      %8418 = vst.msk [vmem:[%s228 + $0x158] sm:$0xff] %vm386, %v8210
      %8419 = vst.msk [vmem:[%s228 + $0x160] sm:$0xff] %vm386, %v8211
      %8420 = vst.msk [vmem:[%s228 + $0x168] sm:$0xff] %vm386, %v8212
      %8421 = vst.msk [vmem:[%s228 + $0x170] sm:$0xff] %vm386, %v8213
      %8422 = vst.msk [vmem:[%s228 + $0x178] sm:$0xff] %vm386, %v8214
      %8423 = vst.msk [vmem:[%s228 + $0x180] sm:$0xff] %vm386, %v8231
      %8424 = vst.msk [vmem:[%s228 + $0x188] sm:$0xff] %vm386, %v8232
      %8425 = vst.msk [vmem:[%s228 + $0x190] sm:$0xff] %vm386, %v8233
      %8426 = vst.msk [vmem:[%s228 + $0x198] sm:$0xff] %vm386, %v8234
      %8427 = vst.msk [vmem:[%s228 + $0x1a0] sm:$0xff] %vm386, %v8235
      %8428 = vst.msk [vmem:[%s228 + $0x1a8] sm:$0xff] %vm386, %v8236
      %8429 = vst.msk [vmem:[%s228 + $0x1b0] sm:$0xff] %vm386, %v8237
      %8430 = vst.msk [vmem:[%s228 + $0x1b8] sm:$0xff] %vm386, %v8238
      %8431 = vst.msk [vmem:[%s228 + $0x1c0] sm:$0xff] %vm386, %v8239
      %8432 = vst.msk [vmem:[%s228 + $0x1c8] sm:$0xff] %vm386, %v8240
      %8433 = vst.msk [vmem:[%s228 + $0x1d0] sm:$0xff] %vm386, %v8241
      %8434 = vst.msk [vmem:[%s228 + $0x1d8] sm:$0xff] %vm386, %v8242
      %8435 = vst.msk [vmem:[%s228 + $0x1e0] sm:$0xff] %vm386, %v8243
      %8436 = vst.msk [vmem:[%s228 + $0x1e8] sm:$0xff] %vm386, %v8244
      %8437 = vst.msk [vmem:[%s228 + $0x1f0] sm:$0xff] %vm386, %v8245
      %8438 = vst.msk [vmem:[%s228 + $0x1f8] sm:$0xff] %vm386, %v8246
      %8439 = vst.msk [vmem:[%s228 + $0x200] sm:$0xff] %vm386, %v8263
      %8440 = vst.msk [vmem:[%s228 + $0x208] sm:$0xff] %vm386, %v8264
      %8441 = vst.msk [vmem:[%s228 + $0x210] sm:$0xff] %vm386, %v8265
      %8442 = vst.msk [vmem:[%s228 + $0x218] sm:$0xff] %vm386, %v8266
      %8443 = vst.msk [vmem:[%s228 + $0x220] sm:$0xff] %vm386, %v8267
      %8444 = vst.msk [vmem:[%s228 + $0x228] sm:$0xff] %vm386, %v8268
      %8445 = vst.msk [vmem:[%s228 + $0x230] sm:$0xff] %vm386, %v8269
      %8446 = vst.msk [vmem:[%s228 + $0x238] sm:$0xff] %vm386, %v8270
      %8447 = vst.msk [vmem:[%s228 + $0x240] sm:$0xff] %vm386, %v8271
      %8448 = vst.msk [vmem:[%s228 + $0x248] sm:$0xff] %vm386, %v8272
      %8449 = vst.msk [vmem:[%s228 + $0x250] sm:$0xff] %vm386, %v8273
      %8450 = vst.msk [vmem:[%s228 + $0x258] sm:$0xff] %vm386, %v8274
      %8451 = vst.msk [vmem:[%s228 + $0x260] sm:$0xff] %vm386, %v8275
      %8452 = vst.msk [vmem:[%s228 + $0x268] sm:$0xff] %vm386, %v8276
      %8453 = vst.msk [vmem:[%s228 + $0x270] sm:$0xff] %vm386, %v8277
      %8454 = vst.msk [vmem:[%s228 + $0x278] sm:$0xff] %vm386, %v8278
      %8455 = vst.msk [vmem:[%s228 + $0x280] sm:$0xff] %vm386, %v8295
      %8456 = vst.msk [vmem:[%s228 + $0x288] sm:$0xff] %vm386, %v8296
      %8457 = vst.msk [vmem:[%s228 + $0x290] sm:$0xff] %vm386, %v8297
      %8458 = vst.msk [vmem:[%s228 + $0x298] sm:$0xff] %vm386, %v8298
      %8459 = vst.msk [vmem:[%s228 + $0x2a0] sm:$0xff] %vm386, %v8299
      %8460 = vst.msk [vmem:[%s228 + $0x2a8] sm:$0xff] %vm386, %v8300
      %8461 = vst.msk [vmem:[%s228 + $0x2b0] sm:$0xff] %vm386, %v8301
      %8462 = vst.msk [vmem:[%s228 + $0x2b8] sm:$0xff] %vm386, %v8302
      %8463 = vst.msk [vmem:[%s228 + $0x2c0] sm:$0xff] %vm386, %v8303
      %8464 = vst.msk [vmem:[%s228 + $0x2c8] sm:$0xff] %vm386, %v8304
      %8465 = vst.msk [vmem:[%s228 + $0x2d0] sm:$0xff] %vm386, %v8305
      %8466 = vst.msk [vmem:[%s228 + $0x2d8] sm:$0xff] %vm386, %v8306
      %8467 = vst.msk [vmem:[%s228 + $0x2e0] sm:$0xff] %vm386, %v8307
      %8468 = vst.msk [vmem:[%s228 + $0x2e8] sm:$0xff] %vm386, %v8308
      %8469 = vst.msk [vmem:[%s228 + $0x2f0] sm:$0xff] %vm386, %v8309
      %8470 = vst.msk [vmem:[%s228 + $0x2f8] sm:$0xff] %vm386, %v8310
      %8471 = vst.msk [vmem:[%s228 + $0x300] sm:$0xff] %vm386, %v8327
      %8472 = vst.msk [vmem:[%s228 + $0x308] sm:$0xff] %vm386, %v8328
      %8473 = vst.msk [vmem:[%s228 + $0x310] sm:$0xff] %vm386, %v8329
      %8474 = vst.msk [vmem:[%s228 + $0x318] sm:$0xff] %vm386, %v8330
      %8475 = vst.msk [vmem:[%s228 + $0x320] sm:$0xff] %vm386, %v8331
      %8476 = vst.msk [vmem:[%s228 + $0x328] sm:$0xff] %vm386, %v8332
      %8477 = vst.msk [vmem:[%s228 + $0x330] sm:$0xff] %vm386, %v8333
      %8478 = vst.msk [vmem:[%s228 + $0x338] sm:$0xff] %vm386, %v8334
      %8479 = vst.msk [vmem:[%s228 + $0x340] sm:$0xff] %vm386, %v8335
      %8480 = vst.msk [vmem:[%s228 + $0x348] sm:$0xff] %vm386, %v8336
      %8481 = vst.msk [vmem:[%s228 + $0x350] sm:$0xff] %vm386, %v8337
      %8482 = vst.msk [vmem:[%s228 + $0x358] sm:$0xff] %vm386, %v8338
      %8483 = vst.msk [vmem:[%s228 + $0x360] sm:$0xff] %vm386, %v8339
      %8484 = vst.msk [vmem:[%s228 + $0x368] sm:$0xff] %vm386, %v8340
      %8485 = vst.msk [vmem:[%s228 + $0x370] sm:$0xff] %vm386, %v8341
      %8486 = vst.msk [vmem:[%s228 + $0x378] sm:$0xff] %vm386, %v8342
      %8487 = vst.msk [vmem:[%s228 + $0x380] sm:$0xff] %vm386, %v8359
      %8488 = vst.msk [vmem:[%s228 + $0x388] sm:$0xff] %vm386, %v8360
      %8489 = vst.msk [vmem:[%s228 + $0x390] sm:$0xff] %vm386, %v8361
      %8490 = vst.msk [vmem:[%s228 + $0x398] sm:$0xff] %vm386, %v8362
      %8491 = vst.msk [vmem:[%s228 + $0x3a0] sm:$0xff] %vm386, %v8363
      %8492 = vst.msk [vmem:[%s228 + $0x3a8] sm:$0xff] %vm386, %v8364
      %8493 = vst.msk [vmem:[%s228 + $0x3b0] sm:$0xff] %vm386, %v8365
      %8494 = vst.msk [vmem:[%s228 + $0x3b8] sm:$0xff] %vm386, %v8366
      %8495 = vst.msk [vmem:[%s228 + $0x3c0] sm:$0xff] %vm386, %v8367
      %8496 = vst.msk [vmem:[%s228 + $0x3c8] sm:$0xff] %vm386, %v8368
      %8497 = vst.msk [vmem:[%s228 + $0x3d0] sm:$0xff] %vm386, %v8369
      %8498 = vst.msk [vmem:[%s228 + $0x3d8] sm:$0xff] %vm386, %v8370
      %8499 = vst.msk [vmem:[%s228 + $0x3e0] sm:$0xff] %vm386, %v8371
      %8500 = vst.msk [vmem:[%s228 + $0x3e8] sm:$0xff] %vm386, %v8372
      %8501 = vst.msk [vmem:[%s228 + $0x3f0] sm:$0xff] %vm386, %v8373
      %8502 = vst.msk [vmem:[%s228 + $0x3f8] sm:$0xff] %vm386, %v8374
      %s8503 = smul.u32 128, %s19
      %p8504 = scmp.lt.s32.totalorder %s18, 1
      %s8505 = scalar_select %p8504, %s18, 1
      %p8506 = scmp.lt.s32.totalorder %s8503, 255
      %s8507 = scalar_select %p8506, %s8503, 255
      %s8508 = smul.addr %s8505, 256
      %s8509 = sadd.s32 %s8507, %s8508
      %s8510 = smul.addr %s8509, 8
      %s8511 = scalar_lea.vmem %s3, %s8510
      // Predicated region
      $region33: #{tpu_custom_call.1} parent=31 // pred_check
        %p8512 = pneg %p121
      $region34: #{tpu_custom_call.1} parent=31 // pred_check_branch
        %8514 = sbr.rel (%p8512) target = $region36
      $region35: #{tpu_custom_call.1} parent=31 // pred_region
        %s8515 = smul.u32 128, %s19
      $region36: #{tpu_custom_call.1} parent=31 // pred_fallthru
        _
    $region32: #{tpu_custom_call.1} parent=5 // pred_fallthru
      _
    %p8516 = scmp.le.s32.totalorder 2, %s9
    // Predicated region
    $region37: #{tpu_custom_call.1} parent=5 // pred_check
      %p8517 = pneg %p8516
    $region38: #{tpu_custom_call.1} parent=5 // pred_check_branch
      %8519 = sbr.rel (%p8517) target = $region40
    $region39: #{tpu_custom_call.1} parent=5 // pred_region
      %s8520 = ssub.s32 %s9, 2
      // Predicated region
      $region41: #{tpu_custom_call.1} parent=39 // pred_check
        %p8521 = pneg %p127
      $region42: #{tpu_custom_call.1} parent=39 // pred_check_branch
        %8523 = sbr.rel (%p8521) target = $region44
      $region43: #{tpu_custom_call.1} parent=39 // pred_region
        %s8524 = smul.u32 128, %s21
        %p8525 = scmp.lt.s32.totalorder %s20, 1
        %s8526 = scalar_select %p8525, %s20, 1
        %p8527 = scmp.lt.s32.totalorder %s8524, 255
        %s8528 = scalar_select %p8527, %s8524, 255
        %s8529 = smul.addr %s8526, 256
        %s8530 = sadd.s32 %s8528, %s8529
        %s8531 = smul.addr %s8530, 8
        %s8532 = scalar_lea.vmem %s3, %s8531
      $region44: #{tpu_custom_call.1} parent=39 // pred_fallthru
        _
    $region40: #{tpu_custom_call.1} parent=5 // pred_fallthru
      _
  $region6: #{tpu_custom_call.1} parent=0 // loop_footer
    %s13 = sadd.s32 1, %s9
  $region7: #{tpu_custom_call.1} parent=0 // loop_footer_branch
    %8 = sbr.rel target = $region3
  $region8: #{tpu_custom_call.1} parent=0 // loop_exit
    _

</llo_original>
